<compile_context>
chip_gen: v7x
topology: tpu7x:2x2x1
jax: 0.10.0
libtpu: 0.0.40
codegen_flags: <defaults>
</compile_context>

<pallas_src>
import functools

import jax
import jax.numpy as jnp
import numpy as np
from jax.experimental import pallas as pl
from jax.experimental.pallas import tpu as pltpu

# Safe on v7x (64 MiB physical) and raises the v5e/v6e scoped defaults.
_VMEM_LIMIT = 48 * 1024 * 1024


# ---------------------------------------------------------------------------
# Kernel 1: fused input projection for both directions
#   gates_d = x @ W_ih_d^T + (b_ih_d + b_hh_d),  d in {fwd, bwd}
#   bf16 operands, f32 MXU accumulation, bf16 gate storage.
# ---------------------------------------------------------------------------
def _proj_kernel(x_ref, w_ref, b_ref, of_ref, ob_ref):
    x = x_ref[...]                                            # (tm, H) bf16
    gf = jnp.dot(x, w_ref[0], preferred_element_type=jnp.float32) + b_ref[0]
    gb = jnp.dot(x, w_ref[1], preferred_element_type=jnp.float32) + b_ref[1]
    of_ref[...] = gf.astype(of_ref.dtype)
    ob_ref[...] = gb.astype(ob_ref.dtype)


def input_projection(x, w, b, *, tile_m=1024):
    """x: (N, H) bf16, w: (2, H, 4H) bf16, b: (2, 1, 4H) f32
    -> (fwd gates, bwd gates), each (N, 4H) bf16."""
    N, H = x.shape
    G4 = w.shape[2]
    tm = min(tile_m, N)
    n_pad = pl.cdiv(N, tm) * tm
    if n_pad != N:
        x = jnp.pad(x, ((0, n_pad - N), (0, 0)))

    out_f, out_b = pl.pallas_call(
        _proj_kernel,
        out_shape=(
            jax.ShapeDtypeStruct((n_pad, G4), jnp.bfloat16),
            jax.ShapeDtypeStruct((n_pad, G4), jnp.bfloat16),
        ),
        grid=(n_pad // tm,),
        in_specs=[
            pl.BlockSpec((tm, H), lambda i: (i, 0)),          # x row tile
            pl.BlockSpec((2, H, G4), lambda i: (0, 0, 0)),    # W_ih^T both dirs
            pl.BlockSpec((2, 1, G4), lambda i: (0, 0, 0)),    # folded biases
        ],
        out_specs=(
            pl.BlockSpec((tm, G4), lambda i: (i, 0)),
            pl.BlockSpec((tm, G4), lambda i: (i, 0)),
        ),
        compiler_params=pltpu.CompilerParams(
            dimension_semantics=("parallel",),
            vmem_limit_bytes=_VMEM_LIMIT),
    )(x, w, b)
    if n_pad != N:
        out_f, out_b = out_f[:N], out_b[:N]
    return out_f, out_b


# ---------------------------------------------------------------------------
# Kernel 2: fused bidirectional LSTM over time-chunks
#   grid = (T_pad // Tc,); inner unrolled loop over Tc timesteps.
#   Forward walks chunks left->right, backward walks right->left (via its own
#   index_map), both in the same grid step, state in persistent VMEM scratch.
# ---------------------------------------------------------------------------
def _bilstm_kernel(len_ref, xpf_ref, xpb_ref, whh_ref,
                   of_ref, ob_ref, hN_ref, cN_ref,
                   h_scr, c_scr, *, Tc, T_total):
    c = pl.program_id(0)
    nc = pl.num_programs(0)

    @pl.when(c == 0)
    def _init():
        h_scr[...] = jnp.zeros_like(h_scr)
        c_scr[...] = jnp.zeros_like(c_scr)

    B = h_scr.shape[1]
    H = h_scr.shape[2]
    lengths = len_ref[...]                         # (B, 1) int32, loaded once

    def lstm_cell(xp_t, h_prev, c_prev, whh):
        # xp_t (bf16) already contains x @ W_ih^T + b_ih + b_hh.
        # bf16 x bf16 -> f32 accumulate: native MXU path (no f32 emulation).
        g = xp_t.astype(jnp.float32) + jnp.dot(
            h_prev.astype(jnp.bfloat16), whh,
            preferred_element_type=jnp.float32)
        i_g = jax.nn.sigmoid(g[:, 0 * H:1 * H])
        f_g = jax.nn.sigmoid(g[:, 1 * H:2 * H])
        g_g = jnp.tanh(g[:, 2 * H:3 * H])
        o_g = jax.nn.sigmoid(g[:, 3 * H:4 * H])
        c_new = f_g * c_prev + i_g * g_g
        h_new = o_g * jnp.tanh(c_new)
        return h_new, c_new

    def step(tt, carry):
        t_f = c * Tc + tt                          # forward global time
        t_b = T_total - 1 - t_f                    # backward global time
        # One compare + one explicit lane broadcast per direction, reused by
        # all three selects (JAX does not CSE broadcast_in_dim in the loop).
        mask_f = jnp.broadcast_to(t_f < lengths, (B, H))
        mask_b = jnp.broadcast_to(t_b < lengths, (B, H))

        # forward direction
        h_f, c_f = lstm_cell(xpf_ref[tt], h_scr[0], c_scr[0], whh_ref[0])
        h_scr[0] = jnp.where(mask_f, h_f, h_scr[0])
        c_scr[0] = jnp.where(mask_f, c_f, c_scr[0])
        of_ref[tt] = jnp.where(mask_f, h_f, 0.0)

        # backward direction (local index inside this chunk is Tc-1-tt)
        h_b, c_b = lstm_cell(xpb_ref[Tc - 1 - tt], h_scr[1], c_scr[1],
                             whh_ref[1])
        h_scr[1] = jnp.where(mask_b, h_b, h_scr[1])
        c_scr[1] = jnp.where(mask_b, c_b, c_scr[1])
        ob_ref[Tc - 1 - tt] = jnp.where(mask_b, h_b, 0.0)
        return carry

    # vreg-pressure guard: full unroll only when the live state is small.
    unroll = Tc if (B <= 32 and H <= 256) else min(Tc, 4)
    jax.lax.fori_loop(0, Tc, step, 0, unroll=unroll)

    @pl.when(c == nc - 1)
    def _finalize():
        hN_ref[...] = h_scr[...]
        cN_ref[...] = c_scr[...]


def bidirectional_lstm(xp_f, xp_b, lengths, w_hh_t, *, time_chunk):
    """xp_f/xp_b: (T_pad, B, 4H) bf16 pre-projected gates (biases folded in),
    lengths: (B, 1) int32, w_hh_t: (2, H, 4H) bf16."""
    T_pad, B, G = xp_f.shape
    H = G // 4
    Tc = time_chunk
    assert T_pad % Tc == 0
    nc = T_pad // Tc

    fwd_idx = lambda c: (c, 0, 0)
    bwd_idx = lambda c, nc=nc: (nc - 1 - c, 0, 0)

    return pl.pallas_call(
        functools.partial(_bilstm_kernel, Tc=Tc, T_total=T_pad),
        out_shape=(
            jax.ShapeDtypeStruct((T_pad, B, H), jnp.float32),  # fwd outputs
            jax.ShapeDtypeStruct((T_pad, B, H), jnp.float32),  # bwd outputs
            jax.ShapeDtypeStruct((2, B, H), jnp.float32),      # h_n
            jax.ShapeDtypeStruct((2, B, H), jnp.float32),      # c_n
        ),
        grid=(nc,),
        in_specs=[
            pl.BlockSpec((B, 1), lambda c: (0, 0)),        # lengths
            pl.BlockSpec((Tc, B, G), fwd_idx),             # gates fwd chunk
            pl.BlockSpec((Tc, B, G), bwd_idx),             # gates bwd chunk
            pl.BlockSpec((2, H, G), lambda c: (0, 0, 0)),  # W_hh^T (both dirs)
        ],
        out_specs=(
            pl.BlockSpec((Tc, B, H), fwd_idx),
            pl.BlockSpec((Tc, B, H), bwd_idx),
            pl.BlockSpec((2, B, H), lambda c: (0, 0, 0)),  # constant: flushed
            pl.BlockSpec((2, B, H), lambda c: (0, 0, 0)),  # only at grid end
        ),
        scratch_shapes=[
            pltpu.VMEM((2, B, H), jnp.float32),  # h state, both directions
            pltpu.VMEM((2, B, H), jnp.float32),  # c state, both directions
        ],
        compiler_params=pltpu.CompilerParams(
            dimension_semantics=("arbitrary",),
            vmem_limit_bytes=_VMEM_LIMIT),
    )(lengths, xp_f, xp_b, w_hh_t)


# ---------------------------------------------------------------------------
# EncoderRNN forward (glue in plain JAX, hot path in Pallas)
# ---------------------------------------------------------------------------
def encoder_rnn_forward(params, input_seq, input_lengths, *, time_chunk=16):
    T, B = input_seq.shape
    emb_table = params["embedding"]
    H = emb_table.shape[1]

    lengths = input_lengths.reshape(B, 1).astype(jnp.int32)

    # pad T to a multiple of the chunk size on the int32 ids (cheap) instead
    # of padding the f32 embedded tensor; padded steps are masked in-kernel.
    Tc = min(time_chunk, T)
    T_pad = pl.cdiv(T, Tc) * Tc
    ids = input_seq
    if T_pad != T:
        ids = jnp.pad(ids, ((0, T_pad - T), (0, 0)))

    # embedding lookup (gather) stays XLA glue; bf16 table halves the
    # materialized embedded tensor and feeds the MXU natively.
    x = emb_table.astype(jnp.bfloat16)[ids].reshape(T_pad * B, H)

    # per-direction W_ih^T stacked; (b_ih + b_hh) folded into the projection
    # bias so the recurrent kernel does no bias add.
    w_ih_t = jnp.stack([params["w_ih"][0].T, params["w_ih"][1].T],
                       axis=0).astype(jnp.bfloat16)              # (2, H, 4H)
    bias = jnp.stack([params["b_ih"][0] + params["b_hh"][0],
                      params["b_ih"][1] + params["b_hh"][1]],
                     axis=0)[:, None, :]                         # (2, 1, 4H)

    xp_f, xp_b = input_projection(x, w_ih_t, bias)
    xp_f = xp_f.reshape(T_pad, B, 4 * H)
    xp_b = xp_b.reshape(T_pad, B, 4 * H)

    w_hh_t = jnp.stack([params["w_hh"][0].T, params["w_hh"][1].T],
                       axis=0).astype(jnp.bfloat16)              # (2, H, 4H)

    out_f, out_b, h_n, c_n = bidirectional_lstm(
        xp_f, xp_b, lengths, w_hh_t, time_chunk=Tc)

    # outputs[:, :, :H] + outputs[:, :, H:] (XLA fuses the add with the [:T]
    # slice into a single pass over out_f / out_b).
    outputs = (out_f + out_b)[:T]
    return outputs, (h_n, c_n)


# ---------------------------------------------------------------------------
# Pure-JAX f32 reference (for sanity check of the Pallas lowering)
# ---------------------------------------------------------------------------
def _ref_direction(xp, lengths, w_hh, b_hh, reverse):
    T, B, G = xp.shape
    H = G // 4
    ts = jnp.arange(T)
    if reverse:
        ts = ts[::-1]

    def step(carry, t):
        h, c = carry
        g = xp[t] + h @ w_hh.T + b_hh
        i = jax.nn.sigmoid(g[:, :H])
        f = jax.nn.sigmoid(g[:, H:2 * H])
        gg = jnp.tanh(g[:, 2 * H:3 * H])
        o = jax.nn.sigmoid(g[:, 3 * H:])
        c_new = f * c + i * gg
        h_new = o * jnp.tanh(c_new)
        valid = (t < lengths)[:, None]
        h = jnp.where(valid, h_new, h)
        c = jnp.where(valid, c_new, c)
        out_t = jnp.where(valid, h_new, 0.0)
        return (h, c), (t, out_t)

    init = (jnp.zeros((B, H), jnp.float32), jnp.zeros((B, H), jnp.float32))
    (h, c), (tidx, outs) = jax.lax.scan(step, init, ts)
    out = jnp.zeros((T, B, H), jnp.float32).at[tidx].set(outs)
    return out, h, c


def _ref_forward(params, input_seq, input_lengths):
    T, B = input_seq.shape
    H = params["embedding"].shape[1]
    emb = params["embedding"][input_seq]
    outs, hs, cs = [], [], []
    for d, rev in enumerate((False, True)):
        xp = (emb @ params["w_ih"][d].T + params["b_ih"][d]).reshape(T, B, 4 * H)
        o, h, c = _ref_direction(xp, input_lengths, params["w_hh"][d],
                                 params["b_hh"][d], rev)
        outs.append(o); hs.append(h); cs.append(c)
    return outs[0] + outs[1], (jnp.stack(hs), jnp.stack(cs))


# ---------------------------------------------------------------------------
if __name__ == "__main__":
    T, B, H, V = 8, 8, 128, 50   # seq len, batch, hidden_size, vocab

    key = jax.random.PRNGKey(0)
    k_emb, k_ih, k_hh, k_bih, k_bhh, k_seq = jax.random.split(key, 6)

    stdv = 1.0 / np.sqrt(H)
    params = {
        "embedding": jax.random.normal(k_emb, (V, H), jnp.float32),
        # per-direction LSTM params (PyTorch gate order: i, f, g, o)
        "w_ih": jax.random.uniform(k_ih, (2, 4 * H, H), jnp.float32, -stdv, stdv),
        "w_hh": jax.random.uniform(k_hh, (2, 4 * H, H), jnp.float32, -stdv, stdv),
        "b_ih": jax.random.uniform(k_bih, (2, 4 * H), jnp.float32, -stdv, stdv),
        "b_hh": jax.random.uniform(k_bhh, (2, 4 * H), jnp.float32, -stdv, stdv),
    }

    input_seq = jax.random.randint(k_seq, (T, B), 0, V, jnp.int32)
    # sorted descending, max length == T (pack_padded_sequence convention)
    input_lengths = jnp.array([8, 7, 6, 5, 4, 3, 2, 1], jnp.int32)

    fwd = jax.jit(encoder_rnn_forward)
    outputs, (h_n, c_n) = fwd(params, input_seq, input_lengths)
    jax.block_until_ready((outputs, h_n, c_n))

    assert outputs.shape == (T, B, H)
    assert h_n.shape == (2, B, H) and c_n.shape == (2, B, H)

    # Tolerance accounts for bf16 MXU operands + bf16 gate storage (per perf
    # review) vs. the f32 reference; accumulation and cell state stay f32.
    ref_out, (ref_h, ref_c) = _ref_forward(params, input_seq, input_lengths)
    np.testing.assert_allclose(np.asarray(outputs), np.asarray(ref_out),
                               rtol=2e-2, atol=2e-2)
    np.testing.assert_allclose(np.asarray(h_n), np.asarray(ref_h),
                               rtol=2e-2, atol=2e-2)
    np.testing.assert_allclose(np.asarray(c_n), np.asarray(ref_c),
                               rtol=2e-2, atol=2e-2)

    print("KERNEL_OK")
</pallas_src>

<mosaic_0001>
module attributes {stable_mosaic.version = 11 : i64} {
  func.func @_proj_kernel(%arg0: i32, %arg1: memref<64x128xbf16, #tpu.memory_space<vmem>>, %arg2: memref<2x128x512xbf16, #tpu.memory_space<vmem>>, %arg3: memref<2x1x512xf32, #tpu.memory_space<vmem>>, %arg4: memref<64x512xbf16, #tpu.memory_space<vmem>>, %arg5: memref<64x512xbf16, #tpu.memory_space<vmem>>) attributes {dimension_semantics = [#tpu.dimension_semantics<parallel>], iteration_bounds = array<i64: 1>, scalar_prefetch = 0 : i64, scratch_operands = 0 : i64, tpu.core_type = #tpu.core_type<tc>, window_params = [{transform_indices = @transform_0, window_bounds = array<i64: 64, 128>}, {pipeline_mode = #tpu.pipeline_mode<synchronous>, transform_indices = @transform_1, window_bounds = array<i64: 2, 128, 512>}, {pipeline_mode = #tpu.pipeline_mode<synchronous>, transform_indices = @transform_2, window_bounds = array<i64: 2, 1, 512>}, {transform_indices = @transform_3, window_bounds = array<i64: 64, 512>}, {transform_indices = @transform_4, window_bounds = array<i64: 64, 512>}]} {
    %c0 = arith.constant 0 : index
    %c0_0 = arith.constant 0 : index
    %0 = vector.load %arg1[%c0, %c0_0] : memref<64x128xbf16, #tpu.memory_space<vmem>>, vector<64x128xbf16>
    %c0_1 = arith.constant 0 : index
    %c0_2 = arith.constant 0 : index
    %c0_3 = arith.constant 0 : index
    %1 = vector.load %arg2[%c0_1, %c0_2, %c0_3] : memref<2x128x512xbf16, #tpu.memory_space<vmem>>, vector<1x128x512xbf16>
    %2 = vector.shape_cast %1 : vector<1x128x512xbf16> to vector<128x512xbf16>
    %cst = arith.constant dense<0.000000e+00> : vector<64x512xf32>
    %3 = tpu.matmul %0, %2, %cst {dimension_numbers = #tpu.dot_dimension_numbers<[1], [0], [0], [1], [0, 0, 1, 1], [], []>} : vector<64x128xbf16>, vector<128x512xbf16>, vector<64x512xf32> -> vector<64x512xf32>
    %c0_4 = arith.constant 0 : index
    %c0_5 = arith.constant 0 : index
    %c0_6 = arith.constant 0 : index
    %4 = vector.load %arg3[%c0_4, %c0_5, %c0_6] : memref<2x1x512xf32, #tpu.memory_space<vmem>>, vector<1x1x512xf32>
    %5 = vector.shape_cast %4 : vector<1x1x512xf32> to vector<1x512xf32>
    %6 = vector.broadcast %5 : vector<1x512xf32> to vector<64x512xf32>
    %7 = arith.addf %3, %6 : vector<64x512xf32>
    %c1 = arith.constant 1 : index
    %c0_7 = arith.constant 0 : index
    %c0_8 = arith.constant 0 : index
    %8 = vector.load %arg2[%c1, %c0_7, %c0_8] : memref<2x128x512xbf16, #tpu.memory_space<vmem>>, vector<1x128x512xbf16>
    %9 = vector.shape_cast %8 : vector<1x128x512xbf16> to vector<128x512xbf16>
    %cst_9 = arith.constant dense<0.000000e+00> : vector<64x512xf32>
    %10 = tpu.matmul %0, %9, %cst_9 {dimension_numbers = #tpu.dot_dimension_numbers<[1], [0], [0], [1], [0, 0, 1, 1], [], []>} : vector<64x128xbf16>, vector<128x512xbf16>, vector<64x512xf32> -> vector<64x512xf32>
    %c1_10 = arith.constant 1 : index
    %c0_11 = arith.constant 0 : index
    %c0_12 = arith.constant 0 : index
    %11 = vector.load %arg3[%c1_10, %c0_11, %c0_12] : memref<2x1x512xf32, #tpu.memory_space<vmem>>, vector<1x1x512xf32>
    %12 = vector.shape_cast %11 : vector<1x1x512xf32> to vector<1x512xf32>
    %13 = vector.broadcast %12 : vector<1x512xf32> to vector<64x512xf32>
    %14 = arith.addf %10, %13 : vector<64x512xf32>
    %15 = arith.truncf %7 : vector<64x512xf32> to vector<64x512xbf16>
    %c0_13 = arith.constant 0 : index
    %c0_14 = arith.constant 0 : index
    %16 = vector.load %arg4[%c0_13, %c0_14] : memref<64x512xbf16, #tpu.memory_space<vmem>>, vector<64x512xbf16>
    tpu.vector_store %arg4[%c0_13, %c0_14], %15 {strides = array<i32>} : memref<64x512xbf16, #tpu.memory_space<vmem>>, vector<64x512xbf16>,
    %17 = arith.truncf %14 : vector<64x512xf32> to vector<64x512xbf16>
    %c0_15 = arith.constant 0 : index
    %c0_16 = arith.constant 0 : index
    %18 = vector.load %arg5[%c0_15, %c0_16] : memref<64x512xbf16, #tpu.memory_space<vmem>>, vector<64x512xbf16>
    tpu.vector_store %arg5[%c0_15, %c0_16], %17 {strides = array<i32>} : memref<64x512xbf16, #tpu.memory_space<vmem>>, vector<64x512xbf16>,
    return
  }
  func.func @transform_0(%arg0: i32) -> (i32, i32) {
    %c0_i32 = arith.constant 0 : i32
    %c0_i32_0 = arith.constant 0 : i32
    return %arg0, %c0_i32 : i32, i32
  }
  func.func @transform_1(%arg0: i32) -> (i32, i32, i32) {
    %c0_i32 = arith.constant 0 : i32
    %c0_i32_0 = arith.constant 0 : i32
    %c0_i32_1 = arith.constant 0 : i32
    %c0_i32_2 = arith.constant 0 : i32
    return %c0_i32, %c0_i32_0, %c0_i32_1 : i32, i32, i32
  }
  func.func @transform_2(%arg0: i32) -> (i32, i32, i32) {
    %c0_i32 = arith.constant 0 : i32
    %c0_i32_0 = arith.constant 0 : i32
    %c0_i32_1 = arith.constant 0 : i32
    %c0_i32_2 = arith.constant 0 : i32
    return %c0_i32, %c0_i32_0, %c0_i32_1 : i32, i32, i32
  }
  func.func @transform_3(%arg0: i32) -> (i32, i32) {
    %c0_i32 = arith.constant 0 : i32
    %c0_i32_0 = arith.constant 0 : i32
    return %arg0, %c0_i32 : i32, i32
  }
  func.func @transform_4(%arg0: i32) -> (i32, i32) {
    %c0_i32 = arith.constant 0 : i32
    %c0_i32_0 = arith.constant 0 : i32
    return %arg0, %c0_i32 : i32, i32
  }
}

module attributes {stable_mosaic.version = 11 : i64} {
  func.func @_bilstm_kernel(%arg0: i32, %arg1: memref<8x1xi32, #tpu.memory_space<vmem>>, %arg2: memref<8x8x512xbf16, #tpu.memory_space<vmem>>, %arg3: memref<8x8x512xbf16, #tpu.memory_space<vmem>>, %arg4: memref<2x128x512xbf16, #tpu.memory_space<vmem>>, %arg5: memref<8x8x128xf32, #tpu.memory_space<vmem>>, %arg6: memref<8x8x128xf32, #tpu.memory_space<vmem>>, %arg7: memref<2x8x128xf32, #tpu.memory_space<vmem>>, %arg8: memref<2x8x128xf32, #tpu.memory_space<vmem>>, %arg9: memref<2x8x128xf32, #tpu.memory_space<vmem>>, %arg10: memref<2x8x128xf32, #tpu.memory_space<vmem>>) attributes {dimension_semantics = [#tpu.dimension_semantics<arbitrary>], iteration_bounds = array<i64: 1>, scalar_prefetch = 0 : i64, scratch_operands = 2 : i64, tpu.core_type = #tpu.core_type<tc>, window_params = [{pipeline_mode = #tpu.pipeline_mode<synchronous>, transform_indices = @transform_0, window_bounds = array<i64: 8, 1>}, {transform_indices = @transform_1, window_bounds = array<i64: 8, 8, 512>}, {transform_indices = @transform_2, window_bounds = array<i64: 8, 8, 512>}, {pipeline_mode = #tpu.pipeline_mode<synchronous>, transform_indices = @transform_3, window_bounds = array<i64: 2, 128, 512>}, {transform_indices = @transform_4, window_bounds = array<i64: 8, 8, 128>}, {transform_indices = @transform_5, window_bounds = array<i64: 8, 8, 128>}, {pipeline_mode = #tpu.pipeline_mode<synchronous>, transform_indices = @transform_6, window_bounds = array<i64: 2, 8, 128>}, {pipeline_mode = #tpu.pipeline_mode<synchronous>, transform_indices = @transform_7, window_bounds = array<i64: 2, 8, 128>}]} {
    %c0_i32 = arith.constant 0 : i32
    %0 = arith.cmpi eq, %arg0, %c0_i32 : i32
    %1 = arith.extui %0 : i1 to i32
    %c0_i32_0 = arith.constant 0 : i32
    %2 = arith.cmpi ne, %1, %c0_i32_0 : i32
    scf.if %2 {
      %cst_515 = arith.constant 0.000000e+00 : f32
      %1007 = vector.broadcast %cst_515 : f32 to vector<2x8x128xf32>
      %c0_516 = arith.constant 0 : index
      %c0_517 = arith.constant 0 : index
      %c0_518 = arith.constant 0 : index
      %1008 = vector.load %arg9[%c0_516, %c0_517, %c0_518] : memref<2x8x128xf32, #tpu.memory_space<vmem>>, vector<2x8x128xf32>
      tpu.vector_store %arg9[%c0_516, %c0_517, %c0_518], %1007 {strides = array<i32>} : memref<2x8x128xf32, #tpu.memory_space<vmem>>, vector<2x8x128xf32>,
      %cst_519 = arith.constant 0.000000e+00 : f32
      %1009 = vector.broadcast %cst_519 : f32 to vector<2x8x128xf32>
      %c0_520 = arith.constant 0 : index
      %c0_521 = arith.constant 0 : index
      %c0_522 = arith.constant 0 : index
      %1010 = vector.load %arg10[%c0_520, %c0_521, %c0_522] : memref<2x8x128xf32, #tpu.memory_space<vmem>>, vector<2x8x128xf32>
      tpu.vector_store %arg10[%c0_520, %c0_521, %c0_522], %1009 {strides = array<i32>} : memref<2x8x128xf32, #tpu.memory_space<vmem>>, vector<2x8x128xf32>,
    } else {
    }
    %c0 = arith.constant 0 : index
    %c0_1 = arith.constant 0 : index
    %3 = vector.load %arg1[%c0, %c0_1] : memref<8x1xi32, #tpu.memory_space<vmem>>, vector<8x1xi32>
    %c0_i32_2 = arith.constant 0 : i32
    %c8_i32 = arith.constant 8 : i32
    %4 = arith.muli %arg0, %c8_i32 : i32
    %5 = arith.addi %4, %c0_i32_2 : i32
    %c7_i32 = arith.constant 7 : i32
    %6 = arith.subi %c7_i32, %5 : i32
    %7 = vector.broadcast %5 : i32 to vector<8x1xi32>
    %8 = arith.cmpi slt, %7, %3 : vector<8x1xi32>
    %9 = vector.shape_cast %8 : vector<8x1xi1> to vector<8x1xi1>
    %10 = vector.broadcast %9 : vector<8x1xi1> to vector<8x128xi1>
    %11 = vector.broadcast %6 : i32 to vector<8x1xi32>
    %12 = arith.cmpi slt, %11, %3 : vector<8x1xi32>
    %13 = vector.shape_cast %12 : vector<8x1xi1> to vector<8x1xi1>
    %14 = vector.broadcast %13 : vector<8x1xi1> to vector<8x128xi1>
    %15 = arith.index_cast %c0_i32_2 : i32 to index
    %c0_3 = arith.constant 0 : index
    %c0_4 = arith.constant 0 : index
    %16 = vector.load %arg2[%15, %c0_3, %c0_4] : memref<8x8x512xbf16, #tpu.memory_space<vmem>>, vector<1x8x512xbf16>
    %17 = vector.shape_cast %16 : vector<1x8x512xbf16> to vector<8x512xbf16>
    %c0_5 = arith.constant 0 : index
    %c0_6 = arith.constant 0 : index
    %c0_7 = arith.constant 0 : index
    %18 = vector.load %arg9[%c0_5, %c0_6, %c0_7] : memref<2x8x128xf32, #tpu.memory_space<vmem>>, vector<1x8x128xf32>
    %19 = vector.shape_cast %18 : vector<1x8x128xf32> to vector<8x128xf32>
    %c0_8 = arith.constant 0 : index
    %c0_9 = arith.constant 0 : index
    %c0_10 = arith.constant 0 : index
    %20 = vector.load %arg10[%c0_8, %c0_9, %c0_10] : memref<2x8x128xf32, #tpu.memory_space<vmem>>, vector<1x8x128xf32>
    %21 = vector.shape_cast %20 : vector<1x8x128xf32> to vector<8x128xf32>
    %c0_11 = arith.constant 0 : index
    %c0_12 = arith.constant 0 : index
    %c0_13 = arith.constant 0 : index
    %22 = vector.load %arg4[%c0_11, %c0_12, %c0_13] : memref<2x128x512xbf16, #tpu.memory_space<vmem>>, vector<1x128x512xbf16>
    %23 = vector.shape_cast %22 : vector<1x128x512xbf16> to vector<128x512xbf16>
    %24 = arith.extf %17 : vector<8x512xbf16> to vector<8x512xf32>
    %25 = arith.truncf %19 : vector<8x128xf32> to vector<8x128xbf16>
    %cst = arith.constant dense<0.000000e+00> : vector<8x512xf32>
    %26 = tpu.matmul %25, %23, %cst {dimension_numbers = #tpu.dot_dimension_numbers<[1], [0], [0], [1], [0, 0, 1, 1], [], []>} : vector<8x128xbf16>, vector<128x512xbf16>, vector<8x512xf32> -> vector<8x512xf32>
    %27 = arith.addf %24, %26 : vector<8x512xf32>
    %28 = vector.extract_strided_slice %27 {offsets = [0, 0], sizes = [8, 128], strides = [1, 1]} : vector<8x512xf32> to vector<8x128xf32>
    %29 = arith.negf %28 : vector<8x128xf32>
    %30 = math.exp %29 : vector<8x128xf32>
    %cst_14 = arith.constant 1.000000e+00 : f32
    %31 = vector.broadcast %cst_14 : f32 to vector<8x128xf32>
    %32 = arith.addf %31, %30 : vector<8x128xf32>
    %33 = arith.divf %31, %32 : vector<8x128xf32>
    %34 = vector.extract_strided_slice %27 {offsets = [0, 128], sizes = [8, 128], strides = [1, 1]} : vector<8x512xf32> to vector<8x128xf32>
    %35 = arith.negf %34 : vector<8x128xf32>
    %36 = math.exp %35 : vector<8x128xf32>
    %cst_15 = arith.constant 1.000000e+00 : f32
    %37 = vector.broadcast %cst_15 : f32 to vector<8x128xf32>
    %38 = arith.addf %37, %36 : vector<8x128xf32>
    %39 = arith.divf %37, %38 : vector<8x128xf32>
    %40 = vector.extract_strided_slice %27 {offsets = [0, 256], sizes = [8, 128], strides = [1, 1]} : vector<8x512xf32> to vector<8x128xf32>
    %41 = math.tanh %40 : vector<8x128xf32>
    %42 = vector.extract_strided_slice %27 {offsets = [0, 384], sizes = [8, 128], strides = [1, 1]} : vector<8x512xf32> to vector<8x128xf32>
    %43 = arith.negf %42 : vector<8x128xf32>
    %44 = math.exp %43 : vector<8x128xf32>
    %cst_16 = arith.constant 1.000000e+00 : f32
    %45 = vector.broadcast %cst_16 : f32 to vector<8x128xf32>
    %46 = arith.addf %45, %44 : vector<8x128xf32>
    %47 = arith.divf %45, %46 : vector<8x128xf32>
    %48 = arith.mulf %39, %21 : vector<8x128xf32>
    %49 = arith.mulf %33, %41 : vector<8x128xf32>
    %50 = arith.addf %48, %49 : vector<8x128xf32>
    %51 = math.tanh %50 : vector<8x128xf32>
    %52 = arith.mulf %47, %51 : vector<8x128xf32>
    %c0_17 = arith.constant 0 : index
    %c0_18 = arith.constant 0 : index
    %c0_19 = arith.constant 0 : index
    %53 = vector.load %arg9[%c0_17, %c0_18, %c0_19] : memref<2x8x128xf32, #tpu.memory_space<vmem>>, vector<1x8x128xf32>
    %54 = vector.shape_cast %53 : vector<1x8x128xf32> to vector<8x128xf32>
    %55 = arith.select %10, %52, %54 : vector<8x128xi1>, vector<8x128xf32>
    %c0_20 = arith.constant 0 : index
    %c0_21 = arith.constant 0 : index
    %c0_22 = arith.constant 0 : index
    %56 = vector.load %arg9[%c0_20, %c0_21, %c0_22] : memref<2x8x128xf32, #tpu.memory_space<vmem>>, vector<1x8x128xf32>
    %57 = vector.shape_cast %56 : vector<1x8x128xf32> to vector<8x128xf32>
    %58 = vector.shape_cast %55 : vector<8x128xf32> to vector<1x8x128xf32>
    tpu.vector_store %arg9[%c0_20, %c0_21, %c0_22], %58 {strides = array<i32>} : memref<2x8x128xf32, #tpu.memory_space<vmem>>, vector<1x8x128xf32>,
    %c0_23 = arith.constant 0 : index
    %c0_24 = arith.constant 0 : index
    %c0_25 = arith.constant 0 : index
    %59 = vector.load %arg10[%c0_23, %c0_24, %c0_25] : memref<2x8x128xf32, #tpu.memory_space<vmem>>, vector<1x8x128xf32>
    %60 = vector.shape_cast %59 : vector<1x8x128xf32> to vector<8x128xf32>
    %61 = arith.select %10, %50, %60 : vector<8x128xi1>, vector<8x128xf32>
    %c0_26 = arith.constant 0 : index
    %c0_27 = arith.constant 0 : index
    %c0_28 = arith.constant 0 : index
    %62 = vector.load %arg10[%c0_26, %c0_27, %c0_28] : memref<2x8x128xf32, #tpu.memory_space<vmem>>, vector<1x8x128xf32>
    %63 = vector.shape_cast %62 : vector<1x8x128xf32> to vector<8x128xf32>
    %64 = vector.shape_cast %61 : vector<8x128xf32> to vector<1x8x128xf32>
    tpu.vector_store %arg10[%c0_26, %c0_27, %c0_28], %64 {strides = array<i32>} : memref<2x8x128xf32, #tpu.memory_space<vmem>>, vector<1x8x128xf32>,
    %cst_29 = arith.constant 0.000000e+00 : f32
    %65 = vector.broadcast %cst_29 : f32 to vector<8x128xf32>
    %66 = arith.select %10, %52, %65 : vector<8x128xi1>, vector<8x128xf32>
    %67 = arith.index_cast %c0_i32_2 : i32 to index
    %c0_30 = arith.constant 0 : index
    %c0_31 = arith.constant 0 : index
    %68 = vector.load %arg5[%67, %c0_30, %c0_31] : memref<8x8x128xf32, #tpu.memory_space<vmem>>, vector<1x8x128xf32>
    %69 = vector.shape_cast %68 : vector<1x8x128xf32> to vector<8x128xf32>
    %70 = vector.shape_cast %66 : vector<8x128xf32> to vector<1x8x128xf32>
    tpu.vector_store %arg5[%67, %c0_30, %c0_31], %70 {strides = array<i32>} : memref<8x8x128xf32, #tpu.memory_space<vmem>>, vector<1x8x128xf32>,
    %c7_i32_32 = arith.constant 7 : i32
    %71 = arith.subi %c7_i32_32, %c0_i32_2 : i32
    %72 = arith.index_cast %71 : i32 to index
    %c0_33 = arith.constant 0 : index
    %c0_34 = arith.constant 0 : index
    %73 = vector.load %arg3[%72, %c0_33, %c0_34] : memref<8x8x512xbf16, #tpu.memory_space<vmem>>, vector<1x8x512xbf16>
    %74 = vector.shape_cast %73 : vector<1x8x512xbf16> to vector<8x512xbf16>
    %c1 = arith.constant 1 : index
    %c0_35 = arith.constant 0 : index
    %c0_36 = arith.constant 0 : index
    %75 = vector.load %arg9[%c1, %c0_35, %c0_36] : memref<2x8x128xf32, #tpu.memory_space<vmem>>, vector<1x8x128xf32>
    %76 = vector.shape_cast %75 : vector<1x8x128xf32> to vector<8x128xf32>
    %c1_37 = arith.constant 1 : index
    %c0_38 = arith.constant 0 : index
    %c0_39 = arith.constant 0 : index
    %77 = vector.load %arg10[%c1_37, %c0_38, %c0_39] : memref<2x8x128xf32, #tpu.memory_space<vmem>>, vector<1x8x128xf32>
    %78 = vector.shape_cast %77 : vector<1x8x128xf32> to vector<8x128xf32>
    %c1_40 = arith.constant 1 : index
    %c0_41 = arith.constant 0 : index
    %c0_42 = arith.constant 0 : index
    %79 = vector.load %arg4[%c1_40, %c0_41, %c0_42] : memref<2x128x512xbf16, #tpu.memory_space<vmem>>, vector<1x128x512xbf16>
    %80 = vector.shape_cast %79 : vector<1x128x512xbf16> to vector<128x512xbf16>
    %81 = arith.extf %74 : vector<8x512xbf16> to vector<8x512xf32>
    %82 = arith.truncf %76 : vector<8x128xf32> to vector<8x128xbf16>
    %cst_43 = arith.constant dense<0.000000e+00> : vector<8x512xf32>
    %83 = tpu.matmul %82, %80, %cst_43 {dimension_numbers = #tpu.dot_dimension_numbers<[1], [0], [0], [1], [0, 0, 1, 1], [], []>} : vector<8x128xbf16>, vector<128x512xbf16>, vector<8x512xf32> -> vector<8x512xf32>
    %84 = arith.addf %81, %83 : vector<8x512xf32>
    %85 = vector.extract_strided_slice %84 {offsets = [0, 0], sizes = [8, 128], strides = [1, 1]} : vector<8x512xf32> to vector<8x128xf32>
    %86 = arith.negf %85 : vector<8x128xf32>
    %87 = math.exp %86 : vector<8x128xf32>
    %cst_44 = arith.constant 1.000000e+00 : f32
    %88 = vector.broadcast %cst_44 : f32 to vector<8x128xf32>
    %89 = arith.addf %88, %87 : vector<8x128xf32>
    %90 = arith.divf %88, %89 : vector<8x128xf32>
    %91 = vector.extract_strided_slice %84 {offsets = [0, 128], sizes = [8, 128], strides = [1, 1]} : vector<8x512xf32> to vector<8x128xf32>
    %92 = arith.negf %91 : vector<8x128xf32>
    %93 = math.exp %92 : vector<8x128xf32>
    %cst_45 = arith.constant 1.000000e+00 : f32
    %94 = vector.broadcast %cst_45 : f32 to vector<8x128xf32>
    %95 = arith.addf %94, %93 : vector<8x128xf32>
    %96 = arith.divf %94, %95 : vector<8x128xf32>
    %97 = vector.extract_strided_slice %84 {offsets = [0, 256], sizes = [8, 128], strides = [1, 1]} : vector<8x512xf32> to vector<8x128xf32>
    %98 = math.tanh %97 : vector<8x128xf32>
    %99 = vector.extract_strided_slice %84 {offsets = [0, 384], sizes = [8, 128], strides = [1, 1]} : vector<8x512xf32> to vector<8x128xf32>
    %100 = arith.negf %99 : vector<8x128xf32>
    %101 = math.exp %100 : vector<8x128xf32>
    %cst_46 = arith.constant 1.000000e+00 : f32
    %102 = vector.broadcast %cst_46 : f32 to vector<8x128xf32>
    %103 = arith.addf %102, %101 : vector<8x128xf32>
    %104 = arith.divf %102, %103 : vector<8x128xf32>
    %105 = arith.mulf %96, %78 : vector<8x128xf32>
    %106 = arith.mulf %90, %98 : vector<8x128xf32>
    %107 = arith.addf %105, %106 : vector<8x128xf32>
    %108 = math.tanh %107 : vector<8x128xf32>
    %109 = arith.mulf %104, %108 : vector<8x128xf32>
    %c1_47 = arith.constant 1 : index
    %c0_48 = arith.constant 0 : index
    %c0_49 = arith.constant 0 : index
    %110 = vector.load %arg9[%c1_47, %c0_48, %c0_49] : memref<2x8x128xf32, #tpu.memory_space<vmem>>, vector<1x8x128xf32>
    %111 = vector.shape_cast %110 : vector<1x8x128xf32> to vector<8x128xf32>
    %112 = arith.select %14, %109, %111 : vector<8x128xi1>, vector<8x128xf32>
    %c1_50 = arith.constant 1 : index
    %c0_51 = arith.constant 0 : index
    %c0_52 = arith.constant 0 : index
    %113 = vector.load %arg9[%c1_50, %c0_51, %c0_52] : memref<2x8x128xf32, #tpu.memory_space<vmem>>, vector<1x8x128xf32>
    %114 = vector.shape_cast %113 : vector<1x8x128xf32> to vector<8x128xf32>
    %115 = vector.shape_cast %112 : vector<8x128xf32> to vector<1x8x128xf32>
    tpu.vector_store %arg9[%c1_50, %c0_51, %c0_52], %115 {strides = array<i32>} : memref<2x8x128xf32, #tpu.memory_space<vmem>>, vector<1x8x128xf32>,
    %c1_53 = arith.constant 1 : index
    %c0_54 = arith.constant 0 : index
    %c0_55 = arith.constant 0 : index
    %116 = vector.load %arg10[%c1_53, %c0_54, %c0_55] : memref<2x8x128xf32, #tpu.memory_space<vmem>>, vector<1x8x128xf32>
    %117 = vector.shape_cast %116 : vector<1x8x128xf32> to vector<8x128xf32>
    %118 = arith.select %14, %107, %117 : vector<8x128xi1>, vector<8x128xf32>
    %c1_56 = arith.constant 1 : index
    %c0_57 = arith.constant 0 : index
    %c0_58 = arith.constant 0 : index
    %119 = vector.load %arg10[%c1_56, %c0_57, %c0_58] : memref<2x8x128xf32, #tpu.memory_space<vmem>>, vector<1x8x128xf32>
    %120 = vector.shape_cast %119 : vector<1x8x128xf32> to vector<8x128xf32>
    %121 = vector.shape_cast %118 : vector<8x128xf32> to vector<1x8x128xf32>
    tpu.vector_store %arg10[%c1_56, %c0_57, %c0_58], %121 {strides = array<i32>} : memref<2x8x128xf32, #tpu.memory_space<vmem>>, vector<1x8x128xf32>,
    %cst_59 = arith.constant 0.000000e+00 : f32
    %122 = vector.broadcast %cst_59 : f32 to vector<8x128xf32>
    %123 = arith.select %14, %109, %122 : vector<8x128xi1>, vector<8x128xf32>
    %c7_i32_60 = arith.constant 7 : i32
    %124 = arith.subi %c7_i32_60, %c0_i32_2 : i32
    %125 = arith.index_cast %124 : i32 to index
    %c0_61 = arith.constant 0 : index
    %c0_62 = arith.constant 0 : index
    %126 = vector.load %arg6[%125, %c0_61, %c0_62] : memref<8x8x128xf32, #tpu.memory_space<vmem>>, vector<1x8x128xf32>
    %127 = vector.shape_cast %126 : vector<1x8x128xf32> to vector<8x128xf32>
    %128 = vector.shape_cast %123 : vector<8x128xf32> to vector<1x8x128xf32>
    tpu.vector_store %arg6[%125, %c0_61, %c0_62], %128 {strides = array<i32>} : memref<8x8x128xf32, #tpu.memory_space<vmem>>, vector<1x8x128xf32>,
    %c1_i32 = arith.constant 1 : i32
    %c8_i32_63 = arith.constant 8 : i32
    %129 = arith.muli %arg0, %c8_i32_63 : i32
    %130 = arith.addi %129, %c1_i32 : i32
    %c7_i32_64 = arith.constant 7 : i32
    %131 = arith.subi %c7_i32_64, %130 : i32
    %132 = vector.broadcast %130 : i32 to vector<8x1xi32>
    %133 = arith.cmpi slt, %132, %3 : vector<8x1xi32>
    %134 = vector.shape_cast %133 : vector<8x1xi1> to vector<8x1xi1>
    %135 = vector.broadcast %134 : vector<8x1xi1> to vector<8x128xi1>
    %136 = vector.broadcast %131 : i32 to vector<8x1xi32>
    %137 = arith.cmpi slt, %136, %3 : vector<8x1xi32>
    %138 = vector.shape_cast %137 : vector<8x1xi1> to vector<8x1xi1>
    %139 = vector.broadcast %138 : vector<8x1xi1> to vector<8x128xi1>
    %140 = arith.index_cast %c1_i32 : i32 to index
    %c0_65 = arith.constant 0 : index
    %c0_66 = arith.constant 0 : index
    %141 = vector.load %arg2[%140, %c0_65, %c0_66] : memref<8x8x512xbf16, #tpu.memory_space<vmem>>, vector<1x8x512xbf16>
    %142 = vector.shape_cast %141 : vector<1x8x512xbf16> to vector<8x512xbf16>
    %c0_67 = arith.constant 0 : index
    %c0_68 = arith.constant 0 : index
    %c0_69 = arith.constant 0 : index
    %143 = vector.load %arg9[%c0_67, %c0_68, %c0_69] : memref<2x8x128xf32, #tpu.memory_space<vmem>>, vector<1x8x128xf32>
    %144 = vector.shape_cast %143 : vector<1x8x128xf32> to vector<8x128xf32>
    %c0_70 = arith.constant 0 : index
    %c0_71 = arith.constant 0 : index
    %c0_72 = arith.constant 0 : index
    %145 = vector.load %arg10[%c0_70, %c0_71, %c0_72] : memref<2x8x128xf32, #tpu.memory_space<vmem>>, vector<1x8x128xf32>
    %146 = vector.shape_cast %145 : vector<1x8x128xf32> to vector<8x128xf32>
    %c0_73 = arith.constant 0 : index
    %c0_74 = arith.constant 0 : index
    %c0_75 = arith.constant 0 : index
    %147 = vector.load %arg4[%c0_73, %c0_74, %c0_75] : memref<2x128x512xbf16, #tpu.memory_space<vmem>>, vector<1x128x512xbf16>
    %148 = vector.shape_cast %147 : vector<1x128x512xbf16> to vector<128x512xbf16>
    %149 = arith.extf %142 : vector<8x512xbf16> to vector<8x512xf32>
    %150 = arith.truncf %144 : vector<8x128xf32> to vector<8x128xbf16>
    %cst_76 = arith.constant dense<0.000000e+00> : vector<8x512xf32>
    %151 = tpu.matmul %150, %148, %cst_76 {dimension_numbers = #tpu.dot_dimension_numbers<[1], [0], [0], [1], [0, 0, 1, 1], [], []>} : vector<8x128xbf16>, vector<128x512xbf16>, vector<8x512xf32> -> vector<8x512xf32>
    %152 = arith.addf %149, %151 : vector<8x512xf32>
    %153 = vector.extract_strided_slice %152 {offsets = [0, 0], sizes = [8, 128], strides = [1, 1]} : vector<8x512xf32> to vector<8x128xf32>
    %154 = arith.negf %153 : vector<8x128xf32>
    %155 = math.exp %154 : vector<8x128xf32>
    %cst_77 = arith.constant 1.000000e+00 : f32
    %156 = vector.broadcast %cst_77 : f32 to vector<8x128xf32>
    %157 = arith.addf %156, %155 : vector<8x128xf32>
    %158 = arith.divf %156, %157 : vector<8x128xf32>
    %159 = vector.extract_strided_slice %152 {offsets = [0, 128], sizes = [8, 128], strides = [1, 1]} : vector<8x512xf32> to vector<8x128xf32>
    %160 = arith.negf %159 : vector<8x128xf32>
    %161 = math.exp %160 : vector<8x128xf32>
    %cst_78 = arith.constant 1.000000e+00 : f32
    %162 = vector.broadcast %cst_78 : f32 to vector<8x128xf32>
    %163 = arith.addf %162, %161 : vector<8x128xf32>
    %164 = arith.divf %162, %163 : vector<8x128xf32>
    %165 = vector.extract_strided_slice %152 {offsets = [0, 256], sizes = [8, 128], strides = [1, 1]} : vector<8x512xf32> to vector<8x128xf32>
    %166 = math.tanh %165 : vector<8x128xf32>
    %167 = vector.extract_strided_slice %152 {offsets = [0, 384], sizes = [8, 128], strides = [1, 1]} : vector<8x512xf32> to vector<8x128xf32>
    %168 = arith.negf %167 : vector<8x128xf32>
    %169 = math.exp %168 : vector<8x128xf32>
    %cst_79 = arith.constant 1.000000e+00 : f32
    %170 = vector.broadcast %cst_79 : f32 to vector<8x128xf32>
    %171 = arith.addf %170, %169 : vector<8x128xf32>
    %172 = arith.divf %170, %171 : vector<8x128xf32>
    %173 = arith.mulf %164, %146 : vector<8x128xf32>
    %174 = arith.mulf %158, %166 : vector<8x128xf32>
    %175 = arith.addf %173, %174 : vector<8x128xf32>
    %176 = math.tanh %175 : vector<8x128xf32>
    %177 = arith.mulf %172, %176 : vector<8x128xf32>
    %c0_80 = arith.constant 0 : index
    %c0_81 = arith.constant 0 : index
    %c0_82 = arith.constant 0 : index
    %178 = vector.load %arg9[%c0_80, %c0_81, %c0_82] : memref<2x8x128xf32, #tpu.memory_space<vmem>>, vector<1x8x128xf32>
    %179 = vector.shape_cast %178 : vector<1x8x128xf32> to vector<8x128xf32>
    %180 = arith.select %135, %177, %179 : vector<8x128xi1>, vector<8x128xf32>
    %c0_83 = arith.constant 0 : index
    %c0_84 = arith.constant 0 : index
    %c0_85 = arith.constant 0 : index
    %181 = vector.load %arg9[%c0_83, %c0_84, %c0_85] : memref<2x8x128xf32, #tpu.memory_space<vmem>>, vector<1x8x128xf32>
    %182 = vector.shape_cast %181 : vector<1x8x128xf32> to vector<8x128xf32>
    %183 = vector.shape_cast %180 : vector<8x128xf32> to vector<1x8x128xf32>
    tpu.vector_store %arg9[%c0_83, %c0_84, %c0_85], %183 {strides = array<i32>} : memref<2x8x128xf32, #tpu.memory_space<vmem>>, vector<1x8x128xf32>,
    %c0_86 = arith.constant 0 : index
    %c0_87 = arith.constant 0 : index
    %c0_88 = arith.constant 0 : index
    %184 = vector.load %arg10[%c0_86, %c0_87, %c0_88] : memref<2x8x128xf32, #tpu.memory_space<vmem>>, vector<1x8x128xf32>
    %185 = vector.shape_cast %184 : vector<1x8x128xf32> to vector<8x128xf32>
    %186 = arith.select %135, %175, %185 : vector<8x128xi1>, vector<8x128xf32>
    %c0_89 = arith.constant 0 : index
    %c0_90 = arith.constant 0 : index
    %c0_91 = arith.constant 0 : index
    %187 = vector.load %arg10[%c0_89, %c0_90, %c0_91] : memref<2x8x128xf32, #tpu.memory_space<vmem>>, vector<1x8x128xf32>
    %188 = vector.shape_cast %187 : vector<1x8x128xf32> to vector<8x128xf32>
    %189 = vector.shape_cast %186 : vector<8x128xf32> to vector<1x8x128xf32>
    tpu.vector_store %arg10[%c0_89, %c0_90, %c0_91], %189 {strides = array<i32>} : memref<2x8x128xf32, #tpu.memory_space<vmem>>, vector<1x8x128xf32>,
    %cst_92 = arith.constant 0.000000e+00 : f32
    %190 = vector.broadcast %cst_92 : f32 to vector<8x128xf32>
    %191 = arith.select %135, %177, %190 : vector<8x128xi1>, vector<8x128xf32>
    %192 = arith.index_cast %c1_i32 : i32 to index
    %c0_93 = arith.constant 0 : index
    %c0_94 = arith.constant 0 : index
    %193 = vector.load %arg5[%192, %c0_93, %c0_94] : memref<8x8x128xf32, #tpu.memory_space<vmem>>, vector<1x8x128xf32>
    %194 = vector.shape_cast %193 : vector<1x8x128xf32> to vector<8x128xf32>
    %195 = vector.shape_cast %191 : vector<8x128xf32> to vector<1x8x128xf32>
    tpu.vector_store %arg5[%192, %c0_93, %c0_94], %195 {strides = array<i32>} : memref<8x8x128xf32, #tpu.memory_space<vmem>>, vector<1x8x128xf32>,
    %c7_i32_95 = arith.constant 7 : i32
    %196 = arith.subi %c7_i32_95, %c1_i32 : i32
    %197 = arith.index_cast %196 : i32 to index
    %c0_96 = arith.constant 0 : index
    %c0_97 = arith.constant 0 : index
    %198 = vector.load %arg3[%197, %c0_96, %c0_97] : memref<8x8x512xbf16, #tpu.memory_space<vmem>>, vector<1x8x512xbf16>
    %199 = vector.shape_cast %198 : vector<1x8x512xbf16> to vector<8x512xbf16>
    %c1_98 = arith.constant 1 : index
    %c0_99 = arith.constant 0 : index
    %c0_100 = arith.constant 0 : index
    %200 = vector.load %arg9[%c1_98, %c0_99, %c0_100] : memref<2x8x128xf32, #tpu.memory_space<vmem>>, vector<1x8x128xf32>
    %201 = vector.shape_cast %200 : vector<1x8x128xf32> to vector<8x128xf32>
    %c1_101 = arith.constant 1 : index
    %c0_102 = arith.constant 0 : index
    %c0_103 = arith.constant 0 : index
    %202 = vector.load %arg10[%c1_101, %c0_102, %c0_103] : memref<2x8x128xf32, #tpu.memory_space<vmem>>, vector<1x8x128xf32>
    %203 = vector.shape_cast %202 : vector<1x8x128xf32> to vector<8x128xf32>
    %c1_104 = arith.constant 1 : index
    %c0_105 = arith.constant 0 : index
    %c0_106 = arith.constant 0 : index
    %204 = vector.load %arg4[%c1_104, %c0_105, %c0_106] : memref<2x128x512xbf16, #tpu.memory_space<vmem>>, vector<1x128x512xbf16>
    %205 = vector.shape_cast %204 : vector<1x128x512xbf16> to vector<128x512xbf16>
    %206 = arith.extf %199 : vector<8x512xbf16> to vector<8x512xf32>
    %207 = arith.truncf %201 : vector<8x128xf32> to vector<8x128xbf16>
    %cst_107 = arith.constant dense<0.000000e+00> : vector<8x512xf32>
    %208 = tpu.matmul %207, %205, %cst_107 {dimension_numbers = #tpu.dot_dimension_numbers<[1], [0], [0], [1], [0, 0, 1, 1], [], []>} : vector<8x128xbf16>, vector<128x512xbf16>, vector<8x512xf32> -> vector<8x512xf32>
    %209 = arith.addf %206, %208 : vector<8x512xf32>
    %210 = vector.extract_strided_slice %209 {offsets = [0, 0], sizes = [8, 128], strides = [1, 1]} : vector<8x512xf32> to vector<8x128xf32>
    %211 = arith.negf %210 : vector<8x128xf32>
    %212 = math.exp %211 : vector<8x128xf32>
    %cst_108 = arith.constant 1.000000e+00 : f32
    %213 = vector.broadcast %cst_108 : f32 to vector<8x128xf32>
    %214 = arith.addf %213, %212 : vector<8x128xf32>
    %215 = arith.divf %213, %214 : vector<8x128xf32>
    %216 = vector.extract_strided_slice %209 {offsets = [0, 128], sizes = [8, 128], strides = [1, 1]} : vector<8x512xf32> to vector<8x128xf32>
    %217 = arith.negf %216 : vector<8x128xf32>
    %218 = math.exp %217 : vector<8x128xf32>
    %cst_109 = arith.constant 1.000000e+00 : f32
    %219 = vector.broadcast %cst_109 : f32 to vector<8x128xf32>
    %220 = arith.addf %219, %218 : vector<8x128xf32>
    %221 = arith.divf %219, %220 : vector<8x128xf32>
    %222 = vector.extract_strided_slice %209 {offsets = [0, 256], sizes = [8, 128], strides = [1, 1]} : vector<8x512xf32> to vector<8x128xf32>
    %223 = math.tanh %222 : vector<8x128xf32>
    %224 = vector.extract_strided_slice %209 {offsets = [0, 384], sizes = [8, 128], strides = [1, 1]} : vector<8x512xf32> to vector<8x128xf32>
    %225 = arith.negf %224 : vector<8x128xf32>
    %226 = math.exp %225 : vector<8x128xf32>
    %cst_110 = arith.constant 1.000000e+00 : f32
    %227 = vector.broadcast %cst_110 : f32 to vector<8x128xf32>
    %228 = arith.addf %227, %226 : vector<8x128xf32>
    %229 = arith.divf %227, %228 : vector<8x128xf32>
    %230 = arith.mulf %221, %203 : vector<8x128xf32>
    %231 = arith.mulf %215, %223 : vector<8x128xf32>
    %232 = arith.addf %230, %231 : vector<8x128xf32>
    %233 = math.tanh %232 : vector<8x128xf32>
    %234 = arith.mulf %229, %233 : vector<8x128xf32>
    %c1_111 = arith.constant 1 : index
    %c0_112 = arith.constant 0 : index
    %c0_113 = arith.constant 0 : index
    %235 = vector.load %arg9[%c1_111, %c0_112, %c0_113] : memref<2x8x128xf32, #tpu.memory_space<vmem>>, vector<1x8x128xf32>
    %236 = vector.shape_cast %235 : vector<1x8x128xf32> to vector<8x128xf32>
    %237 = arith.select %139, %234, %236 : vector<8x128xi1>, vector<8x128xf32>
    %c1_114 = arith.constant 1 : index
    %c0_115 = arith.constant 0 : index
    %c0_116 = arith.constant 0 : index
    %238 = vector.load %arg9[%c1_114, %c0_115, %c0_116] : memref<2x8x128xf32, #tpu.memory_space<vmem>>, vector<1x8x128xf32>
    %239 = vector.shape_cast %238 : vector<1x8x128xf32> to vector<8x128xf32>
    %240 = vector.shape_cast %237 : vector<8x128xf32> to vector<1x8x128xf32>
    tpu.vector_store %arg9[%c1_114, %c0_115, %c0_116], %240 {strides = array<i32>} : memref<2x8x128xf32, #tpu.memory_space<vmem>>, vector<1x8x128xf32>,
    %c1_117 = arith.constant 1 : index
    %c0_118 = arith.constant 0 : index
    %c0_119 = arith.constant 0 : index
    %241 = vector.load %arg10[%c1_117, %c0_118, %c0_119] : memref<2x8x128xf32, #tpu.memory_space<vmem>>, vector<1x8x128xf32>
    %242 = vector.shape_cast %241 : vector<1x8x128xf32> to vector<8x128xf32>
    %243 = arith.select %139, %232, %242 : vector<8x128xi1>, vector<8x128xf32>
    %c1_120 = arith.constant 1 : index
    %c0_121 = arith.constant 0 : index
    %c0_122 = arith.constant 0 : index
    %244 = vector.load %arg10[%c1_120, %c0_121, %c0_122] : memref<2x8x128xf32, #tpu.memory_space<vmem>>, vector<1x8x128xf32>
    %245 = vector.shape_cast %244 : vector<1x8x128xf32> to vector<8x128xf32>
    %246 = vector.shape_cast %243 : vector<8x128xf32> to vector<1x8x128xf32>
    tpu.vector_store %arg10[%c1_120, %c0_121, %c0_122], %246 {strides = array<i32>} : memref<2x8x128xf32, #tpu.memory_space<vmem>>, vector<1x8x128xf32>,
    %cst_123 = arith.constant 0.000000e+00 : f32
    %247 = vector.broadcast %cst_123 : f32 to vector<8x128xf32>
    %248 = arith.select %139, %234, %247 : vector<8x128xi1>, vector<8x128xf32>
    %c7_i32_124 = arith.constant 7 : i32
    %249 = arith.subi %c7_i32_124, %c1_i32 : i32
    %250 = arith.index_cast %249 : i32 to index
    %c0_125 = arith.constant 0 : index
    %c0_126 = arith.constant 0 : index
    %251 = vector.load %arg6[%250, %c0_125, %c0_126] : memref<8x8x128xf32, #tpu.memory_space<vmem>>, vector<1x8x128xf32>
    %252 = vector.shape_cast %251 : vector<1x8x128xf32> to vector<8x128xf32>
    %253 = vector.shape_cast %248 : vector<8x128xf32> to vector<1x8x128xf32>
    tpu.vector_store %arg6[%250, %c0_125, %c0_126], %253 {strides = array<i32>} : memref<8x8x128xf32, #tpu.memory_space<vmem>>, vector<1x8x128xf32>,
    %c2_i32 = arith.constant 2 : i32
    %c8_i32_127 = arith.constant 8 : i32
    %254 = arith.muli %arg0, %c8_i32_127 : i32
    %255 = arith.addi %254, %c2_i32 : i32
    %c7_i32_128 = arith.constant 7 : i32
    %256 = arith.subi %c7_i32_128, %255 : i32
    %257 = vector.broadcast %255 : i32 to vector<8x1xi32>
    %258 = arith.cmpi slt, %257, %3 : vector<8x1xi32>
    %259 = vector.shape_cast %258 : vector<8x1xi1> to vector<8x1xi1>
    %260 = vector.broadcast %259 : vector<8x1xi1> to vector<8x128xi1>
    %261 = vector.broadcast %256 : i32 to vector<8x1xi32>
    %262 = arith.cmpi slt, %261, %3 : vector<8x1xi32>
    %263 = vector.shape_cast %262 : vector<8x1xi1> to vector<8x1xi1>
    %264 = vector.broadcast %263 : vector<8x1xi1> to vector<8x128xi1>
    %265 = arith.index_cast %c2_i32 : i32 to index
    %c0_129 = arith.constant 0 : index
    %c0_130 = arith.constant 0 : index
    %266 = vector.load %arg2[%265, %c0_129, %c0_130] : memref<8x8x512xbf16, #tpu.memory_space<vmem>>, vector<1x8x512xbf16>
    %267 = vector.shape_cast %266 : vector<1x8x512xbf16> to vector<8x512xbf16>
    %c0_131 = arith.constant 0 : index
    %c0_132 = arith.constant 0 : index
    %c0_133 = arith.constant 0 : index
    %268 = vector.load %arg9[%c0_131, %c0_132, %c0_133] : memref<2x8x128xf32, #tpu.memory_space<vmem>>, vector<1x8x128xf32>
    %269 = vector.shape_cast %268 : vector<1x8x128xf32> to vector<8x128xf32>
    %c0_134 = arith.constant 0 : index
    %c0_135 = arith.constant 0 : index
    %c0_136 = arith.constant 0 : index
    %270 = vector.load %arg10[%c0_134, %c0_135, %c0_136] : memref<2x8x128xf32, #tpu.memory_space<vmem>>, vector<1x8x128xf32>
    %271 = vector.shape_cast %270 : vector<1x8x128xf32> to vector<8x128xf32>
    %c0_137 = arith.constant 0 : index
    %c0_138 = arith.constant 0 : index
    %c0_139 = arith.constant 0 : index
    %272 = vector.load %arg4[%c0_137, %c0_138, %c0_139] : memref<2x128x512xbf16, #tpu.memory_space<vmem>>, vector<1x128x512xbf16>
    %273 = vector.shape_cast %272 : vector<1x128x512xbf16> to vector<128x512xbf16>
    %274 = arith.extf %267 : vector<8x512xbf16> to vector<8x512xf32>
    %275 = arith.truncf %269 : vector<8x128xf32> to vector<8x128xbf16>
    %cst_140 = arith.constant dense<0.000000e+00> : vector<8x512xf32>
    %276 = tpu.matmul %275, %273, %cst_140 {dimension_numbers = #tpu.dot_dimension_numbers<[1], [0], [0], [1], [0, 0, 1, 1], [], []>} : vector<8x128xbf16>, vector<128x512xbf16>, vector<8x512xf32> -> vector<8x512xf32>
    %277 = arith.addf %274, %276 : vector<8x512xf32>
    %278 = vector.extract_strided_slice %277 {offsets = [0, 0], sizes = [8, 128], strides = [1, 1]} : vector<8x512xf32> to vector<8x128xf32>
    %279 = arith.negf %278 : vector<8x128xf32>
    %280 = math.exp %279 : vector<8x128xf32>
    %cst_141 = arith.constant 1.000000e+00 : f32
    %281 = vector.broadcast %cst_141 : f32 to vector<8x128xf32>
    %282 = arith.addf %281, %280 : vector<8x128xf32>
    %283 = arith.divf %281, %282 : vector<8x128xf32>
    %284 = vector.extract_strided_slice %277 {offsets = [0, 128], sizes = [8, 128], strides = [1, 1]} : vector<8x512xf32> to vector<8x128xf32>
    %285 = arith.negf %284 : vector<8x128xf32>
    %286 = math.exp %285 : vector<8x128xf32>
    %cst_142 = arith.constant 1.000000e+00 : f32
    %287 = vector.broadcast %cst_142 : f32 to vector<8x128xf32>
    %288 = arith.addf %287, %286 : vector<8x128xf32>
    %289 = arith.divf %287, %288 : vector<8x128xf32>
    %290 = vector.extract_strided_slice %277 {offsets = [0, 256], sizes = [8, 128], strides = [1, 1]} : vector<8x512xf32> to vector<8x128xf32>
    %291 = math.tanh %290 : vector<8x128xf32>
    %292 = vector.extract_strided_slice %277 {offsets = [0, 384], sizes = [8, 128], strides = [1, 1]} : vector<8x512xf32> to vector<8x128xf32>
    %293 = arith.negf %292 : vector<8x128xf32>
    %294 = math.exp %293 : vector<8x128xf32>
    %cst_143 = arith.constant 1.000000e+00 : f32
    %295 = vector.broadcast %cst_143 : f32 to vector<8x128xf32>
    %296 = arith.addf %295, %294 : vector<8x128xf32>
    %297 = arith.divf %295, %296 : vector<8x128xf32>
    %298 = arith.mulf %289, %271 : vector<8x128xf32>
    %299 = arith.mulf %283, %291 : vector<8x128xf32>
    %300 = arith.addf %298, %299 : vector<8x128xf32>
    %301 = math.tanh %300 : vector<8x128xf32>
    %302 = arith.mulf %297, %301 : vector<8x128xf32>
    %c0_144 = arith.constant 0 : index
    %c0_145 = arith.constant 0 : index
    %c0_146 = arith.constant 0 : index
    %303 = vector.load %arg9[%c0_144, %c0_145, %c0_146] : memref<2x8x128xf32, #tpu.memory_space<vmem>>, vector<1x8x128xf32>
    %304 = vector.shape_cast %303 : vector<1x8x128xf32> to vector<8x128xf32>
    %305 = arith.select %260, %302, %304 : vector<8x128xi1>, vector<8x128xf32>
    %c0_147 = arith.constant 0 : index
    %c0_148 = arith.constant 0 : index
    %c0_149 = arith.constant 0 : index
    %306 = vector.load %arg9[%c0_147, %c0_148, %c0_149] : memref<2x8x128xf32, #tpu.memory_space<vmem>>, vector<1x8x128xf32>
    %307 = vector.shape_cast %306 : vector<1x8x128xf32> to vector<8x128xf32>
    %308 = vector.shape_cast %305 : vector<8x128xf32> to vector<1x8x128xf32>
    tpu.vector_store %arg9[%c0_147, %c0_148, %c0_149], %308 {strides = array<i32>} : memref<2x8x128xf32, #tpu.memory_space<vmem>>, vector<1x8x128xf32>,
    %c0_150 = arith.constant 0 : index
    %c0_151 = arith.constant 0 : index
    %c0_152 = arith.constant 0 : index
    %309 = vector.load %arg10[%c0_150, %c0_151, %c0_152] : memref<2x8x128xf32, #tpu.memory_space<vmem>>, vector<1x8x128xf32>
    %310 = vector.shape_cast %309 : vector<1x8x128xf32> to vector<8x128xf32>
    %311 = arith.select %260, %300, %310 : vector<8x128xi1>, vector<8x128xf32>
    %c0_153 = arith.constant 0 : index
    %c0_154 = arith.constant 0 : index
    %c0_155 = arith.constant 0 : index
    %312 = vector.load %arg10[%c0_153, %c0_154, %c0_155] : memref<2x8x128xf32, #tpu.memory_space<vmem>>, vector<1x8x128xf32>
    %313 = vector.shape_cast %312 : vector<1x8x128xf32> to vector<8x128xf32>
    %314 = vector.shape_cast %311 : vector<8x128xf32> to vector<1x8x128xf32>
    tpu.vector_store %arg10[%c0_153, %c0_154, %c0_155], %314 {strides = array<i32>} : memref<2x8x128xf32, #tpu.memory_space<vmem>>, vector<1x8x128xf32>,
    %cst_156 = arith.constant 0.000000e+00 : f32
    %315 = vector.broadcast %cst_156 : f32 to vector<8x128xf32>
    %316 = arith.select %260, %302, %315 : vector<8x128xi1>, vector<8x128xf32>
    %317 = arith.index_cast %c2_i32 : i32 to index
    %c0_157 = arith.constant 0 : index
    %c0_158 = arith.constant 0 : index
    %318 = vector.load %arg5[%317, %c0_157, %c0_158] : memref<8x8x128xf32, #tpu.memory_space<vmem>>, vector<1x8x128xf32>
    %319 = vector.shape_cast %318 : vector<1x8x128xf32> to vector<8x128xf32>
    %320 = vector.shape_cast %316 : vector<8x128xf32> to vector<1x8x128xf32>
    tpu.vector_store %arg5[%317, %c0_157, %c0_158], %320 {strides = array<i32>} : memref<8x8x128xf32, #tpu.memory_space<vmem>>, vector<1x8x128xf32>,
    %c7_i32_159 = arith.constant 7 : i32
    %321 = arith.subi %c7_i32_159, %c2_i32 : i32
    %322 = arith.index_cast %321 : i32 to index
    %c0_160 = arith.constant 0 : index
    %c0_161 = arith.constant 0 : index
    %323 = vector.load %arg3[%322, %c0_160, %c0_161] : memref<8x8x512xbf16, #tpu.memory_space<vmem>>, vector<1x8x512xbf16>
    %324 = vector.shape_cast %323 : vector<1x8x512xbf16> to vector<8x512xbf16>
    %c1_162 = arith.constant 1 : index
    %c0_163 = arith.constant 0 : index
    %c0_164 = arith.constant 0 : index
    %325 = vector.load %arg9[%c1_162, %c0_163, %c0_164] : memref<2x8x128xf32, #tpu.memory_space<vmem>>, vector<1x8x128xf32>
    %326 = vector.shape_cast %325 : vector<1x8x128xf32> to vector<8x128xf32>
    %c1_165 = arith.constant 1 : index
    %c0_166 = arith.constant 0 : index
    %c0_167 = arith.constant 0 : index
    %327 = vector.load %arg10[%c1_165, %c0_166, %c0_167] : memref<2x8x128xf32, #tpu.memory_space<vmem>>, vector<1x8x128xf32>
    %328 = vector.shape_cast %327 : vector<1x8x128xf32> to vector<8x128xf32>
    %c1_168 = arith.constant 1 : index
    %c0_169 = arith.constant 0 : index
    %c0_170 = arith.constant 0 : index
    %329 = vector.load %arg4[%c1_168, %c0_169, %c0_170] : memref<2x128x512xbf16, #tpu.memory_space<vmem>>, vector<1x128x512xbf16>
    %330 = vector.shape_cast %329 : vector<1x128x512xbf16> to vector<128x512xbf16>
    %331 = arith.extf %324 : vector<8x512xbf16> to vector<8x512xf32>
    %332 = arith.truncf %326 : vector<8x128xf32> to vector<8x128xbf16>
    %cst_171 = arith.constant dense<0.000000e+00> : vector<8x512xf32>
    %333 = tpu.matmul %332, %330, %cst_171 {dimension_numbers = #tpu.dot_dimension_numbers<[1], [0], [0], [1], [0, 0, 1, 1], [], []>} : vector<8x128xbf16>, vector<128x512xbf16>, vector<8x512xf32> -> vector<8x512xf32>
    %334 = arith.addf %331, %333 : vector<8x512xf32>
    %335 = vector.extract_strided_slice %334 {offsets = [0, 0], sizes = [8, 128], strides = [1, 1]} : vector<8x512xf32> to vector<8x128xf32>
    %336 = arith.negf %335 : vector<8x128xf32>
    %337 = math.exp %336 : vector<8x128xf32>
    %cst_172 = arith.constant 1.000000e+00 : f32
    %338 = vector.broadcast %cst_172 : f32 to vector<8x128xf32>
    %339 = arith.addf %338, %337 : vector<8x128xf32>
    %340 = arith.divf %338, %339 : vector<8x128xf32>
    %341 = vector.extract_strided_slice %334 {offsets = [0, 128], sizes = [8, 128], strides = [1, 1]} : vector<8x512xf32> to vector<8x128xf32>
    %342 = arith.negf %341 : vector<8x128xf32>
    %343 = math.exp %342 : vector<8x128xf32>
    %cst_173 = arith.constant 1.000000e+00 : f32
    %344 = vector.broadcast %cst_173 : f32 to vector<8x128xf32>
    %345 = arith.addf %344, %343 : vector<8x128xf32>
    %346 = arith.divf %344, %345 : vector<8x128xf32>
    %347 = vector.extract_strided_slice %334 {offsets = [0, 256], sizes = [8, 128], strides = [1, 1]} : vector<8x512xf32> to vector<8x128xf32>
    %348 = math.tanh %347 : vector<8x128xf32>
    %349 = vector.extract_strided_slice %334 {offsets = [0, 384], sizes = [8, 128], strides = [1, 1]} : vector<8x512xf32> to vector<8x128xf32>
    %350 = arith.negf %349 : vector<8x128xf32>
    %351 = math.exp %350 : vector<8x128xf32>
    %cst_174 = arith.constant 1.000000e+00 : f32
    %352 = vector.broadcast %cst_174 : f32 to vector<8x128xf32>
    %353 = arith.addf %352, %351 : vector<8x128xf32>
    %354 = arith.divf %352, %353 : vector<8x128xf32>
    %355 = arith.mulf %346, %328 : vector<8x128xf32>
    %356 = arith.mulf %340, %348 : vector<8x128xf32>
    %357 = arith.addf %355, %356 : vector<8x128xf32>
    %358 = math.tanh %357 : vector<8x128xf32>
    %359 = arith.mulf %354, %358 : vector<8x128xf32>
    %c1_175 = arith.constant 1 : index
    %c0_176 = arith.constant 0 : index
    %c0_177 = arith.constant 0 : index
    %360 = vector.load %arg9[%c1_175, %c0_176, %c0_177] : memref<2x8x128xf32, #tpu.memory_space<vmem>>, vector<1x8x128xf32>
    %361 = vector.shape_cast %360 : vector<1x8x128xf32> to vector<8x128xf32>
    %362 = arith.select %264, %359, %361 : vector<8x128xi1>, vector<8x128xf32>
    %c1_178 = arith.constant 1 : index
    %c0_179 = arith.constant 0 : index
    %c0_180 = arith.constant 0 : index
    %363 = vector.load %arg9[%c1_178, %c0_179, %c0_180] : memref<2x8x128xf32, #tpu.memory_space<vmem>>, vector<1x8x128xf32>
    %364 = vector.shape_cast %363 : vector<1x8x128xf32> to vector<8x128xf32>
    %365 = vector.shape_cast %362 : vector<8x128xf32> to vector<1x8x128xf32>
    tpu.vector_store %arg9[%c1_178, %c0_179, %c0_180], %365 {strides = array<i32>} : memref<2x8x128xf32, #tpu.memory_space<vmem>>, vector<1x8x128xf32>,
    %c1_181 = arith.constant 1 : index
    %c0_182 = arith.constant 0 : index
    %c0_183 = arith.constant 0 : index
    %366 = vector.load %arg10[%c1_181, %c0_182, %c0_183] : memref<2x8x128xf32, #tpu.memory_space<vmem>>, vector<1x8x128xf32>
    %367 = vector.shape_cast %366 : vector<1x8x128xf32> to vector<8x128xf32>
    %368 = arith.select %264, %357, %367 : vector<8x128xi1>, vector<8x128xf32>
    %c1_184 = arith.constant 1 : index
    %c0_185 = arith.constant 0 : index
    %c0_186 = arith.constant 0 : index
    %369 = vector.load %arg10[%c1_184, %c0_185, %c0_186] : memref<2x8x128xf32, #tpu.memory_space<vmem>>, vector<1x8x128xf32>
    %370 = vector.shape_cast %369 : vector<1x8x128xf32> to vector<8x128xf32>
    %371 = vector.shape_cast %368 : vector<8x128xf32> to vector<1x8x128xf32>
    tpu.vector_store %arg10[%c1_184, %c0_185, %c0_186], %371 {strides = array<i32>} : memref<2x8x128xf32, #tpu.memory_space<vmem>>, vector<1x8x128xf32>,
    %cst_187 = arith.constant 0.000000e+00 : f32
    %372 = vector.broadcast %cst_187 : f32 to vector<8x128xf32>
    %373 = arith.select %264, %359, %372 : vector<8x128xi1>, vector<8x128xf32>
    %c7_i32_188 = arith.constant 7 : i32
    %374 = arith.subi %c7_i32_188, %c2_i32 : i32
    %375 = arith.index_cast %374 : i32 to index
    %c0_189 = arith.constant 0 : index
    %c0_190 = arith.constant 0 : index
    %376 = vector.load %arg6[%375, %c0_189, %c0_190] : memref<8x8x128xf32, #tpu.memory_space<vmem>>, vector<1x8x128xf32>
    %377 = vector.shape_cast %376 : vector<1x8x128xf32> to vector<8x128xf32>
    %378 = vector.shape_cast %373 : vector<8x128xf32> to vector<1x8x128xf32>
    tpu.vector_store %arg6[%375, %c0_189, %c0_190], %378 {strides = array<i32>} : memref<8x8x128xf32, #tpu.memory_space<vmem>>, vector<1x8x128xf32>,
    %c3_i32 = arith.constant 3 : i32
    %c8_i32_191 = arith.constant 8 : i32
    %379 = arith.muli %arg0, %c8_i32_191 : i32
    %380 = arith.addi %379, %c3_i32 : i32
    %c7_i32_192 = arith.constant 7 : i32
    %381 = arith.subi %c7_i32_192, %380 : i32
    %382 = vector.broadcast %380 : i32 to vector<8x1xi32>
    %383 = arith.cmpi slt, %382, %3 : vector<8x1xi32>
    %384 = vector.shape_cast %383 : vector<8x1xi1> to vector<8x1xi1>
    %385 = vector.broadcast %384 : vector<8x1xi1> to vector<8x128xi1>
    %386 = vector.broadcast %381 : i32 to vector<8x1xi32>
    %387 = arith.cmpi slt, %386, %3 : vector<8x1xi32>
    %388 = vector.shape_cast %387 : vector<8x1xi1> to vector<8x1xi1>
    %389 = vector.broadcast %388 : vector<8x1xi1> to vector<8x128xi1>
    %390 = arith.index_cast %c3_i32 : i32 to index
    %c0_193 = arith.constant 0 : index
    %c0_194 = arith.constant 0 : index
    %391 = vector.load %arg2[%390, %c0_193, %c0_194] : memref<8x8x512xbf16, #tpu.memory_space<vmem>>, vector<1x8x512xbf16>
    %392 = vector.shape_cast %391 : vector<1x8x512xbf16> to vector<8x512xbf16>
    %c0_195 = arith.constant 0 : index
    %c0_196 = arith.constant 0 : index
    %c0_197 = arith.constant 0 : index
    %393 = vector.load %arg9[%c0_195, %c0_196, %c0_197] : memref<2x8x128xf32, #tpu.memory_space<vmem>>, vector<1x8x128xf32>
    %394 = vector.shape_cast %393 : vector<1x8x128xf32> to vector<8x128xf32>
    %c0_198 = arith.constant 0 : index
    %c0_199 = arith.constant 0 : index
    %c0_200 = arith.constant 0 : index
    %395 = vector.load %arg10[%c0_198, %c0_199, %c0_200] : memref<2x8x128xf32, #tpu.memory_space<vmem>>, vector<1x8x128xf32>
    %396 = vector.shape_cast %395 : vector<1x8x128xf32> to vector<8x128xf32>
    %c0_201 = arith.constant 0 : index
    %c0_202 = arith.constant 0 : index
    %c0_203 = arith.constant 0 : index
    %397 = vector.load %arg4[%c0_201, %c0_202, %c0_203] : memref<2x128x512xbf16, #tpu.memory_space<vmem>>, vector<1x128x512xbf16>
    %398 = vector.shape_cast %397 : vector<1x128x512xbf16> to vector<128x512xbf16>
    %399 = arith.extf %392 : vector<8x512xbf16> to vector<8x512xf32>
    %400 = arith.truncf %394 : vector<8x128xf32> to vector<8x128xbf16>
    %cst_204 = arith.constant dense<0.000000e+00> : vector<8x512xf32>
    %401 = tpu.matmul %400, %398, %cst_204 {dimension_numbers = #tpu.dot_dimension_numbers<[1], [0], [0], [1], [0, 0, 1, 1], [], []>} : vector<8x128xbf16>, vector<128x512xbf16>, vector<8x512xf32> -> vector<8x512xf32>
    %402 = arith.addf %399, %401 : vector<8x512xf32>
    %403 = vector.extract_strided_slice %402 {offsets = [0, 0], sizes = [8, 128], strides = [1, 1]} : vector<8x512xf32> to vector<8x128xf32>
    %404 = arith.negf %403 : vector<8x128xf32>
    %405 = math.exp %404 : vector<8x128xf32>
    %cst_205 = arith.constant 1.000000e+00 : f32
    %406 = vector.broadcast %cst_205 : f32 to vector<8x128xf32>
    %407 = arith.addf %406, %405 : vector<8x128xf32>
    %408 = arith.divf %406, %407 : vector<8x128xf32>
    %409 = vector.extract_strided_slice %402 {offsets = [0, 128], sizes = [8, 128], strides = [1, 1]} : vector<8x512xf32> to vector<8x128xf32>
    %410 = arith.negf %409 : vector<8x128xf32>
    %411 = math.exp %410 : vector<8x128xf32>
    %cst_206 = arith.constant 1.000000e+00 : f32
    %412 = vector.broadcast %cst_206 : f32 to vector<8x128xf32>
    %413 = arith.addf %412, %411 : vector<8x128xf32>
    %414 = arith.divf %412, %413 : vector<8x128xf32>
    %415 = vector.extract_strided_slice %402 {offsets = [0, 256], sizes = [8, 128], strides = [1, 1]} : vector<8x512xf32> to vector<8x128xf32>
    %416 = math.tanh %415 : vector<8x128xf32>
    %417 = vector.extract_strided_slice %402 {offsets = [0, 384], sizes = [8, 128], strides = [1, 1]} : vector<8x512xf32> to vector<8x128xf32>
    %418 = arith.negf %417 : vector<8x128xf32>
    %419 = math.exp %418 : vector<8x128xf32>
    %cst_207 = arith.constant 1.000000e+00 : f32
    %420 = vector.broadcast %cst_207 : f32 to vector<8x128xf32>
    %421 = arith.addf %420, %419 : vector<8x128xf32>
    %422 = arith.divf %420, %421 : vector<8x128xf32>
    %423 = arith.mulf %414, %396 : vector<8x128xf32>
    %424 = arith.mulf %408, %416 : vector<8x128xf32>
    %425 = arith.addf %423, %424 : vector<8x128xf32>
    %426 = math.tanh %425 : vector<8x128xf32>
    %427 = arith.mulf %422, %426 : vector<8x128xf32>
    %c0_208 = arith.constant 0 : index
    %c0_209 = arith.constant 0 : index
    %c0_210 = arith.constant 0 : index
    %428 = vector.load %arg9[%c0_208, %c0_209, %c0_210] : memref<2x8x128xf32, #tpu.memory_space<vmem>>, vector<1x8x128xf32>
    %429 = vector.shape_cast %428 : vector<1x8x128xf32> to vector<8x128xf32>
    %430 = arith.select %385, %427, %429 : vector<8x128xi1>, vector<8x128xf32>
    %c0_211 = arith.constant 0 : index
    %c0_212 = arith.constant 0 : index
    %c0_213 = arith.constant 0 : index
    %431 = vector.load %arg9[%c0_211, %c0_212, %c0_213] : memref<2x8x128xf32, #tpu.memory_space<vmem>>, vector<1x8x128xf32>
    %432 = vector.shape_cast %431 : vector<1x8x128xf32> to vector<8x128xf32>
    %433 = vector.shape_cast %430 : vector<8x128xf32> to vector<1x8x128xf32>
    tpu.vector_store %arg9[%c0_211, %c0_212, %c0_213], %433 {strides = array<i32>} : memref<2x8x128xf32, #tpu.memory_space<vmem>>, vector<1x8x128xf32>,
    %c0_214 = arith.constant 0 : index
    %c0_215 = arith.constant 0 : index
    %c0_216 = arith.constant 0 : index
    %434 = vector.load %arg10[%c0_214, %c0_215, %c0_216] : memref<2x8x128xf32, #tpu.memory_space<vmem>>, vector<1x8x128xf32>
    %435 = vector.shape_cast %434 : vector<1x8x128xf32> to vector<8x128xf32>
    %436 = arith.select %385, %425, %435 : vector<8x128xi1>, vector<8x128xf32>
    %c0_217 = arith.constant 0 : index
    %c0_218 = arith.constant 0 : index
    %c0_219 = arith.constant 0 : index
    %437 = vector.load %arg10[%c0_217, %c0_218, %c0_219] : memref<2x8x128xf32, #tpu.memory_space<vmem>>, vector<1x8x128xf32>
    %438 = vector.shape_cast %437 : vector<1x8x128xf32> to vector<8x128xf32>
    %439 = vector.shape_cast %436 : vector<8x128xf32> to vector<1x8x128xf32>
    tpu.vector_store %arg10[%c0_217, %c0_218, %c0_219], %439 {strides = array<i32>} : memref<2x8x128xf32, #tpu.memory_space<vmem>>, vector<1x8x128xf32>,
    %cst_220 = arith.constant 0.000000e+00 : f32
    %440 = vector.broadcast %cst_220 : f32 to vector<8x128xf32>
    %441 = arith.select %385, %427, %440 : vector<8x128xi1>, vector<8x128xf32>
    %442 = arith.index_cast %c3_i32 : i32 to index
    %c0_221 = arith.constant 0 : index
    %c0_222 = arith.constant 0 : index
    %443 = vector.load %arg5[%442, %c0_221, %c0_222] : memref<8x8x128xf32, #tpu.memory_space<vmem>>, vector<1x8x128xf32>
    %444 = vector.shape_cast %443 : vector<1x8x128xf32> to vector<8x128xf32>
    %445 = vector.shape_cast %441 : vector<8x128xf32> to vector<1x8x128xf32>
    tpu.vector_store %arg5[%442, %c0_221, %c0_222], %445 {strides = array<i32>} : memref<8x8x128xf32, #tpu.memory_space<vmem>>, vector<1x8x128xf32>,
    %c7_i32_223 = arith.constant 7 : i32
    %446 = arith.subi %c7_i32_223, %c3_i32 : i32
    %447 = arith.index_cast %446 : i32 to index
    %c0_224 = arith.constant 0 : index
    %c0_225 = arith.constant 0 : index
    %448 = vector.load %arg3[%447, %c0_224, %c0_225] : memref<8x8x512xbf16, #tpu.memory_space<vmem>>, vector<1x8x512xbf16>
    %449 = vector.shape_cast %448 : vector<1x8x512xbf16> to vector<8x512xbf16>
    %c1_226 = arith.constant 1 : index
    %c0_227 = arith.constant 0 : index
    %c0_228 = arith.constant 0 : index
    %450 = vector.load %arg9[%c1_226, %c0_227, %c0_228] : memref<2x8x128xf32, #tpu.memory_space<vmem>>, vector<1x8x128xf32>
    %451 = vector.shape_cast %450 : vector<1x8x128xf32> to vector<8x128xf32>
    %c1_229 = arith.constant 1 : index
    %c0_230 = arith.constant 0 : index
    %c0_231 = arith.constant 0 : index
    %452 = vector.load %arg10[%c1_229, %c0_230, %c0_231] : memref<2x8x128xf32, #tpu.memory_space<vmem>>, vector<1x8x128xf32>
    %453 = vector.shape_cast %452 : vector<1x8x128xf32> to vector<8x128xf32>
    %c1_232 = arith.constant 1 : index
    %c0_233 = arith.constant 0 : index
    %c0_234 = arith.constant 0 : index
    %454 = vector.load %arg4[%c1_232, %c0_233, %c0_234] : memref<2x128x512xbf16, #tpu.memory_space<vmem>>, vector<1x128x512xbf16>
    %455 = vector.shape_cast %454 : vector<1x128x512xbf16> to vector<128x512xbf16>
    %456 = arith.extf %449 : vector<8x512xbf16> to vector<8x512xf32>
    %457 = arith.truncf %451 : vector<8x128xf32> to vector<8x128xbf16>
    %cst_235 = arith.constant dense<0.000000e+00> : vector<8x512xf32>
    %458 = tpu.matmul %457, %455, %cst_235 {dimension_numbers = #tpu.dot_dimension_numbers<[1], [0], [0], [1], [0, 0, 1, 1], [], []>} : vector<8x128xbf16>, vector<128x512xbf16>, vector<8x512xf32> -> vector<8x512xf32>
    %459 = arith.addf %456, %458 : vector<8x512xf32>
    %460 = vector.extract_strided_slice %459 {offsets = [0, 0], sizes = [8, 128], strides = [1, 1]} : vector<8x512xf32> to vector<8x128xf32>
    %461 = arith.negf %460 : vector<8x128xf32>
    %462 = math.exp %461 : vector<8x128xf32>
    %cst_236 = arith.constant 1.000000e+00 : f32
    %463 = vector.broadcast %cst_236 : f32 to vector<8x128xf32>
    %464 = arith.addf %463, %462 : vector<8x128xf32>
    %465 = arith.divf %463, %464 : vector<8x128xf32>
    %466 = vector.extract_strided_slice %459 {offsets = [0, 128], sizes = [8, 128], strides = [1, 1]} : vector<8x512xf32> to vector<8x128xf32>
    %467 = arith.negf %466 : vector<8x128xf32>
    %468 = math.exp %467 : vector<8x128xf32>
    %cst_237 = arith.constant 1.000000e+00 : f32
    %469 = vector.broadcast %cst_237 : f32 to vector<8x128xf32>
    %470 = arith.addf %469, %468 : vector<8x128xf32>
    %471 = arith.divf %469, %470 : vector<8x128xf32>
    %472 = vector.extract_strided_slice %459 {offsets = [0, 256], sizes = [8, 128], strides = [1, 1]} : vector<8x512xf32> to vector<8x128xf32>
    %473 = math.tanh %472 : vector<8x128xf32>
    %474 = vector.extract_strided_slice %459 {offsets = [0, 384], sizes = [8, 128], strides = [1, 1]} : vector<8x512xf32> to vector<8x128xf32>
    %475 = arith.negf %474 : vector<8x128xf32>
    %476 = math.exp %475 : vector<8x128xf32>
    %cst_238 = arith.constant 1.000000e+00 : f32
    %477 = vector.broadcast %cst_238 : f32 to vector<8x128xf32>
    %478 = arith.addf %477, %476 : vector<8x128xf32>
    %479 = arith.divf %477, %478 : vector<8x128xf32>
    %480 = arith.mulf %471, %453 : vector<8x128xf32>
    %481 = arith.mulf %465, %473 : vector<8x128xf32>
    %482 = arith.addf %480, %481 : vector<8x128xf32>
    %483 = math.tanh %482 : vector<8x128xf32>
    %484 = arith.mulf %479, %483 : vector<8x128xf32>
    %c1_239 = arith.constant 1 : index
    %c0_240 = arith.constant 0 : index
    %c0_241 = arith.constant 0 : index
    %485 = vector.load %arg9[%c1_239, %c0_240, %c0_241] : memref<2x8x128xf32, #tpu.memory_space<vmem>>, vector<1x8x128xf32>
    %486 = vector.shape_cast %485 : vector<1x8x128xf32> to vector<8x128xf32>
    %487 = arith.select %389, %484, %486 : vector<8x128xi1>, vector<8x128xf32>
    %c1_242 = arith.constant 1 : index
    %c0_243 = arith.constant 0 : index
    %c0_244 = arith.constant 0 : index
    %488 = vector.load %arg9[%c1_242, %c0_243, %c0_244] : memref<2x8x128xf32, #tpu.memory_space<vmem>>, vector<1x8x128xf32>
    %489 = vector.shape_cast %488 : vector<1x8x128xf32> to vector<8x128xf32>
    %490 = vector.shape_cast %487 : vector<8x128xf32> to vector<1x8x128xf32>
    tpu.vector_store %arg9[%c1_242, %c0_243, %c0_244], %490 {strides = array<i32>} : memref<2x8x128xf32, #tpu.memory_space<vmem>>, vector<1x8x128xf32>,
    %c1_245 = arith.constant 1 : index
    %c0_246 = arith.constant 0 : index
    %c0_247 = arith.constant 0 : index
    %491 = vector.load %arg10[%c1_245, %c0_246, %c0_247] : memref<2x8x128xf32, #tpu.memory_space<vmem>>, vector<1x8x128xf32>
    %492 = vector.shape_cast %491 : vector<1x8x128xf32> to vector<8x128xf32>
    %493 = arith.select %389, %482, %492 : vector<8x128xi1>, vector<8x128xf32>
    %c1_248 = arith.constant 1 : index
    %c0_249 = arith.constant 0 : index
    %c0_250 = arith.constant 0 : index
    %494 = vector.load %arg10[%c1_248, %c0_249, %c0_250] : memref<2x8x128xf32, #tpu.memory_space<vmem>>, vector<1x8x128xf32>
    %495 = vector.shape_cast %494 : vector<1x8x128xf32> to vector<8x128xf32>
    %496 = vector.shape_cast %493 : vector<8x128xf32> to vector<1x8x128xf32>
    tpu.vector_store %arg10[%c1_248, %c0_249, %c0_250], %496 {strides = array<i32>} : memref<2x8x128xf32, #tpu.memory_space<vmem>>, vector<1x8x128xf32>,
    %cst_251 = arith.constant 0.000000e+00 : f32
    %497 = vector.broadcast %cst_251 : f32 to vector<8x128xf32>
    %498 = arith.select %389, %484, %497 : vector<8x128xi1>, vector<8x128xf32>
    %c7_i32_252 = arith.constant 7 : i32
    %499 = arith.subi %c7_i32_252, %c3_i32 : i32
    %500 = arith.index_cast %499 : i32 to index
    %c0_253 = arith.constant 0 : index
    %c0_254 = arith.constant 0 : index
    %501 = vector.load %arg6[%500, %c0_253, %c0_254] : memref<8x8x128xf32, #tpu.memory_space<vmem>>, vector<1x8x128xf32>
    %502 = vector.shape_cast %501 : vector<1x8x128xf32> to vector<8x128xf32>
    %503 = vector.shape_cast %498 : vector<8x128xf32> to vector<1x8x128xf32>
    tpu.vector_store %arg6[%500, %c0_253, %c0_254], %503 {strides = array<i32>} : memref<8x8x128xf32, #tpu.memory_space<vmem>>, vector<1x8x128xf32>,
    %c4_i32 = arith.constant 4 : i32
    %c8_i32_255 = arith.constant 8 : i32
    %504 = arith.muli %arg0, %c8_i32_255 : i32
    %505 = arith.addi %504, %c4_i32 : i32
    %c7_i32_256 = arith.constant 7 : i32
    %506 = arith.subi %c7_i32_256, %505 : i32
    %507 = vector.broadcast %505 : i32 to vector<8x1xi32>
    %508 = arith.cmpi slt, %507, %3 : vector<8x1xi32>
    %509 = vector.shape_cast %508 : vector<8x1xi1> to vector<8x1xi1>
    %510 = vector.broadcast %509 : vector<8x1xi1> to vector<8x128xi1>
    %511 = vector.broadcast %506 : i32 to vector<8x1xi32>
    %512 = arith.cmpi slt, %511, %3 : vector<8x1xi32>
    %513 = vector.shape_cast %512 : vector<8x1xi1> to vector<8x1xi1>
    %514 = vector.broadcast %513 : vector<8x1xi1> to vector<8x128xi1>
    %515 = arith.index_cast %c4_i32 : i32 to index
    %c0_257 = arith.constant 0 : index
    %c0_258 = arith.constant 0 : index
    %516 = vector.load %arg2[%515, %c0_257, %c0_258] : memref<8x8x512xbf16, #tpu.memory_space<vmem>>, vector<1x8x512xbf16>
    %517 = vector.shape_cast %516 : vector<1x8x512xbf16> to vector<8x512xbf16>
    %c0_259 = arith.constant 0 : index
    %c0_260 = arith.constant 0 : index
    %c0_261 = arith.constant 0 : index
    %518 = vector.load %arg9[%c0_259, %c0_260, %c0_261] : memref<2x8x128xf32, #tpu.memory_space<vmem>>, vector<1x8x128xf32>
    %519 = vector.shape_cast %518 : vector<1x8x128xf32> to vector<8x128xf32>
    %c0_262 = arith.constant 0 : index
    %c0_263 = arith.constant 0 : index
    %c0_264 = arith.constant 0 : index
    %520 = vector.load %arg10[%c0_262, %c0_263, %c0_264] : memref<2x8x128xf32, #tpu.memory_space<vmem>>, vector<1x8x128xf32>
    %521 = vector.shape_cast %520 : vector<1x8x128xf32> to vector<8x128xf32>
    %c0_265 = arith.constant 0 : index
    %c0_266 = arith.constant 0 : index
    %c0_267 = arith.constant 0 : index
    %522 = vector.load %arg4[%c0_265, %c0_266, %c0_267] : memref<2x128x512xbf16, #tpu.memory_space<vmem>>, vector<1x128x512xbf16>
    %523 = vector.shape_cast %522 : vector<1x128x512xbf16> to vector<128x512xbf16>
    %524 = arith.extf %517 : vector<8x512xbf16> to vector<8x512xf32>
    %525 = arith.truncf %519 : vector<8x128xf32> to vector<8x128xbf16>
    %cst_268 = arith.constant dense<0.000000e+00> : vector<8x512xf32>
    %526 = tpu.matmul %525, %523, %cst_268 {dimension_numbers = #tpu.dot_dimension_numbers<[1], [0], [0], [1], [0, 0, 1, 1], [], []>} : vector<8x128xbf16>, vector<128x512xbf16>, vector<8x512xf32> -> vector<8x512xf32>
    %527 = arith.addf %524, %526 : vector<8x512xf32>
    %528 = vector.extract_strided_slice %527 {offsets = [0, 0], sizes = [8, 128], strides = [1, 1]} : vector<8x512xf32> to vector<8x128xf32>
    %529 = arith.negf %528 : vector<8x128xf32>
    %530 = math.exp %529 : vector<8x128xf32>
    %cst_269 = arith.constant 1.000000e+00 : f32
    %531 = vector.broadcast %cst_269 : f32 to vector<8x128xf32>
    %532 = arith.addf %531, %530 : vector<8x128xf32>
    %533 = arith.divf %531, %532 : vector<8x128xf32>
    %534 = vector.extract_strided_slice %527 {offsets = [0, 128], sizes = [8, 128], strides = [1, 1]} : vector<8x512xf32> to vector<8x128xf32>
    %535 = arith.negf %534 : vector<8x128xf32>
    %536 = math.exp %535 : vector<8x128xf32>
    %cst_270 = arith.constant 1.000000e+00 : f32
    %537 = vector.broadcast %cst_270 : f32 to vector<8x128xf32>
    %538 = arith.addf %537, %536 : vector<8x128xf32>
    %539 = arith.divf %537, %538 : vector<8x128xf32>
    %540 = vector.extract_strided_slice %527 {offsets = [0, 256], sizes = [8, 128], strides = [1, 1]} : vector<8x512xf32> to vector<8x128xf32>
    %541 = math.tanh %540 : vector<8x128xf32>
    %542 = vector.extract_strided_slice %527 {offsets = [0, 384], sizes = [8, 128], strides = [1, 1]} : vector<8x512xf32> to vector<8x128xf32>
    %543 = arith.negf %542 : vector<8x128xf32>
    %544 = math.exp %543 : vector<8x128xf32>
    %cst_271 = arith.constant 1.000000e+00 : f32
    %545 = vector.broadcast %cst_271 : f32 to vector<8x128xf32>
    %546 = arith.addf %545, %544 : vector<8x128xf32>
    %547 = arith.divf %545, %546 : vector<8x128xf32>
    %548 = arith.mulf %539, %521 : vector<8x128xf32>
    %549 = arith.mulf %533, %541 : vector<8x128xf32>
    %550 = arith.addf %548, %549 : vector<8x128xf32>
    %551 = math.tanh %550 : vector<8x128xf32>
    %552 = arith.mulf %547, %551 : vector<8x128xf32>
    %c0_272 = arith.constant 0 : index
    %c0_273 = arith.constant 0 : index
    %c0_274 = arith.constant 0 : index
    %553 = vector.load %arg9[%c0_272, %c0_273, %c0_274] : memref<2x8x128xf32, #tpu.memory_space<vmem>>, vector<1x8x128xf32>
    %554 = vector.shape_cast %553 : vector<1x8x128xf32> to vector<8x128xf32>
    %555 = arith.select %510, %552, %554 : vector<8x128xi1>, vector<8x128xf32>
    %c0_275 = arith.constant 0 : index
    %c0_276 = arith.constant 0 : index
    %c0_277 = arith.constant 0 : index
    %556 = vector.load %arg9[%c0_275, %c0_276, %c0_277] : memref<2x8x128xf32, #tpu.memory_space<vmem>>, vector<1x8x128xf32>
    %557 = vector.shape_cast %556 : vector<1x8x128xf32> to vector<8x128xf32>
    %558 = vector.shape_cast %555 : vector<8x128xf32> to vector<1x8x128xf32>
    tpu.vector_store %arg9[%c0_275, %c0_276, %c0_277], %558 {strides = array<i32>} : memref<2x8x128xf32, #tpu.memory_space<vmem>>, vector<1x8x128xf32>,
    %c0_278 = arith.constant 0 : index
    %c0_279 = arith.constant 0 : index
    %c0_280 = arith.constant 0 : index
    %559 = vector.load %arg10[%c0_278, %c0_279, %c0_280] : memref<2x8x128xf32, #tpu.memory_space<vmem>>, vector<1x8x128xf32>
    %560 = vector.shape_cast %559 : vector<1x8x128xf32> to vector<8x128xf32>
    %561 = arith.select %510, %550, %560 : vector<8x128xi1>, vector<8x128xf32>
    %c0_281 = arith.constant 0 : index
    %c0_282 = arith.constant 0 : index
    %c0_283 = arith.constant 0 : index
    %562 = vector.load %arg10[%c0_281, %c0_282, %c0_283] : memref<2x8x128xf32, #tpu.memory_space<vmem>>, vector<1x8x128xf32>
    %563 = vector.shape_cast %562 : vector<1x8x128xf32> to vector<8x128xf32>
    %564 = vector.shape_cast %561 : vector<8x128xf32> to vector<1x8x128xf32>
    tpu.vector_store %arg10[%c0_281, %c0_282, %c0_283], %564 {strides = array<i32>} : memref<2x8x128xf32, #tpu.memory_space<vmem>>, vector<1x8x128xf32>,
    %cst_284 = arith.constant 0.000000e+00 : f32
    %565 = vector.broadcast %cst_284 : f32 to vector<8x128xf32>
    %566 = arith.select %510, %552, %565 : vector<8x128xi1>, vector<8x128xf32>
    %567 = arith.index_cast %c4_i32 : i32 to index
    %c0_285 = arith.constant 0 : index
    %c0_286 = arith.constant 0 : index
    %568 = vector.load %arg5[%567, %c0_285, %c0_286] : memref<8x8x128xf32, #tpu.memory_space<vmem>>, vector<1x8x128xf32>
    %569 = vector.shape_cast %568 : vector<1x8x128xf32> to vector<8x128xf32>
    %570 = vector.shape_cast %566 : vector<8x128xf32> to vector<1x8x128xf32>
    tpu.vector_store %arg5[%567, %c0_285, %c0_286], %570 {strides = array<i32>} : memref<8x8x128xf32, #tpu.memory_space<vmem>>, vector<1x8x128xf32>,
    %c7_i32_287 = arith.constant 7 : i32
    %571 = arith.subi %c7_i32_287, %c4_i32 : i32
    %572 = arith.index_cast %571 : i32 to index
    %c0_288 = arith.constant 0 : index
    %c0_289 = arith.constant 0 : index
    %573 = vector.load %arg3[%572, %c0_288, %c0_289] : memref<8x8x512xbf16, #tpu.memory_space<vmem>>, vector<1x8x512xbf16>
    %574 = vector.shape_cast %573 : vector<1x8x512xbf16> to vector<8x512xbf16>
    %c1_290 = arith.constant 1 : index
    %c0_291 = arith.constant 0 : index
    %c0_292 = arith.constant 0 : index
    %575 = vector.load %arg9[%c1_290, %c0_291, %c0_292] : memref<2x8x128xf32, #tpu.memory_space<vmem>>, vector<1x8x128xf32>
    %576 = vector.shape_cast %575 : vector<1x8x128xf32> to vector<8x128xf32>
    %c1_293 = arith.constant 1 : index
    %c0_294 = arith.constant 0 : index
    %c0_295 = arith.constant 0 : index
    %577 = vector.load %arg10[%c1_293, %c0_294, %c0_295] : memref<2x8x128xf32, #tpu.memory_space<vmem>>, vector<1x8x128xf32>
    %578 = vector.shape_cast %577 : vector<1x8x128xf32> to vector<8x128xf32>
    %c1_296 = arith.constant 1 : index
    %c0_297 = arith.constant 0 : index
    %c0_298 = arith.constant 0 : index
    %579 = vector.load %arg4[%c1_296, %c0_297, %c0_298] : memref<2x128x512xbf16, #tpu.memory_space<vmem>>, vector<1x128x512xbf16>
    %580 = vector.shape_cast %579 : vector<1x128x512xbf16> to vector<128x512xbf16>
    %581 = arith.extf %574 : vector<8x512xbf16> to vector<8x512xf32>
    %582 = arith.truncf %576 : vector<8x128xf32> to vector<8x128xbf16>
    %cst_299 = arith.constant dense<0.000000e+00> : vector<8x512xf32>
    %583 = tpu.matmul %582, %580, %cst_299 {dimension_numbers = #tpu.dot_dimension_numbers<[1], [0], [0], [1], [0, 0, 1, 1], [], []>} : vector<8x128xbf16>, vector<128x512xbf16>, vector<8x512xf32> -> vector<8x512xf32>
    %584 = arith.addf %581, %583 : vector<8x512xf32>
    %585 = vector.extract_strided_slice %584 {offsets = [0, 0], sizes = [8, 128], strides = [1, 1]} : vector<8x512xf32> to vector<8x128xf32>
    %586 = arith.negf %585 : vector<8x128xf32>
    %587 = math.exp %586 : vector<8x128xf32>
    %cst_300 = arith.constant 1.000000e+00 : f32
    %588 = vector.broadcast %cst_300 : f32 to vector<8x128xf32>
    %589 = arith.addf %588, %587 : vector<8x128xf32>
    %590 = arith.divf %588, %589 : vector<8x128xf32>
    %591 = vector.extract_strided_slice %584 {offsets = [0, 128], sizes = [8, 128], strides = [1, 1]} : vector<8x512xf32> to vector<8x128xf32>
    %592 = arith.negf %591 : vector<8x128xf32>
    %593 = math.exp %592 : vector<8x128xf32>
    %cst_301 = arith.constant 1.000000e+00 : f32
    %594 = vector.broadcast %cst_301 : f32 to vector<8x128xf32>
    %595 = arith.addf %594, %593 : vector<8x128xf32>
    %596 = arith.divf %594, %595 : vector<8x128xf32>
    %597 = vector.extract_strided_slice %584 {offsets = [0, 256], sizes = [8, 128], strides = [1, 1]} : vector<8x512xf32> to vector<8x128xf32>
    %598 = math.tanh %597 : vector<8x128xf32>
    %599 = vector.extract_strided_slice %584 {offsets = [0, 384], sizes = [8, 128], strides = [1, 1]} : vector<8x512xf32> to vector<8x128xf32>
    %600 = arith.negf %599 : vector<8x128xf32>
    %601 = math.exp %600 : vector<8x128xf32>
    %cst_302 = arith.constant 1.000000e+00 : f32
    %602 = vector.broadcast %cst_302 : f32 to vector<8x128xf32>
    %603 = arith.addf %602, %601 : vector<8x128xf32>
    %604 = arith.divf %602, %603 : vector<8x128xf32>
    %605 = arith.mulf %596, %578 : vector<8x128xf32>
    %606 = arith.mulf %590, %598 : vector<8x128xf32>
    %607 = arith.addf %605, %606 : vector<8x128xf32>
    %608 = math.tanh %607 : vector<8x128xf32>
    %609 = arith.mulf %604, %608 : vector<8x128xf32>
    %c1_303 = arith.constant 1 : index
    %c0_304 = arith.constant 0 : index
    %c0_305 = arith.constant 0 : index
    %610 = vector.load %arg9[%c1_303, %c0_304, %c0_305] : memref<2x8x128xf32, #tpu.memory_space<vmem>>, vector<1x8x128xf32>
    %611 = vector.shape_cast %610 : vector<1x8x128xf32> to vector<8x128xf32>
    %612 = arith.select %514, %609, %611 : vector<8x128xi1>, vector<8x128xf32>
    %c1_306 = arith.constant 1 : index
    %c0_307 = arith.constant 0 : index
    %c0_308 = arith.constant 0 : index
    %613 = vector.load %arg9[%c1_306, %c0_307, %c0_308] : memref<2x8x128xf32, #tpu.memory_space<vmem>>, vector<1x8x128xf32>
    %614 = vector.shape_cast %613 : vector<1x8x128xf32> to vector<8x128xf32>
    %615 = vector.shape_cast %612 : vector<8x128xf32> to vector<1x8x128xf32>
    tpu.vector_store %arg9[%c1_306, %c0_307, %c0_308], %615 {strides = array<i32>} : memref<2x8x128xf32, #tpu.memory_space<vmem>>, vector<1x8x128xf32>,
    %c1_309 = arith.constant 1 : index
    %c0_310 = arith.constant 0 : index
    %c0_311 = arith.constant 0 : index
    %616 = vector.load %arg10[%c1_309, %c0_310, %c0_311] : memref<2x8x128xf32, #tpu.memory_space<vmem>>, vector<1x8x128xf32>
    %617 = vector.shape_cast %616 : vector<1x8x128xf32> to vector<8x128xf32>
    %618 = arith.select %514, %607, %617 : vector<8x128xi1>, vector<8x128xf32>
    %c1_312 = arith.constant 1 : index
    %c0_313 = arith.constant 0 : index
    %c0_314 = arith.constant 0 : index
    %619 = vector.load %arg10[%c1_312, %c0_313, %c0_314] : memref<2x8x128xf32, #tpu.memory_space<vmem>>, vector<1x8x128xf32>
    %620 = vector.shape_cast %619 : vector<1x8x128xf32> to vector<8x128xf32>
    %621 = vector.shape_cast %618 : vector<8x128xf32> to vector<1x8x128xf32>
    tpu.vector_store %arg10[%c1_312, %c0_313, %c0_314], %621 {strides = array<i32>} : memref<2x8x128xf32, #tpu.memory_space<vmem>>, vector<1x8x128xf32>,
    %cst_315 = arith.constant 0.000000e+00 : f32
    %622 = vector.broadcast %cst_315 : f32 to vector<8x128xf32>
    %623 = arith.select %514, %609, %622 : vector<8x128xi1>, vector<8x128xf32>
    %c7_i32_316 = arith.constant 7 : i32
    %624 = arith.subi %c7_i32_316, %c4_i32 : i32
    %625 = arith.index_cast %624 : i32 to index
    %c0_317 = arith.constant 0 : index
    %c0_318 = arith.constant 0 : index
    %626 = vector.load %arg6[%625, %c0_317, %c0_318] : memref<8x8x128xf32, #tpu.memory_space<vmem>>, vector<1x8x128xf32>
    %627 = vector.shape_cast %626 : vector<1x8x128xf32> to vector<8x128xf32>
    %628 = vector.shape_cast %623 : vector<8x128xf32> to vector<1x8x128xf32>
    tpu.vector_store %arg6[%625, %c0_317, %c0_318], %628 {strides = array<i32>} : memref<8x8x128xf32, #tpu.memory_space<vmem>>, vector<1x8x128xf32>,
    %c5_i32 = arith.constant 5 : i32
    %c8_i32_319 = arith.constant 8 : i32
    %629 = arith.muli %arg0, %c8_i32_319 : i32
    %630 = arith.addi %629, %c5_i32 : i32
    %c7_i32_320 = arith.constant 7 : i32
    %631 = arith.subi %c7_i32_320, %630 : i32
    %632 = vector.broadcast %630 : i32 to vector<8x1xi32>
    %633 = arith.cmpi slt, %632, %3 : vector<8x1xi32>
    %634 = vector.shape_cast %633 : vector<8x1xi1> to vector<8x1xi1>
    %635 = vector.broadcast %634 : vector<8x1xi1> to vector<8x128xi1>
    %636 = vector.broadcast %631 : i32 to vector<8x1xi32>
    %637 = arith.cmpi slt, %636, %3 : vector<8x1xi32>
    %638 = vector.shape_cast %637 : vector<8x1xi1> to vector<8x1xi1>
    %639 = vector.broadcast %638 : vector<8x1xi1> to vector<8x128xi1>
    %640 = arith.index_cast %c5_i32 : i32 to index
    %c0_321 = arith.constant 0 : index
    %c0_322 = arith.constant 0 : index
    %641 = vector.load %arg2[%640, %c0_321, %c0_322] : memref<8x8x512xbf16, #tpu.memory_space<vmem>>, vector<1x8x512xbf16>
    %642 = vector.shape_cast %641 : vector<1x8x512xbf16> to vector<8x512xbf16>
    %c0_323 = arith.constant 0 : index
    %c0_324 = arith.constant 0 : index
    %c0_325 = arith.constant 0 : index
    %643 = vector.load %arg9[%c0_323, %c0_324, %c0_325] : memref<2x8x128xf32, #tpu.memory_space<vmem>>, vector<1x8x128xf32>
    %644 = vector.shape_cast %643 : vector<1x8x128xf32> to vector<8x128xf32>
    %c0_326 = arith.constant 0 : index
    %c0_327 = arith.constant 0 : index
    %c0_328 = arith.constant 0 : index
    %645 = vector.load %arg10[%c0_326, %c0_327, %c0_328] : memref<2x8x128xf32, #tpu.memory_space<vmem>>, vector<1x8x128xf32>
    %646 = vector.shape_cast %645 : vector<1x8x128xf32> to vector<8x128xf32>
    %c0_329 = arith.constant 0 : index
    %c0_330 = arith.constant 0 : index
    %c0_331 = arith.constant 0 : index
    %647 = vector.load %arg4[%c0_329, %c0_330, %c0_331] : memref<2x128x512xbf16, #tpu.memory_space<vmem>>, vector<1x128x512xbf16>
    %648 = vector.shape_cast %647 : vector<1x128x512xbf16> to vector<128x512xbf16>
    %649 = arith.extf %642 : vector<8x512xbf16> to vector<8x512xf32>
    %650 = arith.truncf %644 : vector<8x128xf32> to vector<8x128xbf16>
    %cst_332 = arith.constant dense<0.000000e+00> : vector<8x512xf32>
    %651 = tpu.matmul %650, %648, %cst_332 {dimension_numbers = #tpu.dot_dimension_numbers<[1], [0], [0], [1], [0, 0, 1, 1], [], []>} : vector<8x128xbf16>, vector<128x512xbf16>, vector<8x512xf32> -> vector<8x512xf32>
    %652 = arith.addf %649, %651 : vector<8x512xf32>
    %653 = vector.extract_strided_slice %652 {offsets = [0, 0], sizes = [8, 128], strides = [1, 1]} : vector<8x512xf32> to vector<8x128xf32>
    %654 = arith.negf %653 : vector<8x128xf32>
    %655 = math.exp %654 : vector<8x128xf32>
    %cst_333 = arith.constant 1.000000e+00 : f32
    %656 = vector.broadcast %cst_333 : f32 to vector<8x128xf32>
    %657 = arith.addf %656, %655 : vector<8x128xf32>
    %658 = arith.divf %656, %657 : vector<8x128xf32>
    %659 = vector.extract_strided_slice %652 {offsets = [0, 128], sizes = [8, 128], strides = [1, 1]} : vector<8x512xf32> to vector<8x128xf32>
    %660 = arith.negf %659 : vector<8x128xf32>
    %661 = math.exp %660 : vector<8x128xf32>
    %cst_334 = arith.constant 1.000000e+00 : f32
    %662 = vector.broadcast %cst_334 : f32 to vector<8x128xf32>
    %663 = arith.addf %662, %661 : vector<8x128xf32>
    %664 = arith.divf %662, %663 : vector<8x128xf32>
    %665 = vector.extract_strided_slice %652 {offsets = [0, 256], sizes = [8, 128], strides = [1, 1]} : vector<8x512xf32> to vector<8x128xf32>
    %666 = math.tanh %665 : vector<8x128xf32>
    %667 = vector.extract_strided_slice %652 {offsets = [0, 384], sizes = [8, 128], strides = [1, 1]} : vector<8x512xf32> to vector<8x128xf32>
    %668 = arith.negf %667 : vector<8x128xf32>
    %669 = math.exp %668 : vector<8x128xf32>
    %cst_335 = arith.constant 1.000000e+00 : f32
    %670 = vector.broadcast %cst_335 : f32 to vector<8x128xf32>
    %671 = arith.addf %670, %669 : vector<8x128xf32>
    %672 = arith.divf %670, %671 : vector<8x128xf32>
    %673 = arith.mulf %664, %646 : vector<8x128xf32>
    %674 = arith.mulf %658, %666 : vector<8x128xf32>
    %675 = arith.addf %673, %674 : vector<8x128xf32>
    %676 = math.tanh %675 : vector<8x128xf32>
    %677 = arith.mulf %672, %676 : vector<8x128xf32>
    %c0_336 = arith.constant 0 : index
    %c0_337 = arith.constant 0 : index
    %c0_338 = arith.constant 0 : index
    %678 = vector.load %arg9[%c0_336, %c0_337, %c0_338] : memref<2x8x128xf32, #tpu.memory_space<vmem>>, vector<1x8x128xf32>
    %679 = vector.shape_cast %678 : vector<1x8x128xf32> to vector<8x128xf32>
    %680 = arith.select %635, %677, %679 : vector<8x128xi1>, vector<8x128xf32>
    %c0_339 = arith.constant 0 : index
    %c0_340 = arith.constant 0 : index
    %c0_341 = arith.constant 0 : index
    %681 = vector.load %arg9[%c0_339, %c0_340, %c0_341] : memref<2x8x128xf32, #tpu.memory_space<vmem>>, vector<1x8x128xf32>
    %682 = vector.shape_cast %681 : vector<1x8x128xf32> to vector<8x128xf32>
    %683 = vector.shape_cast %680 : vector<8x128xf32> to vector<1x8x128xf32>
    tpu.vector_store %arg9[%c0_339, %c0_340, %c0_341], %683 {strides = array<i32>} : memref<2x8x128xf32, #tpu.memory_space<vmem>>, vector<1x8x128xf32>,
    %c0_342 = arith.constant 0 : index
    %c0_343 = arith.constant 0 : index
    %c0_344 = arith.constant 0 : index
    %684 = vector.load %arg10[%c0_342, %c0_343, %c0_344] : memref<2x8x128xf32, #tpu.memory_space<vmem>>, vector<1x8x128xf32>
    %685 = vector.shape_cast %684 : vector<1x8x128xf32> to vector<8x128xf32>
    %686 = arith.select %635, %675, %685 : vector<8x128xi1>, vector<8x128xf32>
    %c0_345 = arith.constant 0 : index
    %c0_346 = arith.constant 0 : index
    %c0_347 = arith.constant 0 : index
    %687 = vector.load %arg10[%c0_345, %c0_346, %c0_347] : memref<2x8x128xf32, #tpu.memory_space<vmem>>, vector<1x8x128xf32>
    %688 = vector.shape_cast %687 : vector<1x8x128xf32> to vector<8x128xf32>
    %689 = vector.shape_cast %686 : vector<8x128xf32> to vector<1x8x128xf32>
    tpu.vector_store %arg10[%c0_345, %c0_346, %c0_347], %689 {strides = array<i32>} : memref<2x8x128xf32, #tpu.memory_space<vmem>>, vector<1x8x128xf32>,
    %cst_348 = arith.constant 0.000000e+00 : f32
    %690 = vector.broadcast %cst_348 : f32 to vector<8x128xf32>
    %691 = arith.select %635, %677, %690 : vector<8x128xi1>, vector<8x128xf32>
    %692 = arith.index_cast %c5_i32 : i32 to index
    %c0_349 = arith.constant 0 : index
    %c0_350 = arith.constant 0 : index
    %693 = vector.load %arg5[%692, %c0_349, %c0_350] : memref<8x8x128xf32, #tpu.memory_space<vmem>>, vector<1x8x128xf32>
    %694 = vector.shape_cast %693 : vector<1x8x128xf32> to vector<8x128xf32>
    %695 = vector.shape_cast %691 : vector<8x128xf32> to vector<1x8x128xf32>
    tpu.vector_store %arg5[%692, %c0_349, %c0_350], %695 {strides = array<i32>} : memref<8x8x128xf32, #tpu.memory_space<vmem>>, vector<1x8x128xf32>,
    %c7_i32_351 = arith.constant 7 : i32
    %696 = arith.subi %c7_i32_351, %c5_i32 : i32
    %697 = arith.index_cast %696 : i32 to index
    %c0_352 = arith.constant 0 : index
    %c0_353 = arith.constant 0 : index
    %698 = vector.load %arg3[%697, %c0_352, %c0_353] : memref<8x8x512xbf16, #tpu.memory_space<vmem>>, vector<1x8x512xbf16>
    %699 = vector.shape_cast %698 : vector<1x8x512xbf16> to vector<8x512xbf16>
    %c1_354 = arith.constant 1 : index
    %c0_355 = arith.constant 0 : index
    %c0_356 = arith.constant 0 : index
    %700 = vector.load %arg9[%c1_354, %c0_355, %c0_356] : memref<2x8x128xf32, #tpu.memory_space<vmem>>, vector<1x8x128xf32>
    %701 = vector.shape_cast %700 : vector<1x8x128xf32> to vector<8x128xf32>
    %c1_357 = arith.constant 1 : index
    %c0_358 = arith.constant 0 : index
    %c0_359 = arith.constant 0 : index
    %702 = vector.load %arg10[%c1_357, %c0_358, %c0_359] : memref<2x8x128xf32, #tpu.memory_space<vmem>>, vector<1x8x128xf32>
    %703 = vector.shape_cast %702 : vector<1x8x128xf32> to vector<8x128xf32>
    %c1_360 = arith.constant 1 : index
    %c0_361 = arith.constant 0 : index
    %c0_362 = arith.constant 0 : index
    %704 = vector.load %arg4[%c1_360, %c0_361, %c0_362] : memref<2x128x512xbf16, #tpu.memory_space<vmem>>, vector<1x128x512xbf16>
    %705 = vector.shape_cast %704 : vector<1x128x512xbf16> to vector<128x512xbf16>
    %706 = arith.extf %699 : vector<8x512xbf16> to vector<8x512xf32>
    %707 = arith.truncf %701 : vector<8x128xf32> to vector<8x128xbf16>
    %cst_363 = arith.constant dense<0.000000e+00> : vector<8x512xf32>
    %708 = tpu.matmul %707, %705, %cst_363 {dimension_numbers = #tpu.dot_dimension_numbers<[1], [0], [0], [1], [0, 0, 1, 1], [], []>} : vector<8x128xbf16>, vector<128x512xbf16>, vector<8x512xf32> -> vector<8x512xf32>
    %709 = arith.addf %706, %708 : vector<8x512xf32>
    %710 = vector.extract_strided_slice %709 {offsets = [0, 0], sizes = [8, 128], strides = [1, 1]} : vector<8x512xf32> to vector<8x128xf32>
    %711 = arith.negf %710 : vector<8x128xf32>
    %712 = math.exp %711 : vector<8x128xf32>
    %cst_364 = arith.constant 1.000000e+00 : f32
    %713 = vector.broadcast %cst_364 : f32 to vector<8x128xf32>
    %714 = arith.addf %713, %712 : vector<8x128xf32>
    %715 = arith.divf %713, %714 : vector<8x128xf32>
    %716 = vector.extract_strided_slice %709 {offsets = [0, 128], sizes = [8, 128], strides = [1, 1]} : vector<8x512xf32> to vector<8x128xf32>
    %717 = arith.negf %716 : vector<8x128xf32>
    %718 = math.exp %717 : vector<8x128xf32>
    %cst_365 = arith.constant 1.000000e+00 : f32
    %719 = vector.broadcast %cst_365 : f32 to vector<8x128xf32>
    %720 = arith.addf %719, %718 : vector<8x128xf32>
    %721 = arith.divf %719, %720 : vector<8x128xf32>
    %722 = vector.extract_strided_slice %709 {offsets = [0, 256], sizes = [8, 128], strides = [1, 1]} : vector<8x512xf32> to vector<8x128xf32>
    %723 = math.tanh %722 : vector<8x128xf32>
    %724 = vector.extract_strided_slice %709 {offsets = [0, 384], sizes = [8, 128], strides = [1, 1]} : vector<8x512xf32> to vector<8x128xf32>
    %725 = arith.negf %724 : vector<8x128xf32>
    %726 = math.exp %725 : vector<8x128xf32>
    %cst_366 = arith.constant 1.000000e+00 : f32
    %727 = vector.broadcast %cst_366 : f32 to vector<8x128xf32>
    %728 = arith.addf %727, %726 : vector<8x128xf32>
    %729 = arith.divf %727, %728 : vector<8x128xf32>
    %730 = arith.mulf %721, %703 : vector<8x128xf32>
    %731 = arith.mulf %715, %723 : vector<8x128xf32>
    %732 = arith.addf %730, %731 : vector<8x128xf32>
    %733 = math.tanh %732 : vector<8x128xf32>
    %734 = arith.mulf %729, %733 : vector<8x128xf32>
    %c1_367 = arith.constant 1 : index
    %c0_368 = arith.constant 0 : index
    %c0_369 = arith.constant 0 : index
    %735 = vector.load %arg9[%c1_367, %c0_368, %c0_369] : memref<2x8x128xf32, #tpu.memory_space<vmem>>, vector<1x8x128xf32>
    %736 = vector.shape_cast %735 : vector<1x8x128xf32> to vector<8x128xf32>
    %737 = arith.select %639, %734, %736 : vector<8x128xi1>, vector<8x128xf32>
    %c1_370 = arith.constant 1 : index
    %c0_371 = arith.constant 0 : index
    %c0_372 = arith.constant 0 : index
    %738 = vector.load %arg9[%c1_370, %c0_371, %c0_372] : memref<2x8x128xf32, #tpu.memory_space<vmem>>, vector<1x8x128xf32>
    %739 = vector.shape_cast %738 : vector<1x8x128xf32> to vector<8x128xf32>
    %740 = vector.shape_cast %737 : vector<8x128xf32> to vector<1x8x128xf32>
    tpu.vector_store %arg9[%c1_370, %c0_371, %c0_372], %740 {strides = array<i32>} : memref<2x8x128xf32, #tpu.memory_space<vmem>>, vector<1x8x128xf32>,
    %c1_373 = arith.constant 1 : index
    %c0_374 = arith.constant 0 : index
    %c0_375 = arith.constant 0 : index
    %741 = vector.load %arg10[%c1_373, %c0_374, %c0_375] : memref<2x8x128xf32, #tpu.memory_space<vmem>>, vector<1x8x128xf32>
    %742 = vector.shape_cast %741 : vector<1x8x128xf32> to vector<8x128xf32>
    %743 = arith.select %639, %732, %742 : vector<8x128xi1>, vector<8x128xf32>
    %c1_376 = arith.constant 1 : index
    %c0_377 = arith.constant 0 : index
    %c0_378 = arith.constant 0 : index
    %744 = vector.load %arg10[%c1_376, %c0_377, %c0_378] : memref<2x8x128xf32, #tpu.memory_space<vmem>>, vector<1x8x128xf32>
    %745 = vector.shape_cast %744 : vector<1x8x128xf32> to vector<8x128xf32>
    %746 = vector.shape_cast %743 : vector<8x128xf32> to vector<1x8x128xf32>
    tpu.vector_store %arg10[%c1_376, %c0_377, %c0_378], %746 {strides = array<i32>} : memref<2x8x128xf32, #tpu.memory_space<vmem>>, vector<1x8x128xf32>,
    %cst_379 = arith.constant 0.000000e+00 : f32
    %747 = vector.broadcast %cst_379 : f32 to vector<8x128xf32>
    %748 = arith.select %639, %734, %747 : vector<8x128xi1>, vector<8x128xf32>
    %c7_i32_380 = arith.constant 7 : i32
    %749 = arith.subi %c7_i32_380, %c5_i32 : i32
    %750 = arith.index_cast %749 : i32 to index
    %c0_381 = arith.constant 0 : index
    %c0_382 = arith.constant 0 : index
    %751 = vector.load %arg6[%750, %c0_381, %c0_382] : memref<8x8x128xf32, #tpu.memory_space<vmem>>, vector<1x8x128xf32>
    %752 = vector.shape_cast %751 : vector<1x8x128xf32> to vector<8x128xf32>
    %753 = vector.shape_cast %748 : vector<8x128xf32> to vector<1x8x128xf32>
    tpu.vector_store %arg6[%750, %c0_381, %c0_382], %753 {strides = array<i32>} : memref<8x8x128xf32, #tpu.memory_space<vmem>>, vector<1x8x128xf32>,
    %c6_i32 = arith.constant 6 : i32
    %c8_i32_383 = arith.constant 8 : i32
    %754 = arith.muli %arg0, %c8_i32_383 : i32
    %755 = arith.addi %754, %c6_i32 : i32
    %c7_i32_384 = arith.constant 7 : i32
    %756 = arith.subi %c7_i32_384, %755 : i32
    %757 = vector.broadcast %755 : i32 to vector<8x1xi32>
    %758 = arith.cmpi slt, %757, %3 : vector<8x1xi32>
    %759 = vector.shape_cast %758 : vector<8x1xi1> to vector<8x1xi1>
    %760 = vector.broadcast %759 : vector<8x1xi1> to vector<8x128xi1>
    %761 = vector.broadcast %756 : i32 to vector<8x1xi32>
    %762 = arith.cmpi slt, %761, %3 : vector<8x1xi32>
    %763 = vector.shape_cast %762 : vector<8x1xi1> to vector<8x1xi1>
    %764 = vector.broadcast %763 : vector<8x1xi1> to vector<8x128xi1>
    %765 = arith.index_cast %c6_i32 : i32 to index
    %c0_385 = arith.constant 0 : index
    %c0_386 = arith.constant 0 : index
    %766 = vector.load %arg2[%765, %c0_385, %c0_386] : memref<8x8x512xbf16, #tpu.memory_space<vmem>>, vector<1x8x512xbf16>
    %767 = vector.shape_cast %766 : vector<1x8x512xbf16> to vector<8x512xbf16>
    %c0_387 = arith.constant 0 : index
    %c0_388 = arith.constant 0 : index
    %c0_389 = arith.constant 0 : index
    %768 = vector.load %arg9[%c0_387, %c0_388, %c0_389] : memref<2x8x128xf32, #tpu.memory_space<vmem>>, vector<1x8x128xf32>
    %769 = vector.shape_cast %768 : vector<1x8x128xf32> to vector<8x128xf32>
    %c0_390 = arith.constant 0 : index
    %c0_391 = arith.constant 0 : index
    %c0_392 = arith.constant 0 : index
    %770 = vector.load %arg10[%c0_390, %c0_391, %c0_392] : memref<2x8x128xf32, #tpu.memory_space<vmem>>, vector<1x8x128xf32>
    %771 = vector.shape_cast %770 : vector<1x8x128xf32> to vector<8x128xf32>
    %c0_393 = arith.constant 0 : index
    %c0_394 = arith.constant 0 : index
    %c0_395 = arith.constant 0 : index
    %772 = vector.load %arg4[%c0_393, %c0_394, %c0_395] : memref<2x128x512xbf16, #tpu.memory_space<vmem>>, vector<1x128x512xbf16>
    %773 = vector.shape_cast %772 : vector<1x128x512xbf16> to vector<128x512xbf16>
    %774 = arith.extf %767 : vector<8x512xbf16> to vector<8x512xf32>
    %775 = arith.truncf %769 : vector<8x128xf32> to vector<8x128xbf16>
    %cst_396 = arith.constant dense<0.000000e+00> : vector<8x512xf32>
    %776 = tpu.matmul %775, %773, %cst_396 {dimension_numbers = #tpu.dot_dimension_numbers<[1], [0], [0], [1], [0, 0, 1, 1], [], []>} : vector<8x128xbf16>, vector<128x512xbf16>, vector<8x512xf32> -> vector<8x512xf32>
    %777 = arith.addf %774, %776 : vector<8x512xf32>
    %778 = vector.extract_strided_slice %777 {offsets = [0, 0], sizes = [8, 128], strides = [1, 1]} : vector<8x512xf32> to vector<8x128xf32>
    %779 = arith.negf %778 : vector<8x128xf32>
    %780 = math.exp %779 : vector<8x128xf32>
    %cst_397 = arith.constant 1.000000e+00 : f32
    %781 = vector.broadcast %cst_397 : f32 to vector<8x128xf32>
    %782 = arith.addf %781, %780 : vector<8x128xf32>
    %783 = arith.divf %781, %782 : vector<8x128xf32>
    %784 = vector.extract_strided_slice %777 {offsets = [0, 128], sizes = [8, 128], strides = [1, 1]} : vector<8x512xf32> to vector<8x128xf32>
    %785 = arith.negf %784 : vector<8x128xf32>
    %786 = math.exp %785 : vector<8x128xf32>
    %cst_398 = arith.constant 1.000000e+00 : f32
    %787 = vector.broadcast %cst_398 : f32 to vector<8x128xf32>
    %788 = arith.addf %787, %786 : vector<8x128xf32>
    %789 = arith.divf %787, %788 : vector<8x128xf32>
    %790 = vector.extract_strided_slice %777 {offsets = [0, 256], sizes = [8, 128], strides = [1, 1]} : vector<8x512xf32> to vector<8x128xf32>
    %791 = math.tanh %790 : vector<8x128xf32>
    %792 = vector.extract_strided_slice %777 {offsets = [0, 384], sizes = [8, 128], strides = [1, 1]} : vector<8x512xf32> to vector<8x128xf32>
    %793 = arith.negf %792 : vector<8x128xf32>
    %794 = math.exp %793 : vector<8x128xf32>
    %cst_399 = arith.constant 1.000000e+00 : f32
    %795 = vector.broadcast %cst_399 : f32 to vector<8x128xf32>
    %796 = arith.addf %795, %794 : vector<8x128xf32>
    %797 = arith.divf %795, %796 : vector<8x128xf32>
    %798 = arith.mulf %789, %771 : vector<8x128xf32>
    %799 = arith.mulf %783, %791 : vector<8x128xf32>
    %800 = arith.addf %798, %799 : vector<8x128xf32>
    %801 = math.tanh %800 : vector<8x128xf32>
    %802 = arith.mulf %797, %801 : vector<8x128xf32>
    %c0_400 = arith.constant 0 : index
    %c0_401 = arith.constant 0 : index
    %c0_402 = arith.constant 0 : index
    %803 = vector.load %arg9[%c0_400, %c0_401, %c0_402] : memref<2x8x128xf32, #tpu.memory_space<vmem>>, vector<1x8x128xf32>
    %804 = vector.shape_cast %803 : vector<1x8x128xf32> to vector<8x128xf32>
    %805 = arith.select %760, %802, %804 : vector<8x128xi1>, vector<8x128xf32>
    %c0_403 = arith.constant 0 : index
    %c0_404 = arith.constant 0 : index
    %c0_405 = arith.constant 0 : index
    %806 = vector.load %arg9[%c0_403, %c0_404, %c0_405] : memref<2x8x128xf32, #tpu.memory_space<vmem>>, vector<1x8x128xf32>
    %807 = vector.shape_cast %806 : vector<1x8x128xf32> to vector<8x128xf32>
    %808 = vector.shape_cast %805 : vector<8x128xf32> to vector<1x8x128xf32>
    tpu.vector_store %arg9[%c0_403, %c0_404, %c0_405], %808 {strides = array<i32>} : memref<2x8x128xf32, #tpu.memory_space<vmem>>, vector<1x8x128xf32>,
    %c0_406 = arith.constant 0 : index
    %c0_407 = arith.constant 0 : index
    %c0_408 = arith.constant 0 : index
    %809 = vector.load %arg10[%c0_406, %c0_407, %c0_408] : memref<2x8x128xf32, #tpu.memory_space<vmem>>, vector<1x8x128xf32>
    %810 = vector.shape_cast %809 : vector<1x8x128xf32> to vector<8x128xf32>
    %811 = arith.select %760, %800, %810 : vector<8x128xi1>, vector<8x128xf32>
    %c0_409 = arith.constant 0 : index
    %c0_410 = arith.constant 0 : index
    %c0_411 = arith.constant 0 : index
    %812 = vector.load %arg10[%c0_409, %c0_410, %c0_411] : memref<2x8x128xf32, #tpu.memory_space<vmem>>, vector<1x8x128xf32>
    %813 = vector.shape_cast %812 : vector<1x8x128xf32> to vector<8x128xf32>
    %814 = vector.shape_cast %811 : vector<8x128xf32> to vector<1x8x128xf32>
    tpu.vector_store %arg10[%c0_409, %c0_410, %c0_411], %814 {strides = array<i32>} : memref<2x8x128xf32, #tpu.memory_space<vmem>>, vector<1x8x128xf32>,
    %cst_412 = arith.constant 0.000000e+00 : f32
    %815 = vector.broadcast %cst_412 : f32 to vector<8x128xf32>
    %816 = arith.select %760, %802, %815 : vector<8x128xi1>, vector<8x128xf32>
    %817 = arith.index_cast %c6_i32 : i32 to index
    %c0_413 = arith.constant 0 : index
    %c0_414 = arith.constant 0 : index
    %818 = vector.load %arg5[%817, %c0_413, %c0_414] : memref<8x8x128xf32, #tpu.memory_space<vmem>>, vector<1x8x128xf32>
    %819 = vector.shape_cast %818 : vector<1x8x128xf32> to vector<8x128xf32>
    %820 = vector.shape_cast %816 : vector<8x128xf32> to vector<1x8x128xf32>
    tpu.vector_store %arg5[%817, %c0_413, %c0_414], %820 {strides = array<i32>} : memref<8x8x128xf32, #tpu.memory_space<vmem>>, vector<1x8x128xf32>,
    %c7_i32_415 = arith.constant 7 : i32
    %821 = arith.subi %c7_i32_415, %c6_i32 : i32
    %822 = arith.index_cast %821 : i32 to index
    %c0_416 = arith.constant 0 : index
    %c0_417 = arith.constant 0 : index
    %823 = vector.load %arg3[%822, %c0_416, %c0_417] : memref<8x8x512xbf16, #tpu.memory_space<vmem>>, vector<1x8x512xbf16>
    %824 = vector.shape_cast %823 : vector<1x8x512xbf16> to vector<8x512xbf16>
    %c1_418 = arith.constant 1 : index
    %c0_419 = arith.constant 0 : index
    %c0_420 = arith.constant 0 : index
    %825 = vector.load %arg9[%c1_418, %c0_419, %c0_420] : memref<2x8x128xf32, #tpu.memory_space<vmem>>, vector<1x8x128xf32>
    %826 = vector.shape_cast %825 : vector<1x8x128xf32> to vector<8x128xf32>
    %c1_421 = arith.constant 1 : index
    %c0_422 = arith.constant 0 : index
    %c0_423 = arith.constant 0 : index
    %827 = vector.load %arg10[%c1_421, %c0_422, %c0_423] : memref<2x8x128xf32, #tpu.memory_space<vmem>>, vector<1x8x128xf32>
    %828 = vector.shape_cast %827 : vector<1x8x128xf32> to vector<8x128xf32>
    %c1_424 = arith.constant 1 : index
    %c0_425 = arith.constant 0 : index
    %c0_426 = arith.constant 0 : index
    %829 = vector.load %arg4[%c1_424, %c0_425, %c0_426] : memref<2x128x512xbf16, #tpu.memory_space<vmem>>, vector<1x128x512xbf16>
    %830 = vector.shape_cast %829 : vector<1x128x512xbf16> to vector<128x512xbf16>
    %831 = arith.extf %824 : vector<8x512xbf16> to vector<8x512xf32>
    %832 = arith.truncf %826 : vector<8x128xf32> to vector<8x128xbf16>
    %cst_427 = arith.constant dense<0.000000e+00> : vector<8x512xf32>
    %833 = tpu.matmul %832, %830, %cst_427 {dimension_numbers = #tpu.dot_dimension_numbers<[1], [0], [0], [1], [0, 0, 1, 1], [], []>} : vector<8x128xbf16>, vector<128x512xbf16>, vector<8x512xf32> -> vector<8x512xf32>
    %834 = arith.addf %831, %833 : vector<8x512xf32>
    %835 = vector.extract_strided_slice %834 {offsets = [0, 0], sizes = [8, 128], strides = [1, 1]} : vector<8x512xf32> to vector<8x128xf32>
    %836 = arith.negf %835 : vector<8x128xf32>
    %837 = math.exp %836 : vector<8x128xf32>
    %cst_428 = arith.constant 1.000000e+00 : f32
    %838 = vector.broadcast %cst_428 : f32 to vector<8x128xf32>
    %839 = arith.addf %838, %837 : vector<8x128xf32>
    %840 = arith.divf %838, %839 : vector<8x128xf32>
    %841 = vector.extract_strided_slice %834 {offsets = [0, 128], sizes = [8, 128], strides = [1, 1]} : vector<8x512xf32> to vector<8x128xf32>
    %842 = arith.negf %841 : vector<8x128xf32>
    %843 = math.exp %842 : vector<8x128xf32>
    %cst_429 = arith.constant 1.000000e+00 : f32
    %844 = vector.broadcast %cst_429 : f32 to vector<8x128xf32>
    %845 = arith.addf %844, %843 : vector<8x128xf32>
    %846 = arith.divf %844, %845 : vector<8x128xf32>
    %847 = vector.extract_strided_slice %834 {offsets = [0, 256], sizes = [8, 128], strides = [1, 1]} : vector<8x512xf32> to vector<8x128xf32>
    %848 = math.tanh %847 : vector<8x128xf32>
    %849 = vector.extract_strided_slice %834 {offsets = [0, 384], sizes = [8, 128], strides = [1, 1]} : vector<8x512xf32> to vector<8x128xf32>
    %850 = arith.negf %849 : vector<8x128xf32>
    %851 = math.exp %850 : vector<8x128xf32>
    %cst_430 = arith.constant 1.000000e+00 : f32
    %852 = vector.broadcast %cst_430 : f32 to vector<8x128xf32>
    %853 = arith.addf %852, %851 : vector<8x128xf32>
    %854 = arith.divf %852, %853 : vector<8x128xf32>
    %855 = arith.mulf %846, %828 : vector<8x128xf32>
    %856 = arith.mulf %840, %848 : vector<8x128xf32>
    %857 = arith.addf %855, %856 : vector<8x128xf32>
    %858 = math.tanh %857 : vector<8x128xf32>
    %859 = arith.mulf %854, %858 : vector<8x128xf32>
    %c1_431 = arith.constant 1 : index
    %c0_432 = arith.constant 0 : index
    %c0_433 = arith.constant 0 : index
    %860 = vector.load %arg9[%c1_431, %c0_432, %c0_433] : memref<2x8x128xf32, #tpu.memory_space<vmem>>, vector<1x8x128xf32>
    %861 = vector.shape_cast %860 : vector<1x8x128xf32> to vector<8x128xf32>
    %862 = arith.select %764, %859, %861 : vector<8x128xi1>, vector<8x128xf32>
    %c1_434 = arith.constant 1 : index
    %c0_435 = arith.constant 0 : index
    %c0_436 = arith.constant 0 : index
    %863 = vector.load %arg9[%c1_434, %c0_435, %c0_436] : memref<2x8x128xf32, #tpu.memory_space<vmem>>, vector<1x8x128xf32>
    %864 = vector.shape_cast %863 : vector<1x8x128xf32> to vector<8x128xf32>
    %865 = vector.shape_cast %862 : vector<8x128xf32> to vector<1x8x128xf32>
    tpu.vector_store %arg9[%c1_434, %c0_435, %c0_436], %865 {strides = array<i32>} : memref<2x8x128xf32, #tpu.memory_space<vmem>>, vector<1x8x128xf32>,
    %c1_437 = arith.constant 1 : index
    %c0_438 = arith.constant 0 : index
    %c0_439 = arith.constant 0 : index
    %866 = vector.load %arg10[%c1_437, %c0_438, %c0_439] : memref<2x8x128xf32, #tpu.memory_space<vmem>>, vector<1x8x128xf32>
    %867 = vector.shape_cast %866 : vector<1x8x128xf32> to vector<8x128xf32>
    %868 = arith.select %764, %857, %867 : vector<8x128xi1>, vector<8x128xf32>
    %c1_440 = arith.constant 1 : index
    %c0_441 = arith.constant 0 : index
    %c0_442 = arith.constant 0 : index
    %869 = vector.load %arg10[%c1_440, %c0_441, %c0_442] : memref<2x8x128xf32, #tpu.memory_space<vmem>>, vector<1x8x128xf32>
    %870 = vector.shape_cast %869 : vector<1x8x128xf32> to vector<8x128xf32>
    %871 = vector.shape_cast %868 : vector<8x128xf32> to vector<1x8x128xf32>
    tpu.vector_store %arg10[%c1_440, %c0_441, %c0_442], %871 {strides = array<i32>} : memref<2x8x128xf32, #tpu.memory_space<vmem>>, vector<1x8x128xf32>,
    %cst_443 = arith.constant 0.000000e+00 : f32
    %872 = vector.broadcast %cst_443 : f32 to vector<8x128xf32>
    %873 = arith.select %764, %859, %872 : vector<8x128xi1>, vector<8x128xf32>
    %c7_i32_444 = arith.constant 7 : i32
    %874 = arith.subi %c7_i32_444, %c6_i32 : i32
    %875 = arith.index_cast %874 : i32 to index
    %c0_445 = arith.constant 0 : index
    %c0_446 = arith.constant 0 : index
    %876 = vector.load %arg6[%875, %c0_445, %c0_446] : memref<8x8x128xf32, #tpu.memory_space<vmem>>, vector<1x8x128xf32>
    %877 = vector.shape_cast %876 : vector<1x8x128xf32> to vector<8x128xf32>
    %878 = vector.shape_cast %873 : vector<8x128xf32> to vector<1x8x128xf32>
    tpu.vector_store %arg6[%875, %c0_445, %c0_446], %878 {strides = array<i32>} : memref<8x8x128xf32, #tpu.memory_space<vmem>>, vector<1x8x128xf32>,
    %c7_i32_447 = arith.constant 7 : i32
    %c8_i32_448 = arith.constant 8 : i32
    %879 = arith.muli %arg0, %c8_i32_448 : i32
    %880 = arith.addi %879, %c7_i32_447 : i32
    %c7_i32_449 = arith.constant 7 : i32
    %881 = arith.subi %c7_i32_449, %880 : i32
    %882 = vector.broadcast %880 : i32 to vector<8x1xi32>
    %883 = arith.cmpi slt, %882, %3 : vector<8x1xi32>
    %884 = vector.shape_cast %883 : vector<8x1xi1> to vector<8x1xi1>
    %885 = vector.broadcast %884 : vector<8x1xi1> to vector<8x128xi1>
    %886 = vector.broadcast %881 : i32 to vector<8x1xi32>
    %887 = arith.cmpi slt, %886, %3 : vector<8x1xi32>
    %888 = vector.shape_cast %887 : vector<8x1xi1> to vector<8x1xi1>
    %889 = vector.broadcast %888 : vector<8x1xi1> to vector<8x128xi1>
    %890 = arith.index_cast %c7_i32_447 : i32 to index
    %c0_450 = arith.constant 0 : index
    %c0_451 = arith.constant 0 : index
    %891 = vector.load %arg2[%890, %c0_450, %c0_451] : memref<8x8x512xbf16, #tpu.memory_space<vmem>>, vector<1x8x512xbf16>
    %892 = vector.shape_cast %891 : vector<1x8x512xbf16> to vector<8x512xbf16>
    %c0_452 = arith.constant 0 : index
    %c0_453 = arith.constant 0 : index
    %c0_454 = arith.constant 0 : index
    %893 = vector.load %arg9[%c0_452, %c0_453, %c0_454] : memref<2x8x128xf32, #tpu.memory_space<vmem>>, vector<1x8x128xf32>
    %894 = vector.shape_cast %893 : vector<1x8x128xf32> to vector<8x128xf32>
    %c0_455 = arith.constant 0 : index
    %c0_456 = arith.constant 0 : index
    %c0_457 = arith.constant 0 : index
    %895 = vector.load %arg10[%c0_455, %c0_456, %c0_457] : memref<2x8x128xf32, #tpu.memory_space<vmem>>, vector<1x8x128xf32>
    %896 = vector.shape_cast %895 : vector<1x8x128xf32> to vector<8x128xf32>
    %c0_458 = arith.constant 0 : index
    %c0_459 = arith.constant 0 : index
    %c0_460 = arith.constant 0 : index
    %897 = vector.load %arg4[%c0_458, %c0_459, %c0_460] : memref<2x128x512xbf16, #tpu.memory_space<vmem>>, vector<1x128x512xbf16>
    %898 = vector.shape_cast %897 : vector<1x128x512xbf16> to vector<128x512xbf16>
    %899 = arith.extf %892 : vector<8x512xbf16> to vector<8x512xf32>
    %900 = arith.truncf %894 : vector<8x128xf32> to vector<8x128xbf16>
    %cst_461 = arith.constant dense<0.000000e+00> : vector<8x512xf32>
    %901 = tpu.matmul %900, %898, %cst_461 {dimension_numbers = #tpu.dot_dimension_numbers<[1], [0], [0], [1], [0, 0, 1, 1], [], []>} : vector<8x128xbf16>, vector<128x512xbf16>, vector<8x512xf32> -> vector<8x512xf32>
    %902 = arith.addf %899, %901 : vector<8x512xf32>
    %903 = vector.extract_strided_slice %902 {offsets = [0, 0], sizes = [8, 128], strides = [1, 1]} : vector<8x512xf32> to vector<8x128xf32>
    %904 = arith.negf %903 : vector<8x128xf32>
    %905 = math.exp %904 : vector<8x128xf32>
    %cst_462 = arith.constant 1.000000e+00 : f32
    %906 = vector.broadcast %cst_462 : f32 to vector<8x128xf32>
    %907 = arith.addf %906, %905 : vector<8x128xf32>
    %908 = arith.divf %906, %907 : vector<8x128xf32>
    %909 = vector.extract_strided_slice %902 {offsets = [0, 128], sizes = [8, 128], strides = [1, 1]} : vector<8x512xf32> to vector<8x128xf32>
    %910 = arith.negf %909 : vector<8x128xf32>
    %911 = math.exp %910 : vector<8x128xf32>
    %cst_463 = arith.constant 1.000000e+00 : f32
    %912 = vector.broadcast %cst_463 : f32 to vector<8x128xf32>
    %913 = arith.addf %912, %911 : vector<8x128xf32>
    %914 = arith.divf %912, %913 : vector<8x128xf32>
    %915 = vector.extract_strided_slice %902 {offsets = [0, 256], sizes = [8, 128], strides = [1, 1]} : vector<8x512xf32> to vector<8x128xf32>
    %916 = math.tanh %915 : vector<8x128xf32>
    %917 = vector.extract_strided_slice %902 {offsets = [0, 384], sizes = [8, 128], strides = [1, 1]} : vector<8x512xf32> to vector<8x128xf32>
    %918 = arith.negf %917 : vector<8x128xf32>
    %919 = math.exp %918 : vector<8x128xf32>
    %cst_464 = arith.constant 1.000000e+00 : f32
    %920 = vector.broadcast %cst_464 : f32 to vector<8x128xf32>
    %921 = arith.addf %920, %919 : vector<8x128xf32>
    %922 = arith.divf %920, %921 : vector<8x128xf32>
    %923 = arith.mulf %914, %896 : vector<8x128xf32>
    %924 = arith.mulf %908, %916 : vector<8x128xf32>
    %925 = arith.addf %923, %924 : vector<8x128xf32>
    %926 = math.tanh %925 : vector<8x128xf32>
    %927 = arith.mulf %922, %926 : vector<8x128xf32>
    %c0_465 = arith.constant 0 : index
    %c0_466 = arith.constant 0 : index
    %c0_467 = arith.constant 0 : index
    %928 = vector.load %arg9[%c0_465, %c0_466, %c0_467] : memref<2x8x128xf32, #tpu.memory_space<vmem>>, vector<1x8x128xf32>
    %929 = vector.shape_cast %928 : vector<1x8x128xf32> to vector<8x128xf32>
    %930 = arith.select %885, %927, %929 : vector<8x128xi1>, vector<8x128xf32>
    %c0_468 = arith.constant 0 : index
    %c0_469 = arith.constant 0 : index
    %c0_470 = arith.constant 0 : index
    %931 = vector.load %arg9[%c0_468, %c0_469, %c0_470] : memref<2x8x128xf32, #tpu.memory_space<vmem>>, vector<1x8x128xf32>
    %932 = vector.shape_cast %931 : vector<1x8x128xf32> to vector<8x128xf32>
    %933 = vector.shape_cast %930 : vector<8x128xf32> to vector<1x8x128xf32>
    tpu.vector_store %arg9[%c0_468, %c0_469, %c0_470], %933 {strides = array<i32>} : memref<2x8x128xf32, #tpu.memory_space<vmem>>, vector<1x8x128xf32>,
    %c0_471 = arith.constant 0 : index
    %c0_472 = arith.constant 0 : index
    %c0_473 = arith.constant 0 : index
    %934 = vector.load %arg10[%c0_471, %c0_472, %c0_473] : memref<2x8x128xf32, #tpu.memory_space<vmem>>, vector<1x8x128xf32>
    %935 = vector.shape_cast %934 : vector<1x8x128xf32> to vector<8x128xf32>
    %936 = arith.select %885, %925, %935 : vector<8x128xi1>, vector<8x128xf32>
    %c0_474 = arith.constant 0 : index
    %c0_475 = arith.constant 0 : index
    %c0_476 = arith.constant 0 : index
    %937 = vector.load %arg10[%c0_474, %c0_475, %c0_476] : memref<2x8x128xf32, #tpu.memory_space<vmem>>, vector<1x8x128xf32>
    %938 = vector.shape_cast %937 : vector<1x8x128xf32> to vector<8x128xf32>
    %939 = vector.shape_cast %936 : vector<8x128xf32> to vector<1x8x128xf32>
    tpu.vector_store %arg10[%c0_474, %c0_475, %c0_476], %939 {strides = array<i32>} : memref<2x8x128xf32, #tpu.memory_space<vmem>>, vector<1x8x128xf32>,
    %cst_477 = arith.constant 0.000000e+00 : f32
    %940 = vector.broadcast %cst_477 : f32 to vector<8x128xf32>
    %941 = arith.select %885, %927, %940 : vector<8x128xi1>, vector<8x128xf32>
    %942 = arith.index_cast %c7_i32_447 : i32 to index
    %c0_478 = arith.constant 0 : index
    %c0_479 = arith.constant 0 : index
    %943 = vector.load %arg5[%942, %c0_478, %c0_479] : memref<8x8x128xf32, #tpu.memory_space<vmem>>, vector<1x8x128xf32>
    %944 = vector.shape_cast %943 : vector<1x8x128xf32> to vector<8x128xf32>
    %945 = vector.shape_cast %941 : vector<8x128xf32> to vector<1x8x128xf32>
    tpu.vector_store %arg5[%942, %c0_478, %c0_479], %945 {strides = array<i32>} : memref<8x8x128xf32, #tpu.memory_space<vmem>>, vector<1x8x128xf32>,
    %c7_i32_480 = arith.constant 7 : i32
    %946 = arith.subi %c7_i32_480, %c7_i32_447 : i32
    %947 = arith.index_cast %946 : i32 to index
    %c0_481 = arith.constant 0 : index
    %c0_482 = arith.constant 0 : index
    %948 = vector.load %arg3[%947, %c0_481, %c0_482] : memref<8x8x512xbf16, #tpu.memory_space<vmem>>, vector<1x8x512xbf16>
    %949 = vector.shape_cast %948 : vector<1x8x512xbf16> to vector<8x512xbf16>
    %c1_483 = arith.constant 1 : index
    %c0_484 = arith.constant 0 : index
    %c0_485 = arith.constant 0 : index
    %950 = vector.load %arg9[%c1_483, %c0_484, %c0_485] : memref<2x8x128xf32, #tpu.memory_space<vmem>>, vector<1x8x128xf32>
    %951 = vector.shape_cast %950 : vector<1x8x128xf32> to vector<8x128xf32>
    %c1_486 = arith.constant 1 : index
    %c0_487 = arith.constant 0 : index
    %c0_488 = arith.constant 0 : index
    %952 = vector.load %arg10[%c1_486, %c0_487, %c0_488] : memref<2x8x128xf32, #tpu.memory_space<vmem>>, vector<1x8x128xf32>
    %953 = vector.shape_cast %952 : vector<1x8x128xf32> to vector<8x128xf32>
    %c1_489 = arith.constant 1 : index
    %c0_490 = arith.constant 0 : index
    %c0_491 = arith.constant 0 : index
    %954 = vector.load %arg4[%c1_489, %c0_490, %c0_491] : memref<2x128x512xbf16, #tpu.memory_space<vmem>>, vector<1x128x512xbf16>
    %955 = vector.shape_cast %954 : vector<1x128x512xbf16> to vector<128x512xbf16>
    %956 = arith.extf %949 : vector<8x512xbf16> to vector<8x512xf32>
    %957 = arith.truncf %951 : vector<8x128xf32> to vector<8x128xbf16>
    %cst_492 = arith.constant dense<0.000000e+00> : vector<8x512xf32>
    %958 = tpu.matmul %957, %955, %cst_492 {dimension_numbers = #tpu.dot_dimension_numbers<[1], [0], [0], [1], [0, 0, 1, 1], [], []>} : vector<8x128xbf16>, vector<128x512xbf16>, vector<8x512xf32> -> vector<8x512xf32>
    %959 = arith.addf %956, %958 : vector<8x512xf32>
    %960 = vector.extract_strided_slice %959 {offsets = [0, 0], sizes = [8, 128], strides = [1, 1]} : vector<8x512xf32> to vector<8x128xf32>
    %961 = arith.negf %960 : vector<8x128xf32>
    %962 = math.exp %961 : vector<8x128xf32>
    %cst_493 = arith.constant 1.000000e+00 : f32
    %963 = vector.broadcast %cst_493 : f32 to vector<8x128xf32>
    %964 = arith.addf %963, %962 : vector<8x128xf32>
    %965 = arith.divf %963, %964 : vector<8x128xf32>
    %966 = vector.extract_strided_slice %959 {offsets = [0, 128], sizes = [8, 128], strides = [1, 1]} : vector<8x512xf32> to vector<8x128xf32>
    %967 = arith.negf %966 : vector<8x128xf32>
    %968 = math.exp %967 : vector<8x128xf32>
    %cst_494 = arith.constant 1.000000e+00 : f32
    %969 = vector.broadcast %cst_494 : f32 to vector<8x128xf32>
    %970 = arith.addf %969, %968 : vector<8x128xf32>
    %971 = arith.divf %969, %970 : vector<8x128xf32>
    %972 = vector.extract_strided_slice %959 {offsets = [0, 256], sizes = [8, 128], strides = [1, 1]} : vector<8x512xf32> to vector<8x128xf32>
    %973 = math.tanh %972 : vector<8x128xf32>
    %974 = vector.extract_strided_slice %959 {offsets = [0, 384], sizes = [8, 128], strides = [1, 1]} : vector<8x512xf32> to vector<8x128xf32>
    %975 = arith.negf %974 : vector<8x128xf32>
    %976 = math.exp %975 : vector<8x128xf32>
    %cst_495 = arith.constant 1.000000e+00 : f32
    %977 = vector.broadcast %cst_495 : f32 to vector<8x128xf32>
    %978 = arith.addf %977, %976 : vector<8x128xf32>
    %979 = arith.divf %977, %978 : vector<8x128xf32>
    %980 = arith.mulf %971, %953 : vector<8x128xf32>
    %981 = arith.mulf %965, %973 : vector<8x128xf32>
    %982 = arith.addf %980, %981 : vector<8x128xf32>
    %983 = math.tanh %982 : vector<8x128xf32>
    %984 = arith.mulf %979, %983 : vector<8x128xf32>
    %c1_496 = arith.constant 1 : index
    %c0_497 = arith.constant 0 : index
    %c0_498 = arith.constant 0 : index
    %985 = vector.load %arg9[%c1_496, %c0_497, %c0_498] : memref<2x8x128xf32, #tpu.memory_space<vmem>>, vector<1x8x128xf32>
    %986 = vector.shape_cast %985 : vector<1x8x128xf32> to vector<8x128xf32>
    %987 = arith.select %889, %984, %986 : vector<8x128xi1>, vector<8x128xf32>
    %c1_499 = arith.constant 1 : index
    %c0_500 = arith.constant 0 : index
    %c0_501 = arith.constant 0 : index
    %988 = vector.load %arg9[%c1_499, %c0_500, %c0_501] : memref<2x8x128xf32, #tpu.memory_space<vmem>>, vector<1x8x128xf32>
    %989 = vector.shape_cast %988 : vector<1x8x128xf32> to vector<8x128xf32>
    %990 = vector.shape_cast %987 : vector<8x128xf32> to vector<1x8x128xf32>
    tpu.vector_store %arg9[%c1_499, %c0_500, %c0_501], %990 {strides = array<i32>} : memref<2x8x128xf32, #tpu.memory_space<vmem>>, vector<1x8x128xf32>,
    %c1_502 = arith.constant 1 : index
    %c0_503 = arith.constant 0 : index
    %c0_504 = arith.constant 0 : index
    %991 = vector.load %arg10[%c1_502, %c0_503, %c0_504] : memref<2x8x128xf32, #tpu.memory_space<vmem>>, vector<1x8x128xf32>
    %992 = vector.shape_cast %991 : vector<1x8x128xf32> to vector<8x128xf32>
    %993 = arith.select %889, %982, %992 : vector<8x128xi1>, vector<8x128xf32>
    %c1_505 = arith.constant 1 : index
    %c0_506 = arith.constant 0 : index
    %c0_507 = arith.constant 0 : index
    %994 = vector.load %arg10[%c1_505, %c0_506, %c0_507] : memref<2x8x128xf32, #tpu.memory_space<vmem>>, vector<1x8x128xf32>
    %995 = vector.shape_cast %994 : vector<1x8x128xf32> to vector<8x128xf32>
    %996 = vector.shape_cast %993 : vector<8x128xf32> to vector<1x8x128xf32>
    tpu.vector_store %arg10[%c1_505, %c0_506, %c0_507], %996 {strides = array<i32>} : memref<2x8x128xf32, #tpu.memory_space<vmem>>, vector<1x8x128xf32>,
    %cst_508 = arith.constant 0.000000e+00 : f32
    %997 = vector.broadcast %cst_508 : f32 to vector<8x128xf32>
    %998 = arith.select %889, %984, %997 : vector<8x128xi1>, vector<8x128xf32>
    %c7_i32_509 = arith.constant 7 : i32
    %999 = arith.subi %c7_i32_509, %c7_i32_447 : i32
    %1000 = arith.index_cast %999 : i32 to index
    %c0_510 = arith.constant 0 : index
    %c0_511 = arith.constant 0 : index
    %1001 = vector.load %arg6[%1000, %c0_510, %c0_511] : memref<8x8x128xf32, #tpu.memory_space<vmem>>, vector<1x8x128xf32>
    %1002 = vector.shape_cast %1001 : vector<1x8x128xf32> to vector<8x128xf32>
    %1003 = vector.shape_cast %998 : vector<8x128xf32> to vector<1x8x128xf32>
    tpu.vector_store %arg6[%1000, %c0_510, %c0_511], %1003 {strides = array<i32>} : memref<8x8x128xf32, #tpu.memory_space<vmem>>, vector<1x8x128xf32>,
    %c8_i32_512 = arith.constant 8 : i32
    %c0_i32_513 = arith.constant 0 : i32
    %1004 = arith.cmpi eq, %arg0, %c0_i32_513 : i32
    %1005 = arith.extui %1004 : i1 to i32
    %c0_i32_514 = arith.constant 0 : i32
    %1006 = arith.cmpi ne, %1005, %c0_i32_514 : i32
    scf.if %1006 {
      %c0_515 = arith.constant 0 : index
      %c0_516 = arith.constant 0 : index
      %c0_517 = arith.constant 0 : index
      %1007 = vector.load %arg9[%c0_515, %c0_516, %c0_517] : memref<2x8x128xf32, #tpu.memory_space<vmem>>, vector<2x8x128xf32>
      %c0_518 = arith.constant 0 : index
      %c0_519 = arith.constant 0 : index
      %c0_520 = arith.constant 0 : index
      %1008 = vector.load %arg7[%c0_518, %c0_519, %c0_520] : memref<2x8x128xf32, #tpu.memory_space<vmem>>, vector<2x8x128xf32>
      tpu.vector_store %arg7[%c0_518, %c0_519, %c0_520], %1007 {strides = array<i32>} : memref<2x8x128xf32, #tpu.memory_space<vmem>>, vector<2x8x128xf32>,
      %c0_521 = arith.constant 0 : index
      %c0_522 = arith.constant 0 : index
      %c0_523 = arith.constant 0 : index
      %1009 = vector.load %arg10[%c0_521, %c0_522, %c0_523] : memref<2x8x128xf32, #tpu.memory_space<vmem>>, vector<2x8x128xf32>
      %c0_524 = arith.constant 0 : index
      %c0_525 = arith.constant 0 : index
      %c0_526 = arith.constant 0 : index
      %1010 = vector.load %arg8[%c0_524, %c0_525, %c0_526] : memref<2x8x128xf32, #tpu.memory_space<vmem>>, vector<2x8x128xf32>
      tpu.vector_store %arg8[%c0_524, %c0_525, %c0_526], %1009 {strides = array<i32>} : memref<2x8x128xf32, #tpu.memory_space<vmem>>, vector<2x8x128xf32>,
    } else {
    }
    return
  }
  func.func @transform_0(%arg0: i32) -> (i32, i32) {
    %c0_i32 = arith.constant 0 : i32
    %c0_i32_0 = arith.constant 0 : i32
    %c0_i32_1 = arith.constant 0 : i32
    return %c0_i32, %c0_i32_0 : i32, i32
  }
  func.func @transform_1(%arg0: i32) -> (i32, i32, i32) {
    %c0_i32 = arith.constant 0 : i32
    %c0_i32_0 = arith.constant 0 : i32
    %c0_i32_1 = arith.constant 0 : i32
    return %arg0, %c0_i32, %c0_i32_0 : i32, i32, i32
  }
  func.func @transform_2(%arg0: i32) -> (i32, i32, i32) {
    %c0_i32 = arith.constant 0 : i32
    %0 = arith.subi %c0_i32, %arg0 : i32
    %c0_i32_0 = arith.constant 0 : i32
    %c0_i32_1 = arith.constant 0 : i32
    %c0_i32_2 = arith.constant 0 : i32
    return %0, %c0_i32_0, %c0_i32_1 : i32, i32, i32
  }
  func.func @transform_3(%arg0: i32) -> (i32, i32, i32) {
    %c0_i32 = arith.constant 0 : i32
    %c0_i32_0 = arith.constant 0 : i32
    %c0_i32_1 = arith.constant 0 : i32
    %c0_i32_2 = arith.constant 0 : i32
    return %c0_i32, %c0_i32_0, %c0_i32_1 : i32, i32, i32
  }
  func.func @transform_4(%arg0: i32) -> (i32, i32, i32) {
    %c0_i32 = arith.constant 0 : i32
    %c0_i32_0 = arith.constant 0 : i32
    %c0_i32_1 = arith.constant 0 : i32
    return %arg0, %c0_i32, %c0_i32_0 : i32, i32, i32
  }
  func.func @transform_5(%arg0: i32) -> (i32, i32, i32) {
    %c0_i32 = arith.constant 0 : i32
    %0 = arith.subi %c0_i32, %arg0 : i32
    %c0_i32_0 = arith.constant 0 : i32
    %c0_i32_1 = arith.constant 0 : i32
    %c0_i32_2 = arith.constant 0 : i32
    return %0, %c0_i32_0, %c0_i32_1 : i32, i32, i32
  }
  func.func @transform_6(%arg0: i32) -> (i32, i32, i32) {
    %c0_i32 = arith.constant 0 : i32
    %c0_i32_0 = arith.constant 0 : i32
    %c0_i32_1 = arith.constant 0 : i32
    %c0_i32_2 = arith.constant 0 : i32
    return %c0_i32, %c0_i32_0, %c0_i32_1 : i32, i32, i32
  }
  func.func @transform_7(%arg0: i32) -> (i32, i32, i32) {
    %c0_i32 = arith.constant 0 : i32
    %c0_i32_0 = arith.constant 0 : i32
    %c0_i32_1 = arith.constant 0 : i32
    %c0_i32_2 = arith.constant 0 : i32
    return %c0_i32, %c0_i32_0, %c0_i32_1 : i32, i32, i32
  }
}

</mosaic_0001>

<llo_original>
// kernel: encoder_rnn_forward.2
$region0: #{encoder_rnn_forward.2}
  #allocation0 [shape = 'u32[]', space=smem, size = 0x4, offset = 0x4, fixed_abs, tag = 'smem constant byte address 0x4 - core index']
  #allocation1 [shape = 'u32[144,128]{1,0:T(1,128)}', space=vmem, size = 0x12000, scoped, tag = 'internal scratch']
  %s0 = inlined_call_operand.vmem [shape: bf16[64,128], index: 0, kind: input, shape index: {}]
  %s1 = inlined_call_operand.vmem [shape: bf16[2,128,512], index: 1, kind: input, shape index: {}]
  %s2 = inlined_call_operand.vmem [shape: f32[2,1,512], index: 2, kind: input, shape index: {}]
  %s3 = inlined_call_operand.vmem [shape: bf16[64,512], index: 3, kind: output, shape index: {0}]
  %s4 = inlined_call_operand.vmem [shape: bf16[64,512], index: 4, kind: output, shape index: {1}]
  %5 = xla_tuple %s3, %s4
  %s6 = sld [smem:[#allocation0]]
  $region30: #{encoder_rnn_forward.2} parent=0
    _
  %s8 = ssub.s32 1, %s6
  %s9 = scalar_select 0, %s8, %s6
  // Predicated region
  $region2: #{encoder_rnn_forward.2} parent=0 // pred_check
    _
  $region3: #{encoder_rnn_forward.2} parent=0 // pred_check_branch
    %11 = sbr.rel (0) target = $region5
  $region4: #{encoder_rnn_forward.2} parent=0 // pred_region
    _
  $region5: #{encoder_rnn_forward.2} parent=0 // pred_fallthru
    _
  // Predicated region
  $region6: #{encoder_rnn_forward.2} parent=0 // pred_check
    _
  $region7: #{encoder_rnn_forward.2} parent=0 // pred_check_branch
    %13 = sbr.rel (0) target = $region9
  $region8: #{encoder_rnn_forward.2} parent=0 // pred_region
    _
  $region9: #{encoder_rnn_forward.2} parent=0 // pred_fallthru
    _
  // Predicated region
  $region10: #{encoder_rnn_forward.2} parent=0 // pred_check
    _
  $region11: #{encoder_rnn_forward.2} parent=0 // pred_check_branch
    %15 = sbr.rel (0) target = $region13
  $region12: #{encoder_rnn_forward.2} parent=0 // pred_region
    _
  $region13: #{encoder_rnn_forward.2} parent=0 // pred_fallthru
    _
  %v17 = vld [vmem:[%s0] sm:$0xf]
  %v18 = vld [vmem:[%s0 + $0x4] sm:$0xf]
  %v19 = vld [vmem:[%s0 + $0x8] sm:$0xf]
  %v20 = vld [vmem:[%s0 + $0xc] sm:$0xf]
  %v21 = vld [vmem:[%s0 + $0x10] sm:$0xf]
  %v22 = vld [vmem:[%s0 + $0x14] sm:$0xf]
  %v23 = vld [vmem:[%s0 + $0x18] sm:$0xf]
  %v24 = vld [vmem:[%s0 + $0x1c] sm:$0xf]
  %v25 = vld [vmem:[%s1] sm:$0xff]
  %v26 = vld [vmem:[%s1 + $0x8] sm:$0xff]
  %v27 = vld [vmem:[%s1 + $0x10] sm:$0xff]
  %v28 = vld [vmem:[%s1 + $0x18] sm:$0xff]
  %v29 = vld [vmem:[%s1 + $0x20] sm:$0xff]
  %v30 = vld [vmem:[%s1 + $0x28] sm:$0xff]
  %v31 = vld [vmem:[%s1 + $0x30] sm:$0xff]
  %v32 = vld [vmem:[%s1 + $0x38] sm:$0xff]
  %v33 = vld [vmem:[%s1 + $0x40] sm:$0xff]
  %v34 = vld [vmem:[%s1 + $0x48] sm:$0xff]
  %v35 = vld [vmem:[%s1 + $0x50] sm:$0xff]
  %v36 = vld [vmem:[%s1 + $0x58] sm:$0xff]
  %v37 = vld [vmem:[%s1 + $0x60] sm:$0xff]
  %v38 = vld [vmem:[%s1 + $0x68] sm:$0xff]
  %v39 = vld [vmem:[%s1 + $0x70] sm:$0xff]
  %v40 = vld [vmem:[%s1 + $0x78] sm:$0xff]
  %v41 = vld [vmem:[%s1 + $0x80] sm:$0xff]
  %v42 = vld [vmem:[%s1 + $0x88] sm:$0xff]
  %v43 = vld [vmem:[%s1 + $0x90] sm:$0xff]
  %v44 = vld [vmem:[%s1 + $0x98] sm:$0xff]
  %v45 = vld [vmem:[%s1 + $0xa0] sm:$0xff]
  %v46 = vld [vmem:[%s1 + $0xa8] sm:$0xff]
  %v47 = vld [vmem:[%s1 + $0xb0] sm:$0xff]
  %v48 = vld [vmem:[%s1 + $0xb8] sm:$0xff]
  %v49 = vld [vmem:[%s1 + $0xc0] sm:$0xff]
  %v50 = vld [vmem:[%s1 + $0xc8] sm:$0xff]
  %v51 = vld [vmem:[%s1 + $0xd0] sm:$0xff]
  %v52 = vld [vmem:[%s1 + $0xd8] sm:$0xff]
  %v53 = vld [vmem:[%s1 + $0xe0] sm:$0xff]
  %v54 = vld [vmem:[%s1 + $0xe8] sm:$0xff]
  %v55 = vld [vmem:[%s1 + $0xf0] sm:$0xff]
  %v56 = vld [vmem:[%s1 + $0xf8] sm:$0xff]
  %v57 = vld [vmem:[%s2] sm:$0xf]
  %v59 = vlaneseq
  %v60 = vshrl.u32 %v59, 7
  %v61 = vsub.s32 0, %v60
  %v62 = vrot.slane %v57, %v61
  %v63 = vlaneseq
  %v64 = vshrl.u32 %v63, 7
  %v65 = vsub.s32 1, %v64
  %v66 = vrot.slane %v57, %v65
  %v67 = vlaneseq
  %v68 = vshrl.u32 %v67, 7
  %v69 = vsub.s32 2, %v68
  %v70 = vrot.slane %v57, %v69
  %v71 = vlaneseq
  %v72 = vshrl.u32 %v71, 7
  %v73 = vsub.s32 3, %v72
  %v74 = vrot.slane %v57, %v73
  %v87 = vunpack.c.l.b16 %v17
  %v88 = vunpack.c.l.b16 %v18
  %v89 = vunpack.c.l.b16 %v19
  %v90 = vunpack.c.l.b16 %v20
  %v91 = vunpack.c.l.b16 %v21
  %v92 = vunpack.c.l.b16 %v22
  %v93 = vunpack.c.l.b16 %v23
  %v94 = vunpack.c.l.b16 %v24
  %v95 = vpack.c.b16 %v88, %v87
  %v96 = vpack.c.b16 %v90, %v89
  %v97 = vpack.c.b16 %v92, %v91
  %v98 = vpack.c.b16 %v94, %v93
  %v135 = vunpack.c.l.b16 %v25
  %v136 = vunpack.c.h.b16 %v25
  %v137 = vunpack.c.l.b16 %v26
  %v138 = vunpack.c.h.b16 %v26
  %v139 = vunpack.c.l.b16 %v27
  %v140 = vunpack.c.h.b16 %v27
  %v141 = vunpack.c.l.b16 %v28
  %v142 = vunpack.c.h.b16 %v28
  %v143 = vunpack.c.l.b16 %v29
  %v144 = vunpack.c.h.b16 %v29
  %v145 = vunpack.c.l.b16 %v30
  %v146 = vunpack.c.h.b16 %v30
  %v147 = vunpack.c.l.b16 %v31
  %v148 = vunpack.c.h.b16 %v31
  %v149 = vunpack.c.l.b16 %v32
  %v150 = vunpack.c.h.b16 %v32
  %v151 = vunpack.c.l.b16 %v33
  %v152 = vunpack.c.h.b16 %v33
  %v153 = vunpack.c.l.b16 %v34
  %v154 = vunpack.c.h.b16 %v34
  %v155 = vunpack.c.l.b16 %v35
  %v156 = vunpack.c.h.b16 %v35
  %v157 = vunpack.c.l.b16 %v36
  %v158 = vunpack.c.h.b16 %v36
  %v159 = vunpack.c.l.b16 %v37
  %v160 = vunpack.c.h.b16 %v37
  %v161 = vunpack.c.l.b16 %v38
  %v162 = vunpack.c.h.b16 %v38
  %v163 = vunpack.c.l.b16 %v39
  %v164 = vunpack.c.h.b16 %v39
  %v165 = vunpack.c.l.b16 %v40
  %v166 = vunpack.c.h.b16 %v40
  %v167 = vunpack.c.l.b16 %v41
  %v168 = vunpack.c.h.b16 %v41
  %v169 = vunpack.c.l.b16 %v42
  %v170 = vunpack.c.h.b16 %v42
  %v171 = vunpack.c.l.b16 %v43
  %v172 = vunpack.c.h.b16 %v43
  %v173 = vunpack.c.l.b16 %v44
  %v174 = vunpack.c.h.b16 %v44
  %v175 = vunpack.c.l.b16 %v45
  %v176 = vunpack.c.h.b16 %v45
  %v177 = vunpack.c.l.b16 %v46
  %v178 = vunpack.c.h.b16 %v46
  %v179 = vunpack.c.l.b16 %v47
  %v180 = vunpack.c.h.b16 %v47
  %v181 = vunpack.c.l.b16 %v48
  %v182 = vunpack.c.h.b16 %v48
  %v183 = vunpack.c.l.b16 %v49
  %v184 = vunpack.c.h.b16 %v49
  %v185 = vunpack.c.l.b16 %v50
  %v186 = vunpack.c.h.b16 %v50
  %v187 = vunpack.c.l.b16 %v51
  %v188 = vunpack.c.h.b16 %v51
  %v189 = vunpack.c.l.b16 %v52
  %v190 = vunpack.c.h.b16 %v52
  %v191 = vunpack.c.l.b16 %v53
  %v192 = vunpack.c.h.b16 %v53
  %v193 = vunpack.c.l.b16 %v54
  %v194 = vunpack.c.h.b16 %v54
  %v195 = vunpack.c.l.b16 %v55
  %v196 = vunpack.c.h.b16 %v55
  %v197 = vunpack.c.l.b16 %v56
  %v198 = vunpack.c.h.b16 %v56
  %v199 = vpack.c.b16 %v139, %v135
  %v200 = vpack.c.b16 %v140, %v136
  %v201 = vpack.c.b16 %v141, %v137
  %v202 = vpack.c.b16 %v142, %v138
  %v203 = vpack.c.b16 %v147, %v143
  %v204 = vpack.c.b16 %v148, %v144
  %v205 = vpack.c.b16 %v149, %v145
  %v206 = vpack.c.b16 %v150, %v146
  %v207 = vpack.c.b16 %v155, %v151
  %v208 = vpack.c.b16 %v156, %v152
  %v209 = vpack.c.b16 %v157, %v153
  %v210 = vpack.c.b16 %v158, %v154
  %v211 = vpack.c.b16 %v163, %v159
  %v212 = vpack.c.b16 %v164, %v160
  %v213 = vpack.c.b16 %v165, %v161
  %v214 = vpack.c.b16 %v166, %v162
  %v215 = vpack.c.b16 %v171, %v167
  %v216 = vpack.c.b16 %v172, %v168
  %v217 = vpack.c.b16 %v173, %v169
  %v218 = vpack.c.b16 %v174, %v170
  %v219 = vpack.c.b16 %v179, %v175
  %v220 = vpack.c.b16 %v180, %v176
  %v221 = vpack.c.b16 %v181, %v177
  %v222 = vpack.c.b16 %v182, %v178
  %v223 = vpack.c.b16 %v187, %v183
  %v224 = vpack.c.b16 %v188, %v184
  %v225 = vpack.c.b16 %v189, %v185
  %v226 = vpack.c.b16 %v190, %v186
  %v227 = vpack.c.b16 %v195, %v191
  %v228 = vpack.c.b16 %v196, %v192
  %v229 = vpack.c.b16 %v197, %v193
  %v230 = vpack.c.b16 %v198, %v194
  %263 = vmatprep.subr.bf16.mxu0 %v200
  %264 = vmatpush1.bf16.msra.mxu0 %v199
  %265 = vmatprep.subr.bf16.mxu0 %v204
  %266 = vmatpush1.bf16.msra.mxu0 %v203
  %267 = vmatprep.subr.bf16.mxu0 %v208
  %268 = vmatpush1.bf16.msra.mxu0 %v207
  %269 = vmatprep.subr.bf16.mxu0 %v212
  %270 = vmatpush1.bf16.msra.mxu0 %v211
  %271 = vmatprep.subr.bf16.mxu0 %v216
  %272 = vmatpush1.bf16.msra.mxu0 %v215
  %273 = vmatprep.subr.bf16.mxu0 %v220
  %274 = vmatpush1.bf16.msra.mxu0 %v219
  %275 = vmatprep.subr.bf16.mxu0 %v224
  %276 = vmatpush1.bf16.msra.mxu0 %v223
  %277 = vmatprep.subr.bf16.mxu0 %v228
  %278 = vmatpush1.bf16.msra.mxu0 %v227
  %279 = vmatprep.subr.bf16.mxu0 0
  %280 = vmatpush1.bf16.msra.mxu0 0
  %281 = vmatprep.subr.bf16.mxu0 0
  %282 = vmatpush1.bf16.msra.mxu0 0
  %283 = vmatprep.subr.bf16.mxu0 0
  %284 = vmatpush1.bf16.msra.mxu0 0
  %285 = vmatprep.subr.bf16.mxu0 0
  %286 = vmatpush1.bf16.msra.mxu0 0
  %287 = vmatprep.subr.bf16.mxu0 0
  %288 = vmatpush1.bf16.msra.mxu0 0
  %289 = vmatprep.subr.bf16.mxu0 0
  %290 = vmatpush1.bf16.msra.mxu0 0
  %291 = vmatprep.subr.bf16.mxu0 0
  %292 = vmatpush1.bf16.msra.mxu0 0
  %293 = vmatprep.subr.bf16.mxu0 0
  %294 = vmatpush1.bf16.msra.mxu0 0
  %295 = vmatprep.mubr.bf16.mxu0 0
  %296 = vmatmul.mubr.bf16.gmra.mrb[0].mxu0 %v95
  %v297 = vpop.f32.mrb[0].mxu0
  %v298 = vadd.f32 %v62, %v297
  %v299 = vpop.f32.mrb[0].mxu0
  %v300 = vadd.f32 %v66, %v299
  %v301 = vpop.f32.mrb[0].mxu0
  %v302 = vadd.f32 %v62, %v301
  %v303 = vpop.f32.mrb[0].mxu0
  %v304 = vadd.f32 %v66, %v303
  %305 = vmatprep.mubr.bf16.mxu0 0
  %306 = vmatmul.mubr.bf16.gmra.mrb[0].mxu0 %v96
  %v307 = vpop.f32.mrb[0].mxu0
  %v308 = vadd.f32 %v62, %v307
  %v309 = vpop.f32.mrb[0].mxu0
  %v310 = vadd.f32 %v66, %v309
  %v311 = vpop.f32.mrb[0].mxu0
  %v312 = vadd.f32 %v62, %v311
  %v313 = vpop.f32.mrb[0].mxu0
  %v314 = vadd.f32 %v66, %v313
  %315 = vmatprep.mubr.bf16.mxu0 0
  %316 = vmatmul.mubr.bf16.gmra.mrb[0].mxu0 %v97
  %v317 = vpop.f32.mrb[0].mxu0
  %v318 = vadd.f32 %v62, %v317
  %v319 = vpop.f32.mrb[0].mxu0
  %v320 = vadd.f32 %v66, %v319
  %v321 = vpop.f32.mrb[0].mxu0
  %v322 = vadd.f32 %v62, %v321
  %v323 = vpop.f32.mrb[0].mxu0
  %v324 = vadd.f32 %v66, %v323
  %325 = vmatprep.mubr.bf16.mxu0 0
  %326 = vmatmul.mubr.bf16.gmra.mrb[0].mxu0 %v98
  %v327 = vpop.f32.mrb[0].mxu0
  %v328 = vadd.f32 %v62, %v327
  %v329 = vpop.f32.mrb[0].mxu0
  %v330 = vadd.f32 %v66, %v329
  %v331 = vpop.f32.mrb[0].mxu0
  %v332 = vadd.f32 %v62, %v331
  %v333 = vpop.f32.mrb[0].mxu0
  %v334 = vadd.f32 %v66, %v333
  %335 = vdwg.mxu0
  %336 = vmatprep.subr.bf16.mxu0 %v202
  %337 = vmatpush1.bf16.msra.mxu0 %v201
  %338 = vmatprep.subr.bf16.mxu0 %v206
  %339 = vmatpush1.bf16.msra.mxu0 %v205
  %340 = vmatprep.subr.bf16.mxu0 %v210
  %341 = vmatpush1.bf16.msra.mxu0 %v209
  %342 = vmatprep.subr.bf16.mxu0 %v214
  %343 = vmatpush1.bf16.msra.mxu0 %v213
  %344 = vmatprep.subr.bf16.mxu0 %v218
  %345 = vmatpush1.bf16.msra.mxu0 %v217
  %346 = vmatprep.subr.bf16.mxu0 %v222
  %347 = vmatpush1.bf16.msra.mxu0 %v221
  %348 = vmatprep.subr.bf16.mxu0 %v226
  %349 = vmatpush1.bf16.msra.mxu0 %v225
  %350 = vmatprep.subr.bf16.mxu0 %v230
  %351 = vmatpush1.bf16.msra.mxu0 %v229
  %352 = vmatprep.subr.bf16.mxu0 0
  %353 = vmatpush1.bf16.msra.mxu0 0
  %354 = vmatprep.subr.bf16.mxu0 0
  %355 = vmatpush1.bf16.msra.mxu0 0
  %356 = vmatprep.subr.bf16.mxu0 0
  %357 = vmatpush1.bf16.msra.mxu0 0
  %358 = vmatprep.subr.bf16.mxu0 0
  %359 = vmatpush1.bf16.msra.mxu0 0
  %360 = vmatprep.subr.bf16.mxu0 0
  %361 = vmatpush1.bf16.msra.mxu0 0
  %362 = vmatprep.subr.bf16.mxu0 0
  %363 = vmatpush1.bf16.msra.mxu0 0
  %364 = vmatprep.subr.bf16.mxu0 0
  %365 = vmatpush1.bf16.msra.mxu0 0
  %366 = vmatprep.subr.bf16.mxu0 0
  %367 = vmatpush1.bf16.msra.mxu0 0
  %368 = vmatprep.mubr.bf16.mxu0 0
  %369 = vmatmul.mubr.bf16.gmra.mrb[0].mxu0 %v95
  %v370 = vpop.f32.mrb[0].mxu0
  %v371 = vadd.f32 %v70, %v370
  %v372 = vpop.f32.mrb[0].mxu0
  %v373 = vadd.f32 %v74, %v372
  %v374 = vpop.f32.mrb[0].mxu0
  %v375 = vadd.f32 %v70, %v374
  %v376 = vpop.f32.mrb[0].mxu0
  %v377 = vadd.f32 %v74, %v376
  %378 = vmatprep.mubr.bf16.mxu0 0
  %379 = vmatmul.mubr.bf16.gmra.mrb[0].mxu0 %v96
  %v380 = vpop.f32.mrb[0].mxu0
  %v381 = vadd.f32 %v70, %v380
  %v382 = vpop.f32.mrb[0].mxu0
  %v383 = vadd.f32 %v74, %v382
  %v384 = vpop.f32.mrb[0].mxu0
  %v385 = vadd.f32 %v70, %v384
  %v386 = vpop.f32.mrb[0].mxu0
  %v387 = vadd.f32 %v74, %v386
  %388 = vmatprep.mubr.bf16.mxu0 0
  %389 = vmatmul.mubr.bf16.gmra.mrb[0].mxu0 %v97
  %v390 = vpop.f32.mrb[0].mxu0
  %v391 = vadd.f32 %v70, %v390
  %v392 = vpop.f32.mrb[0].mxu0
  %v393 = vadd.f32 %v74, %v392
  %v394 = vpop.f32.mrb[0].mxu0
  %v395 = vadd.f32 %v70, %v394
  %v396 = vpop.f32.mrb[0].mxu0
  %v397 = vadd.f32 %v74, %v396
  %398 = vmatprep.mubr.bf16.mxu0 0
  %399 = vmatmul.mubr.bf16.gmra.mrb[0].mxu0 %v98
  %v400 = vpop.f32.mrb[0].mxu0
  %v401 = vadd.f32 %v70, %v400
  %v402 = vpop.f32.mrb[0].mxu0
  %v403 = vadd.f32 %v74, %v402
  %v404 = vpop.f32.mrb[0].mxu0
  %v405 = vadd.f32 %v70, %v404
  %v406 = vpop.f32.mrb[0].mxu0
  %v407 = vadd.f32 %v74, %v406
  %408 = vdwg.mxu0
  %s409 = scalar_lea.vmem %s1, 256
  %v410 = vld [vmem:[%s409] sm:$0xff]
  %v411 = vld [vmem:[%s409 + $0x8] sm:$0xff]
  %v412 = vld [vmem:[%s409 + $0x10] sm:$0xff]
  %v413 = vld [vmem:[%s409 + $0x18] sm:$0xff]
  %v414 = vld [vmem:[%s409 + $0x20] sm:$0xff]
  %v415 = vld [vmem:[%s409 + $0x28] sm:$0xff]
  %v416 = vld [vmem:[%s409 + $0x30] sm:$0xff]
  %v417 = vld [vmem:[%s409 + $0x38] sm:$0xff]
  %v418 = vld [vmem:[%s409 + $0x40] sm:$0xff]
  %v419 = vld [vmem:[%s409 + $0x48] sm:$0xff]
  %v420 = vld [vmem:[%s409 + $0x50] sm:$0xff]
  %v421 = vld [vmem:[%s409 + $0x58] sm:$0xff]
  %v422 = vld [vmem:[%s409 + $0x60] sm:$0xff]
  %v423 = vld [vmem:[%s409 + $0x68] sm:$0xff]
  %v424 = vld [vmem:[%s409 + $0x70] sm:$0xff]
  %v425 = vld [vmem:[%s409 + $0x78] sm:$0xff]
  %v426 = vld [vmem:[%s409 + $0x80] sm:$0xff]
  %v427 = vld [vmem:[%s409 + $0x88] sm:$0xff]
  %v428 = vld [vmem:[%s409 + $0x90] sm:$0xff]
  %v429 = vld [vmem:[%s409 + $0x98] sm:$0xff]
  %v430 = vld [vmem:[%s409 + $0xa0] sm:$0xff]
  %v431 = vld [vmem:[%s409 + $0xa8] sm:$0xff]
  %v432 = vld [vmem:[%s409 + $0xb0] sm:$0xff]
  %v433 = vld [vmem:[%s409 + $0xb8] sm:$0xff]
  %v434 = vld [vmem:[%s409 + $0xc0] sm:$0xff]
  %v435 = vld [vmem:[%s409 + $0xc8] sm:$0xff]
  %v436 = vld [vmem:[%s409 + $0xd0] sm:$0xff]
  %v437 = vld [vmem:[%s409 + $0xd8] sm:$0xff]
  %v438 = vld [vmem:[%s409 + $0xe0] sm:$0xff]
  %v439 = vld [vmem:[%s409 + $0xe8] sm:$0xff]
  %v440 = vld [vmem:[%s409 + $0xf0] sm:$0xff]
  %v441 = vld [vmem:[%s409 + $0xf8] sm:$0xff]
  %s442 = scalar_lea.vmem %s2, 4
  %v443 = vld [vmem:[%s442] sm:$0xf]
  %v445 = vlaneseq
  %v446 = vshrl.u32 %v445, 7
  %v447 = vsub.s32 0, %v446
  %v448 = vrot.slane %v443, %v447
  %v449 = vlaneseq
  %v450 = vshrl.u32 %v449, 7
  %v451 = vsub.s32 1, %v450
  %v452 = vrot.slane %v443, %v451
  %v453 = vlaneseq
  %v454 = vshrl.u32 %v453, 7
  %v455 = vsub.s32 2, %v454
  %v456 = vrot.slane %v443, %v455
  %v457 = vlaneseq
  %v458 = vshrl.u32 %v457, 7
  %v459 = vsub.s32 3, %v458
  %v460 = vrot.slane %v443, %v459
  %v497 = vunpack.c.l.b16 %v410
  %v498 = vunpack.c.h.b16 %v410
  %v499 = vunpack.c.l.b16 %v411
  %v500 = vunpack.c.h.b16 %v411
  %v501 = vunpack.c.l.b16 %v412
  %v502 = vunpack.c.h.b16 %v412
  %v503 = vunpack.c.l.b16 %v413
  %v504 = vunpack.c.h.b16 %v413
  %v505 = vunpack.c.l.b16 %v414
  %v506 = vunpack.c.h.b16 %v414
  %v507 = vunpack.c.l.b16 %v415
  %v508 = vunpack.c.h.b16 %v415
  %v509 = vunpack.c.l.b16 %v416
  %v510 = vunpack.c.h.b16 %v416
  %v511 = vunpack.c.l.b16 %v417
  %v512 = vunpack.c.h.b16 %v417
  %v513 = vunpack.c.l.b16 %v418
  %v514 = vunpack.c.h.b16 %v418
  %v515 = vunpack.c.l.b16 %v419
  %v516 = vunpack.c.h.b16 %v419
  %v517 = vunpack.c.l.b16 %v420
  %v518 = vunpack.c.h.b16 %v420
  %v519 = vunpack.c.l.b16 %v421
  %v520 = vunpack.c.h.b16 %v421
  %v521 = vunpack.c.l.b16 %v422
  %v522 = vunpack.c.h.b16 %v422
  %v523 = vunpack.c.l.b16 %v423
  %v524 = vunpack.c.h.b16 %v423
  %v525 = vunpack.c.l.b16 %v424
  %v526 = vunpack.c.h.b16 %v424
  %v527 = vunpack.c.l.b16 %v425
  %v528 = vunpack.c.h.b16 %v425
  %v529 = vunpack.c.l.b16 %v426
  %v530 = vunpack.c.h.b16 %v426
  %v531 = vunpack.c.l.b16 %v427
  %v532 = vunpack.c.h.b16 %v427
  %v533 = vunpack.c.l.b16 %v428
  %v534 = vunpack.c.h.b16 %v428
  %v535 = vunpack.c.l.b16 %v429
  %v536 = vunpack.c.h.b16 %v429
  %v537 = vunpack.c.l.b16 %v430
  %v538 = vunpack.c.h.b16 %v430
  %v539 = vunpack.c.l.b16 %v431
  %v540 = vunpack.c.h.b16 %v431
  %v541 = vunpack.c.l.b16 %v432
  %v542 = vunpack.c.h.b16 %v432
  %v543 = vunpack.c.l.b16 %v433
  %v544 = vunpack.c.h.b16 %v433
  %v545 = vunpack.c.l.b16 %v434
  %v546 = vunpack.c.h.b16 %v434
  %v547 = vunpack.c.l.b16 %v435
  %v548 = vunpack.c.h.b16 %v435
  %v549 = vunpack.c.l.b16 %v436
  %v550 = vunpack.c.h.b16 %v436
  %v551 = vunpack.c.l.b16 %v437
  %v552 = vunpack.c.h.b16 %v437
  %v553 = vunpack.c.l.b16 %v438
  %v554 = vunpack.c.h.b16 %v438
  %v555 = vunpack.c.l.b16 %v439
  %v556 = vunpack.c.h.b16 %v439
  %v557 = vunpack.c.l.b16 %v440
  %v558 = vunpack.c.h.b16 %v440
  %v559 = vunpack.c.l.b16 %v441
  %v560 = vunpack.c.h.b16 %v441
  %v561 = vpack.c.b16 %v501, %v497
  %v562 = vpack.c.b16 %v502, %v498
  %v563 = vpack.c.b16 %v503, %v499
  %v564 = vpack.c.b16 %v504, %v500
  %v565 = vpack.c.b16 %v509, %v505
  %v566 = vpack.c.b16 %v510, %v506
  %v567 = vpack.c.b16 %v511, %v507
  %v568 = vpack.c.b16 %v512, %v508
  %v569 = vpack.c.b16 %v517, %v513
  %v570 = vpack.c.b16 %v518, %v514
  %v571 = vpack.c.b16 %v519, %v515
  %v572 = vpack.c.b16 %v520, %v516
  %v573 = vpack.c.b16 %v525, %v521
  %v574 = vpack.c.b16 %v526, %v522
  %v575 = vpack.c.b16 %v527, %v523
  %v576 = vpack.c.b16 %v528, %v524
  %v577 = vpack.c.b16 %v533, %v529
  %v578 = vpack.c.b16 %v534, %v530
  %v579 = vpack.c.b16 %v535, %v531
  %v580 = vpack.c.b16 %v536, %v532
  %v581 = vpack.c.b16 %v541, %v537
  %v582 = vpack.c.b16 %v542, %v538
  %v583 = vpack.c.b16 %v543, %v539
  %v584 = vpack.c.b16 %v544, %v540
  %v585 = vpack.c.b16 %v549, %v545
  %v586 = vpack.c.b16 %v550, %v546
  %v587 = vpack.c.b16 %v551, %v547
  %v588 = vpack.c.b16 %v552, %v548
  %v589 = vpack.c.b16 %v557, %v553
  %v590 = vpack.c.b16 %v558, %v554
  %v591 = vpack.c.b16 %v559, %v555
  %v592 = vpack.c.b16 %v560, %v556
  %625 = vmatprep.subr.bf16.mxu0 %v562
  %626 = vmatpush1.bf16.msra.mxu0 %v561
  %627 = vmatprep.subr.bf16.mxu0 %v566
  %628 = vmatpush1.bf16.msra.mxu0 %v565
  %629 = vmatprep.subr.bf16.mxu0 %v570
  %630 = vmatpush1.bf16.msra.mxu0 %v569
  %631 = vmatprep.subr.bf16.mxu0 %v574
  %632 = vmatpush1.bf16.msra.mxu0 %v573
  %633 = vmatprep.subr.bf16.mxu0 %v578
  %634 = vmatpush1.bf16.msra.mxu0 %v577
  %635 = vmatprep.subr.bf16.mxu0 %v582
  %636 = vmatpush1.bf16.msra.mxu0 %v581
  %637 = vmatprep.subr.bf16.mxu0 %v586
  %638 = vmatpush1.bf16.msra.mxu0 %v585
  %639 = vmatprep.subr.bf16.mxu0 %v590
  %640 = vmatpush1.bf16.msra.mxu0 %v589
  %641 = vmatprep.subr.bf16.mxu0 0
  %642 = vmatpush1.bf16.msra.mxu0 0
  %643 = vmatprep.subr.bf16.mxu0 0
  %644 = vmatpush1.bf16.msra.mxu0 0
  %645 = vmatprep.subr.bf16.mxu0 0
  %646 = vmatpush1.bf16.msra.mxu0 0
  %647 = vmatprep.subr.bf16.mxu0 0
  %648 = vmatpush1.bf16.msra.mxu0 0
  %649 = vmatprep.subr.bf16.mxu0 0
  %650 = vmatpush1.bf16.msra.mxu0 0
  %651 = vmatprep.subr.bf16.mxu0 0
  %652 = vmatpush1.bf16.msra.mxu0 0
  %653 = vmatprep.subr.bf16.mxu0 0
  %654 = vmatpush1.bf16.msra.mxu0 0
  %655 = vmatprep.subr.bf16.mxu0 0
  %656 = vmatpush1.bf16.msra.mxu0 0
  %657 = vmatprep.mubr.bf16.mxu0 0
  %658 = vmatmul.mubr.bf16.gmra.mrb[0].mxu0 %v95
  %v659 = vpop.f32.mrb[0].mxu0
  %v660 = vadd.f32 %v448, %v659
  %v661 = vpop.f32.mrb[0].mxu0
  %v662 = vadd.f32 %v452, %v661
  %v663 = vpop.f32.mrb[0].mxu0
  %v664 = vadd.f32 %v448, %v663
  %v665 = vpop.f32.mrb[0].mxu0
  %v666 = vadd.f32 %v452, %v665
  %667 = vmatprep.mubr.bf16.mxu0 0
  %668 = vmatmul.mubr.bf16.gmra.mrb[0].mxu0 %v96
  %v669 = vpop.f32.mrb[0].mxu0
  %v670 = vadd.f32 %v448, %v669
  %v671 = vpop.f32.mrb[0].mxu0
  %v672 = vadd.f32 %v452, %v671
  %v673 = vpop.f32.mrb[0].mxu0
  %v674 = vadd.f32 %v448, %v673
  %v675 = vpop.f32.mrb[0].mxu0
  %v676 = vadd.f32 %v452, %v675
  %677 = vmatprep.mubr.bf16.mxu0 0
  %678 = vmatmul.mubr.bf16.gmra.mrb[0].mxu0 %v97
  %v679 = vpop.f32.mrb[0].mxu0
  %v680 = vadd.f32 %v448, %v679
  %v681 = vpop.f32.mrb[0].mxu0
  %v682 = vadd.f32 %v452, %v681
  %v683 = vpop.f32.mrb[0].mxu0
  %v684 = vadd.f32 %v448, %v683
  %v685 = vpop.f32.mrb[0].mxu0
  %v686 = vadd.f32 %v452, %v685
  %687 = vmatprep.mubr.bf16.mxu0 0
  %688 = vmatmul.mubr.bf16.gmra.mrb[0].mxu0 %v98
  %v689 = vpop.f32.mrb[0].mxu0
  %v690 = vadd.f32 %v448, %v689
  %v691 = vpop.f32.mrb[0].mxu0
  %v692 = vadd.f32 %v452, %v691
  %v693 = vpop.f32.mrb[0].mxu0
  %v694 = vadd.f32 %v448, %v693
  %v695 = vpop.f32.mrb[0].mxu0
  %v696 = vadd.f32 %v452, %v695
  %697 = vdwg.mxu0
  %698 = vmatprep.subr.bf16.mxu0 %v564
  %699 = vmatpush1.bf16.msra.mxu0 %v563
  %700 = vmatprep.subr.bf16.mxu0 %v568
  %701 = vmatpush1.bf16.msra.mxu0 %v567
  %702 = vmatprep.subr.bf16.mxu0 %v572
  %703 = vmatpush1.bf16.msra.mxu0 %v571
  %704 = vmatprep.subr.bf16.mxu0 %v576
  %705 = vmatpush1.bf16.msra.mxu0 %v575
  %706 = vmatprep.subr.bf16.mxu0 %v580
  %707 = vmatpush1.bf16.msra.mxu0 %v579
  %708 = vmatprep.subr.bf16.mxu0 %v584
  %709 = vmatpush1.bf16.msra.mxu0 %v583
  %710 = vmatprep.subr.bf16.mxu0 %v588
  %711 = vmatpush1.bf16.msra.mxu0 %v587
  %712 = vmatprep.subr.bf16.mxu0 %v592
  %713 = vmatpush1.bf16.msra.mxu0 %v591
  %714 = vmatprep.subr.bf16.mxu0 0
  %715 = vmatpush1.bf16.msra.mxu0 0
  %716 = vmatprep.subr.bf16.mxu0 0
  %717 = vmatpush1.bf16.msra.mxu0 0
  %718 = vmatprep.subr.bf16.mxu0 0
  %719 = vmatpush1.bf16.msra.mxu0 0
  %720 = vmatprep.subr.bf16.mxu0 0
  %721 = vmatpush1.bf16.msra.mxu0 0
  %722 = vmatprep.subr.bf16.mxu0 0
  %723 = vmatpush1.bf16.msra.mxu0 0
  %724 = vmatprep.subr.bf16.mxu0 0
  %725 = vmatpush1.bf16.msra.mxu0 0
  %726 = vmatprep.subr.bf16.mxu0 0
  %727 = vmatpush1.bf16.msra.mxu0 0
  %728 = vmatprep.subr.bf16.mxu0 0
  %729 = vmatpush1.bf16.msra.mxu0 0
  %730 = vmatprep.mubr.bf16.mxu0 0
  %731 = vmatmul.mubr.bf16.gmra.mrb[0].mxu0 %v95
  %v732 = vpop.f32.mrb[0].mxu0
  %v733 = vadd.f32 %v456, %v732
  %v734 = vpop.f32.mrb[0].mxu0
  %v735 = vadd.f32 %v460, %v734
  %v736 = vpop.f32.mrb[0].mxu0
  %v737 = vadd.f32 %v456, %v736
  %v738 = vpop.f32.mrb[0].mxu0
  %v739 = vadd.f32 %v460, %v738
  %740 = vmatprep.mubr.bf16.mxu0 0
  %741 = vmatmul.mubr.bf16.gmra.mrb[0].mxu0 %v96
  %v742 = vpop.f32.mrb[0].mxu0
  %v743 = vadd.f32 %v456, %v742
  %v744 = vpop.f32.mrb[0].mxu0
  %v745 = vadd.f32 %v460, %v744
  %v746 = vpop.f32.mrb[0].mxu0
  %v747 = vadd.f32 %v456, %v746
  %v748 = vpop.f32.mrb[0].mxu0
  %v749 = vadd.f32 %v460, %v748
  %750 = vmatprep.mubr.bf16.mxu0 0
  %751 = vmatmul.mubr.bf16.gmra.mrb[0].mxu0 %v97
  %v752 = vpop.f32.mrb[0].mxu0
  %v753 = vadd.f32 %v456, %v752
  %v754 = vpop.f32.mrb[0].mxu0
  %v755 = vadd.f32 %v460, %v754
  %v756 = vpop.f32.mrb[0].mxu0
  %v757 = vadd.f32 %v456, %v756
  %v758 = vpop.f32.mrb[0].mxu0
  %v759 = vadd.f32 %v460, %v758
  %760 = vmatprep.mubr.bf16.mxu0 0
  %761 = vmatmul.mubr.bf16.gmra.mrb[0].mxu0 %v98
  %v762 = vpop.f32.mrb[0].mxu0
  %v763 = vadd.f32 %v456, %v762
  %v764 = vpop.f32.mrb[0].mxu0
  %v765 = vadd.f32 %v460, %v764
  %v766 = vpop.f32.mrb[0].mxu0
  %v767 = vadd.f32 %v456, %v766
  %v768 = vpop.f32.mrb[0].mxu0
  %v769 = vadd.f32 %v460, %v768
  %770 = vdwg.mxu0
  %v771 = vpack.c.bf16 %v302, %v298
  %v772 = vpack.c.bf16 %v304, %v300
  %v773 = vpack.c.bf16 %v375, %v371
  %v774 = vpack.c.bf16 %v377, %v373
  %v775 = vpack.c.bf16 %v312, %v308
  %v776 = vpack.c.bf16 %v314, %v310
  %v777 = vpack.c.bf16 %v385, %v381
  %v778 = vpack.c.bf16 %v387, %v383
  %v779 = vpack.c.bf16 %v322, %v318
  %v780 = vpack.c.bf16 %v324, %v320
  %v781 = vpack.c.bf16 %v395, %v391
  %v782 = vpack.c.bf16 %v397, %v393
  %v783 = vpack.c.bf16 %v332, %v328
  %v784 = vpack.c.bf16 %v334, %v330
  %v785 = vpack.c.bf16 %v405, %v401
  %v786 = vpack.c.bf16 %v407, %v403
  %v803 = vunpack.c.l.b16 %v771
  %v804 = vunpack.c.l.b16 %v772
  %v805 = vunpack.c.l.b16 %v773
  %v806 = vunpack.c.l.b16 %v774
  %v807 = vunpack.c.h.b16 %v771
  %v808 = vunpack.c.h.b16 %v772
  %v809 = vunpack.c.h.b16 %v773
  %v810 = vunpack.c.h.b16 %v774
  %v811 = vunpack.c.l.b16 %v775
  %v812 = vunpack.c.l.b16 %v776
  %v813 = vunpack.c.l.b16 %v777
  %v814 = vunpack.c.l.b16 %v778
  %v815 = vunpack.c.h.b16 %v775
  %v816 = vunpack.c.h.b16 %v776
  %v817 = vunpack.c.h.b16 %v777
  %v818 = vunpack.c.h.b16 %v778
  %v819 = vunpack.c.l.b16 %v779
  %v820 = vunpack.c.l.b16 %v780
  %v821 = vunpack.c.l.b16 %v781
  %v822 = vunpack.c.l.b16 %v782
  %v823 = vunpack.c.h.b16 %v779
  %v824 = vunpack.c.h.b16 %v780
  %v825 = vunpack.c.h.b16 %v781
  %v826 = vunpack.c.h.b16 %v782
  %v827 = vunpack.c.l.b16 %v783
  %v828 = vunpack.c.l.b16 %v784
  %v829 = vunpack.c.l.b16 %v785
  %v830 = vunpack.c.l.b16 %v786
  %v831 = vunpack.c.h.b16 %v783
  %v832 = vunpack.c.h.b16 %v784
  %v833 = vunpack.c.h.b16 %v785
  %v834 = vunpack.c.h.b16 %v786
  %v835 = vpack.c.b16 %v804, %v803
  %v836 = vpack.c.b16 %v806, %v805
  %v837 = vpack.c.b16 %v808, %v807
  %v838 = vpack.c.b16 %v810, %v809
  %v839 = vpack.c.b16 %v812, %v811
  %v840 = vpack.c.b16 %v814, %v813
  %v841 = vpack.c.b16 %v816, %v815
  %v842 = vpack.c.b16 %v818, %v817
  %v843 = vpack.c.b16 %v820, %v819
  %v844 = vpack.c.b16 %v822, %v821
  %v845 = vpack.c.b16 %v824, %v823
  %v846 = vpack.c.b16 %v826, %v825
  %v847 = vpack.c.b16 %v828, %v827
  %v848 = vpack.c.b16 %v830, %v829
  %v849 = vpack.c.b16 %v832, %v831
  %v850 = vpack.c.b16 %v834, %v833
  %867 = vst [vmem:[%s3] sm:$0xff] %v835
  %868 = vst [vmem:[%s3 + $0x8] sm:$0xff] %v836
  %869 = vst [vmem:[%s3 + $0x10] sm:$0xff] %v837
  %870 = vst [vmem:[%s3 + $0x18] sm:$0xff] %v838
  %871 = vst [vmem:[%s3 + $0x20] sm:$0xff] %v839
  %872 = vst [vmem:[%s3 + $0x28] sm:$0xff] %v840
  %873 = vst [vmem:[%s3 + $0x30] sm:$0xff] %v841
  %874 = vst [vmem:[%s3 + $0x38] sm:$0xff] %v842
  %875 = vst [vmem:[%s3 + $0x40] sm:$0xff] %v843
  %876 = vst [vmem:[%s3 + $0x48] sm:$0xff] %v844
  %877 = vst [vmem:[%s3 + $0x50] sm:$0xff] %v845
  %878 = vst [vmem:[%s3 + $0x58] sm:$0xff] %v846
  %879 = vst [vmem:[%s3 + $0x60] sm:$0xff] %v847
  %880 = vst [vmem:[%s3 + $0x68] sm:$0xff] %v848
  %881 = vst [vmem:[%s3 + $0x70] sm:$0xff] %v849
  %882 = vst [vmem:[%s3 + $0x78] sm:$0xff] %v850
  %v883 = vpack.c.bf16 %v664, %v660
  %v884 = vpack.c.bf16 %v666, %v662
  %v885 = vpack.c.bf16 %v737, %v733
  %v886 = vpack.c.bf16 %v739, %v735
  %v887 = vpack.c.bf16 %v674, %v670
  %v888 = vpack.c.bf16 %v676, %v672
  %v889 = vpack.c.bf16 %v747, %v743
  %v890 = vpack.c.bf16 %v749, %v745
  %v891 = vpack.c.bf16 %v684, %v680
  %v892 = vpack.c.bf16 %v686, %v682
  %v893 = vpack.c.bf16 %v757, %v753
  %v894 = vpack.c.bf16 %v759, %v755
  %v895 = vpack.c.bf16 %v694, %v690
  %v896 = vpack.c.bf16 %v696, %v692
  %v897 = vpack.c.bf16 %v767, %v763
  %v898 = vpack.c.bf16 %v769, %v765
  %v915 = vunpack.c.l.b16 %v883
  %v916 = vunpack.c.l.b16 %v884
  %v917 = vunpack.c.l.b16 %v885
  %v918 = vunpack.c.l.b16 %v886
  %v919 = vunpack.c.h.b16 %v883
  %v920 = vunpack.c.h.b16 %v884
  %v921 = vunpack.c.h.b16 %v885
  %v922 = vunpack.c.h.b16 %v886
  %v923 = vunpack.c.l.b16 %v887
  %v924 = vunpack.c.l.b16 %v888
  %v925 = vunpack.c.l.b16 %v889
  %v926 = vunpack.c.l.b16 %v890
  %v927 = vunpack.c.h.b16 %v887
  %v928 = vunpack.c.h.b16 %v888
  %v929 = vunpack.c.h.b16 %v889
  %v930 = vunpack.c.h.b16 %v890
  %v931 = vunpack.c.l.b16 %v891
  %v932 = vunpack.c.l.b16 %v892
  %v933 = vunpack.c.l.b16 %v893
  %v934 = vunpack.c.l.b16 %v894
  %v935 = vunpack.c.h.b16 %v891
  %v936 = vunpack.c.h.b16 %v892
  %v937 = vunpack.c.h.b16 %v893
  %v938 = vunpack.c.h.b16 %v894
  %v939 = vunpack.c.l.b16 %v895
  %v940 = vunpack.c.l.b16 %v896
  %v941 = vunpack.c.l.b16 %v897
  %v942 = vunpack.c.l.b16 %v898
  %v943 = vunpack.c.h.b16 %v895
  %v944 = vunpack.c.h.b16 %v896
  %v945 = vunpack.c.h.b16 %v897
  %v946 = vunpack.c.h.b16 %v898
  %v947 = vpack.c.b16 %v916, %v915
  %v948 = vpack.c.b16 %v918, %v917
  %v949 = vpack.c.b16 %v920, %v919
  %v950 = vpack.c.b16 %v922, %v921
  %v951 = vpack.c.b16 %v924, %v923
  %v952 = vpack.c.b16 %v926, %v925
  %v953 = vpack.c.b16 %v928, %v927
  %v954 = vpack.c.b16 %v930, %v929
  %v955 = vpack.c.b16 %v932, %v931
  %v956 = vpack.c.b16 %v934, %v933
  %v957 = vpack.c.b16 %v936, %v935
  %v958 = vpack.c.b16 %v938, %v937
  %v959 = vpack.c.b16 %v940, %v939
  %v960 = vpack.c.b16 %v942, %v941
  %v961 = vpack.c.b16 %v944, %v943
  %v962 = vpack.c.b16 %v946, %v945
  %979 = vst [vmem:[%s4] sm:$0xff] %v947
  %980 = vst [vmem:[%s4 + $0x8] sm:$0xff] %v948
  %981 = vst [vmem:[%s4 + $0x10] sm:$0xff] %v949
  %982 = vst [vmem:[%s4 + $0x18] sm:$0xff] %v950
  %983 = vst [vmem:[%s4 + $0x20] sm:$0xff] %v951
  %984 = vst [vmem:[%s4 + $0x28] sm:$0xff] %v952
  %985 = vst [vmem:[%s4 + $0x30] sm:$0xff] %v953
  %986 = vst [vmem:[%s4 + $0x38] sm:$0xff] %v954
  %987 = vst [vmem:[%s4 + $0x40] sm:$0xff] %v955
  %988 = vst [vmem:[%s4 + $0x48] sm:$0xff] %v956
  %989 = vst [vmem:[%s4 + $0x50] sm:$0xff] %v957
  %990 = vst [vmem:[%s4 + $0x58] sm:$0xff] %v958
  %991 = vst [vmem:[%s4 + $0x60] sm:$0xff] %v959
  %992 = vst [vmem:[%s4 + $0x68] sm:$0xff] %v960
  %993 = vst [vmem:[%s4 + $0x70] sm:$0xff] %v961
  %994 = vst [vmem:[%s4 + $0x78] sm:$0xff] %v962
  // Predicated region
  $region14: #{encoder_rnn_forward.2} parent=0 // pred_check
    _
  $region15: #{encoder_rnn_forward.2} parent=0 // pred_check_branch
    %996 = sbr.rel (0) target = $region17
  $region16: #{encoder_rnn_forward.2} parent=0 // pred_region
    _
  $region17: #{encoder_rnn_forward.2} parent=0 // pred_fallthru
    _
  // Predicated region
  $region18: #{encoder_rnn_forward.2} parent=0 // pred_check
    _
  $region19: #{encoder_rnn_forward.2} parent=0 // pred_check_branch
    %998 = sbr.rel (0) target = $region21
  $region20: #{encoder_rnn_forward.2} parent=0 // pred_region
    _
  $region21: #{encoder_rnn_forward.2} parent=0 // pred_fallthru
    _
  // Predicated region
  $region22: #{encoder_rnn_forward.2} parent=0 // pred_check
    _
  $region23: #{encoder_rnn_forward.2} parent=0 // pred_check_branch
    %1000 = sbr.rel (0) target = $region25
  $region24: #{encoder_rnn_forward.2} parent=0 // pred_region
    _
  $region25: #{encoder_rnn_forward.2} parent=0 // pred_fallthru
    _
  // Predicated region
  $region26: #{encoder_rnn_forward.2} parent=0 // pred_check
    _
  $region27: #{encoder_rnn_forward.2} parent=0 // pred_check_branch
    %1002 = sbr.rel (0) target = $region29
  $region28: #{encoder_rnn_forward.2} parent=0 // pred_region
    _
  $region29: #{encoder_rnn_forward.2} parent=0 // pred_fallthru
    _

// kernel: encoder_rnn_forward.3
$region0: #{encoder_rnn_forward.3}
  #allocation0 [shape = 'u32[]', space=smem, size = 0x4, offset = 0x4, fixed_abs, tag = 'smem constant byte address 0x4 - core index']
  #allocation1 [shape = 'u32[144,128]{1,0:T(1,128)}', space=vmem, size = 0x12000, scoped, tag = 'internal scratch']
  #allocation2 [shape = 'f32[2,8,128]{2,1,0:T(8,128)}', space=vmem, size = 0x2000, scoped, tag = 'scratch operand']
  #allocation3 [shape = 'f32[2,8,128]{2,1,0:T(8,128)}', space=vmem, size = 0x2000, scoped, tag = 'scratch operand']
  %s0 = inlined_call_operand.vmem [shape: s32[8,1], index: 0, kind: input, shape index: {}]
  %s1 = inlined_call_operand.vmem [shape: bf16[8,8,512], index: 1, kind: input, shape index: {}]
  %s2 = inlined_call_operand.vmem [shape: bf16[8,8,512], index: 2, kind: input, shape index: {}]
  %s3 = inlined_call_operand.vmem [shape: bf16[2,128,512], index: 3, kind: input, shape index: {}]
  %s4 = inlined_call_operand.vmem [shape: f32[8,8,128], index: 4, kind: output, shape index: {0}]
  %s5 = inlined_call_operand.vmem [shape: f32[8,8,128], index: 5, kind: output, shape index: {1}]
  %s6 = inlined_call_operand.hbm [shape: f32[2,8,128], index: 6, kind: output, shape index: {2}]
  %s7 = inlined_call_operand.hbm [shape: f32[2,8,128], index: 7, kind: output, shape index: {3}]
  %8 = xla_tuple %s4, %s5, %s6, %s7
  %s9 = sld [smem:[#allocation0]]
  $region58: #{encoder_rnn_forward.3} parent=0
    _
  %s11 = ssub.s32 1, %s9
  %s12 = scalar_select 0, %s11, %s9
  $region1: #{encoder_rnn_forward.3} parent=0
    #allocation4 [shape = 'u8[8192]{0}', space=vmem, size = 0x2000, scoped, tag = 'output window, operand 2, single buffered']
    #allocation5 [shape = 's32[1]{0}', space=sflag, size = 0x4, scoped, tag = 'scoped memory for encoder_rnn_forward.3']
    #allocation6 [shape = 'u8[8192]{0}', space=vmem, size = 0x2000, scoped, tag = 'output window, operand 3, single buffered']
    #allocation7 [shape = 's32[1]{0}', space=sflag, size = 0x4, scoped, tag = 'scoped memory for encoder_rnn_forward.3']
    %13 = vsyncpa [#allocation5], 0
    %14 = vsyncpa [#allocation7], 0
    // Predicated region
    $region2: #{encoder_rnn_forward.3} parent=1 // pred_check
      _
    $region3: #{encoder_rnn_forward.3} parent=1 // pred_check_branch
      %16 = sbr.rel (0) target = $region5
    $region4: #{encoder_rnn_forward.3} parent=1 // pred_region
      _
    $region5: #{encoder_rnn_forward.3} parent=1 // pred_fallthru
      _
    // Predicated region
    $region6: #{encoder_rnn_forward.3} parent=1 // pred_check
      _
    $region7: #{encoder_rnn_forward.3} parent=1 // pred_check_branch
      %18 = sbr.rel (0) target = $region9
    $region8: #{encoder_rnn_forward.3} parent=1 // pred_region
      _
    $region9: #{encoder_rnn_forward.3} parent=1 // pred_fallthru
      _
    // Predicated region
    $region10: #{encoder_rnn_forward.3} parent=1 // pred_check
      _
    $region11: #{encoder_rnn_forward.3} parent=1 // pred_check_branch
      %20 = sbr.rel (0) target = $region13
    $region12: #{encoder_rnn_forward.3} parent=1 // pred_region
      %s21 = ssub.s32 0, 0
      %s22 = smul.u32 8, %s21
      %p23 = scmp.lt.s32.totalorder %s22, 7
      %s24 = scalar_select %p23, %s22, 7
      %s25 = smul.addr %s24, 4
      %s26 = smul.addr %s25, 4
      %s27 = scalar_lea.vmem %s2, %s26
      %s28 = ssub.s32 0, 0
      %s29 = smul.u32 8, %s28
    $region13: #{encoder_rnn_forward.3} parent=1 // pred_fallthru
      _
    // Predicated region
    $region14: #{encoder_rnn_forward.3} parent=1 // pred_check
      _
    $region15: #{encoder_rnn_forward.3} parent=1 // pred_check_branch
      %31 = sbr.rel (0) target = $region17
    $region16: #{encoder_rnn_forward.3} parent=1 // pred_region
      _
    $region17: #{encoder_rnn_forward.3} parent=1 // pred_fallthru
      _
    %s32 = ssub.s32 0, 0
    %s33 = smul.u32 8, %s32
    %p34 = scmp.lt.s32.totalorder %s33, 7
    %s35 = scalar_select %p34, %s33, 7
    %s36 = smul.addr %s35, 4
    %s37 = smul.addr %s36, 4
    %s38 = scalar_lea.vmem %s2, %s37
    %s39 = ssub.s32 0, 0
    %s40 = smul.u32 8, %s39
    %p41 = scmp.lt.s32.totalorder %s40, 7
    %s42 = scalar_select %p41, %s40, 7
    %s43 = smul.addr %s42, 8
    %s44 = scalar_lea.vmem %s5, %s43
    %s45 = ssub.s32 0, 0
    %s46 = smul.u32 8, %s45
    %p47 = scmp.lt.s32.totalorder %s46, 7
    %s48 = scalar_select %p47, %s46, 7
    %s49 = smul.addr %s48, 4
    %s50 = smul.addr %s49, 4
    %s51 = scalar_lea.vmem %s2, %s50
    %s52 = ssub.s32 0, 0
    %s53 = smul.u32 8, %s52
    %s54 = ssub.s32 0, 0
    %s55 = smul.u32 8, %s54
    %p56 = scmp.lt.s32.totalorder %s55, 7
    %s57 = scalar_select %p56, %s55, 7
    %s58 = smul.addr %s57, 8
    %s59 = scalar_lea.vmem %s5, %s58
    %s60 = ssub.s32 0, 0
    %s61 = smul.u32 8, %s60
    %p63 = scmp.eq.s32.totalorder 0, 0
    // Predicated region
    $region18: #{encoder_rnn_forward.3} parent=1 // pred_check
      %p64 = pneg %p63
    $region19: #{encoder_rnn_forward.3} parent=1 // pred_check_branch
      %66 = sbr.rel (%p64) target = $region21
    $region20: #{encoder_rnn_forward.3} parent=1 // pred_region
      %67 = vst [vmem:[#allocation2] sm:$0xff] 0.0
      %68 = vst [vmem:[#allocation2 + $0x8] sm:$0xff] 0.0
      %69 = vst [vmem:[#allocation3] sm:$0xff] 0.0
      %70 = vst [vmem:[#allocation3 + $0x8] sm:$0xff] 0.0
    $region21: #{encoder_rnn_forward.3} parent=1 // pred_fallthru
      _
    %v71 = vld [vmem:[%s0] sm:$0xff]
    %s72 = smul.u32 0, 8
    %s73 = ssub.s32 7, %s72
    %v74 = vstv %s72
    %vm75 = vcmp.lt.s32.totalorder %v74, %v71
    %v76 = vsel %vm75, 1, 0
    %77 = vset.pattern.permute.xlu0 0
    %78 = vperm.xlu0 %77, %v76
    %v79 = vpop.permute.xlu0 %78
    %vm80 = vcmp.eq.s32.totalorder %v79, 1
    %v81 = vstv %s73
    %vm82 = vcmp.lt.s32.totalorder %v81, %v71
    %v83 = vsel %vm82, 1, 0
    %84 = vset.pattern.permute.xlu0 0
    %85 = vperm.xlu0 %84, %v83
    %v86 = vpop.permute.xlu0 %85
    %vm87 = vcmp.eq.s32.totalorder %v86, 1
    %v88 = vld [vmem:[%s1] sm:$0xff]
    %v89 = vld [vmem:[%s1 + $0x8] sm:$0xff]
    %v90 = vld [vmem:[#allocation2] sm:$0xff]
    %v91 = vld [vmem:[#allocation3] sm:$0xff]
    %v92 = vld [vmem:[%s3] sm:$0xff]
    %v93 = vld [vmem:[%s3 + $0x8] sm:$0xff]
    %v94 = vld [vmem:[%s3 + $0x10] sm:$0xff]
    %v95 = vld [vmem:[%s3 + $0x18] sm:$0xff]
    %v96 = vld [vmem:[%s3 + $0x20] sm:$0xff]
    %v97 = vld [vmem:[%s3 + $0x28] sm:$0xff]
    %v98 = vld [vmem:[%s3 + $0x30] sm:$0xff]
    %v99 = vld [vmem:[%s3 + $0x38] sm:$0xff]
    %v100 = vld [vmem:[%s3 + $0x40] sm:$0xff]
    %v101 = vld [vmem:[%s3 + $0x48] sm:$0xff]
    %v102 = vld [vmem:[%s3 + $0x50] sm:$0xff]
    %v103 = vld [vmem:[%s3 + $0x58] sm:$0xff]
    %v104 = vld [vmem:[%s3 + $0x60] sm:$0xff]
    %v105 = vld [vmem:[%s3 + $0x68] sm:$0xff]
    %v106 = vld [vmem:[%s3 + $0x70] sm:$0xff]
    %v107 = vld [vmem:[%s3 + $0x78] sm:$0xff]
    %v108 = vld [vmem:[%s3 + $0x80] sm:$0xff]
    %v109 = vld [vmem:[%s3 + $0x88] sm:$0xff]
    %v110 = vld [vmem:[%s3 + $0x90] sm:$0xff]
    %v111 = vld [vmem:[%s3 + $0x98] sm:$0xff]
    %v112 = vld [vmem:[%s3 + $0xa0] sm:$0xff]
    %v113 = vld [vmem:[%s3 + $0xa8] sm:$0xff]
    %v114 = vld [vmem:[%s3 + $0xb0] sm:$0xff]
    %v115 = vld [vmem:[%s3 + $0xb8] sm:$0xff]
    %v116 = vld [vmem:[%s3 + $0xc0] sm:$0xff]
    %v117 = vld [vmem:[%s3 + $0xc8] sm:$0xff]
    %v118 = vld [vmem:[%s3 + $0xd0] sm:$0xff]
    %v119 = vld [vmem:[%s3 + $0xd8] sm:$0xff]
    %v120 = vld [vmem:[%s3 + $0xe0] sm:$0xff]
    %v121 = vld [vmem:[%s3 + $0xe8] sm:$0xff]
    %v122 = vld [vmem:[%s3 + $0xf0] sm:$0xff]
    %v123 = vld [vmem:[%s3 + $0xf8] sm:$0xff]
    %v124 = vunpack.c.l.bf16 %v88
    %v125 = vunpack.c.h.bf16 %v88
    %v126 = vunpack.c.l.bf16 %v89
    %v127 = vunpack.c.h.bf16 %v89
    %v128 = vpack.c.bf16 %v90, %v90
    %v161 = vunpack.c.l.b16 %v92
    %v162 = vunpack.c.h.b16 %v92
    %v163 = vunpack.c.l.b16 %v93
    %v164 = vunpack.c.h.b16 %v93
    %v165 = vunpack.c.l.b16 %v94
    %v166 = vunpack.c.h.b16 %v94
    %v167 = vunpack.c.l.b16 %v95
    %v168 = vunpack.c.h.b16 %v95
    %v169 = vunpack.c.l.b16 %v96
    %v170 = vunpack.c.h.b16 %v96
    %v171 = vunpack.c.l.b16 %v97
    %v172 = vunpack.c.h.b16 %v97
    %v173 = vunpack.c.l.b16 %v98
    %v174 = vunpack.c.h.b16 %v98
    %v175 = vunpack.c.l.b16 %v99
    %v176 = vunpack.c.h.b16 %v99
    %v177 = vunpack.c.l.b16 %v100
    %v178 = vunpack.c.h.b16 %v100
    %v179 = vunpack.c.l.b16 %v101
    %v180 = vunpack.c.h.b16 %v101
    %v181 = vunpack.c.l.b16 %v102
    %v182 = vunpack.c.h.b16 %v102
    %v183 = vunpack.c.l.b16 %v103
    %v184 = vunpack.c.h.b16 %v103
    %v185 = vunpack.c.l.b16 %v104
    %v186 = vunpack.c.h.b16 %v104
    %v187 = vunpack.c.l.b16 %v105
    %v188 = vunpack.c.h.b16 %v105
    %v189 = vunpack.c.l.b16 %v106
    %v190 = vunpack.c.h.b16 %v106
    %v191 = vunpack.c.l.b16 %v107
    %v192 = vunpack.c.h.b16 %v107
    %v193 = vunpack.c.l.b16 %v108
    %v194 = vunpack.c.h.b16 %v108
    %v195 = vunpack.c.l.b16 %v109
    %v196 = vunpack.c.h.b16 %v109
    %v197 = vunpack.c.l.b16 %v110
    %v198 = vunpack.c.h.b16 %v110
    %v199 = vunpack.c.l.b16 %v111
    %v200 = vunpack.c.h.b16 %v111
    %v201 = vunpack.c.l.b16 %v112
    %v202 = vunpack.c.h.b16 %v112
    %v203 = vunpack.c.l.b16 %v113
    %v204 = vunpack.c.h.b16 %v113
    %v205 = vunpack.c.l.b16 %v114
    %v206 = vunpack.c.h.b16 %v114
    %v207 = vunpack.c.l.b16 %v115
    %v208 = vunpack.c.h.b16 %v115
    %v209 = vunpack.c.l.b16 %v116
    %v210 = vunpack.c.h.b16 %v116
    %v211 = vunpack.c.l.b16 %v117
    %v212 = vunpack.c.h.b16 %v117
    %v213 = vunpack.c.l.b16 %v118
    %v214 = vunpack.c.h.b16 %v118
    %v215 = vunpack.c.l.b16 %v119
    %v216 = vunpack.c.h.b16 %v119
    %v217 = vunpack.c.l.b16 %v120
    %v218 = vunpack.c.h.b16 %v120
    %v219 = vunpack.c.l.b16 %v121
    %v220 = vunpack.c.h.b16 %v121
    %v221 = vunpack.c.l.b16 %v122
    %v222 = vunpack.c.h.b16 %v122
    %v223 = vunpack.c.l.b16 %v123
    %v224 = vunpack.c.h.b16 %v123
    %v225 = vpack.c.b16 %v165, %v161
    %v226 = vpack.c.b16 %v166, %v162
    %v227 = vpack.c.b16 %v167, %v163
    %v228 = vpack.c.b16 %v168, %v164
    %v229 = vpack.c.b16 %v173, %v169
    %v230 = vpack.c.b16 %v174, %v170
    %v231 = vpack.c.b16 %v175, %v171
    %v232 = vpack.c.b16 %v176, %v172
    %v233 = vpack.c.b16 %v181, %v177
    %v234 = vpack.c.b16 %v182, %v178
    %v235 = vpack.c.b16 %v183, %v179
    %v236 = vpack.c.b16 %v184, %v180
    %v237 = vpack.c.b16 %v189, %v185
    %v238 = vpack.c.b16 %v190, %v186
    %v239 = vpack.c.b16 %v191, %v187
    %v240 = vpack.c.b16 %v192, %v188
    %v241 = vpack.c.b16 %v197, %v193
    %v242 = vpack.c.b16 %v198, %v194
    %v243 = vpack.c.b16 %v199, %v195
    %v244 = vpack.c.b16 %v200, %v196
    %v245 = vpack.c.b16 %v205, %v201
    %v246 = vpack.c.b16 %v206, %v202
    %v247 = vpack.c.b16 %v207, %v203
    %v248 = vpack.c.b16 %v208, %v204
    %v249 = vpack.c.b16 %v213, %v209
    %v250 = vpack.c.b16 %v214, %v210
    %v251 = vpack.c.b16 %v215, %v211
    %v252 = vpack.c.b16 %v216, %v212
    %v253 = vpack.c.b16 %v221, %v217
    %v254 = vpack.c.b16 %v222, %v218
    %v255 = vpack.c.b16 %v223, %v219
    %v256 = vpack.c.b16 %v224, %v220
    %289 = vmatprep.subr.bf16.mxu0 %v226
    %290 = vmatpush1.bf16.msra.mxu0 %v225
    %291 = vmatprep.subr.bf16.mxu0 %v230
    %292 = vmatpush1.bf16.msra.mxu0 %v229
    %293 = vmatprep.subr.bf16.mxu0 %v234
    %294 = vmatpush1.bf16.msra.mxu0 %v233
    %295 = vmatprep.subr.bf16.mxu0 %v238
    %296 = vmatpush1.bf16.msra.mxu0 %v237
    %297 = vmatprep.subr.bf16.mxu0 %v242
    %298 = vmatpush1.bf16.msra.mxu0 %v241
    %299 = vmatprep.subr.bf16.mxu0 %v246
    %300 = vmatpush1.bf16.msra.mxu0 %v245
    %301 = vmatprep.subr.bf16.mxu0 %v250
    %302 = vmatpush1.bf16.msra.mxu0 %v249
    %303 = vmatprep.subr.bf16.mxu0 %v254
    %304 = vmatpush1.bf16.msra.mxu0 %v253
    %305 = vmatprep.subr.bf16.mxu0 0
    %306 = vmatpush1.bf16.msra.mxu0 0
    %307 = vmatprep.subr.bf16.mxu0 0
    %308 = vmatpush1.bf16.msra.mxu0 0
    %309 = vmatprep.subr.bf16.mxu0 0
    %310 = vmatpush1.bf16.msra.mxu0 0
    %311 = vmatprep.subr.bf16.mxu0 0
    %312 = vmatpush1.bf16.msra.mxu0 0
    %313 = vmatprep.subr.bf16.mxu0 0
    %314 = vmatpush1.bf16.msra.mxu0 0
    %315 = vmatprep.subr.bf16.mxu0 0
    %316 = vmatpush1.bf16.msra.mxu0 0
    %317 = vmatprep.subr.bf16.mxu0 0
    %318 = vmatpush1.bf16.msra.mxu0 0
    %319 = vmatprep.subr.bf16.mxu0 0
    %320 = vmatpush1.bf16.msra.mxu0 0
    %321 = vmatprep.mubr.bf16.mxu0 0
    %322 = vmatmul.mubr.bf16.gmra.mrb[0].mxu0 %v128
    %v323 = vpop.f32.mrb[0].mxu0
    %v324 = vadd.f32 0.0, %v323
    %v325 = vpop.f32.mrb[0].mxu0
    %v326 = vadd.f32 0.0, %v325
    %v327 = vpop.f32.mrb[0].mxu0
    %v328 = vpop.f32.mrb[0].mxu0
    %329 = vdwg.mxu0
    %330 = vmatprep.subr.bf16.mxu0 %v228
    %331 = vmatpush1.bf16.msra.mxu0 %v227
    %332 = vmatprep.subr.bf16.mxu0 %v232
    %333 = vmatpush1.bf16.msra.mxu0 %v231
    %334 = vmatprep.subr.bf16.mxu0 %v236
    %335 = vmatpush1.bf16.msra.mxu0 %v235
    %336 = vmatprep.subr.bf16.mxu0 %v240
    %337 = vmatpush1.bf16.msra.mxu0 %v239
    %338 = vmatprep.subr.bf16.mxu0 %v244
    %339 = vmatpush1.bf16.msra.mxu0 %v243
    %340 = vmatprep.subr.bf16.mxu0 %v248
    %341 = vmatpush1.bf16.msra.mxu0 %v247
    %342 = vmatprep.subr.bf16.mxu0 %v252
    %343 = vmatpush1.bf16.msra.mxu0 %v251
    %344 = vmatprep.subr.bf16.mxu0 %v256
    %345 = vmatpush1.bf16.msra.mxu0 %v255
    %346 = vmatprep.subr.bf16.mxu0 0
    %347 = vmatpush1.bf16.msra.mxu0 0
    %348 = vmatprep.subr.bf16.mxu0 0
    %349 = vmatpush1.bf16.msra.mxu0 0
    %350 = vmatprep.subr.bf16.mxu0 0
    %351 = vmatpush1.bf16.msra.mxu0 0
    %352 = vmatprep.subr.bf16.mxu0 0
    %353 = vmatpush1.bf16.msra.mxu0 0
    %354 = vmatprep.subr.bf16.mxu0 0
    %355 = vmatpush1.bf16.msra.mxu0 0
    %356 = vmatprep.subr.bf16.mxu0 0
    %357 = vmatpush1.bf16.msra.mxu0 0
    %358 = vmatprep.subr.bf16.mxu0 0
    %359 = vmatpush1.bf16.msra.mxu0 0
    %360 = vmatprep.subr.bf16.mxu0 0
    %361 = vmatpush1.bf16.msra.mxu0 0
    %362 = vmatprep.mubr.bf16.mxu0 0
    %363 = vmatmul.mubr.bf16.gmra.mrb[0].mxu0 %v128
    %v364 = vpop.f32.mrb[0].mxu0
    %v365 = vadd.f32 0.0, %v364
    %v366 = vpop.f32.mrb[0].mxu0
    %v367 = vadd.f32 0.0, %v366
    %v368 = vpop.f32.mrb[0].mxu0
    %v369 = vpop.f32.mrb[0].mxu0
    %370 = vdwg.mxu0
    %v371 = vadd.f32 %v124, %v324
    %v372 = vadd.f32 %v125, %v326
    %v373 = vadd.f32 %v126, %v365
    %v374 = vadd.f32 %v127, %v367
    %v375 = vxor.u32 %v371, 2147483648
    %v376 = vmul.f32 %v375, 1.442695
    %v377 = vpow.pop %v376
    %v378 = vadd.f32 %v377, 1.0
    %v379 = vrcp.pop %v378
    %v380 = vmul.f32 1.0, %v379
    %v381 = vxor.u32 %v372, 2147483648
    %v382 = vmul.f32 %v381, 1.442695
    %v383 = vpow.pop %v382
    %v384 = vadd.f32 %v383, 1.0
    %v385 = vrcp.pop %v384
    %v386 = vmul.f32 1.0, %v385
    %v387 = vtanh.pop %v373
    %v388 = vxor.u32 %v374, 2147483648
    %v389 = vmul.f32 %v388, 1.442695
    %v390 = vpow.pop %v389
    %v391 = vadd.f32 %v390, 1.0
    %v392 = vrcp.pop %v391
    %v393 = vmul.f32 1.0, %v392
    %v394 = vmul.f32 %v386, %v91
    %v395 = vmul.f32 %v380, %v387
    %v396 = vadd.f32 %v394, %v395
    %v397 = vtanh.pop %v396
    %v398 = vmul.f32 %v393, %v397
    %v399 = vsel %vm80, %v398, %v90
    %400 = vst [vmem:[#allocation2] sm:$0xff] %v399
    %v401 = vld [vmem:[#allocation3] sm:$0xff]
    %v402 = vsel %vm80, %v396, %v401
    %403 = vst [vmem:[#allocation3] sm:$0xff] %v402
    %v404 = vsel %vm80, %v398, 0.0
    %405 = vst [vmem:[%s4] sm:$0xff] %v404
    %s406 = scalar_lea.vmem %s51, 112
    %v407 = vld [vmem:[%s406] sm:$0xff]
    %v408 = vld [vmem:[%s406 + $0x8] sm:$0xff]
    %s409 = scalar_lea.vmem [#allocation2], 8
    %v410 = vld [vmem:[%s409] sm:$0xff]
    %s411 = scalar_lea.vmem [#allocation3], 8
    %v412 = vld [vmem:[%s411] sm:$0xff]
    %s413 = scalar_lea.vmem %s3, 256
    %v414 = vld [vmem:[%s413] sm:$0xff]
    %v415 = vld [vmem:[%s413 + $0x8] sm:$0xff]
    %v416 = vld [vmem:[%s413 + $0x10] sm:$0xff]
    %v417 = vld [vmem:[%s413 + $0x18] sm:$0xff]
    %v418 = vld [vmem:[%s413 + $0x20] sm:$0xff]
    %v419 = vld [vmem:[%s413 + $0x28] sm:$0xff]
    %v420 = vld [vmem:[%s413 + $0x30] sm:$0xff]
    %v421 = vld [vmem:[%s413 + $0x38] sm:$0xff]
    %v422 = vld [vmem:[%s413 + $0x40] sm:$0xff]
    %v423 = vld [vmem:[%s413 + $0x48] sm:$0xff]
    %v424 = vld [vmem:[%s413 + $0x50] sm:$0xff]
    %v425 = vld [vmem:[%s413 + $0x58] sm:$0xff]
    %v426 = vld [vmem:[%s413 + $0x60] sm:$0xff]
    %v427 = vld [vmem:[%s413 + $0x68] sm:$0xff]
    %v428 = vld [vmem:[%s413 + $0x70] sm:$0xff]
    %v429 = vld [vmem:[%s413 + $0x78] sm:$0xff]
    %v430 = vld [vmem:[%s413 + $0x80] sm:$0xff]
    %v431 = vld [vmem:[%s413 + $0x88] sm:$0xff]
    %v432 = vld [vmem:[%s413 + $0x90] sm:$0xff]
    %v433 = vld [vmem:[%s413 + $0x98] sm:$0xff]
    %v434 = vld [vmem:[%s413 + $0xa0] sm:$0xff]
    %v435 = vld [vmem:[%s413 + $0xa8] sm:$0xff]
    %v436 = vld [vmem:[%s413 + $0xb0] sm:$0xff]
    %v437 = vld [vmem:[%s413 + $0xb8] sm:$0xff]
    %v438 = vld [vmem:[%s413 + $0xc0] sm:$0xff]
    %v439 = vld [vmem:[%s413 + $0xc8] sm:$0xff]
    %v440 = vld [vmem:[%s413 + $0xd0] sm:$0xff]
    %v441 = vld [vmem:[%s413 + $0xd8] sm:$0xff]
    %v442 = vld [vmem:[%s413 + $0xe0] sm:$0xff]
    %v443 = vld [vmem:[%s413 + $0xe8] sm:$0xff]
    %v444 = vld [vmem:[%s413 + $0xf0] sm:$0xff]
    %v445 = vld [vmem:[%s413 + $0xf8] sm:$0xff]
    %v446 = vunpack.c.l.bf16 %v407
    %v447 = vunpack.c.h.bf16 %v407
    %v448 = vunpack.c.l.bf16 %v408
    %v449 = vunpack.c.h.bf16 %v408
    %v450 = vpack.c.bf16 %v410, %v410
    %v483 = vunpack.c.l.b16 %v414
    %v484 = vunpack.c.h.b16 %v414
    %v485 = vunpack.c.l.b16 %v415
    %v486 = vunpack.c.h.b16 %v415
    %v487 = vunpack.c.l.b16 %v416
    %v488 = vunpack.c.h.b16 %v416
    %v489 = vunpack.c.l.b16 %v417
    %v490 = vunpack.c.h.b16 %v417
    %v491 = vunpack.c.l.b16 %v418
    %v492 = vunpack.c.h.b16 %v418
    %v493 = vunpack.c.l.b16 %v419
    %v494 = vunpack.c.h.b16 %v419
    %v495 = vunpack.c.l.b16 %v420
    %v496 = vunpack.c.h.b16 %v420
    %v497 = vunpack.c.l.b16 %v421
    %v498 = vunpack.c.h.b16 %v421
    %v499 = vunpack.c.l.b16 %v422
    %v500 = vunpack.c.h.b16 %v422
    %v501 = vunpack.c.l.b16 %v423
    %v502 = vunpack.c.h.b16 %v423
    %v503 = vunpack.c.l.b16 %v424
    %v504 = vunpack.c.h.b16 %v424
    %v505 = vunpack.c.l.b16 %v425
    %v506 = vunpack.c.h.b16 %v425
    %v507 = vunpack.c.l.b16 %v426
    %v508 = vunpack.c.h.b16 %v426
    %v509 = vunpack.c.l.b16 %v427
    %v510 = vunpack.c.h.b16 %v427
    %v511 = vunpack.c.l.b16 %v428
    %v512 = vunpack.c.h.b16 %v428
    %v513 = vunpack.c.l.b16 %v429
    %v514 = vunpack.c.h.b16 %v429
    %v515 = vunpack.c.l.b16 %v430
    %v516 = vunpack.c.h.b16 %v430
    %v517 = vunpack.c.l.b16 %v431
    %v518 = vunpack.c.h.b16 %v431
    %v519 = vunpack.c.l.b16 %v432
    %v520 = vunpack.c.h.b16 %v432
    %v521 = vunpack.c.l.b16 %v433
    %v522 = vunpack.c.h.b16 %v433
    %v523 = vunpack.c.l.b16 %v434
    %v524 = vunpack.c.h.b16 %v434
    %v525 = vunpack.c.l.b16 %v435
    %v526 = vunpack.c.h.b16 %v435
    %v527 = vunpack.c.l.b16 %v436
    %v528 = vunpack.c.h.b16 %v436
    %v529 = vunpack.c.l.b16 %v437
    %v530 = vunpack.c.h.b16 %v437
    %v531 = vunpack.c.l.b16 %v438
    %v532 = vunpack.c.h.b16 %v438
    %v533 = vunpack.c.l.b16 %v439
    %v534 = vunpack.c.h.b16 %v439
    %v535 = vunpack.c.l.b16 %v440
    %v536 = vunpack.c.h.b16 %v440
    %v537 = vunpack.c.l.b16 %v441
    %v538 = vunpack.c.h.b16 %v441
    %v539 = vunpack.c.l.b16 %v442
    %v540 = vunpack.c.h.b16 %v442
    %v541 = vunpack.c.l.b16 %v443
    %v542 = vunpack.c.h.b16 %v443
    %v543 = vunpack.c.l.b16 %v444
    %v544 = vunpack.c.h.b16 %v444
    %v545 = vunpack.c.l.b16 %v445
    %v546 = vunpack.c.h.b16 %v445
    %v547 = vpack.c.b16 %v487, %v483
    %v548 = vpack.c.b16 %v488, %v484
    %v549 = vpack.c.b16 %v489, %v485
    %v550 = vpack.c.b16 %v490, %v486
    %v551 = vpack.c.b16 %v495, %v491
    %v552 = vpack.c.b16 %v496, %v492
    %v553 = vpack.c.b16 %v497, %v493
    %v554 = vpack.c.b16 %v498, %v494
    %v555 = vpack.c.b16 %v503, %v499
    %v556 = vpack.c.b16 %v504, %v500
    %v557 = vpack.c.b16 %v505, %v501
    %v558 = vpack.c.b16 %v506, %v502
    %v559 = vpack.c.b16 %v511, %v507
    %v560 = vpack.c.b16 %v512, %v508
    %v561 = vpack.c.b16 %v513, %v509
    %v562 = vpack.c.b16 %v514, %v510
    %v563 = vpack.c.b16 %v519, %v515
    %v564 = vpack.c.b16 %v520, %v516
    %v565 = vpack.c.b16 %v521, %v517
    %v566 = vpack.c.b16 %v522, %v518
    %v567 = vpack.c.b16 %v527, %v523
    %v568 = vpack.c.b16 %v528, %v524
    %v569 = vpack.c.b16 %v529, %v525
    %v570 = vpack.c.b16 %v530, %v526
    %v571 = vpack.c.b16 %v535, %v531
    %v572 = vpack.c.b16 %v536, %v532
    %v573 = vpack.c.b16 %v537, %v533
    %v574 = vpack.c.b16 %v538, %v534
    %v575 = vpack.c.b16 %v543, %v539
    %v576 = vpack.c.b16 %v544, %v540
    %v577 = vpack.c.b16 %v545, %v541
    %v578 = vpack.c.b16 %v546, %v542
    %611 = vmatprep.subr.bf16.mxu0 %v548
    %612 = vmatpush1.bf16.msra.mxu0 %v547
    %613 = vmatprep.subr.bf16.mxu0 %v552
    %614 = vmatpush1.bf16.msra.mxu0 %v551
    %615 = vmatprep.subr.bf16.mxu0 %v556
    %616 = vmatpush1.bf16.msra.mxu0 %v555
    %617 = vmatprep.subr.bf16.mxu0 %v560
    %618 = vmatpush1.bf16.msra.mxu0 %v559
    %619 = vmatprep.subr.bf16.mxu0 %v564
    %620 = vmatpush1.bf16.msra.mxu0 %v563
    %621 = vmatprep.subr.bf16.mxu0 %v568
    %622 = vmatpush1.bf16.msra.mxu0 %v567
    %623 = vmatprep.subr.bf16.mxu0 %v572
    %624 = vmatpush1.bf16.msra.mxu0 %v571
    %625 = vmatprep.subr.bf16.mxu0 %v576
    %626 = vmatpush1.bf16.msra.mxu0 %v575
    %627 = vmatprep.subr.bf16.mxu0 0
    %628 = vmatpush1.bf16.msra.mxu0 0
    %629 = vmatprep.subr.bf16.mxu0 0
    %630 = vmatpush1.bf16.msra.mxu0 0
    %631 = vmatprep.subr.bf16.mxu0 0
    %632 = vmatpush1.bf16.msra.mxu0 0
    %633 = vmatprep.subr.bf16.mxu0 0
    %634 = vmatpush1.bf16.msra.mxu0 0
    %635 = vmatprep.subr.bf16.mxu0 0
    %636 = vmatpush1.bf16.msra.mxu0 0
    %637 = vmatprep.subr.bf16.mxu0 0
    %638 = vmatpush1.bf16.msra.mxu0 0
    %639 = vmatprep.subr.bf16.mxu0 0
    %640 = vmatpush1.bf16.msra.mxu0 0
    %641 = vmatprep.subr.bf16.mxu0 0
    %642 = vmatpush1.bf16.msra.mxu0 0
    %643 = vmatprep.mubr.bf16.mxu0 0
    %644 = vmatmul.mubr.bf16.gmra.mrb[0].mxu0 %v450
    %v645 = vpop.f32.mrb[0].mxu0
    %v646 = vadd.f32 0.0, %v645
    %v647 = vpop.f32.mrb[0].mxu0
    %v648 = vadd.f32 0.0, %v647
    %v649 = vpop.f32.mrb[0].mxu0
    %v650 = vpop.f32.mrb[0].mxu0
    %651 = vdwg.mxu0
    %652 = vmatprep.subr.bf16.mxu0 %v550
    %653 = vmatpush1.bf16.msra.mxu0 %v549
    %654 = vmatprep.subr.bf16.mxu0 %v554
    %655 = vmatpush1.bf16.msra.mxu0 %v553
    %656 = vmatprep.subr.bf16.mxu0 %v558
    %657 = vmatpush1.bf16.msra.mxu0 %v557
    %658 = vmatprep.subr.bf16.mxu0 %v562
    %659 = vmatpush1.bf16.msra.mxu0 %v561
    %660 = vmatprep.subr.bf16.mxu0 %v566
    %661 = vmatpush1.bf16.msra.mxu0 %v565
    %662 = vmatprep.subr.bf16.mxu0 %v570
    %663 = vmatpush1.bf16.msra.mxu0 %v569
    %664 = vmatprep.subr.bf16.mxu0 %v574
    %665 = vmatpush1.bf16.msra.mxu0 %v573
    %666 = vmatprep.subr.bf16.mxu0 %v578
    %667 = vmatpush1.bf16.msra.mxu0 %v577
    %668 = vmatprep.subr.bf16.mxu0 0
    %669 = vmatpush1.bf16.msra.mxu0 0
    %670 = vmatprep.subr.bf16.mxu0 0
    %671 = vmatpush1.bf16.msra.mxu0 0
    %672 = vmatprep.subr.bf16.mxu0 0
    %673 = vmatpush1.bf16.msra.mxu0 0
    %674 = vmatprep.subr.bf16.mxu0 0
    %675 = vmatpush1.bf16.msra.mxu0 0
    %676 = vmatprep.subr.bf16.mxu0 0
    %677 = vmatpush1.bf16.msra.mxu0 0
    %678 = vmatprep.subr.bf16.mxu0 0
    %679 = vmatpush1.bf16.msra.mxu0 0
    %680 = vmatprep.subr.bf16.mxu0 0
    %681 = vmatpush1.bf16.msra.mxu0 0
    %682 = vmatprep.subr.bf16.mxu0 0
    %683 = vmatpush1.bf16.msra.mxu0 0
    %684 = vmatprep.mubr.bf16.mxu0 0
    %685 = vmatmul.mubr.bf16.gmra.mrb[0].mxu0 %v450
    %v686 = vpop.f32.mrb[0].mxu0
    %v687 = vadd.f32 0.0, %v686
    %v688 = vpop.f32.mrb[0].mxu0
    %v689 = vadd.f32 0.0, %v688
    %v690 = vpop.f32.mrb[0].mxu0
    %v691 = vpop.f32.mrb[0].mxu0
    %692 = vdwg.mxu0
    %v693 = vadd.f32 %v446, %v646
    %v694 = vadd.f32 %v447, %v648
    %v695 = vadd.f32 %v448, %v687
    %v696 = vadd.f32 %v449, %v689
    %v697 = vxor.u32 %v693, 2147483648
    %v698 = vmul.f32 %v697, 1.442695
    %v699 = vpow.pop %v698
    %v700 = vadd.f32 %v699, 1.0
    %v701 = vrcp.pop %v700
    %v702 = vmul.f32 1.0, %v701
    %v703 = vxor.u32 %v694, 2147483648
    %v704 = vmul.f32 %v703, 1.442695
    %v705 = vpow.pop %v704
    %v706 = vadd.f32 %v705, 1.0
    %v707 = vrcp.pop %v706
    %v708 = vmul.f32 1.0, %v707
    %v709 = vtanh.pop %v695
    %v710 = vxor.u32 %v696, 2147483648
    %v711 = vmul.f32 %v710, 1.442695
    %v712 = vpow.pop %v711
    %v713 = vadd.f32 %v712, 1.0
    %v714 = vrcp.pop %v713
    %v715 = vmul.f32 1.0, %v714
    %v716 = vmul.f32 %v708, %v412
    %v717 = vmul.f32 %v702, %v709
    %v718 = vadd.f32 %v716, %v717
    %v719 = vtanh.pop %v718
    %v720 = vmul.f32 %v715, %v719
    %v721 = vsel %vm87, %v720, %v410
    %722 = vst [vmem:[%s409] sm:$0xff] %v721
    %v723 = vld [vmem:[%s411] sm:$0xff]
    %v724 = vsel %vm87, %v718, %v723
    %725 = vst [vmem:[%s411] sm:$0xff] %v724
    %v726 = vsel %vm87, %v720, 0.0
    %s727 = scalar_lea.vmem %s59, 56
    %728 = vst [vmem:[%s727] sm:$0xff] %v726
    %s729 = sadd.s32 %s72, 1
    %s730 = ssub.s32 6, %s72
    %v731 = vstv %s729
    %vm732 = vcmp.lt.s32.totalorder %v731, %v71
    %v733 = vsel %vm732, 1, 0
    %734 = vset.pattern.permute.xlu0 0
    %735 = vperm.xlu0 %734, %v733
    %v736 = vpop.permute.xlu0 %735
    %vm737 = vcmp.eq.s32.totalorder %v736, 1
    %v738 = vstv %s730
    %vm739 = vcmp.lt.s32.totalorder %v738, %v71
    %v740 = vsel %vm739, 1, 0
    %741 = vset.pattern.permute.xlu0 0
    %742 = vperm.xlu0 %741, %v740
    %v743 = vpop.permute.xlu0 %742
    %vm744 = vcmp.eq.s32.totalorder %v743, 1
    %s745 = scalar_lea.vmem %s1, 16
    %v746 = vld [vmem:[%s745] sm:$0xff]
    %v747 = vld [vmem:[%s745 + $0x8] sm:$0xff]
    %v748 = vld [vmem:[#allocation2] sm:$0xff]
    %v749 = vld [vmem:[#allocation3] sm:$0xff]
    %v750 = vld [vmem:[%s3] sm:$0xff]
    %v751 = vld [vmem:[%s3 + $0x8] sm:$0xff]
    %v752 = vld [vmem:[%s3 + $0x10] sm:$0xff]
    %v753 = vld [vmem:[%s3 + $0x18] sm:$0xff]
    %v754 = vld [vmem:[%s3 + $0x20] sm:$0xff]
    %v755 = vld [vmem:[%s3 + $0x28] sm:$0xff]
    %v756 = vld [vmem:[%s3 + $0x30] sm:$0xff]
    %v757 = vld [vmem:[%s3 + $0x38] sm:$0xff]
    %v758 = vld [vmem:[%s3 + $0x40] sm:$0xff]
    %v759 = vld [vmem:[%s3 + $0x48] sm:$0xff]
    %v760 = vld [vmem:[%s3 + $0x50] sm:$0xff]
    %v761 = vld [vmem:[%s3 + $0x58] sm:$0xff]
    %v762 = vld [vmem:[%s3 + $0x60] sm:$0xff]
    %v763 = vld [vmem:[%s3 + $0x68] sm:$0xff]
    %v764 = vld [vmem:[%s3 + $0x70] sm:$0xff]
    %v765 = vld [vmem:[%s3 + $0x78] sm:$0xff]
    %v766 = vld [vmem:[%s3 + $0x80] sm:$0xff]
    %v767 = vld [vmem:[%s3 + $0x88] sm:$0xff]
    %v768 = vld [vmem:[%s3 + $0x90] sm:$0xff]
    %v769 = vld [vmem:[%s3 + $0x98] sm:$0xff]
    %v770 = vld [vmem:[%s3 + $0xa0] sm:$0xff]
    %v771 = vld [vmem:[%s3 + $0xa8] sm:$0xff]
    %v772 = vld [vmem:[%s3 + $0xb0] sm:$0xff]
    %v773 = vld [vmem:[%s3 + $0xb8] sm:$0xff]
    %v774 = vld [vmem:[%s3 + $0xc0] sm:$0xff]
    %v775 = vld [vmem:[%s3 + $0xc8] sm:$0xff]
    %v776 = vld [vmem:[%s3 + $0xd0] sm:$0xff]
    %v777 = vld [vmem:[%s3 + $0xd8] sm:$0xff]
    %v778 = vld [vmem:[%s3 + $0xe0] sm:$0xff]
    %v779 = vld [vmem:[%s3 + $0xe8] sm:$0xff]
    %v780 = vld [vmem:[%s3 + $0xf0] sm:$0xff]
    %v781 = vld [vmem:[%s3 + $0xf8] sm:$0xff]
    %v782 = vunpack.c.l.bf16 %v746
    %v783 = vunpack.c.h.bf16 %v746
    %v784 = vunpack.c.l.bf16 %v747
    %v785 = vunpack.c.h.bf16 %v747
    %v786 = vpack.c.bf16 %v748, %v748
    %v819 = vunpack.c.l.b16 %v750
    %v820 = vunpack.c.h.b16 %v750
    %v821 = vunpack.c.l.b16 %v751
    %v822 = vunpack.c.h.b16 %v751
    %v823 = vunpack.c.l.b16 %v752
    %v824 = vunpack.c.h.b16 %v752
    %v825 = vunpack.c.l.b16 %v753
    %v826 = vunpack.c.h.b16 %v753
    %v827 = vunpack.c.l.b16 %v754
    %v828 = vunpack.c.h.b16 %v754
    %v829 = vunpack.c.l.b16 %v755
    %v830 = vunpack.c.h.b16 %v755
    %v831 = vunpack.c.l.b16 %v756
    %v832 = vunpack.c.h.b16 %v756
    %v833 = vunpack.c.l.b16 %v757
    %v834 = vunpack.c.h.b16 %v757
    %v835 = vunpack.c.l.b16 %v758
    %v836 = vunpack.c.h.b16 %v758
    %v837 = vunpack.c.l.b16 %v759
    %v838 = vunpack.c.h.b16 %v759
    %v839 = vunpack.c.l.b16 %v760
    %v840 = vunpack.c.h.b16 %v760
    %v841 = vunpack.c.l.b16 %v761
    %v842 = vunpack.c.h.b16 %v761
    %v843 = vunpack.c.l.b16 %v762
    %v844 = vunpack.c.h.b16 %v762
    %v845 = vunpack.c.l.b16 %v763
    %v846 = vunpack.c.h.b16 %v763
    %v847 = vunpack.c.l.b16 %v764
    %v848 = vunpack.c.h.b16 %v764
    %v849 = vunpack.c.l.b16 %v765
    %v850 = vunpack.c.h.b16 %v765
    %v851 = vunpack.c.l.b16 %v766
    %v852 = vunpack.c.h.b16 %v766
    %v853 = vunpack.c.l.b16 %v767
    %v854 = vunpack.c.h.b16 %v767
    %v855 = vunpack.c.l.b16 %v768
    %v856 = vunpack.c.h.b16 %v768
    %v857 = vunpack.c.l.b16 %v769
    %v858 = vunpack.c.h.b16 %v769
    %v859 = vunpack.c.l.b16 %v770
    %v860 = vunpack.c.h.b16 %v770
    %v861 = vunpack.c.l.b16 %v771
    %v862 = vunpack.c.h.b16 %v771
    %v863 = vunpack.c.l.b16 %v772
    %v864 = vunpack.c.h.b16 %v772
    %v865 = vunpack.c.l.b16 %v773
    %v866 = vunpack.c.h.b16 %v773
    %v867 = vunpack.c.l.b16 %v774
    %v868 = vunpack.c.h.b16 %v774
    %v869 = vunpack.c.l.b16 %v775
    %v870 = vunpack.c.h.b16 %v775
    %v871 = vunpack.c.l.b16 %v776
    %v872 = vunpack.c.h.b16 %v776
    %v873 = vunpack.c.l.b16 %v777
    %v874 = vunpack.c.h.b16 %v777
    %v875 = vunpack.c.l.b16 %v778
    %v876 = vunpack.c.h.b16 %v778
    %v877 = vunpack.c.l.b16 %v779
    %v878 = vunpack.c.h.b16 %v779
    %v879 = vunpack.c.l.b16 %v780
    %v880 = vunpack.c.h.b16 %v780
    %v881 = vunpack.c.l.b16 %v781
    %v882 = vunpack.c.h.b16 %v781
    %v883 = vpack.c.b16 %v823, %v819
    %v884 = vpack.c.b16 %v824, %v820
    %v885 = vpack.c.b16 %v825, %v821
    %v886 = vpack.c.b16 %v826, %v822
    %v887 = vpack.c.b16 %v831, %v827
    %v888 = vpack.c.b16 %v832, %v828
    %v889 = vpack.c.b16 %v833, %v829
    %v890 = vpack.c.b16 %v834, %v830
    %v891 = vpack.c.b16 %v839, %v835
    %v892 = vpack.c.b16 %v840, %v836
    %v893 = vpack.c.b16 %v841, %v837
    %v894 = vpack.c.b16 %v842, %v838
    %v895 = vpack.c.b16 %v847, %v843
    %v896 = vpack.c.b16 %v848, %v844
    %v897 = vpack.c.b16 %v849, %v845
    %v898 = vpack.c.b16 %v850, %v846
    %v899 = vpack.c.b16 %v855, %v851
    %v900 = vpack.c.b16 %v856, %v852
    %v901 = vpack.c.b16 %v857, %v853
    %v902 = vpack.c.b16 %v858, %v854
    %v903 = vpack.c.b16 %v863, %v859
    %v904 = vpack.c.b16 %v864, %v860
    %v905 = vpack.c.b16 %v865, %v861
    %v906 = vpack.c.b16 %v866, %v862
    %v907 = vpack.c.b16 %v871, %v867
    %v908 = vpack.c.b16 %v872, %v868
    %v909 = vpack.c.b16 %v873, %v869
    %v910 = vpack.c.b16 %v874, %v870
    %v911 = vpack.c.b16 %v879, %v875
    %v912 = vpack.c.b16 %v880, %v876
    %v913 = vpack.c.b16 %v881, %v877
    %v914 = vpack.c.b16 %v882, %v878
    %947 = vmatprep.subr.bf16.mxu0 %v884
    %948 = vmatpush1.bf16.msra.mxu0 %v883
    %949 = vmatprep.subr.bf16.mxu0 %v888
    %950 = vmatpush1.bf16.msra.mxu0 %v887
    %951 = vmatprep.subr.bf16.mxu0 %v892
    %952 = vmatpush1.bf16.msra.mxu0 %v891
    %953 = vmatprep.subr.bf16.mxu0 %v896
    %954 = vmatpush1.bf16.msra.mxu0 %v895
    %955 = vmatprep.subr.bf16.mxu0 %v900
    %956 = vmatpush1.bf16.msra.mxu0 %v899
    %957 = vmatprep.subr.bf16.mxu0 %v904
    %958 = vmatpush1.bf16.msra.mxu0 %v903
    %959 = vmatprep.subr.bf16.mxu0 %v908
    %960 = vmatpush1.bf16.msra.mxu0 %v907
    %961 = vmatprep.subr.bf16.mxu0 %v912
    %962 = vmatpush1.bf16.msra.mxu0 %v911
    %963 = vmatprep.subr.bf16.mxu0 0
    %964 = vmatpush1.bf16.msra.mxu0 0
    %965 = vmatprep.subr.bf16.mxu0 0
    %966 = vmatpush1.bf16.msra.mxu0 0
    %967 = vmatprep.subr.bf16.mxu0 0
    %968 = vmatpush1.bf16.msra.mxu0 0
    %969 = vmatprep.subr.bf16.mxu0 0
    %970 = vmatpush1.bf16.msra.mxu0 0
    %971 = vmatprep.subr.bf16.mxu0 0
    %972 = vmatpush1.bf16.msra.mxu0 0
    %973 = vmatprep.subr.bf16.mxu0 0
    %974 = vmatpush1.bf16.msra.mxu0 0
    %975 = vmatprep.subr.bf16.mxu0 0
    %976 = vmatpush1.bf16.msra.mxu0 0
    %977 = vmatprep.subr.bf16.mxu0 0
    %978 = vmatpush1.bf16.msra.mxu0 0
    %979 = vmatprep.mubr.bf16.mxu0 0
    %980 = vmatmul.mubr.bf16.gmra.mrb[0].mxu0 %v786
    %v981 = vpop.f32.mrb[0].mxu0
    %v982 = vadd.f32 0.0, %v981
    %v983 = vpop.f32.mrb[0].mxu0
    %v984 = vadd.f32 0.0, %v983
    %v985 = vpop.f32.mrb[0].mxu0
    %v986 = vpop.f32.mrb[0].mxu0
    %987 = vdwg.mxu0
    %988 = vmatprep.subr.bf16.mxu0 %v886
    %989 = vmatpush1.bf16.msra.mxu0 %v885
    %990 = vmatprep.subr.bf16.mxu0 %v890
    %991 = vmatpush1.bf16.msra.mxu0 %v889
    %992 = vmatprep.subr.bf16.mxu0 %v894
    %993 = vmatpush1.bf16.msra.mxu0 %v893
    %994 = vmatprep.subr.bf16.mxu0 %v898
    %995 = vmatpush1.bf16.msra.mxu0 %v897
    %996 = vmatprep.subr.bf16.mxu0 %v902
    %997 = vmatpush1.bf16.msra.mxu0 %v901
    %998 = vmatprep.subr.bf16.mxu0 %v906
    %999 = vmatpush1.bf16.msra.mxu0 %v905
    %1000 = vmatprep.subr.bf16.mxu0 %v910
    %1001 = vmatpush1.bf16.msra.mxu0 %v909
    %1002 = vmatprep.subr.bf16.mxu0 %v914
    %1003 = vmatpush1.bf16.msra.mxu0 %v913
    %1004 = vmatprep.subr.bf16.mxu0 0
    %1005 = vmatpush1.bf16.msra.mxu0 0
    %1006 = vmatprep.subr.bf16.mxu0 0
    %1007 = vmatpush1.bf16.msra.mxu0 0
    %1008 = vmatprep.subr.bf16.mxu0 0
    %1009 = vmatpush1.bf16.msra.mxu0 0
    %1010 = vmatprep.subr.bf16.mxu0 0
    %1011 = vmatpush1.bf16.msra.mxu0 0
    %1012 = vmatprep.subr.bf16.mxu0 0
    %1013 = vmatpush1.bf16.msra.mxu0 0
    %1014 = vmatprep.subr.bf16.mxu0 0
    %1015 = vmatpush1.bf16.msra.mxu0 0
    %1016 = vmatprep.subr.bf16.mxu0 0
    %1017 = vmatpush1.bf16.msra.mxu0 0
    %1018 = vmatprep.subr.bf16.mxu0 0
    %1019 = vmatpush1.bf16.msra.mxu0 0
    %1020 = vmatprep.mubr.bf16.mxu0 0
    %1021 = vmatmul.mubr.bf16.gmra.mrb[0].mxu0 %v786
    %v1022 = vpop.f32.mrb[0].mxu0
    %v1023 = vadd.f32 0.0, %v1022
    %v1024 = vpop.f32.mrb[0].mxu0
    %v1025 = vadd.f32 0.0, %v1024
    %v1026 = vpop.f32.mrb[0].mxu0
    %v1027 = vpop.f32.mrb[0].mxu0
    %1028 = vdwg.mxu0
    %v1029 = vadd.f32 %v782, %v982
    %v1030 = vadd.f32 %v783, %v984
    %v1031 = vadd.f32 %v784, %v1023
    %v1032 = vadd.f32 %v785, %v1025
    %v1033 = vxor.u32 %v1029, 2147483648
    %v1034 = vmul.f32 %v1033, 1.442695
    %v1035 = vpow.pop %v1034
    %v1036 = vadd.f32 %v1035, 1.0
    %v1037 = vrcp.pop %v1036
    %v1038 = vmul.f32 1.0, %v1037
    %v1039 = vxor.u32 %v1030, 2147483648
    %v1040 = vmul.f32 %v1039, 1.442695
    %v1041 = vpow.pop %v1040
    %v1042 = vadd.f32 %v1041, 1.0
    %v1043 = vrcp.pop %v1042
    %v1044 = vmul.f32 1.0, %v1043
    %v1045 = vtanh.pop %v1031
    %v1046 = vxor.u32 %v1032, 2147483648
    %v1047 = vmul.f32 %v1046, 1.442695
    %v1048 = vpow.pop %v1047
    %v1049 = vadd.f32 %v1048, 1.0
    %v1050 = vrcp.pop %v1049
    %v1051 = vmul.f32 1.0, %v1050
    %v1052 = vmul.f32 %v1044, %v749
    %v1053 = vmul.f32 %v1038, %v1045
    %v1054 = vadd.f32 %v1052, %v1053
    %v1055 = vtanh.pop %v1054
    %v1056 = vmul.f32 %v1051, %v1055
    %v1057 = vsel %vm737, %v1056, %v748
    %1058 = vst [vmem:[#allocation2] sm:$0xff] %v1057
    %v1059 = vld [vmem:[#allocation3] sm:$0xff]
    %v1060 = vsel %vm737, %v1054, %v1059
    %1061 = vst [vmem:[#allocation3] sm:$0xff] %v1060
    %v1062 = vsel %vm737, %v1056, 0.0
    %s1063 = scalar_lea.vmem %s4, 8
    %1064 = vst [vmem:[%s1063] sm:$0xff] %v1062
    %s1065 = scalar_lea.vmem %s51, 96
    %v1066 = vld [vmem:[%s1065] sm:$0xff]
    %v1067 = vld [vmem:[%s1065 + $0x8] sm:$0xff]
    %v1068 = vld [vmem:[%s409] sm:$0xff]
    %v1069 = vld [vmem:[%s411] sm:$0xff]
    %v1070 = vld [vmem:[%s413] sm:$0xff]
    %v1071 = vld [vmem:[%s413 + $0x8] sm:$0xff]
    %v1072 = vld [vmem:[%s413 + $0x10] sm:$0xff]
    %v1073 = vld [vmem:[%s413 + $0x18] sm:$0xff]
    %v1074 = vld [vmem:[%s413 + $0x20] sm:$0xff]
    %v1075 = vld [vmem:[%s413 + $0x28] sm:$0xff]
    %v1076 = vld [vmem:[%s413 + $0x30] sm:$0xff]
    %v1077 = vld [vmem:[%s413 + $0x38] sm:$0xff]
    %v1078 = vld [vmem:[%s413 + $0x40] sm:$0xff]
    %v1079 = vld [vmem:[%s413 + $0x48] sm:$0xff]
    %v1080 = vld [vmem:[%s413 + $0x50] sm:$0xff]
    %v1081 = vld [vmem:[%s413 + $0x58] sm:$0xff]
    %v1082 = vld [vmem:[%s413 + $0x60] sm:$0xff]
    %v1083 = vld [vmem:[%s413 + $0x68] sm:$0xff]
    %v1084 = vld [vmem:[%s413 + $0x70] sm:$0xff]
    %v1085 = vld [vmem:[%s413 + $0x78] sm:$0xff]
    %v1086 = vld [vmem:[%s413 + $0x80] sm:$0xff]
    %v1087 = vld [vmem:[%s413 + $0x88] sm:$0xff]
    %v1088 = vld [vmem:[%s413 + $0x90] sm:$0xff]
    %v1089 = vld [vmem:[%s413 + $0x98] sm:$0xff]
    %v1090 = vld [vmem:[%s413 + $0xa0] sm:$0xff]
    %v1091 = vld [vmem:[%s413 + $0xa8] sm:$0xff]
    %v1092 = vld [vmem:[%s413 + $0xb0] sm:$0xff]
    %v1093 = vld [vmem:[%s413 + $0xb8] sm:$0xff]
    %v1094 = vld [vmem:[%s413 + $0xc0] sm:$0xff]
    %v1095 = vld [vmem:[%s413 + $0xc8] sm:$0xff]
    %v1096 = vld [vmem:[%s413 + $0xd0] sm:$0xff]
    %v1097 = vld [vmem:[%s413 + $0xd8] sm:$0xff]
    %v1098 = vld [vmem:[%s413 + $0xe0] sm:$0xff]
    %v1099 = vld [vmem:[%s413 + $0xe8] sm:$0xff]
    %v1100 = vld [vmem:[%s413 + $0xf0] sm:$0xff]
    %v1101 = vld [vmem:[%s413 + $0xf8] sm:$0xff]
    %v1102 = vunpack.c.l.bf16 %v1066
    %v1103 = vunpack.c.h.bf16 %v1066
    %v1104 = vunpack.c.l.bf16 %v1067
    %v1105 = vunpack.c.h.bf16 %v1067
    %v1106 = vpack.c.bf16 %v1068, %v1068
    %v1139 = vunpack.c.l.b16 %v1070
    %v1140 = vunpack.c.h.b16 %v1070
    %v1141 = vunpack.c.l.b16 %v1071
    %v1142 = vunpack.c.h.b16 %v1071
    %v1143 = vunpack.c.l.b16 %v1072
    %v1144 = vunpack.c.h.b16 %v1072
    %v1145 = vunpack.c.l.b16 %v1073
    %v1146 = vunpack.c.h.b16 %v1073
    %v1147 = vunpack.c.l.b16 %v1074
    %v1148 = vunpack.c.h.b16 %v1074
    %v1149 = vunpack.c.l.b16 %v1075
    %v1150 = vunpack.c.h.b16 %v1075
    %v1151 = vunpack.c.l.b16 %v1076
    %v1152 = vunpack.c.h.b16 %v1076
    %v1153 = vunpack.c.l.b16 %v1077
    %v1154 = vunpack.c.h.b16 %v1077
    %v1155 = vunpack.c.l.b16 %v1078
    %v1156 = vunpack.c.h.b16 %v1078
    %v1157 = vunpack.c.l.b16 %v1079
    %v1158 = vunpack.c.h.b16 %v1079
    %v1159 = vunpack.c.l.b16 %v1080
    %v1160 = vunpack.c.h.b16 %v1080
    %v1161 = vunpack.c.l.b16 %v1081
    %v1162 = vunpack.c.h.b16 %v1081
    %v1163 = vunpack.c.l.b16 %v1082
    %v1164 = vunpack.c.h.b16 %v1082
    %v1165 = vunpack.c.l.b16 %v1083
    %v1166 = vunpack.c.h.b16 %v1083
    %v1167 = vunpack.c.l.b16 %v1084
    %v1168 = vunpack.c.h.b16 %v1084
    %v1169 = vunpack.c.l.b16 %v1085
    %v1170 = vunpack.c.h.b16 %v1085
    %v1171 = vunpack.c.l.b16 %v1086
    %v1172 = vunpack.c.h.b16 %v1086
    %v1173 = vunpack.c.l.b16 %v1087
    %v1174 = vunpack.c.h.b16 %v1087
    %v1175 = vunpack.c.l.b16 %v1088
    %v1176 = vunpack.c.h.b16 %v1088
    %v1177 = vunpack.c.l.b16 %v1089
    %v1178 = vunpack.c.h.b16 %v1089
    %v1179 = vunpack.c.l.b16 %v1090
    %v1180 = vunpack.c.h.b16 %v1090
    %v1181 = vunpack.c.l.b16 %v1091
    %v1182 = vunpack.c.h.b16 %v1091
    %v1183 = vunpack.c.l.b16 %v1092
    %v1184 = vunpack.c.h.b16 %v1092
    %v1185 = vunpack.c.l.b16 %v1093
    %v1186 = vunpack.c.h.b16 %v1093
    %v1187 = vunpack.c.l.b16 %v1094
    %v1188 = vunpack.c.h.b16 %v1094
    %v1189 = vunpack.c.l.b16 %v1095
    %v1190 = vunpack.c.h.b16 %v1095
    %v1191 = vunpack.c.l.b16 %v1096
    %v1192 = vunpack.c.h.b16 %v1096
    %v1193 = vunpack.c.l.b16 %v1097
    %v1194 = vunpack.c.h.b16 %v1097
    %v1195 = vunpack.c.l.b16 %v1098
    %v1196 = vunpack.c.h.b16 %v1098
    %v1197 = vunpack.c.l.b16 %v1099
    %v1198 = vunpack.c.h.b16 %v1099
    %v1199 = vunpack.c.l.b16 %v1100
    %v1200 = vunpack.c.h.b16 %v1100
    %v1201 = vunpack.c.l.b16 %v1101
    %v1202 = vunpack.c.h.b16 %v1101
    %v1203 = vpack.c.b16 %v1143, %v1139
    %v1204 = vpack.c.b16 %v1144, %v1140
    %v1205 = vpack.c.b16 %v1145, %v1141
    %v1206 = vpack.c.b16 %v1146, %v1142
    %v1207 = vpack.c.b16 %v1151, %v1147
    %v1208 = vpack.c.b16 %v1152, %v1148
    %v1209 = vpack.c.b16 %v1153, %v1149
    %v1210 = vpack.c.b16 %v1154, %v1150
    %v1211 = vpack.c.b16 %v1159, %v1155
    %v1212 = vpack.c.b16 %v1160, %v1156
    %v1213 = vpack.c.b16 %v1161, %v1157
    %v1214 = vpack.c.b16 %v1162, %v1158
    %v1215 = vpack.c.b16 %v1167, %v1163
    %v1216 = vpack.c.b16 %v1168, %v1164
    %v1217 = vpack.c.b16 %v1169, %v1165
    %v1218 = vpack.c.b16 %v1170, %v1166
    %v1219 = vpack.c.b16 %v1175, %v1171
    %v1220 = vpack.c.b16 %v1176, %v1172
    %v1221 = vpack.c.b16 %v1177, %v1173
    %v1222 = vpack.c.b16 %v1178, %v1174
    %v1223 = vpack.c.b16 %v1183, %v1179
    %v1224 = vpack.c.b16 %v1184, %v1180
    %v1225 = vpack.c.b16 %v1185, %v1181
    %v1226 = vpack.c.b16 %v1186, %v1182
    %v1227 = vpack.c.b16 %v1191, %v1187
    %v1228 = vpack.c.b16 %v1192, %v1188
    %v1229 = vpack.c.b16 %v1193, %v1189
    %v1230 = vpack.c.b16 %v1194, %v1190
    %v1231 = vpack.c.b16 %v1199, %v1195
    %v1232 = vpack.c.b16 %v1200, %v1196
    %v1233 = vpack.c.b16 %v1201, %v1197
    %v1234 = vpack.c.b16 %v1202, %v1198
    %1267 = vmatprep.subr.bf16.mxu0 %v1204
    %1268 = vmatpush1.bf16.msra.mxu0 %v1203
    %1269 = vmatprep.subr.bf16.mxu0 %v1208
    %1270 = vmatpush1.bf16.msra.mxu0 %v1207
    %1271 = vmatprep.subr.bf16.mxu0 %v1212
    %1272 = vmatpush1.bf16.msra.mxu0 %v1211
    %1273 = vmatprep.subr.bf16.mxu0 %v1216
    %1274 = vmatpush1.bf16.msra.mxu0 %v1215
    %1275 = vmatprep.subr.bf16.mxu0 %v1220
    %1276 = vmatpush1.bf16.msra.mxu0 %v1219
    %1277 = vmatprep.subr.bf16.mxu0 %v1224
    %1278 = vmatpush1.bf16.msra.mxu0 %v1223
    %1279 = vmatprep.subr.bf16.mxu0 %v1228
    %1280 = vmatpush1.bf16.msra.mxu0 %v1227
    %1281 = vmatprep.subr.bf16.mxu0 %v1232
    %1282 = vmatpush1.bf16.msra.mxu0 %v1231
    %1283 = vmatprep.subr.bf16.mxu0 0
    %1284 = vmatpush1.bf16.msra.mxu0 0
    %1285 = vmatprep.subr.bf16.mxu0 0
    %1286 = vmatpush1.bf16.msra.mxu0 0
    %1287 = vmatprep.subr.bf16.mxu0 0
    %1288 = vmatpush1.bf16.msra.mxu0 0
    %1289 = vmatprep.subr.bf16.mxu0 0
    %1290 = vmatpush1.bf16.msra.mxu0 0
    %1291 = vmatprep.subr.bf16.mxu0 0
    %1292 = vmatpush1.bf16.msra.mxu0 0
    %1293 = vmatprep.subr.bf16.mxu0 0
    %1294 = vmatpush1.bf16.msra.mxu0 0
    %1295 = vmatprep.subr.bf16.mxu0 0
    %1296 = vmatpush1.bf16.msra.mxu0 0
    %1297 = vmatprep.subr.bf16.mxu0 0
    %1298 = vmatpush1.bf16.msra.mxu0 0
    %1299 = vmatprep.mubr.bf16.mxu0 0
    %1300 = vmatmul.mubr.bf16.gmra.mrb[0].mxu0 %v1106
    %v1301 = vpop.f32.mrb[0].mxu0
    %v1302 = vadd.f32 0.0, %v1301
    %v1303 = vpop.f32.mrb[0].mxu0
    %v1304 = vadd.f32 0.0, %v1303
    %v1305 = vpop.f32.mrb[0].mxu0
    %v1306 = vpop.f32.mrb[0].mxu0
    %1307 = vdwg.mxu0
    %1308 = vmatprep.subr.bf16.mxu0 %v1206
    %1309 = vmatpush1.bf16.msra.mxu0 %v1205
    %1310 = vmatprep.subr.bf16.mxu0 %v1210
    %1311 = vmatpush1.bf16.msra.mxu0 %v1209
    %1312 = vmatprep.subr.bf16.mxu0 %v1214
    %1313 = vmatpush1.bf16.msra.mxu0 %v1213
    %1314 = vmatprep.subr.bf16.mxu0 %v1218
    %1315 = vmatpush1.bf16.msra.mxu0 %v1217
    %1316 = vmatprep.subr.bf16.mxu0 %v1222
    %1317 = vmatpush1.bf16.msra.mxu0 %v1221
    %1318 = vmatprep.subr.bf16.mxu0 %v1226
    %1319 = vmatpush1.bf16.msra.mxu0 %v1225
    %1320 = vmatprep.subr.bf16.mxu0 %v1230
    %1321 = vmatpush1.bf16.msra.mxu0 %v1229
    %1322 = vmatprep.subr.bf16.mxu0 %v1234
    %1323 = vmatpush1.bf16.msra.mxu0 %v1233
    %1324 = vmatprep.subr.bf16.mxu0 0
    %1325 = vmatpush1.bf16.msra.mxu0 0
    %1326 = vmatprep.subr.bf16.mxu0 0
    %1327 = vmatpush1.bf16.msra.mxu0 0
    %1328 = vmatprep.subr.bf16.mxu0 0
    %1329 = vmatpush1.bf16.msra.mxu0 0
    %1330 = vmatprep.subr.bf16.mxu0 0
    %1331 = vmatpush1.bf16.msra.mxu0 0
    %1332 = vmatprep.subr.bf16.mxu0 0
    %1333 = vmatpush1.bf16.msra.mxu0 0
    %1334 = vmatprep.subr.bf16.mxu0 0
    %1335 = vmatpush1.bf16.msra.mxu0 0
    %1336 = vmatprep.subr.bf16.mxu0 0
    %1337 = vmatpush1.bf16.msra.mxu0 0
    %1338 = vmatprep.subr.bf16.mxu0 0
    %1339 = vmatpush1.bf16.msra.mxu0 0
    %1340 = vmatprep.mubr.bf16.mxu0 0
    %1341 = vmatmul.mubr.bf16.gmra.mrb[0].mxu0 %v1106
    %v1342 = vpop.f32.mrb[0].mxu0
    %v1343 = vadd.f32 0.0, %v1342
    %v1344 = vpop.f32.mrb[0].mxu0
    %v1345 = vadd.f32 0.0, %v1344
    %v1346 = vpop.f32.mrb[0].mxu0
    %v1347 = vpop.f32.mrb[0].mxu0
    %1348 = vdwg.mxu0
    %v1349 = vadd.f32 %v1102, %v1302
    %v1350 = vadd.f32 %v1103, %v1304
    %v1351 = vadd.f32 %v1104, %v1343
    %v1352 = vadd.f32 %v1105, %v1345
    %v1353 = vxor.u32 %v1349, 2147483648
    %v1354 = vmul.f32 %v1353, 1.442695
    %v1355 = vpow.pop %v1354
    %v1356 = vadd.f32 %v1355, 1.0
    %v1357 = vrcp.pop %v1356
    %v1358 = vmul.f32 1.0, %v1357
    %v1359 = vxor.u32 %v1350, 2147483648
    %v1360 = vmul.f32 %v1359, 1.442695
    %v1361 = vpow.pop %v1360
    %v1362 = vadd.f32 %v1361, 1.0
    %v1363 = vrcp.pop %v1362
    %v1364 = vmul.f32 1.0, %v1363
    %v1365 = vtanh.pop %v1351
    %v1366 = vxor.u32 %v1352, 2147483648
    %v1367 = vmul.f32 %v1366, 1.442695
    %v1368 = vpow.pop %v1367
    %v1369 = vadd.f32 %v1368, 1.0
    %v1370 = vrcp.pop %v1369
    %v1371 = vmul.f32 1.0, %v1370
    %v1372 = vmul.f32 %v1364, %v1069
    %v1373 = vmul.f32 %v1358, %v1365
    %v1374 = vadd.f32 %v1372, %v1373
    %v1375 = vtanh.pop %v1374
    %v1376 = vmul.f32 %v1371, %v1375
    %v1377 = vsel %vm744, %v1376, %v1068
    %1378 = vst [vmem:[%s409] sm:$0xff] %v1377
    %v1379 = vld [vmem:[%s411] sm:$0xff]
    %v1380 = vsel %vm744, %v1374, %v1379
    %1381 = vst [vmem:[%s411] sm:$0xff] %v1380
    %v1382 = vsel %vm744, %v1376, 0.0
    %s1383 = scalar_lea.vmem %s59, 48
    %1384 = vst [vmem:[%s1383] sm:$0xff] %v1382
    %s1385 = sadd.s32 %s72, 2
    %s1386 = ssub.s32 5, %s72
    %v1387 = vstv %s1385
    %vm1388 = vcmp.lt.s32.totalorder %v1387, %v71
    %v1389 = vsel %vm1388, 1, 0
    %1390 = vset.pattern.permute.xlu0 0
    %1391 = vperm.xlu0 %1390, %v1389
    %v1392 = vpop.permute.xlu0 %1391
    %vm1393 = vcmp.eq.s32.totalorder %v1392, 1
    %v1394 = vstv %s1386
    %vm1395 = vcmp.lt.s32.totalorder %v1394, %v71
    %v1396 = vsel %vm1395, 1, 0
    %1397 = vset.pattern.permute.xlu0 0
    %1398 = vperm.xlu0 %1397, %v1396
    %v1399 = vpop.permute.xlu0 %1398
    %vm1400 = vcmp.eq.s32.totalorder %v1399, 1
    %s1401 = scalar_lea.vmem %s1, 32
    %v1402 = vld [vmem:[%s1401] sm:$0xff]
    %v1403 = vld [vmem:[%s1401 + $0x8] sm:$0xff]
    %v1404 = vld [vmem:[#allocation2] sm:$0xff]
    %v1405 = vld [vmem:[#allocation3] sm:$0xff]
    %v1406 = vld [vmem:[%s3] sm:$0xff]
    %v1407 = vld [vmem:[%s3 + $0x8] sm:$0xff]
    %v1408 = vld [vmem:[%s3 + $0x10] sm:$0xff]
    %v1409 = vld [vmem:[%s3 + $0x18] sm:$0xff]
    %v1410 = vld [vmem:[%s3 + $0x20] sm:$0xff]
    %v1411 = vld [vmem:[%s3 + $0x28] sm:$0xff]
    %v1412 = vld [vmem:[%s3 + $0x30] sm:$0xff]
    %v1413 = vld [vmem:[%s3 + $0x38] sm:$0xff]
    %v1414 = vld [vmem:[%s3 + $0x40] sm:$0xff]
    %v1415 = vld [vmem:[%s3 + $0x48] sm:$0xff]
    %v1416 = vld [vmem:[%s3 + $0x50] sm:$0xff]
    %v1417 = vld [vmem:[%s3 + $0x58] sm:$0xff]
    %v1418 = vld [vmem:[%s3 + $0x60] sm:$0xff]
    %v1419 = vld [vmem:[%s3 + $0x68] sm:$0xff]
    %v1420 = vld [vmem:[%s3 + $0x70] sm:$0xff]
    %v1421 = vld [vmem:[%s3 + $0x78] sm:$0xff]
    %v1422 = vld [vmem:[%s3 + $0x80] sm:$0xff]
    %v1423 = vld [vmem:[%s3 + $0x88] sm:$0xff]
    %v1424 = vld [vmem:[%s3 + $0x90] sm:$0xff]
    %v1425 = vld [vmem:[%s3 + $0x98] sm:$0xff]
    %v1426 = vld [vmem:[%s3 + $0xa0] sm:$0xff]
    %v1427 = vld [vmem:[%s3 + $0xa8] sm:$0xff]
    %v1428 = vld [vmem:[%s3 + $0xb0] sm:$0xff]
    %v1429 = vld [vmem:[%s3 + $0xb8] sm:$0xff]
    %v1430 = vld [vmem:[%s3 + $0xc0] sm:$0xff]
    %v1431 = vld [vmem:[%s3 + $0xc8] sm:$0xff]
    %v1432 = vld [vmem:[%s3 + $0xd0] sm:$0xff]
    %v1433 = vld [vmem:[%s3 + $0xd8] sm:$0xff]
    %v1434 = vld [vmem:[%s3 + $0xe0] sm:$0xff]
    %v1435 = vld [vmem:[%s3 + $0xe8] sm:$0xff]
    %v1436 = vld [vmem:[%s3 + $0xf0] sm:$0xff]
    %v1437 = vld [vmem:[%s3 + $0xf8] sm:$0xff]
    %v1438 = vunpack.c.l.bf16 %v1402
    %v1439 = vunpack.c.h.bf16 %v1402
    %v1440 = vunpack.c.l.bf16 %v1403
    %v1441 = vunpack.c.h.bf16 %v1403
    %v1442 = vpack.c.bf16 %v1404, %v1404
    %v1475 = vunpack.c.l.b16 %v1406
    %v1476 = vunpack.c.h.b16 %v1406
    %v1477 = vunpack.c.l.b16 %v1407
    %v1478 = vunpack.c.h.b16 %v1407
    %v1479 = vunpack.c.l.b16 %v1408
    %v1480 = vunpack.c.h.b16 %v1408
    %v1481 = vunpack.c.l.b16 %v1409
    %v1482 = vunpack.c.h.b16 %v1409
    %v1483 = vunpack.c.l.b16 %v1410
    %v1484 = vunpack.c.h.b16 %v1410
    %v1485 = vunpack.c.l.b16 %v1411
    %v1486 = vunpack.c.h.b16 %v1411
    %v1487 = vunpack.c.l.b16 %v1412
    %v1488 = vunpack.c.h.b16 %v1412
    %v1489 = vunpack.c.l.b16 %v1413
    %v1490 = vunpack.c.h.b16 %v1413
    %v1491 = vunpack.c.l.b16 %v1414
    %v1492 = vunpack.c.h.b16 %v1414
    %v1493 = vunpack.c.l.b16 %v1415
    %v1494 = vunpack.c.h.b16 %v1415
    %v1495 = vunpack.c.l.b16 %v1416
    %v1496 = vunpack.c.h.b16 %v1416
    %v1497 = vunpack.c.l.b16 %v1417
    %v1498 = vunpack.c.h.b16 %v1417
    %v1499 = vunpack.c.l.b16 %v1418
    %v1500 = vunpack.c.h.b16 %v1418
    %v1501 = vunpack.c.l.b16 %v1419
    %v1502 = vunpack.c.h.b16 %v1419
    %v1503 = vunpack.c.l.b16 %v1420
    %v1504 = vunpack.c.h.b16 %v1420
    %v1505 = vunpack.c.l.b16 %v1421
    %v1506 = vunpack.c.h.b16 %v1421
    %v1507 = vunpack.c.l.b16 %v1422
    %v1508 = vunpack.c.h.b16 %v1422
    %v1509 = vunpack.c.l.b16 %v1423
    %v1510 = vunpack.c.h.b16 %v1423
    %v1511 = vunpack.c.l.b16 %v1424
    %v1512 = vunpack.c.h.b16 %v1424
    %v1513 = vunpack.c.l.b16 %v1425
    %v1514 = vunpack.c.h.b16 %v1425
    %v1515 = vunpack.c.l.b16 %v1426
    %v1516 = vunpack.c.h.b16 %v1426
    %v1517 = vunpack.c.l.b16 %v1427
    %v1518 = vunpack.c.h.b16 %v1427
    %v1519 = vunpack.c.l.b16 %v1428
    %v1520 = vunpack.c.h.b16 %v1428
    %v1521 = vunpack.c.l.b16 %v1429
    %v1522 = vunpack.c.h.b16 %v1429
    %v1523 = vunpack.c.l.b16 %v1430
    %v1524 = vunpack.c.h.b16 %v1430
    %v1525 = vunpack.c.l.b16 %v1431
    %v1526 = vunpack.c.h.b16 %v1431
    %v1527 = vunpack.c.l.b16 %v1432
    %v1528 = vunpack.c.h.b16 %v1432
    %v1529 = vunpack.c.l.b16 %v1433
    %v1530 = vunpack.c.h.b16 %v1433
    %v1531 = vunpack.c.l.b16 %v1434
    %v1532 = vunpack.c.h.b16 %v1434
    %v1533 = vunpack.c.l.b16 %v1435
    %v1534 = vunpack.c.h.b16 %v1435
    %v1535 = vunpack.c.l.b16 %v1436
    %v1536 = vunpack.c.h.b16 %v1436
    %v1537 = vunpack.c.l.b16 %v1437
    %v1538 = vunpack.c.h.b16 %v1437
    %v1539 = vpack.c.b16 %v1479, %v1475
    %v1540 = vpack.c.b16 %v1480, %v1476
    %v1541 = vpack.c.b16 %v1481, %v1477
    %v1542 = vpack.c.b16 %v1482, %v1478
    %v1543 = vpack.c.b16 %v1487, %v1483
    %v1544 = vpack.c.b16 %v1488, %v1484
    %v1545 = vpack.c.b16 %v1489, %v1485
    %v1546 = vpack.c.b16 %v1490, %v1486
    %v1547 = vpack.c.b16 %v1495, %v1491
    %v1548 = vpack.c.b16 %v1496, %v1492
    %v1549 = vpack.c.b16 %v1497, %v1493
    %v1550 = vpack.c.b16 %v1498, %v1494
    %v1551 = vpack.c.b16 %v1503, %v1499
    %v1552 = vpack.c.b16 %v1504, %v1500
    %v1553 = vpack.c.b16 %v1505, %v1501
    %v1554 = vpack.c.b16 %v1506, %v1502
    %v1555 = vpack.c.b16 %v1511, %v1507
    %v1556 = vpack.c.b16 %v1512, %v1508
    %v1557 = vpack.c.b16 %v1513, %v1509
    %v1558 = vpack.c.b16 %v1514, %v1510
    %v1559 = vpack.c.b16 %v1519, %v1515
    %v1560 = vpack.c.b16 %v1520, %v1516
    %v1561 = vpack.c.b16 %v1521, %v1517
    %v1562 = vpack.c.b16 %v1522, %v1518
    %v1563 = vpack.c.b16 %v1527, %v1523
    %v1564 = vpack.c.b16 %v1528, %v1524
    %v1565 = vpack.c.b16 %v1529, %v1525
    %v1566 = vpack.c.b16 %v1530, %v1526
    %v1567 = vpack.c.b16 %v1535, %v1531
    %v1568 = vpack.c.b16 %v1536, %v1532
    %v1569 = vpack.c.b16 %v1537, %v1533
    %v1570 = vpack.c.b16 %v1538, %v1534
    %1603 = vmatprep.subr.bf16.mxu0 %v1540
    %1604 = vmatpush1.bf16.msra.mxu0 %v1539
    %1605 = vmatprep.subr.bf16.mxu0 %v1544
    %1606 = vmatpush1.bf16.msra.mxu0 %v1543
    %1607 = vmatprep.subr.bf16.mxu0 %v1548
    %1608 = vmatpush1.bf16.msra.mxu0 %v1547
    %1609 = vmatprep.subr.bf16.mxu0 %v1552
    %1610 = vmatpush1.bf16.msra.mxu0 %v1551
    %1611 = vmatprep.subr.bf16.mxu0 %v1556
    %1612 = vmatpush1.bf16.msra.mxu0 %v1555
    %1613 = vmatprep.subr.bf16.mxu0 %v1560
    %1614 = vmatpush1.bf16.msra.mxu0 %v1559
    %1615 = vmatprep.subr.bf16.mxu0 %v1564
    %1616 = vmatpush1.bf16.msra.mxu0 %v1563
    %1617 = vmatprep.subr.bf16.mxu0 %v1568
    %1618 = vmatpush1.bf16.msra.mxu0 %v1567
    %1619 = vmatprep.subr.bf16.mxu0 0
    %1620 = vmatpush1.bf16.msra.mxu0 0
    %1621 = vmatprep.subr.bf16.mxu0 0
    %1622 = vmatpush1.bf16.msra.mxu0 0
    %1623 = vmatprep.subr.bf16.mxu0 0
    %1624 = vmatpush1.bf16.msra.mxu0 0
    %1625 = vmatprep.subr.bf16.mxu0 0
    %1626 = vmatpush1.bf16.msra.mxu0 0
    %1627 = vmatprep.subr.bf16.mxu0 0
    %1628 = vmatpush1.bf16.msra.mxu0 0
    %1629 = vmatprep.subr.bf16.mxu0 0
    %1630 = vmatpush1.bf16.msra.mxu0 0
    %1631 = vmatprep.subr.bf16.mxu0 0
    %1632 = vmatpush1.bf16.msra.mxu0 0
    %1633 = vmatprep.subr.bf16.mxu0 0
    %1634 = vmatpush1.bf16.msra.mxu0 0
    %1635 = vmatprep.mubr.bf16.mxu0 0
    %1636 = vmatmul.mubr.bf16.gmra.mrb[0].mxu0 %v1442
    %v1637 = vpop.f32.mrb[0].mxu0
    %v1638 = vadd.f32 0.0, %v1637
    %v1639 = vpop.f32.mrb[0].mxu0
    %v1640 = vadd.f32 0.0, %v1639
    %v1641 = vpop.f32.mrb[0].mxu0
    %v1642 = vpop.f32.mrb[0].mxu0
    %1643 = vdwg.mxu0
    %1644 = vmatprep.subr.bf16.mxu0 %v1542
    %1645 = vmatpush1.bf16.msra.mxu0 %v1541
    %1646 = vmatprep.subr.bf16.mxu0 %v1546
    %1647 = vmatpush1.bf16.msra.mxu0 %v1545
    %1648 = vmatprep.subr.bf16.mxu0 %v1550
    %1649 = vmatpush1.bf16.msra.mxu0 %v1549
    %1650 = vmatprep.subr.bf16.mxu0 %v1554
    %1651 = vmatpush1.bf16.msra.mxu0 %v1553
    %1652 = vmatprep.subr.bf16.mxu0 %v1558
    %1653 = vmatpush1.bf16.msra.mxu0 %v1557
    %1654 = vmatprep.subr.bf16.mxu0 %v1562
    %1655 = vmatpush1.bf16.msra.mxu0 %v1561
    %1656 = vmatprep.subr.bf16.mxu0 %v1566
    %1657 = vmatpush1.bf16.msra.mxu0 %v1565
    %1658 = vmatprep.subr.bf16.mxu0 %v1570
    %1659 = vmatpush1.bf16.msra.mxu0 %v1569
    %1660 = vmatprep.subr.bf16.mxu0 0
    %1661 = vmatpush1.bf16.msra.mxu0 0
    %1662 = vmatprep.subr.bf16.mxu0 0
    %1663 = vmatpush1.bf16.msra.mxu0 0
    %1664 = vmatprep.subr.bf16.mxu0 0
    %1665 = vmatpush1.bf16.msra.mxu0 0
    %1666 = vmatprep.subr.bf16.mxu0 0
    %1667 = vmatpush1.bf16.msra.mxu0 0
    %1668 = vmatprep.subr.bf16.mxu0 0
    %1669 = vmatpush1.bf16.msra.mxu0 0
    %1670 = vmatprep.subr.bf16.mxu0 0
    %1671 = vmatpush1.bf16.msra.mxu0 0
    %1672 = vmatprep.subr.bf16.mxu0 0
    %1673 = vmatpush1.bf16.msra.mxu0 0
    %1674 = vmatprep.subr.bf16.mxu0 0
    %1675 = vmatpush1.bf16.msra.mxu0 0
    %1676 = vmatprep.mubr.bf16.mxu0 0
    %1677 = vmatmul.mubr.bf16.gmra.mrb[0].mxu0 %v1442
    %v1678 = vpop.f32.mrb[0].mxu0
    %v1679 = vadd.f32 0.0, %v1678
    %v1680 = vpop.f32.mrb[0].mxu0
    %v1681 = vadd.f32 0.0, %v1680
    %v1682 = vpop.f32.mrb[0].mxu0
    %v1683 = vpop.f32.mrb[0].mxu0
    %1684 = vdwg.mxu0
    %v1685 = vadd.f32 %v1438, %v1638
    %v1686 = vadd.f32 %v1439, %v1640
    %v1687 = vadd.f32 %v1440, %v1679
    %v1688 = vadd.f32 %v1441, %v1681
    %v1689 = vxor.u32 %v1685, 2147483648
    %v1690 = vmul.f32 %v1689, 1.442695
    %v1691 = vpow.pop %v1690
    %v1692 = vadd.f32 %v1691, 1.0
    %v1693 = vrcp.pop %v1692
    %v1694 = vmul.f32 1.0, %v1693
    %v1695 = vxor.u32 %v1686, 2147483648
    %v1696 = vmul.f32 %v1695, 1.442695
    %v1697 = vpow.pop %v1696
    %v1698 = vadd.f32 %v1697, 1.0
    %v1699 = vrcp.pop %v1698
    %v1700 = vmul.f32 1.0, %v1699
    %v1701 = vtanh.pop %v1687
    %v1702 = vxor.u32 %v1688, 2147483648
    %v1703 = vmul.f32 %v1702, 1.442695
    %v1704 = vpow.pop %v1703
    %v1705 = vadd.f32 %v1704, 1.0
    %v1706 = vrcp.pop %v1705
    %v1707 = vmul.f32 1.0, %v1706
    %v1708 = vmul.f32 %v1700, %v1405
    %v1709 = vmul.f32 %v1694, %v1701
    %v1710 = vadd.f32 %v1708, %v1709
    %v1711 = vtanh.pop %v1710
    %v1712 = vmul.f32 %v1707, %v1711
    %v1713 = vsel %vm1393, %v1712, %v1404
    %1714 = vst [vmem:[#allocation2] sm:$0xff] %v1713
    %v1715 = vld [vmem:[#allocation3] sm:$0xff]
    %v1716 = vsel %vm1393, %v1710, %v1715
    %1717 = vst [vmem:[#allocation3] sm:$0xff] %v1716
    %v1718 = vsel %vm1393, %v1712, 0.0
    %s1719 = scalar_lea.vmem %s4, 16
    %1720 = vst [vmem:[%s1719] sm:$0xff] %v1718
    %s1721 = scalar_lea.vmem %s51, 80
    %v1722 = vld [vmem:[%s1721] sm:$0xff]
    %v1723 = vld [vmem:[%s1721 + $0x8] sm:$0xff]
    %v1724 = vld [vmem:[%s409] sm:$0xff]
    %v1725 = vld [vmem:[%s411] sm:$0xff]
    %v1726 = vld [vmem:[%s413] sm:$0xff]
    %v1727 = vld [vmem:[%s413 + $0x8] sm:$0xff]
    %v1728 = vld [vmem:[%s413 + $0x10] sm:$0xff]
    %v1729 = vld [vmem:[%s413 + $0x18] sm:$0xff]
    %v1730 = vld [vmem:[%s413 + $0x20] sm:$0xff]
    %v1731 = vld [vmem:[%s413 + $0x28] sm:$0xff]
    %v1732 = vld [vmem:[%s413 + $0x30] sm:$0xff]
    %v1733 = vld [vmem:[%s413 + $0x38] sm:$0xff]
    %v1734 = vld [vmem:[%s413 + $0x40] sm:$0xff]
    %v1735 = vld [vmem:[%s413 + $0x48] sm:$0xff]
    %v1736 = vld [vmem:[%s413 + $0x50] sm:$0xff]
    %v1737 = vld [vmem:[%s413 + $0x58] sm:$0xff]
    %v1738 = vld [vmem:[%s413 + $0x60] sm:$0xff]
    %v1739 = vld [vmem:[%s413 + $0x68] sm:$0xff]
    %v1740 = vld [vmem:[%s413 + $0x70] sm:$0xff]
    %v1741 = vld [vmem:[%s413 + $0x78] sm:$0xff]
    %v1742 = vld [vmem:[%s413 + $0x80] sm:$0xff]
    %v1743 = vld [vmem:[%s413 + $0x88] sm:$0xff]
    %v1744 = vld [vmem:[%s413 + $0x90] sm:$0xff]
    %v1745 = vld [vmem:[%s413 + $0x98] sm:$0xff]
    %v1746 = vld [vmem:[%s413 + $0xa0] sm:$0xff]
    %v1747 = vld [vmem:[%s413 + $0xa8] sm:$0xff]
    %v1748 = vld [vmem:[%s413 + $0xb0] sm:$0xff]
    %v1749 = vld [vmem:[%s413 + $0xb8] sm:$0xff]
    %v1750 = vld [vmem:[%s413 + $0xc0] sm:$0xff]
    %v1751 = vld [vmem:[%s413 + $0xc8] sm:$0xff]
    %v1752 = vld [vmem:[%s413 + $0xd0] sm:$0xff]
    %v1753 = vld [vmem:[%s413 + $0xd8] sm:$0xff]
    %v1754 = vld [vmem:[%s413 + $0xe0] sm:$0xff]
    %v1755 = vld [vmem:[%s413 + $0xe8] sm:$0xff]
    %v1756 = vld [vmem:[%s413 + $0xf0] sm:$0xff]
    %v1757 = vld [vmem:[%s413 + $0xf8] sm:$0xff]
    %v1758 = vunpack.c.l.bf16 %v1722
    %v1759 = vunpack.c.h.bf16 %v1722
    %v1760 = vunpack.c.l.bf16 %v1723
    %v1761 = vunpack.c.h.bf16 %v1723
    %v1762 = vpack.c.bf16 %v1724, %v1724
    %v1795 = vunpack.c.l.b16 %v1726
    %v1796 = vunpack.c.h.b16 %v1726
    %v1797 = vunpack.c.l.b16 %v1727
    %v1798 = vunpack.c.h.b16 %v1727
    %v1799 = vunpack.c.l.b16 %v1728
    %v1800 = vunpack.c.h.b16 %v1728
    %v1801 = vunpack.c.l.b16 %v1729
    %v1802 = vunpack.c.h.b16 %v1729
    %v1803 = vunpack.c.l.b16 %v1730
    %v1804 = vunpack.c.h.b16 %v1730
    %v1805 = vunpack.c.l.b16 %v1731
    %v1806 = vunpack.c.h.b16 %v1731
    %v1807 = vunpack.c.l.b16 %v1732
    %v1808 = vunpack.c.h.b16 %v1732
    %v1809 = vunpack.c.l.b16 %v1733
    %v1810 = vunpack.c.h.b16 %v1733
    %v1811 = vunpack.c.l.b16 %v1734
    %v1812 = vunpack.c.h.b16 %v1734
    %v1813 = vunpack.c.l.b16 %v1735
    %v1814 = vunpack.c.h.b16 %v1735
    %v1815 = vunpack.c.l.b16 %v1736
    %v1816 = vunpack.c.h.b16 %v1736
    %v1817 = vunpack.c.l.b16 %v1737
    %v1818 = vunpack.c.h.b16 %v1737
    %v1819 = vunpack.c.l.b16 %v1738
    %v1820 = vunpack.c.h.b16 %v1738
    %v1821 = vunpack.c.l.b16 %v1739
    %v1822 = vunpack.c.h.b16 %v1739
    %v1823 = vunpack.c.l.b16 %v1740
    %v1824 = vunpack.c.h.b16 %v1740
    %v1825 = vunpack.c.l.b16 %v1741
    %v1826 = vunpack.c.h.b16 %v1741
    %v1827 = vunpack.c.l.b16 %v1742
    %v1828 = vunpack.c.h.b16 %v1742
    %v1829 = vunpack.c.l.b16 %v1743
    %v1830 = vunpack.c.h.b16 %v1743
    %v1831 = vunpack.c.l.b16 %v1744
    %v1832 = vunpack.c.h.b16 %v1744
    %v1833 = vunpack.c.l.b16 %v1745
    %v1834 = vunpack.c.h.b16 %v1745
    %v1835 = vunpack.c.l.b16 %v1746
    %v1836 = vunpack.c.h.b16 %v1746
    %v1837 = vunpack.c.l.b16 %v1747
    %v1838 = vunpack.c.h.b16 %v1747
    %v1839 = vunpack.c.l.b16 %v1748
    %v1840 = vunpack.c.h.b16 %v1748
    %v1841 = vunpack.c.l.b16 %v1749
    %v1842 = vunpack.c.h.b16 %v1749
    %v1843 = vunpack.c.l.b16 %v1750
    %v1844 = vunpack.c.h.b16 %v1750
    %v1845 = vunpack.c.l.b16 %v1751
    %v1846 = vunpack.c.h.b16 %v1751
    %v1847 = vunpack.c.l.b16 %v1752
    %v1848 = vunpack.c.h.b16 %v1752
    %v1849 = vunpack.c.l.b16 %v1753
    %v1850 = vunpack.c.h.b16 %v1753
    %v1851 = vunpack.c.l.b16 %v1754
    %v1852 = vunpack.c.h.b16 %v1754
    %v1853 = vunpack.c.l.b16 %v1755
    %v1854 = vunpack.c.h.b16 %v1755
    %v1855 = vunpack.c.l.b16 %v1756
    %v1856 = vunpack.c.h.b16 %v1756
    %v1857 = vunpack.c.l.b16 %v1757
    %v1858 = vunpack.c.h.b16 %v1757
    %v1859 = vpack.c.b16 %v1799, %v1795
    %v1860 = vpack.c.b16 %v1800, %v1796
    %v1861 = vpack.c.b16 %v1801, %v1797
    %v1862 = vpack.c.b16 %v1802, %v1798
    %v1863 = vpack.c.b16 %v1807, %v1803
    %v1864 = vpack.c.b16 %v1808, %v1804
    %v1865 = vpack.c.b16 %v1809, %v1805
    %v1866 = vpack.c.b16 %v1810, %v1806
    %v1867 = vpack.c.b16 %v1815, %v1811
    %v1868 = vpack.c.b16 %v1816, %v1812
    %v1869 = vpack.c.b16 %v1817, %v1813
    %v1870 = vpack.c.b16 %v1818, %v1814
    %v1871 = vpack.c.b16 %v1823, %v1819
    %v1872 = vpack.c.b16 %v1824, %v1820
    %v1873 = vpack.c.b16 %v1825, %v1821
    %v1874 = vpack.c.b16 %v1826, %v1822
    %v1875 = vpack.c.b16 %v1831, %v1827
    %v1876 = vpack.c.b16 %v1832, %v1828
    %v1877 = vpack.c.b16 %v1833, %v1829
    %v1878 = vpack.c.b16 %v1834, %v1830
    %v1879 = vpack.c.b16 %v1839, %v1835
    %v1880 = vpack.c.b16 %v1840, %v1836
    %v1881 = vpack.c.b16 %v1841, %v1837
    %v1882 = vpack.c.b16 %v1842, %v1838
    %v1883 = vpack.c.b16 %v1847, %v1843
    %v1884 = vpack.c.b16 %v1848, %v1844
    %v1885 = vpack.c.b16 %v1849, %v1845
    %v1886 = vpack.c.b16 %v1850, %v1846
    %v1887 = vpack.c.b16 %v1855, %v1851
    %v1888 = vpack.c.b16 %v1856, %v1852
    %v1889 = vpack.c.b16 %v1857, %v1853
    %v1890 = vpack.c.b16 %v1858, %v1854
    %1923 = vmatprep.subr.bf16.mxu0 %v1860
    %1924 = vmatpush1.bf16.msra.mxu0 %v1859
    %1925 = vmatprep.subr.bf16.mxu0 %v1864
    %1926 = vmatpush1.bf16.msra.mxu0 %v1863
    %1927 = vmatprep.subr.bf16.mxu0 %v1868
    %1928 = vmatpush1.bf16.msra.mxu0 %v1867
    %1929 = vmatprep.subr.bf16.mxu0 %v1872
    %1930 = vmatpush1.bf16.msra.mxu0 %v1871
    %1931 = vmatprep.subr.bf16.mxu0 %v1876
    %1932 = vmatpush1.bf16.msra.mxu0 %v1875
    %1933 = vmatprep.subr.bf16.mxu0 %v1880
    %1934 = vmatpush1.bf16.msra.mxu0 %v1879
    %1935 = vmatprep.subr.bf16.mxu0 %v1884
    %1936 = vmatpush1.bf16.msra.mxu0 %v1883
    %1937 = vmatprep.subr.bf16.mxu0 %v1888
    %1938 = vmatpush1.bf16.msra.mxu0 %v1887
    %1939 = vmatprep.subr.bf16.mxu0 0
    %1940 = vmatpush1.bf16.msra.mxu0 0
    %1941 = vmatprep.subr.bf16.mxu0 0
    %1942 = vmatpush1.bf16.msra.mxu0 0
    %1943 = vmatprep.subr.bf16.mxu0 0
    %1944 = vmatpush1.bf16.msra.mxu0 0
    %1945 = vmatprep.subr.bf16.mxu0 0
    %1946 = vmatpush1.bf16.msra.mxu0 0
    %1947 = vmatprep.subr.bf16.mxu0 0
    %1948 = vmatpush1.bf16.msra.mxu0 0
    %1949 = vmatprep.subr.bf16.mxu0 0
    %1950 = vmatpush1.bf16.msra.mxu0 0
    %1951 = vmatprep.subr.bf16.mxu0 0
    %1952 = vmatpush1.bf16.msra.mxu0 0
    %1953 = vmatprep.subr.bf16.mxu0 0
    %1954 = vmatpush1.bf16.msra.mxu0 0
    %1955 = vmatprep.mubr.bf16.mxu0 0
    %1956 = vmatmul.mubr.bf16.gmra.mrb[0].mxu0 %v1762
    %v1957 = vpop.f32.mrb[0].mxu0
    %v1958 = vadd.f32 0.0, %v1957
    %v1959 = vpop.f32.mrb[0].mxu0
    %v1960 = vadd.f32 0.0, %v1959
    %v1961 = vpop.f32.mrb[0].mxu0
    %v1962 = vpop.f32.mrb[0].mxu0
    %1963 = vdwg.mxu0
    %1964 = vmatprep.subr.bf16.mxu0 %v1862
    %1965 = vmatpush1.bf16.msra.mxu0 %v1861
    %1966 = vmatprep.subr.bf16.mxu0 %v1866
    %1967 = vmatpush1.bf16.msra.mxu0 %v1865
    %1968 = vmatprep.subr.bf16.mxu0 %v1870
    %1969 = vmatpush1.bf16.msra.mxu0 %v1869
    %1970 = vmatprep.subr.bf16.mxu0 %v1874
    %1971 = vmatpush1.bf16.msra.mxu0 %v1873
    %1972 = vmatprep.subr.bf16.mxu0 %v1878
    %1973 = vmatpush1.bf16.msra.mxu0 %v1877
    %1974 = vmatprep.subr.bf16.mxu0 %v1882
    %1975 = vmatpush1.bf16.msra.mxu0 %v1881
    %1976 = vmatprep.subr.bf16.mxu0 %v1886
    %1977 = vmatpush1.bf16.msra.mxu0 %v1885
    %1978 = vmatprep.subr.bf16.mxu0 %v1890
    %1979 = vmatpush1.bf16.msra.mxu0 %v1889
    %1980 = vmatprep.subr.bf16.mxu0 0
    %1981 = vmatpush1.bf16.msra.mxu0 0
    %1982 = vmatprep.subr.bf16.mxu0 0
    %1983 = vmatpush1.bf16.msra.mxu0 0
    %1984 = vmatprep.subr.bf16.mxu0 0
    %1985 = vmatpush1.bf16.msra.mxu0 0
    %1986 = vmatprep.subr.bf16.mxu0 0
    %1987 = vmatpush1.bf16.msra.mxu0 0
    %1988 = vmatprep.subr.bf16.mxu0 0
    %1989 = vmatpush1.bf16.msra.mxu0 0
    %1990 = vmatprep.subr.bf16.mxu0 0
    %1991 = vmatpush1.bf16.msra.mxu0 0
    %1992 = vmatprep.subr.bf16.mxu0 0
    %1993 = vmatpush1.bf16.msra.mxu0 0
    %1994 = vmatprep.subr.bf16.mxu0 0
    %1995 = vmatpush1.bf16.msra.mxu0 0
    %1996 = vmatprep.mubr.bf16.mxu0 0
    %1997 = vmatmul.mubr.bf16.gmra.mrb[0].mxu0 %v1762
    %v1998 = vpop.f32.mrb[0].mxu0
    %v1999 = vadd.f32 0.0, %v1998
    %v2000 = vpop.f32.mrb[0].mxu0
    %v2001 = vadd.f32 0.0, %v2000
    %v2002 = vpop.f32.mrb[0].mxu0
    %v2003 = vpop.f32.mrb[0].mxu0
    %2004 = vdwg.mxu0
    %v2005 = vadd.f32 %v1758, %v1958
    %v2006 = vadd.f32 %v1759, %v1960
    %v2007 = vadd.f32 %v1760, %v1999
    %v2008 = vadd.f32 %v1761, %v2001
    %v2009 = vxor.u32 %v2005, 2147483648
    %v2010 = vmul.f32 %v2009, 1.442695
    %v2011 = vpow.pop %v2010
    %v2012 = vadd.f32 %v2011, 1.0
    %v2013 = vrcp.pop %v2012
    %v2014 = vmul.f32 1.0, %v2013
    %v2015 = vxor.u32 %v2006, 2147483648
    %v2016 = vmul.f32 %v2015, 1.442695
    %v2017 = vpow.pop %v2016
    %v2018 = vadd.f32 %v2017, 1.0
    %v2019 = vrcp.pop %v2018
    %v2020 = vmul.f32 1.0, %v2019
    %v2021 = vtanh.pop %v2007
    %v2022 = vxor.u32 %v2008, 2147483648
    %v2023 = vmul.f32 %v2022, 1.442695
    %v2024 = vpow.pop %v2023
    %v2025 = vadd.f32 %v2024, 1.0
    %v2026 = vrcp.pop %v2025
    %v2027 = vmul.f32 1.0, %v2026
    %v2028 = vmul.f32 %v2020, %v1725
    %v2029 = vmul.f32 %v2014, %v2021
    %v2030 = vadd.f32 %v2028, %v2029
    %v2031 = vtanh.pop %v2030
    %v2032 = vmul.f32 %v2027, %v2031
    %v2033 = vsel %vm1400, %v2032, %v1724
    %2034 = vst [vmem:[%s409] sm:$0xff] %v2033
    %v2035 = vld [vmem:[%s411] sm:$0xff]
    %v2036 = vsel %vm1400, %v2030, %v2035
    %2037 = vst [vmem:[%s411] sm:$0xff] %v2036
    %v2038 = vsel %vm1400, %v2032, 0.0
    %s2039 = scalar_lea.vmem %s59, 40
    %2040 = vst [vmem:[%s2039] sm:$0xff] %v2038
    %s2041 = sadd.s32 %s72, 3
    %s2042 = ssub.s32 4, %s72
    %v2043 = vstv %s2041
    %vm2044 = vcmp.lt.s32.totalorder %v2043, %v71
    %v2045 = vsel %vm2044, 1, 0
    %2046 = vset.pattern.permute.xlu0 0
    %2047 = vperm.xlu0 %2046, %v2045
    %v2048 = vpop.permute.xlu0 %2047
    %vm2049 = vcmp.eq.s32.totalorder %v2048, 1
    %v2050 = vstv %s2042
    %vm2051 = vcmp.lt.s32.totalorder %v2050, %v71
    %v2052 = vsel %vm2051, 1, 0
    %2053 = vset.pattern.permute.xlu0 0
    %2054 = vperm.xlu0 %2053, %v2052
    %v2055 = vpop.permute.xlu0 %2054
    %vm2056 = vcmp.eq.s32.totalorder %v2055, 1
    %s2057 = scalar_lea.vmem %s1, 48
    %v2058 = vld [vmem:[%s2057] sm:$0xff]
    %v2059 = vld [vmem:[%s2057 + $0x8] sm:$0xff]
    %v2060 = vld [vmem:[#allocation2] sm:$0xff]
    %v2061 = vld [vmem:[#allocation3] sm:$0xff]
    %v2062 = vld [vmem:[%s3] sm:$0xff]
    %v2063 = vld [vmem:[%s3 + $0x8] sm:$0xff]
    %v2064 = vld [vmem:[%s3 + $0x10] sm:$0xff]
    %v2065 = vld [vmem:[%s3 + $0x18] sm:$0xff]
    %v2066 = vld [vmem:[%s3 + $0x20] sm:$0xff]
    %v2067 = vld [vmem:[%s3 + $0x28] sm:$0xff]
    %v2068 = vld [vmem:[%s3 + $0x30] sm:$0xff]
    %v2069 = vld [vmem:[%s3 + $0x38] sm:$0xff]
    %v2070 = vld [vmem:[%s3 + $0x40] sm:$0xff]
    %v2071 = vld [vmem:[%s3 + $0x48] sm:$0xff]
    %v2072 = vld [vmem:[%s3 + $0x50] sm:$0xff]
    %v2073 = vld [vmem:[%s3 + $0x58] sm:$0xff]
    %v2074 = vld [vmem:[%s3 + $0x60] sm:$0xff]
    %v2075 = vld [vmem:[%s3 + $0x68] sm:$0xff]
    %v2076 = vld [vmem:[%s3 + $0x70] sm:$0xff]
    %v2077 = vld [vmem:[%s3 + $0x78] sm:$0xff]
    %v2078 = vld [vmem:[%s3 + $0x80] sm:$0xff]
    %v2079 = vld [vmem:[%s3 + $0x88] sm:$0xff]
    %v2080 = vld [vmem:[%s3 + $0x90] sm:$0xff]
    %v2081 = vld [vmem:[%s3 + $0x98] sm:$0xff]
    %v2082 = vld [vmem:[%s3 + $0xa0] sm:$0xff]
    %v2083 = vld [vmem:[%s3 + $0xa8] sm:$0xff]
    %v2084 = vld [vmem:[%s3 + $0xb0] sm:$0xff]
    %v2085 = vld [vmem:[%s3 + $0xb8] sm:$0xff]
    %v2086 = vld [vmem:[%s3 + $0xc0] sm:$0xff]
    %v2087 = vld [vmem:[%s3 + $0xc8] sm:$0xff]
    %v2088 = vld [vmem:[%s3 + $0xd0] sm:$0xff]
    %v2089 = vld [vmem:[%s3 + $0xd8] sm:$0xff]
    %v2090 = vld [vmem:[%s3 + $0xe0] sm:$0xff]
    %v2091 = vld [vmem:[%s3 + $0xe8] sm:$0xff]
    %v2092 = vld [vmem:[%s3 + $0xf0] sm:$0xff]
    %v2093 = vld [vmem:[%s3 + $0xf8] sm:$0xff]
    %v2094 = vunpack.c.l.bf16 %v2058
    %v2095 = vunpack.c.h.bf16 %v2058
    %v2096 = vunpack.c.l.bf16 %v2059
    %v2097 = vunpack.c.h.bf16 %v2059
    %v2098 = vpack.c.bf16 %v2060, %v2060
    %v2131 = vunpack.c.l.b16 %v2062
    %v2132 = vunpack.c.h.b16 %v2062
    %v2133 = vunpack.c.l.b16 %v2063
    %v2134 = vunpack.c.h.b16 %v2063
    %v2135 = vunpack.c.l.b16 %v2064
    %v2136 = vunpack.c.h.b16 %v2064
    %v2137 = vunpack.c.l.b16 %v2065
    %v2138 = vunpack.c.h.b16 %v2065
    %v2139 = vunpack.c.l.b16 %v2066
    %v2140 = vunpack.c.h.b16 %v2066
    %v2141 = vunpack.c.l.b16 %v2067
    %v2142 = vunpack.c.h.b16 %v2067
    %v2143 = vunpack.c.l.b16 %v2068
    %v2144 = vunpack.c.h.b16 %v2068
    %v2145 = vunpack.c.l.b16 %v2069
    %v2146 = vunpack.c.h.b16 %v2069
    %v2147 = vunpack.c.l.b16 %v2070
    %v2148 = vunpack.c.h.b16 %v2070
    %v2149 = vunpack.c.l.b16 %v2071
    %v2150 = vunpack.c.h.b16 %v2071
    %v2151 = vunpack.c.l.b16 %v2072
    %v2152 = vunpack.c.h.b16 %v2072
    %v2153 = vunpack.c.l.b16 %v2073
    %v2154 = vunpack.c.h.b16 %v2073
    %v2155 = vunpack.c.l.b16 %v2074
    %v2156 = vunpack.c.h.b16 %v2074
    %v2157 = vunpack.c.l.b16 %v2075
    %v2158 = vunpack.c.h.b16 %v2075
    %v2159 = vunpack.c.l.b16 %v2076
    %v2160 = vunpack.c.h.b16 %v2076
    %v2161 = vunpack.c.l.b16 %v2077
    %v2162 = vunpack.c.h.b16 %v2077
    %v2163 = vunpack.c.l.b16 %v2078
    %v2164 = vunpack.c.h.b16 %v2078
    %v2165 = vunpack.c.l.b16 %v2079
    %v2166 = vunpack.c.h.b16 %v2079
    %v2167 = vunpack.c.l.b16 %v2080
    %v2168 = vunpack.c.h.b16 %v2080
    %v2169 = vunpack.c.l.b16 %v2081
    %v2170 = vunpack.c.h.b16 %v2081
    %v2171 = vunpack.c.l.b16 %v2082
    %v2172 = vunpack.c.h.b16 %v2082
    %v2173 = vunpack.c.l.b16 %v2083
    %v2174 = vunpack.c.h.b16 %v2083
    %v2175 = vunpack.c.l.b16 %v2084
    %v2176 = vunpack.c.h.b16 %v2084
    %v2177 = vunpack.c.l.b16 %v2085
    %v2178 = vunpack.c.h.b16 %v2085
    %v2179 = vunpack.c.l.b16 %v2086
    %v2180 = vunpack.c.h.b16 %v2086
    %v2181 = vunpack.c.l.b16 %v2087
    %v2182 = vunpack.c.h.b16 %v2087
    %v2183 = vunpack.c.l.b16 %v2088
    %v2184 = vunpack.c.h.b16 %v2088
    %v2185 = vunpack.c.l.b16 %v2089
    %v2186 = vunpack.c.h.b16 %v2089
    %v2187 = vunpack.c.l.b16 %v2090
    %v2188 = vunpack.c.h.b16 %v2090
    %v2189 = vunpack.c.l.b16 %v2091
    %v2190 = vunpack.c.h.b16 %v2091
    %v2191 = vunpack.c.l.b16 %v2092
    %v2192 = vunpack.c.h.b16 %v2092
    %v2193 = vunpack.c.l.b16 %v2093
    %v2194 = vunpack.c.h.b16 %v2093
    %v2195 = vpack.c.b16 %v2135, %v2131
    %v2196 = vpack.c.b16 %v2136, %v2132
    %v2197 = vpack.c.b16 %v2137, %v2133
    %v2198 = vpack.c.b16 %v2138, %v2134
    %v2199 = vpack.c.b16 %v2143, %v2139
    %v2200 = vpack.c.b16 %v2144, %v2140
    %v2201 = vpack.c.b16 %v2145, %v2141
    %v2202 = vpack.c.b16 %v2146, %v2142
    %v2203 = vpack.c.b16 %v2151, %v2147
    %v2204 = vpack.c.b16 %v2152, %v2148
    %v2205 = vpack.c.b16 %v2153, %v2149
    %v2206 = vpack.c.b16 %v2154, %v2150
    %v2207 = vpack.c.b16 %v2159, %v2155
    %v2208 = vpack.c.b16 %v2160, %v2156
    %v2209 = vpack.c.b16 %v2161, %v2157
    %v2210 = vpack.c.b16 %v2162, %v2158
    %v2211 = vpack.c.b16 %v2167, %v2163
    %v2212 = vpack.c.b16 %v2168, %v2164
    %v2213 = vpack.c.b16 %v2169, %v2165
    %v2214 = vpack.c.b16 %v2170, %v2166
    %v2215 = vpack.c.b16 %v2175, %v2171
    %v2216 = vpack.c.b16 %v2176, %v2172
    %v2217 = vpack.c.b16 %v2177, %v2173
    %v2218 = vpack.c.b16 %v2178, %v2174
    %v2219 = vpack.c.b16 %v2183, %v2179
    %v2220 = vpack.c.b16 %v2184, %v2180
    %v2221 = vpack.c.b16 %v2185, %v2181
    %v2222 = vpack.c.b16 %v2186, %v2182
    %v2223 = vpack.c.b16 %v2191, %v2187
    %v2224 = vpack.c.b16 %v2192, %v2188
    %v2225 = vpack.c.b16 %v2193, %v2189
    %v2226 = vpack.c.b16 %v2194, %v2190
    %2259 = vmatprep.subr.bf16.mxu0 %v2196
    %2260 = vmatpush1.bf16.msra.mxu0 %v2195
    %2261 = vmatprep.subr.bf16.mxu0 %v2200
    %2262 = vmatpush1.bf16.msra.mxu0 %v2199
    %2263 = vmatprep.subr.bf16.mxu0 %v2204
    %2264 = vmatpush1.bf16.msra.mxu0 %v2203
    %2265 = vmatprep.subr.bf16.mxu0 %v2208
    %2266 = vmatpush1.bf16.msra.mxu0 %v2207
    %2267 = vmatprep.subr.bf16.mxu0 %v2212
    %2268 = vmatpush1.bf16.msra.mxu0 %v2211
    %2269 = vmatprep.subr.bf16.mxu0 %v2216
    %2270 = vmatpush1.bf16.msra.mxu0 %v2215
    %2271 = vmatprep.subr.bf16.mxu0 %v2220
    %2272 = vmatpush1.bf16.msra.mxu0 %v2219
    %2273 = vmatprep.subr.bf16.mxu0 %v2224
    %2274 = vmatpush1.bf16.msra.mxu0 %v2223
    %2275 = vmatprep.subr.bf16.mxu0 0
    %2276 = vmatpush1.bf16.msra.mxu0 0
    %2277 = vmatprep.subr.bf16.mxu0 0
    %2278 = vmatpush1.bf16.msra.mxu0 0
    %2279 = vmatprep.subr.bf16.mxu0 0
    %2280 = vmatpush1.bf16.msra.mxu0 0
    %2281 = vmatprep.subr.bf16.mxu0 0
    %2282 = vmatpush1.bf16.msra.mxu0 0
    %2283 = vmatprep.subr.bf16.mxu0 0
    %2284 = vmatpush1.bf16.msra.mxu0 0
    %2285 = vmatprep.subr.bf16.mxu0 0
    %2286 = vmatpush1.bf16.msra.mxu0 0
    %2287 = vmatprep.subr.bf16.mxu0 0
    %2288 = vmatpush1.bf16.msra.mxu0 0
    %2289 = vmatprep.subr.bf16.mxu0 0
    %2290 = vmatpush1.bf16.msra.mxu0 0
    %2291 = vmatprep.mubr.bf16.mxu0 0
    %2292 = vmatmul.mubr.bf16.gmra.mrb[0].mxu0 %v2098
    %v2293 = vpop.f32.mrb[0].mxu0
    %v2294 = vadd.f32 0.0, %v2293
    %v2295 = vpop.f32.mrb[0].mxu0
    %v2296 = vadd.f32 0.0, %v2295
    %v2297 = vpop.f32.mrb[0].mxu0
    %v2298 = vpop.f32.mrb[0].mxu0
    %2299 = vdwg.mxu0
    %2300 = vmatprep.subr.bf16.mxu0 %v2198
    %2301 = vmatpush1.bf16.msra.mxu0 %v2197
    %2302 = vmatprep.subr.bf16.mxu0 %v2202
    %2303 = vmatpush1.bf16.msra.mxu0 %v2201
    %2304 = vmatprep.subr.bf16.mxu0 %v2206
    %2305 = vmatpush1.bf16.msra.mxu0 %v2205
    %2306 = vmatprep.subr.bf16.mxu0 %v2210
    %2307 = vmatpush1.bf16.msra.mxu0 %v2209
    %2308 = vmatprep.subr.bf16.mxu0 %v2214
    %2309 = vmatpush1.bf16.msra.mxu0 %v2213
    %2310 = vmatprep.subr.bf16.mxu0 %v2218
    %2311 = vmatpush1.bf16.msra.mxu0 %v2217
    %2312 = vmatprep.subr.bf16.mxu0 %v2222
    %2313 = vmatpush1.bf16.msra.mxu0 %v2221
    %2314 = vmatprep.subr.bf16.mxu0 %v2226
    %2315 = vmatpush1.bf16.msra.mxu0 %v2225
    %2316 = vmatprep.subr.bf16.mxu0 0
    %2317 = vmatpush1.bf16.msra.mxu0 0
    %2318 = vmatprep.subr.bf16.mxu0 0
    %2319 = vmatpush1.bf16.msra.mxu0 0
    %2320 = vmatprep.subr.bf16.mxu0 0
    %2321 = vmatpush1.bf16.msra.mxu0 0
    %2322 = vmatprep.subr.bf16.mxu0 0
    %2323 = vmatpush1.bf16.msra.mxu0 0
    %2324 = vmatprep.subr.bf16.mxu0 0
    %2325 = vmatpush1.bf16.msra.mxu0 0
    %2326 = vmatprep.subr.bf16.mxu0 0
    %2327 = vmatpush1.bf16.msra.mxu0 0
    %2328 = vmatprep.subr.bf16.mxu0 0
    %2329 = vmatpush1.bf16.msra.mxu0 0
    %2330 = vmatprep.subr.bf16.mxu0 0
    %2331 = vmatpush1.bf16.msra.mxu0 0
    %2332 = vmatprep.mubr.bf16.mxu0 0
    %2333 = vmatmul.mubr.bf16.gmra.mrb[0].mxu0 %v2098
    %v2334 = vpop.f32.mrb[0].mxu0
    %v2335 = vadd.f32 0.0, %v2334
    %v2336 = vpop.f32.mrb[0].mxu0
    %v2337 = vadd.f32 0.0, %v2336
    %v2338 = vpop.f32.mrb[0].mxu0
    %v2339 = vpop.f32.mrb[0].mxu0
    %2340 = vdwg.mxu0
    %v2341 = vadd.f32 %v2094, %v2294
    %v2342 = vadd.f32 %v2095, %v2296
    %v2343 = vadd.f32 %v2096, %v2335
    %v2344 = vadd.f32 %v2097, %v2337
    %v2345 = vxor.u32 %v2341, 2147483648
    %v2346 = vmul.f32 %v2345, 1.442695
    %v2347 = vpow.pop %v2346
    %v2348 = vadd.f32 %v2347, 1.0
    %v2349 = vrcp.pop %v2348
    %v2350 = vmul.f32 1.0, %v2349
    %v2351 = vxor.u32 %v2342, 2147483648
    %v2352 = vmul.f32 %v2351, 1.442695
    %v2353 = vpow.pop %v2352
    %v2354 = vadd.f32 %v2353, 1.0
    %v2355 = vrcp.pop %v2354
    %v2356 = vmul.f32 1.0, %v2355
    %v2357 = vtanh.pop %v2343
    %v2358 = vxor.u32 %v2344, 2147483648
    %v2359 = vmul.f32 %v2358, 1.442695
    %v2360 = vpow.pop %v2359
    %v2361 = vadd.f32 %v2360, 1.0
    %v2362 = vrcp.pop %v2361
    %v2363 = vmul.f32 1.0, %v2362
    %v2364 = vmul.f32 %v2356, %v2061
    %v2365 = vmul.f32 %v2350, %v2357
    %v2366 = vadd.f32 %v2364, %v2365
    %v2367 = vtanh.pop %v2366
    %v2368 = vmul.f32 %v2363, %v2367
    %v2369 = vsel %vm2049, %v2368, %v2060
    %2370 = vst [vmem:[#allocation2] sm:$0xff] %v2369
    %v2371 = vld [vmem:[#allocation3] sm:$0xff]
    %v2372 = vsel %vm2049, %v2366, %v2371
    %2373 = vst [vmem:[#allocation3] sm:$0xff] %v2372
    %v2374 = vsel %vm2049, %v2368, 0.0
    %s2375 = scalar_lea.vmem %s4, 24
    %2376 = vst [vmem:[%s2375] sm:$0xff] %v2374
    %s2377 = scalar_lea.vmem %s51, 64
    %v2378 = vld [vmem:[%s2377] sm:$0xff]
    %v2379 = vld [vmem:[%s2377 + $0x8] sm:$0xff]
    %v2380 = vld [vmem:[%s409] sm:$0xff]
    %v2381 = vld [vmem:[%s411] sm:$0xff]
    %v2382 = vld [vmem:[%s413] sm:$0xff]
    %v2383 = vld [vmem:[%s413 + $0x8] sm:$0xff]
    %v2384 = vld [vmem:[%s413 + $0x10] sm:$0xff]
    %v2385 = vld [vmem:[%s413 + $0x18] sm:$0xff]
    %v2386 = vld [vmem:[%s413 + $0x20] sm:$0xff]
    %v2387 = vld [vmem:[%s413 + $0x28] sm:$0xff]
    %v2388 = vld [vmem:[%s413 + $0x30] sm:$0xff]
    %v2389 = vld [vmem:[%s413 + $0x38] sm:$0xff]
    %v2390 = vld [vmem:[%s413 + $0x40] sm:$0xff]
    %v2391 = vld [vmem:[%s413 + $0x48] sm:$0xff]
    %v2392 = vld [vmem:[%s413 + $0x50] sm:$0xff]
    %v2393 = vld [vmem:[%s413 + $0x58] sm:$0xff]
    %v2394 = vld [vmem:[%s413 + $0x60] sm:$0xff]
    %v2395 = vld [vmem:[%s413 + $0x68] sm:$0xff]
    %v2396 = vld [vmem:[%s413 + $0x70] sm:$0xff]
    %v2397 = vld [vmem:[%s413 + $0x78] sm:$0xff]
    %v2398 = vld [vmem:[%s413 + $0x80] sm:$0xff]
    %v2399 = vld [vmem:[%s413 + $0x88] sm:$0xff]
    %v2400 = vld [vmem:[%s413 + $0x90] sm:$0xff]
    %v2401 = vld [vmem:[%s413 + $0x98] sm:$0xff]
    %v2402 = vld [vmem:[%s413 + $0xa0] sm:$0xff]
    %v2403 = vld [vmem:[%s413 + $0xa8] sm:$0xff]
    %v2404 = vld [vmem:[%s413 + $0xb0] sm:$0xff]
    %v2405 = vld [vmem:[%s413 + $0xb8] sm:$0xff]
    %v2406 = vld [vmem:[%s413 + $0xc0] sm:$0xff]
    %v2407 = vld [vmem:[%s413 + $0xc8] sm:$0xff]
    %v2408 = vld [vmem:[%s413 + $0xd0] sm:$0xff]
    %v2409 = vld [vmem:[%s413 + $0xd8] sm:$0xff]
    %v2410 = vld [vmem:[%s413 + $0xe0] sm:$0xff]
    %v2411 = vld [vmem:[%s413 + $0xe8] sm:$0xff]
    %v2412 = vld [vmem:[%s413 + $0xf0] sm:$0xff]
    %v2413 = vld [vmem:[%s413 + $0xf8] sm:$0xff]
    %v2414 = vunpack.c.l.bf16 %v2378
    %v2415 = vunpack.c.h.bf16 %v2378
    %v2416 = vunpack.c.l.bf16 %v2379
    %v2417 = vunpack.c.h.bf16 %v2379
    %v2418 = vpack.c.bf16 %v2380, %v2380
    %v2451 = vunpack.c.l.b16 %v2382
    %v2452 = vunpack.c.h.b16 %v2382
    %v2453 = vunpack.c.l.b16 %v2383
    %v2454 = vunpack.c.h.b16 %v2383
    %v2455 = vunpack.c.l.b16 %v2384
    %v2456 = vunpack.c.h.b16 %v2384
    %v2457 = vunpack.c.l.b16 %v2385
    %v2458 = vunpack.c.h.b16 %v2385
    %v2459 = vunpack.c.l.b16 %v2386
    %v2460 = vunpack.c.h.b16 %v2386
    %v2461 = vunpack.c.l.b16 %v2387
    %v2462 = vunpack.c.h.b16 %v2387
    %v2463 = vunpack.c.l.b16 %v2388
    %v2464 = vunpack.c.h.b16 %v2388
    %v2465 = vunpack.c.l.b16 %v2389
    %v2466 = vunpack.c.h.b16 %v2389
    %v2467 = vunpack.c.l.b16 %v2390
    %v2468 = vunpack.c.h.b16 %v2390
    %v2469 = vunpack.c.l.b16 %v2391
    %v2470 = vunpack.c.h.b16 %v2391
    %v2471 = vunpack.c.l.b16 %v2392
    %v2472 = vunpack.c.h.b16 %v2392
    %v2473 = vunpack.c.l.b16 %v2393
    %v2474 = vunpack.c.h.b16 %v2393
    %v2475 = vunpack.c.l.b16 %v2394
    %v2476 = vunpack.c.h.b16 %v2394
    %v2477 = vunpack.c.l.b16 %v2395
    %v2478 = vunpack.c.h.b16 %v2395
    %v2479 = vunpack.c.l.b16 %v2396
    %v2480 = vunpack.c.h.b16 %v2396
    %v2481 = vunpack.c.l.b16 %v2397
    %v2482 = vunpack.c.h.b16 %v2397
    %v2483 = vunpack.c.l.b16 %v2398
    %v2484 = vunpack.c.h.b16 %v2398
    %v2485 = vunpack.c.l.b16 %v2399
    %v2486 = vunpack.c.h.b16 %v2399
    %v2487 = vunpack.c.l.b16 %v2400
    %v2488 = vunpack.c.h.b16 %v2400
    %v2489 = vunpack.c.l.b16 %v2401
    %v2490 = vunpack.c.h.b16 %v2401
    %v2491 = vunpack.c.l.b16 %v2402
    %v2492 = vunpack.c.h.b16 %v2402
    %v2493 = vunpack.c.l.b16 %v2403
    %v2494 = vunpack.c.h.b16 %v2403
    %v2495 = vunpack.c.l.b16 %v2404
    %v2496 = vunpack.c.h.b16 %v2404
    %v2497 = vunpack.c.l.b16 %v2405
    %v2498 = vunpack.c.h.b16 %v2405
    %v2499 = vunpack.c.l.b16 %v2406
    %v2500 = vunpack.c.h.b16 %v2406
    %v2501 = vunpack.c.l.b16 %v2407
    %v2502 = vunpack.c.h.b16 %v2407
    %v2503 = vunpack.c.l.b16 %v2408
    %v2504 = vunpack.c.h.b16 %v2408
    %v2505 = vunpack.c.l.b16 %v2409
    %v2506 = vunpack.c.h.b16 %v2409
    %v2507 = vunpack.c.l.b16 %v2410
    %v2508 = vunpack.c.h.b16 %v2410
    %v2509 = vunpack.c.l.b16 %v2411
    %v2510 = vunpack.c.h.b16 %v2411
    %v2511 = vunpack.c.l.b16 %v2412
    %v2512 = vunpack.c.h.b16 %v2412
    %v2513 = vunpack.c.l.b16 %v2413
    %v2514 = vunpack.c.h.b16 %v2413
    %v2515 = vpack.c.b16 %v2455, %v2451
    %v2516 = vpack.c.b16 %v2456, %v2452
    %v2517 = vpack.c.b16 %v2457, %v2453
    %v2518 = vpack.c.b16 %v2458, %v2454
    %v2519 = vpack.c.b16 %v2463, %v2459
    %v2520 = vpack.c.b16 %v2464, %v2460
    %v2521 = vpack.c.b16 %v2465, %v2461
    %v2522 = vpack.c.b16 %v2466, %v2462
    %v2523 = vpack.c.b16 %v2471, %v2467
    %v2524 = vpack.c.b16 %v2472, %v2468
    %v2525 = vpack.c.b16 %v2473, %v2469
    %v2526 = vpack.c.b16 %v2474, %v2470
    %v2527 = vpack.c.b16 %v2479, %v2475
    %v2528 = vpack.c.b16 %v2480, %v2476
    %v2529 = vpack.c.b16 %v2481, %v2477
    %v2530 = vpack.c.b16 %v2482, %v2478
    %v2531 = vpack.c.b16 %v2487, %v2483
    %v2532 = vpack.c.b16 %v2488, %v2484
    %v2533 = vpack.c.b16 %v2489, %v2485
    %v2534 = vpack.c.b16 %v2490, %v2486
    %v2535 = vpack.c.b16 %v2495, %v2491
    %v2536 = vpack.c.b16 %v2496, %v2492
    %v2537 = vpack.c.b16 %v2497, %v2493
    %v2538 = vpack.c.b16 %v2498, %v2494
    %v2539 = vpack.c.b16 %v2503, %v2499
    %v2540 = vpack.c.b16 %v2504, %v2500
    %v2541 = vpack.c.b16 %v2505, %v2501
    %v2542 = vpack.c.b16 %v2506, %v2502
    %v2543 = vpack.c.b16 %v2511, %v2507
    %v2544 = vpack.c.b16 %v2512, %v2508
    %v2545 = vpack.c.b16 %v2513, %v2509
    %v2546 = vpack.c.b16 %v2514, %v2510
    %2579 = vmatprep.subr.bf16.mxu0 %v2516
    %2580 = vmatpush1.bf16.msra.mxu0 %v2515
    %2581 = vmatprep.subr.bf16.mxu0 %v2520
    %2582 = vmatpush1.bf16.msra.mxu0 %v2519
    %2583 = vmatprep.subr.bf16.mxu0 %v2524
    %2584 = vmatpush1.bf16.msra.mxu0 %v2523
    %2585 = vmatprep.subr.bf16.mxu0 %v2528
    %2586 = vmatpush1.bf16.msra.mxu0 %v2527
    %2587 = vmatprep.subr.bf16.mxu0 %v2532
    %2588 = vmatpush1.bf16.msra.mxu0 %v2531
    %2589 = vmatprep.subr.bf16.mxu0 %v2536
    %2590 = vmatpush1.bf16.msra.mxu0 %v2535
    %2591 = vmatprep.subr.bf16.mxu0 %v2540
    %2592 = vmatpush1.bf16.msra.mxu0 %v2539
    %2593 = vmatprep.subr.bf16.mxu0 %v2544
    %2594 = vmatpush1.bf16.msra.mxu0 %v2543
    %2595 = vmatprep.subr.bf16.mxu0 0
    %2596 = vmatpush1.bf16.msra.mxu0 0
    %2597 = vmatprep.subr.bf16.mxu0 0
    %2598 = vmatpush1.bf16.msra.mxu0 0
    %2599 = vmatprep.subr.bf16.mxu0 0
    %2600 = vmatpush1.bf16.msra.mxu0 0
    %2601 = vmatprep.subr.bf16.mxu0 0
    %2602 = vmatpush1.bf16.msra.mxu0 0
    %2603 = vmatprep.subr.bf16.mxu0 0
    %2604 = vmatpush1.bf16.msra.mxu0 0
    %2605 = vmatprep.subr.bf16.mxu0 0
    %2606 = vmatpush1.bf16.msra.mxu0 0
    %2607 = vmatprep.subr.bf16.mxu0 0
    %2608 = vmatpush1.bf16.msra.mxu0 0
    %2609 = vmatprep.subr.bf16.mxu0 0
    %2610 = vmatpush1.bf16.msra.mxu0 0
    %2611 = vmatprep.mubr.bf16.mxu0 0
    %2612 = vmatmul.mubr.bf16.gmra.mrb[0].mxu0 %v2418
    %v2613 = vpop.f32.mrb[0].mxu0
    %v2614 = vadd.f32 0.0, %v2613
    %v2615 = vpop.f32.mrb[0].mxu0
    %v2616 = vadd.f32 0.0, %v2615
    %v2617 = vpop.f32.mrb[0].mxu0
    %v2618 = vpop.f32.mrb[0].mxu0
    %2619 = vdwg.mxu0
    %2620 = vmatprep.subr.bf16.mxu0 %v2518
    %2621 = vmatpush1.bf16.msra.mxu0 %v2517
    %2622 = vmatprep.subr.bf16.mxu0 %v2522
    %2623 = vmatpush1.bf16.msra.mxu0 %v2521
    %2624 = vmatprep.subr.bf16.mxu0 %v2526
    %2625 = vmatpush1.bf16.msra.mxu0 %v2525
    %2626 = vmatprep.subr.bf16.mxu0 %v2530
    %2627 = vmatpush1.bf16.msra.mxu0 %v2529
    %2628 = vmatprep.subr.bf16.mxu0 %v2534
    %2629 = vmatpush1.bf16.msra.mxu0 %v2533
    %2630 = vmatprep.subr.bf16.mxu0 %v2538
    %2631 = vmatpush1.bf16.msra.mxu0 %v2537
    %2632 = vmatprep.subr.bf16.mxu0 %v2542
    %2633 = vmatpush1.bf16.msra.mxu0 %v2541
    %2634 = vmatprep.subr.bf16.mxu0 %v2546
    %2635 = vmatpush1.bf16.msra.mxu0 %v2545
    %2636 = vmatprep.subr.bf16.mxu0 0
    %2637 = vmatpush1.bf16.msra.mxu0 0
    %2638 = vmatprep.subr.bf16.mxu0 0
    %2639 = vmatpush1.bf16.msra.mxu0 0
    %2640 = vmatprep.subr.bf16.mxu0 0
    %2641 = vmatpush1.bf16.msra.mxu0 0
    %2642 = vmatprep.subr.bf16.mxu0 0
    %2643 = vmatpush1.bf16.msra.mxu0 0
    %2644 = vmatprep.subr.bf16.mxu0 0
    %2645 = vmatpush1.bf16.msra.mxu0 0
    %2646 = vmatprep.subr.bf16.mxu0 0
    %2647 = vmatpush1.bf16.msra.mxu0 0
    %2648 = vmatprep.subr.bf16.mxu0 0
    %2649 = vmatpush1.bf16.msra.mxu0 0
    %2650 = vmatprep.subr.bf16.mxu0 0
    %2651 = vmatpush1.bf16.msra.mxu0 0
    %2652 = vmatprep.mubr.bf16.mxu0 0
    %2653 = vmatmul.mubr.bf16.gmra.mrb[0].mxu0 %v2418
    %v2654 = vpop.f32.mrb[0].mxu0
    %v2655 = vadd.f32 0.0, %v2654
    %v2656 = vpop.f32.mrb[0].mxu0
    %v2657 = vadd.f32 0.0, %v2656
    %v2658 = vpop.f32.mrb[0].mxu0
    %v2659 = vpop.f32.mrb[0].mxu0
    %2660 = vdwg.mxu0
    %v2661 = vadd.f32 %v2414, %v2614
    %v2662 = vadd.f32 %v2415, %v2616
    %v2663 = vadd.f32 %v2416, %v2655
    %v2664 = vadd.f32 %v2417, %v2657
    %v2665 = vxor.u32 %v2661, 2147483648
    %v2666 = vmul.f32 %v2665, 1.442695
    %v2667 = vpow.pop %v2666
    %v2668 = vadd.f32 %v2667, 1.0
    %v2669 = vrcp.pop %v2668
    %v2670 = vmul.f32 1.0, %v2669
    %v2671 = vxor.u32 %v2662, 2147483648
    %v2672 = vmul.f32 %v2671, 1.442695
    %v2673 = vpow.pop %v2672
    %v2674 = vadd.f32 %v2673, 1.0
    %v2675 = vrcp.pop %v2674
    %v2676 = vmul.f32 1.0, %v2675
    %v2677 = vtanh.pop %v2663
    %v2678 = vxor.u32 %v2664, 2147483648
    %v2679 = vmul.f32 %v2678, 1.442695
    %v2680 = vpow.pop %v2679
    %v2681 = vadd.f32 %v2680, 1.0
    %v2682 = vrcp.pop %v2681
    %v2683 = vmul.f32 1.0, %v2682
    %v2684 = vmul.f32 %v2676, %v2381
    %v2685 = vmul.f32 %v2670, %v2677
    %v2686 = vadd.f32 %v2684, %v2685
    %v2687 = vtanh.pop %v2686
    %v2688 = vmul.f32 %v2683, %v2687
    %v2689 = vsel %vm2056, %v2688, %v2380
    %2690 = vst [vmem:[%s409] sm:$0xff] %v2689
    %v2691 = vld [vmem:[%s411] sm:$0xff]
    %v2692 = vsel %vm2056, %v2686, %v2691
    %2693 = vst [vmem:[%s411] sm:$0xff] %v2692
    %v2694 = vsel %vm2056, %v2688, 0.0
    %s2695 = scalar_lea.vmem %s59, 32
    %2696 = vst [vmem:[%s2695] sm:$0xff] %v2694
    %s2697 = sadd.s32 %s72, 4
    %s2698 = ssub.s32 3, %s72
    %v2699 = vstv %s2697
    %vm2700 = vcmp.lt.s32.totalorder %v2699, %v71
    %v2701 = vsel %vm2700, 1, 0
    %2702 = vset.pattern.permute.xlu0 0
    %2703 = vperm.xlu0 %2702, %v2701
    %v2704 = vpop.permute.xlu0 %2703
    %vm2705 = vcmp.eq.s32.totalorder %v2704, 1
    %v2706 = vstv %s2698
    %vm2707 = vcmp.lt.s32.totalorder %v2706, %v71
    %v2708 = vsel %vm2707, 1, 0
    %2709 = vset.pattern.permute.xlu0 0
    %2710 = vperm.xlu0 %2709, %v2708
    %v2711 = vpop.permute.xlu0 %2710
    %vm2712 = vcmp.eq.s32.totalorder %v2711, 1
    %s2713 = scalar_lea.vmem %s1, 64
    %v2714 = vld [vmem:[%s2713] sm:$0xff]
    %v2715 = vld [vmem:[%s2713 + $0x8] sm:$0xff]
    %v2716 = vld [vmem:[#allocation2] sm:$0xff]
    %v2717 = vld [vmem:[#allocation3] sm:$0xff]
    %v2718 = vld [vmem:[%s3] sm:$0xff]
    %v2719 = vld [vmem:[%s3 + $0x8] sm:$0xff]
    %v2720 = vld [vmem:[%s3 + $0x10] sm:$0xff]
    %v2721 = vld [vmem:[%s3 + $0x18] sm:$0xff]
    %v2722 = vld [vmem:[%s3 + $0x20] sm:$0xff]
    %v2723 = vld [vmem:[%s3 + $0x28] sm:$0xff]
    %v2724 = vld [vmem:[%s3 + $0x30] sm:$0xff]
    %v2725 = vld [vmem:[%s3 + $0x38] sm:$0xff]
    %v2726 = vld [vmem:[%s3 + $0x40] sm:$0xff]
    %v2727 = vld [vmem:[%s3 + $0x48] sm:$0xff]
    %v2728 = vld [vmem:[%s3 + $0x50] sm:$0xff]
    %v2729 = vld [vmem:[%s3 + $0x58] sm:$0xff]
    %v2730 = vld [vmem:[%s3 + $0x60] sm:$0xff]
    %v2731 = vld [vmem:[%s3 + $0x68] sm:$0xff]
    %v2732 = vld [vmem:[%s3 + $0x70] sm:$0xff]
    %v2733 = vld [vmem:[%s3 + $0x78] sm:$0xff]
    %v2734 = vld [vmem:[%s3 + $0x80] sm:$0xff]
    %v2735 = vld [vmem:[%s3 + $0x88] sm:$0xff]
    %v2736 = vld [vmem:[%s3 + $0x90] sm:$0xff]
    %v2737 = vld [vmem:[%s3 + $0x98] sm:$0xff]
    %v2738 = vld [vmem:[%s3 + $0xa0] sm:$0xff]
    %v2739 = vld [vmem:[%s3 + $0xa8] sm:$0xff]
    %v2740 = vld [vmem:[%s3 + $0xb0] sm:$0xff]
    %v2741 = vld [vmem:[%s3 + $0xb8] sm:$0xff]
    %v2742 = vld [vmem:[%s3 + $0xc0] sm:$0xff]
    %v2743 = vld [vmem:[%s3 + $0xc8] sm:$0xff]
    %v2744 = vld [vmem:[%s3 + $0xd0] sm:$0xff]
    %v2745 = vld [vmem:[%s3 + $0xd8] sm:$0xff]
    %v2746 = vld [vmem:[%s3 + $0xe0] sm:$0xff]
    %v2747 = vld [vmem:[%s3 + $0xe8] sm:$0xff]
    %v2748 = vld [vmem:[%s3 + $0xf0] sm:$0xff]
    %v2749 = vld [vmem:[%s3 + $0xf8] sm:$0xff]
    %v2750 = vunpack.c.l.bf16 %v2714
    %v2751 = vunpack.c.h.bf16 %v2714
    %v2752 = vunpack.c.l.bf16 %v2715
    %v2753 = vunpack.c.h.bf16 %v2715
    %v2754 = vpack.c.bf16 %v2716, %v2716
    %v2787 = vunpack.c.l.b16 %v2718
    %v2788 = vunpack.c.h.b16 %v2718
    %v2789 = vunpack.c.l.b16 %v2719
    %v2790 = vunpack.c.h.b16 %v2719
    %v2791 = vunpack.c.l.b16 %v2720
    %v2792 = vunpack.c.h.b16 %v2720
    %v2793 = vunpack.c.l.b16 %v2721
    %v2794 = vunpack.c.h.b16 %v2721
    %v2795 = vunpack.c.l.b16 %v2722
    %v2796 = vunpack.c.h.b16 %v2722
    %v2797 = vunpack.c.l.b16 %v2723
    %v2798 = vunpack.c.h.b16 %v2723
    %v2799 = vunpack.c.l.b16 %v2724
    %v2800 = vunpack.c.h.b16 %v2724
    %v2801 = vunpack.c.l.b16 %v2725
    %v2802 = vunpack.c.h.b16 %v2725
    %v2803 = vunpack.c.l.b16 %v2726
    %v2804 = vunpack.c.h.b16 %v2726
    %v2805 = vunpack.c.l.b16 %v2727
    %v2806 = vunpack.c.h.b16 %v2727
    %v2807 = vunpack.c.l.b16 %v2728
    %v2808 = vunpack.c.h.b16 %v2728
    %v2809 = vunpack.c.l.b16 %v2729
    %v2810 = vunpack.c.h.b16 %v2729
    %v2811 = vunpack.c.l.b16 %v2730
    %v2812 = vunpack.c.h.b16 %v2730
    %v2813 = vunpack.c.l.b16 %v2731
    %v2814 = vunpack.c.h.b16 %v2731
    %v2815 = vunpack.c.l.b16 %v2732
    %v2816 = vunpack.c.h.b16 %v2732
    %v2817 = vunpack.c.l.b16 %v2733
    %v2818 = vunpack.c.h.b16 %v2733
    %v2819 = vunpack.c.l.b16 %v2734
    %v2820 = vunpack.c.h.b16 %v2734
    %v2821 = vunpack.c.l.b16 %v2735
    %v2822 = vunpack.c.h.b16 %v2735
    %v2823 = vunpack.c.l.b16 %v2736
    %v2824 = vunpack.c.h.b16 %v2736
    %v2825 = vunpack.c.l.b16 %v2737
    %v2826 = vunpack.c.h.b16 %v2737
    %v2827 = vunpack.c.l.b16 %v2738
    %v2828 = vunpack.c.h.b16 %v2738
    %v2829 = vunpack.c.l.b16 %v2739
    %v2830 = vunpack.c.h.b16 %v2739
    %v2831 = vunpack.c.l.b16 %v2740
    %v2832 = vunpack.c.h.b16 %v2740
    %v2833 = vunpack.c.l.b16 %v2741
    %v2834 = vunpack.c.h.b16 %v2741
    %v2835 = vunpack.c.l.b16 %v2742
    %v2836 = vunpack.c.h.b16 %v2742
    %v2837 = vunpack.c.l.b16 %v2743
    %v2838 = vunpack.c.h.b16 %v2743
    %v2839 = vunpack.c.l.b16 %v2744
    %v2840 = vunpack.c.h.b16 %v2744
    %v2841 = vunpack.c.l.b16 %v2745
    %v2842 = vunpack.c.h.b16 %v2745
    %v2843 = vunpack.c.l.b16 %v2746
    %v2844 = vunpack.c.h.b16 %v2746
    %v2845 = vunpack.c.l.b16 %v2747
    %v2846 = vunpack.c.h.b16 %v2747
    %v2847 = vunpack.c.l.b16 %v2748
    %v2848 = vunpack.c.h.b16 %v2748
    %v2849 = vunpack.c.l.b16 %v2749
    %v2850 = vunpack.c.h.b16 %v2749
    %v2851 = vpack.c.b16 %v2791, %v2787
    %v2852 = vpack.c.b16 %v2792, %v2788
    %v2853 = vpack.c.b16 %v2793, %v2789
    %v2854 = vpack.c.b16 %v2794, %v2790
    %v2855 = vpack.c.b16 %v2799, %v2795
    %v2856 = vpack.c.b16 %v2800, %v2796
    %v2857 = vpack.c.b16 %v2801, %v2797
    %v2858 = vpack.c.b16 %v2802, %v2798
    %v2859 = vpack.c.b16 %v2807, %v2803
    %v2860 = vpack.c.b16 %v2808, %v2804
    %v2861 = vpack.c.b16 %v2809, %v2805
    %v2862 = vpack.c.b16 %v2810, %v2806
    %v2863 = vpack.c.b16 %v2815, %v2811
    %v2864 = vpack.c.b16 %v2816, %v2812
    %v2865 = vpack.c.b16 %v2817, %v2813
    %v2866 = vpack.c.b16 %v2818, %v2814
    %v2867 = vpack.c.b16 %v2823, %v2819
    %v2868 = vpack.c.b16 %v2824, %v2820
    %v2869 = vpack.c.b16 %v2825, %v2821
    %v2870 = vpack.c.b16 %v2826, %v2822
    %v2871 = vpack.c.b16 %v2831, %v2827
    %v2872 = vpack.c.b16 %v2832, %v2828
    %v2873 = vpack.c.b16 %v2833, %v2829
    %v2874 = vpack.c.b16 %v2834, %v2830
    %v2875 = vpack.c.b16 %v2839, %v2835
    %v2876 = vpack.c.b16 %v2840, %v2836
    %v2877 = vpack.c.b16 %v2841, %v2837
    %v2878 = vpack.c.b16 %v2842, %v2838
    %v2879 = vpack.c.b16 %v2847, %v2843
    %v2880 = vpack.c.b16 %v2848, %v2844
    %v2881 = vpack.c.b16 %v2849, %v2845
    %v2882 = vpack.c.b16 %v2850, %v2846
    %2915 = vmatprep.subr.bf16.mxu0 %v2852
    %2916 = vmatpush1.bf16.msra.mxu0 %v2851
    %2917 = vmatprep.subr.bf16.mxu0 %v2856
    %2918 = vmatpush1.bf16.msra.mxu0 %v2855
    %2919 = vmatprep.subr.bf16.mxu0 %v2860
    %2920 = vmatpush1.bf16.msra.mxu0 %v2859
    %2921 = vmatprep.subr.bf16.mxu0 %v2864
    %2922 = vmatpush1.bf16.msra.mxu0 %v2863
    %2923 = vmatprep.subr.bf16.mxu0 %v2868
    %2924 = vmatpush1.bf16.msra.mxu0 %v2867
    %2925 = vmatprep.subr.bf16.mxu0 %v2872
    %2926 = vmatpush1.bf16.msra.mxu0 %v2871
    %2927 = vmatprep.subr.bf16.mxu0 %v2876
    %2928 = vmatpush1.bf16.msra.mxu0 %v2875
    %2929 = vmatprep.subr.bf16.mxu0 %v2880
    %2930 = vmatpush1.bf16.msra.mxu0 %v2879
    %2931 = vmatprep.subr.bf16.mxu0 0
    %2932 = vmatpush1.bf16.msra.mxu0 0
    %2933 = vmatprep.subr.bf16.mxu0 0
    %2934 = vmatpush1.bf16.msra.mxu0 0
    %2935 = vmatprep.subr.bf16.mxu0 0
    %2936 = vmatpush1.bf16.msra.mxu0 0
    %2937 = vmatprep.subr.bf16.mxu0 0
    %2938 = vmatpush1.bf16.msra.mxu0 0
    %2939 = vmatprep.subr.bf16.mxu0 0
    %2940 = vmatpush1.bf16.msra.mxu0 0
    %2941 = vmatprep.subr.bf16.mxu0 0
    %2942 = vmatpush1.bf16.msra.mxu0 0
    %2943 = vmatprep.subr.bf16.mxu0 0
    %2944 = vmatpush1.bf16.msra.mxu0 0
    %2945 = vmatprep.subr.bf16.mxu0 0
    %2946 = vmatpush1.bf16.msra.mxu0 0
    %2947 = vmatprep.mubr.bf16.mxu0 0
    %2948 = vmatmul.mubr.bf16.gmra.mrb[0].mxu0 %v2754
    %v2949 = vpop.f32.mrb[0].mxu0
    %v2950 = vadd.f32 0.0, %v2949
    %v2951 = vpop.f32.mrb[0].mxu0
    %v2952 = vadd.f32 0.0, %v2951
    %v2953 = vpop.f32.mrb[0].mxu0
    %v2954 = vpop.f32.mrb[0].mxu0
    %2955 = vdwg.mxu0
    %2956 = vmatprep.subr.bf16.mxu0 %v2854
    %2957 = vmatpush1.bf16.msra.mxu0 %v2853
    %2958 = vmatprep.subr.bf16.mxu0 %v2858
    %2959 = vmatpush1.bf16.msra.mxu0 %v2857
    %2960 = vmatprep.subr.bf16.mxu0 %v2862
    %2961 = vmatpush1.bf16.msra.mxu0 %v2861
    %2962 = vmatprep.subr.bf16.mxu0 %v2866
    %2963 = vmatpush1.bf16.msra.mxu0 %v2865
    %2964 = vmatprep.subr.bf16.mxu0 %v2870
    %2965 = vmatpush1.bf16.msra.mxu0 %v2869
    %2966 = vmatprep.subr.bf16.mxu0 %v2874
    %2967 = vmatpush1.bf16.msra.mxu0 %v2873
    %2968 = vmatprep.subr.bf16.mxu0 %v2878
    %2969 = vmatpush1.bf16.msra.mxu0 %v2877
    %2970 = vmatprep.subr.bf16.mxu0 %v2882
    %2971 = vmatpush1.bf16.msra.mxu0 %v2881
    %2972 = vmatprep.subr.bf16.mxu0 0
    %2973 = vmatpush1.bf16.msra.mxu0 0
    %2974 = vmatprep.subr.bf16.mxu0 0
    %2975 = vmatpush1.bf16.msra.mxu0 0
    %2976 = vmatprep.subr.bf16.mxu0 0
    %2977 = vmatpush1.bf16.msra.mxu0 0
    %2978 = vmatprep.subr.bf16.mxu0 0
    %2979 = vmatpush1.bf16.msra.mxu0 0
    %2980 = vmatprep.subr.bf16.mxu0 0
    %2981 = vmatpush1.bf16.msra.mxu0 0
    %2982 = vmatprep.subr.bf16.mxu0 0
    %2983 = vmatpush1.bf16.msra.mxu0 0
    %2984 = vmatprep.subr.bf16.mxu0 0
    %2985 = vmatpush1.bf16.msra.mxu0 0
    %2986 = vmatprep.subr.bf16.mxu0 0
    %2987 = vmatpush1.bf16.msra.mxu0 0
    %2988 = vmatprep.mubr.bf16.mxu0 0
    %2989 = vmatmul.mubr.bf16.gmra.mrb[0].mxu0 %v2754
    %v2990 = vpop.f32.mrb[0].mxu0
    %v2991 = vadd.f32 0.0, %v2990
    %v2992 = vpop.f32.mrb[0].mxu0
    %v2993 = vadd.f32 0.0, %v2992
    %v2994 = vpop.f32.mrb[0].mxu0
    %v2995 = vpop.f32.mrb[0].mxu0
    %2996 = vdwg.mxu0
    %v2997 = vadd.f32 %v2750, %v2950
    %v2998 = vadd.f32 %v2751, %v2952
    %v2999 = vadd.f32 %v2752, %v2991
    %v3000 = vadd.f32 %v2753, %v2993
    %v3001 = vxor.u32 %v2997, 2147483648
    %v3002 = vmul.f32 %v3001, 1.442695
    %v3003 = vpow.pop %v3002
    %v3004 = vadd.f32 %v3003, 1.0
    %v3005 = vrcp.pop %v3004
    %v3006 = vmul.f32 1.0, %v3005
    %v3007 = vxor.u32 %v2998, 2147483648
    %v3008 = vmul.f32 %v3007, 1.442695
    %v3009 = vpow.pop %v3008
    %v3010 = vadd.f32 %v3009, 1.0
    %v3011 = vrcp.pop %v3010
    %v3012 = vmul.f32 1.0, %v3011
    %v3013 = vtanh.pop %v2999
    %v3014 = vxor.u32 %v3000, 2147483648
    %v3015 = vmul.f32 %v3014, 1.442695
    %v3016 = vpow.pop %v3015
    %v3017 = vadd.f32 %v3016, 1.0
    %v3018 = vrcp.pop %v3017
    %v3019 = vmul.f32 1.0, %v3018
    %v3020 = vmul.f32 %v3012, %v2717
    %v3021 = vmul.f32 %v3006, %v3013
    %v3022 = vadd.f32 %v3020, %v3021
    %v3023 = vtanh.pop %v3022
    %v3024 = vmul.f32 %v3019, %v3023
    %v3025 = vsel %vm2705, %v3024, %v2716
    %3026 = vst [vmem:[#allocation2] sm:$0xff] %v3025
    %v3027 = vld [vmem:[#allocation3] sm:$0xff]
    %v3028 = vsel %vm2705, %v3022, %v3027
    %3029 = vst [vmem:[#allocation3] sm:$0xff] %v3028
    %v3030 = vsel %vm2705, %v3024, 0.0
    %s3031 = scalar_lea.vmem %s4, 32
    %3032 = vst [vmem:[%s3031] sm:$0xff] %v3030
    %s3033 = scalar_lea.vmem %s51, 48
    %v3034 = vld [vmem:[%s3033] sm:$0xff]
    %v3035 = vld [vmem:[%s3033 + $0x8] sm:$0xff]
    %v3036 = vld [vmem:[%s409] sm:$0xff]
    %v3037 = vld [vmem:[%s411] sm:$0xff]
    %v3038 = vld [vmem:[%s413] sm:$0xff]
    %v3039 = vld [vmem:[%s413 + $0x8] sm:$0xff]
    %v3040 = vld [vmem:[%s413 + $0x10] sm:$0xff]
    %v3041 = vld [vmem:[%s413 + $0x18] sm:$0xff]
    %v3042 = vld [vmem:[%s413 + $0x20] sm:$0xff]
    %v3043 = vld [vmem:[%s413 + $0x28] sm:$0xff]
    %v3044 = vld [vmem:[%s413 + $0x30] sm:$0xff]
    %v3045 = vld [vmem:[%s413 + $0x38] sm:$0xff]
    %v3046 = vld [vmem:[%s413 + $0x40] sm:$0xff]
    %v3047 = vld [vmem:[%s413 + $0x48] sm:$0xff]
    %v3048 = vld [vmem:[%s413 + $0x50] sm:$0xff]
    %v3049 = vld [vmem:[%s413 + $0x58] sm:$0xff]
    %v3050 = vld [vmem:[%s413 + $0x60] sm:$0xff]
    %v3051 = vld [vmem:[%s413 + $0x68] sm:$0xff]
    %v3052 = vld [vmem:[%s413 + $0x70] sm:$0xff]
    %v3053 = vld [vmem:[%s413 + $0x78] sm:$0xff]
    %v3054 = vld [vmem:[%s413 + $0x80] sm:$0xff]
    %v3055 = vld [vmem:[%s413 + $0x88] sm:$0xff]
    %v3056 = vld [vmem:[%s413 + $0x90] sm:$0xff]
    %v3057 = vld [vmem:[%s413 + $0x98] sm:$0xff]
    %v3058 = vld [vmem:[%s413 + $0xa0] sm:$0xff]
    %v3059 = vld [vmem:[%s413 + $0xa8] sm:$0xff]
    %v3060 = vld [vmem:[%s413 + $0xb0] sm:$0xff]
    %v3061 = vld [vmem:[%s413 + $0xb8] sm:$0xff]
    %v3062 = vld [vmem:[%s413 + $0xc0] sm:$0xff]
    %v3063 = vld [vmem:[%s413 + $0xc8] sm:$0xff]
    %v3064 = vld [vmem:[%s413 + $0xd0] sm:$0xff]
    %v3065 = vld [vmem:[%s413 + $0xd8] sm:$0xff]
    %v3066 = vld [vmem:[%s413 + $0xe0] sm:$0xff]
    %v3067 = vld [vmem:[%s413 + $0xe8] sm:$0xff]
    %v3068 = vld [vmem:[%s413 + $0xf0] sm:$0xff]
    %v3069 = vld [vmem:[%s413 + $0xf8] sm:$0xff]
    %v3070 = vunpack.c.l.bf16 %v3034
    %v3071 = vunpack.c.h.bf16 %v3034
    %v3072 = vunpack.c.l.bf16 %v3035
    %v3073 = vunpack.c.h.bf16 %v3035
    %v3074 = vpack.c.bf16 %v3036, %v3036
    %v3107 = vunpack.c.l.b16 %v3038
    %v3108 = vunpack.c.h.b16 %v3038
    %v3109 = vunpack.c.l.b16 %v3039
    %v3110 = vunpack.c.h.b16 %v3039
    %v3111 = vunpack.c.l.b16 %v3040
    %v3112 = vunpack.c.h.b16 %v3040
    %v3113 = vunpack.c.l.b16 %v3041
    %v3114 = vunpack.c.h.b16 %v3041
    %v3115 = vunpack.c.l.b16 %v3042
    %v3116 = vunpack.c.h.b16 %v3042
    %v3117 = vunpack.c.l.b16 %v3043
    %v3118 = vunpack.c.h.b16 %v3043
    %v3119 = vunpack.c.l.b16 %v3044
    %v3120 = vunpack.c.h.b16 %v3044
    %v3121 = vunpack.c.l.b16 %v3045
    %v3122 = vunpack.c.h.b16 %v3045
    %v3123 = vunpack.c.l.b16 %v3046
    %v3124 = vunpack.c.h.b16 %v3046
    %v3125 = vunpack.c.l.b16 %v3047
    %v3126 = vunpack.c.h.b16 %v3047
    %v3127 = vunpack.c.l.b16 %v3048
    %v3128 = vunpack.c.h.b16 %v3048
    %v3129 = vunpack.c.l.b16 %v3049
    %v3130 = vunpack.c.h.b16 %v3049
    %v3131 = vunpack.c.l.b16 %v3050
    %v3132 = vunpack.c.h.b16 %v3050
    %v3133 = vunpack.c.l.b16 %v3051
    %v3134 = vunpack.c.h.b16 %v3051
    %v3135 = vunpack.c.l.b16 %v3052
    %v3136 = vunpack.c.h.b16 %v3052
    %v3137 = vunpack.c.l.b16 %v3053
    %v3138 = vunpack.c.h.b16 %v3053
    %v3139 = vunpack.c.l.b16 %v3054
    %v3140 = vunpack.c.h.b16 %v3054
    %v3141 = vunpack.c.l.b16 %v3055
    %v3142 = vunpack.c.h.b16 %v3055
    %v3143 = vunpack.c.l.b16 %v3056
    %v3144 = vunpack.c.h.b16 %v3056
    %v3145 = vunpack.c.l.b16 %v3057
    %v3146 = vunpack.c.h.b16 %v3057
    %v3147 = vunpack.c.l.b16 %v3058
    %v3148 = vunpack.c.h.b16 %v3058
    %v3149 = vunpack.c.l.b16 %v3059
    %v3150 = vunpack.c.h.b16 %v3059
    %v3151 = vunpack.c.l.b16 %v3060
    %v3152 = vunpack.c.h.b16 %v3060
    %v3153 = vunpack.c.l.b16 %v3061
    %v3154 = vunpack.c.h.b16 %v3061
    %v3155 = vunpack.c.l.b16 %v3062
    %v3156 = vunpack.c.h.b16 %v3062
    %v3157 = vunpack.c.l.b16 %v3063
    %v3158 = vunpack.c.h.b16 %v3063
    %v3159 = vunpack.c.l.b16 %v3064
    %v3160 = vunpack.c.h.b16 %v3064
    %v3161 = vunpack.c.l.b16 %v3065
    %v3162 = vunpack.c.h.b16 %v3065
    %v3163 = vunpack.c.l.b16 %v3066
    %v3164 = vunpack.c.h.b16 %v3066
    %v3165 = vunpack.c.l.b16 %v3067
    %v3166 = vunpack.c.h.b16 %v3067
    %v3167 = vunpack.c.l.b16 %v3068
    %v3168 = vunpack.c.h.b16 %v3068
    %v3169 = vunpack.c.l.b16 %v3069
    %v3170 = vunpack.c.h.b16 %v3069
    %v3171 = vpack.c.b16 %v3111, %v3107
    %v3172 = vpack.c.b16 %v3112, %v3108
    %v3173 = vpack.c.b16 %v3113, %v3109
    %v3174 = vpack.c.b16 %v3114, %v3110
    %v3175 = vpack.c.b16 %v3119, %v3115
    %v3176 = vpack.c.b16 %v3120, %v3116
    %v3177 = vpack.c.b16 %v3121, %v3117
    %v3178 = vpack.c.b16 %v3122, %v3118
    %v3179 = vpack.c.b16 %v3127, %v3123
    %v3180 = vpack.c.b16 %v3128, %v3124
    %v3181 = vpack.c.b16 %v3129, %v3125
    %v3182 = vpack.c.b16 %v3130, %v3126
    %v3183 = vpack.c.b16 %v3135, %v3131
    %v3184 = vpack.c.b16 %v3136, %v3132
    %v3185 = vpack.c.b16 %v3137, %v3133
    %v3186 = vpack.c.b16 %v3138, %v3134
    %v3187 = vpack.c.b16 %v3143, %v3139
    %v3188 = vpack.c.b16 %v3144, %v3140
    %v3189 = vpack.c.b16 %v3145, %v3141
    %v3190 = vpack.c.b16 %v3146, %v3142
    %v3191 = vpack.c.b16 %v3151, %v3147
    %v3192 = vpack.c.b16 %v3152, %v3148
    %v3193 = vpack.c.b16 %v3153, %v3149
    %v3194 = vpack.c.b16 %v3154, %v3150
    %v3195 = vpack.c.b16 %v3159, %v3155
    %v3196 = vpack.c.b16 %v3160, %v3156
    %v3197 = vpack.c.b16 %v3161, %v3157
    %v3198 = vpack.c.b16 %v3162, %v3158
    %v3199 = vpack.c.b16 %v3167, %v3163
    %v3200 = vpack.c.b16 %v3168, %v3164
    %v3201 = vpack.c.b16 %v3169, %v3165
    %v3202 = vpack.c.b16 %v3170, %v3166
    %3235 = vmatprep.subr.bf16.mxu0 %v3172
    %3236 = vmatpush1.bf16.msra.mxu0 %v3171
    %3237 = vmatprep.subr.bf16.mxu0 %v3176
    %3238 = vmatpush1.bf16.msra.mxu0 %v3175
    %3239 = vmatprep.subr.bf16.mxu0 %v3180
    %3240 = vmatpush1.bf16.msra.mxu0 %v3179
    %3241 = vmatprep.subr.bf16.mxu0 %v3184
    %3242 = vmatpush1.bf16.msra.mxu0 %v3183
    %3243 = vmatprep.subr.bf16.mxu0 %v3188
    %3244 = vmatpush1.bf16.msra.mxu0 %v3187
    %3245 = vmatprep.subr.bf16.mxu0 %v3192
    %3246 = vmatpush1.bf16.msra.mxu0 %v3191
    %3247 = vmatprep.subr.bf16.mxu0 %v3196
    %3248 = vmatpush1.bf16.msra.mxu0 %v3195
    %3249 = vmatprep.subr.bf16.mxu0 %v3200
    %3250 = vmatpush1.bf16.msra.mxu0 %v3199
    %3251 = vmatprep.subr.bf16.mxu0 0
    %3252 = vmatpush1.bf16.msra.mxu0 0
    %3253 = vmatprep.subr.bf16.mxu0 0
    %3254 = vmatpush1.bf16.msra.mxu0 0
    %3255 = vmatprep.subr.bf16.mxu0 0
    %3256 = vmatpush1.bf16.msra.mxu0 0
    %3257 = vmatprep.subr.bf16.mxu0 0
    %3258 = vmatpush1.bf16.msra.mxu0 0
    %3259 = vmatprep.subr.bf16.mxu0 0
    %3260 = vmatpush1.bf16.msra.mxu0 0
    %3261 = vmatprep.subr.bf16.mxu0 0
    %3262 = vmatpush1.bf16.msra.mxu0 0
    %3263 = vmatprep.subr.bf16.mxu0 0
    %3264 = vmatpush1.bf16.msra.mxu0 0
    %3265 = vmatprep.subr.bf16.mxu0 0
    %3266 = vmatpush1.bf16.msra.mxu0 0
    %3267 = vmatprep.mubr.bf16.mxu0 0
    %3268 = vmatmul.mubr.bf16.gmra.mrb[0].mxu0 %v3074
    %v3269 = vpop.f32.mrb[0].mxu0
    %v3270 = vadd.f32 0.0, %v3269
    %v3271 = vpop.f32.mrb[0].mxu0
    %v3272 = vadd.f32 0.0, %v3271
    %v3273 = vpop.f32.mrb[0].mxu0
    %v3274 = vpop.f32.mrb[0].mxu0
    %3275 = vdwg.mxu0
    %3276 = vmatprep.subr.bf16.mxu0 %v3174
    %3277 = vmatpush1.bf16.msra.mxu0 %v3173
    %3278 = vmatprep.subr.bf16.mxu0 %v3178
    %3279 = vmatpush1.bf16.msra.mxu0 %v3177
    %3280 = vmatprep.subr.bf16.mxu0 %v3182
    %3281 = vmatpush1.bf16.msra.mxu0 %v3181
    %3282 = vmatprep.subr.bf16.mxu0 %v3186
    %3283 = vmatpush1.bf16.msra.mxu0 %v3185
    %3284 = vmatprep.subr.bf16.mxu0 %v3190
    %3285 = vmatpush1.bf16.msra.mxu0 %v3189
    %3286 = vmatprep.subr.bf16.mxu0 %v3194
    %3287 = vmatpush1.bf16.msra.mxu0 %v3193
    %3288 = vmatprep.subr.bf16.mxu0 %v3198
    %3289 = vmatpush1.bf16.msra.mxu0 %v3197
    %3290 = vmatprep.subr.bf16.mxu0 %v3202
    %3291 = vmatpush1.bf16.msra.mxu0 %v3201
    %3292 = vmatprep.subr.bf16.mxu0 0
    %3293 = vmatpush1.bf16.msra.mxu0 0
    %3294 = vmatprep.subr.bf16.mxu0 0
    %3295 = vmatpush1.bf16.msra.mxu0 0
    %3296 = vmatprep.subr.bf16.mxu0 0
    %3297 = vmatpush1.bf16.msra.mxu0 0
    %3298 = vmatprep.subr.bf16.mxu0 0
    %3299 = vmatpush1.bf16.msra.mxu0 0
    %3300 = vmatprep.subr.bf16.mxu0 0
    %3301 = vmatpush1.bf16.msra.mxu0 0
    %3302 = vmatprep.subr.bf16.mxu0 0
    %3303 = vmatpush1.bf16.msra.mxu0 0
    %3304 = vmatprep.subr.bf16.mxu0 0
    %3305 = vmatpush1.bf16.msra.mxu0 0
    %3306 = vmatprep.subr.bf16.mxu0 0
    %3307 = vmatpush1.bf16.msra.mxu0 0
    %3308 = vmatprep.mubr.bf16.mxu0 0
    %3309 = vmatmul.mubr.bf16.gmra.mrb[0].mxu0 %v3074
    %v3310 = vpop.f32.mrb[0].mxu0
    %v3311 = vadd.f32 0.0, %v3310
    %v3312 = vpop.f32.mrb[0].mxu0
    %v3313 = vadd.f32 0.0, %v3312
    %v3314 = vpop.f32.mrb[0].mxu0
    %v3315 = vpop.f32.mrb[0].mxu0
    %3316 = vdwg.mxu0
    %v3317 = vadd.f32 %v3070, %v3270
    %v3318 = vadd.f32 %v3071, %v3272
    %v3319 = vadd.f32 %v3072, %v3311
    %v3320 = vadd.f32 %v3073, %v3313
    %v3321 = vxor.u32 %v3317, 2147483648
    %v3322 = vmul.f32 %v3321, 1.442695
    %v3323 = vpow.pop %v3322
    %v3324 = vadd.f32 %v3323, 1.0
    %v3325 = vrcp.pop %v3324
    %v3326 = vmul.f32 1.0, %v3325
    %v3327 = vxor.u32 %v3318, 2147483648
    %v3328 = vmul.f32 %v3327, 1.442695
    %v3329 = vpow.pop %v3328
    %v3330 = vadd.f32 %v3329, 1.0
    %v3331 = vrcp.pop %v3330
    %v3332 = vmul.f32 1.0, %v3331
    %v3333 = vtanh.pop %v3319
    %v3334 = vxor.u32 %v3320, 2147483648
    %v3335 = vmul.f32 %v3334, 1.442695
    %v3336 = vpow.pop %v3335
    %v3337 = vadd.f32 %v3336, 1.0
    %v3338 = vrcp.pop %v3337
    %v3339 = vmul.f32 1.0, %v3338
    %v3340 = vmul.f32 %v3332, %v3037
    %v3341 = vmul.f32 %v3326, %v3333
    %v3342 = vadd.f32 %v3340, %v3341
    %v3343 = vtanh.pop %v3342
    %v3344 = vmul.f32 %v3339, %v3343
    %v3345 = vsel %vm2712, %v3344, %v3036
    %3346 = vst [vmem:[%s409] sm:$0xff] %v3345
    %v3347 = vld [vmem:[%s411] sm:$0xff]
    %v3348 = vsel %vm2712, %v3342, %v3347
    %3349 = vst [vmem:[%s411] sm:$0xff] %v3348
    %v3350 = vsel %vm2712, %v3344, 0.0
    %s3351 = scalar_lea.vmem %s59, 24
    %3352 = vst [vmem:[%s3351] sm:$0xff] %v3350
    %s3353 = sadd.s32 %s72, 5
    %s3354 = ssub.s32 2, %s72
    %v3355 = vstv %s3353
    %vm3356 = vcmp.lt.s32.totalorder %v3355, %v71
    %v3357 = vsel %vm3356, 1, 0
    %3358 = vset.pattern.permute.xlu0 0
    %3359 = vperm.xlu0 %3358, %v3357
    %v3360 = vpop.permute.xlu0 %3359
    %vm3361 = vcmp.eq.s32.totalorder %v3360, 1
    %v3362 = vstv %s3354
    %vm3363 = vcmp.lt.s32.totalorder %v3362, %v71
    %v3364 = vsel %vm3363, 1, 0
    %3365 = vset.pattern.permute.xlu0 0
    %3366 = vperm.xlu0 %3365, %v3364
    %v3367 = vpop.permute.xlu0 %3366
    %vm3368 = vcmp.eq.s32.totalorder %v3367, 1
    %s3369 = scalar_lea.vmem %s1, 80
    %v3370 = vld [vmem:[%s3369] sm:$0xff]
    %v3371 = vld [vmem:[%s3369 + $0x8] sm:$0xff]
    %v3372 = vld [vmem:[#allocation2] sm:$0xff]
    %v3373 = vld [vmem:[#allocation3] sm:$0xff]
    %v3374 = vld [vmem:[%s3] sm:$0xff]
    %v3375 = vld [vmem:[%s3 + $0x8] sm:$0xff]
    %v3376 = vld [vmem:[%s3 + $0x10] sm:$0xff]
    %v3377 = vld [vmem:[%s3 + $0x18] sm:$0xff]
    %v3378 = vld [vmem:[%s3 + $0x20] sm:$0xff]
    %v3379 = vld [vmem:[%s3 + $0x28] sm:$0xff]
    %v3380 = vld [vmem:[%s3 + $0x30] sm:$0xff]
    %v3381 = vld [vmem:[%s3 + $0x38] sm:$0xff]
    %v3382 = vld [vmem:[%s3 + $0x40] sm:$0xff]
    %v3383 = vld [vmem:[%s3 + $0x48] sm:$0xff]
    %v3384 = vld [vmem:[%s3 + $0x50] sm:$0xff]
    %v3385 = vld [vmem:[%s3 + $0x58] sm:$0xff]
    %v3386 = vld [vmem:[%s3 + $0x60] sm:$0xff]
    %v3387 = vld [vmem:[%s3 + $0x68] sm:$0xff]
    %v3388 = vld [vmem:[%s3 + $0x70] sm:$0xff]
    %v3389 = vld [vmem:[%s3 + $0x78] sm:$0xff]
    %v3390 = vld [vmem:[%s3 + $0x80] sm:$0xff]
    %v3391 = vld [vmem:[%s3 + $0x88] sm:$0xff]
    %v3392 = vld [vmem:[%s3 + $0x90] sm:$0xff]
    %v3393 = vld [vmem:[%s3 + $0x98] sm:$0xff]
    %v3394 = vld [vmem:[%s3 + $0xa0] sm:$0xff]
    %v3395 = vld [vmem:[%s3 + $0xa8] sm:$0xff]
    %v3396 = vld [vmem:[%s3 + $0xb0] sm:$0xff]
    %v3397 = vld [vmem:[%s3 + $0xb8] sm:$0xff]
    %v3398 = vld [vmem:[%s3 + $0xc0] sm:$0xff]
    %v3399 = vld [vmem:[%s3 + $0xc8] sm:$0xff]
    %v3400 = vld [vmem:[%s3 + $0xd0] sm:$0xff]
    %v3401 = vld [vmem:[%s3 + $0xd8] sm:$0xff]
    %v3402 = vld [vmem:[%s3 + $0xe0] sm:$0xff]
    %v3403 = vld [vmem:[%s3 + $0xe8] sm:$0xff]
    %v3404 = vld [vmem:[%s3 + $0xf0] sm:$0xff]
    %v3405 = vld [vmem:[%s3 + $0xf8] sm:$0xff]
    %v3406 = vunpack.c.l.bf16 %v3370
    %v3407 = vunpack.c.h.bf16 %v3370
    %v3408 = vunpack.c.l.bf16 %v3371
    %v3409 = vunpack.c.h.bf16 %v3371
    %v3410 = vpack.c.bf16 %v3372, %v3372
    %v3443 = vunpack.c.l.b16 %v3374
    %v3444 = vunpack.c.h.b16 %v3374
    %v3445 = vunpack.c.l.b16 %v3375
    %v3446 = vunpack.c.h.b16 %v3375
    %v3447 = vunpack.c.l.b16 %v3376
    %v3448 = vunpack.c.h.b16 %v3376
    %v3449 = vunpack.c.l.b16 %v3377
    %v3450 = vunpack.c.h.b16 %v3377
    %v3451 = vunpack.c.l.b16 %v3378
    %v3452 = vunpack.c.h.b16 %v3378
    %v3453 = vunpack.c.l.b16 %v3379
    %v3454 = vunpack.c.h.b16 %v3379
    %v3455 = vunpack.c.l.b16 %v3380
    %v3456 = vunpack.c.h.b16 %v3380
    %v3457 = vunpack.c.l.b16 %v3381
    %v3458 = vunpack.c.h.b16 %v3381
    %v3459 = vunpack.c.l.b16 %v3382
    %v3460 = vunpack.c.h.b16 %v3382
    %v3461 = vunpack.c.l.b16 %v3383
    %v3462 = vunpack.c.h.b16 %v3383
    %v3463 = vunpack.c.l.b16 %v3384
    %v3464 = vunpack.c.h.b16 %v3384
    %v3465 = vunpack.c.l.b16 %v3385
    %v3466 = vunpack.c.h.b16 %v3385
    %v3467 = vunpack.c.l.b16 %v3386
    %v3468 = vunpack.c.h.b16 %v3386
    %v3469 = vunpack.c.l.b16 %v3387
    %v3470 = vunpack.c.h.b16 %v3387
    %v3471 = vunpack.c.l.b16 %v3388
    %v3472 = vunpack.c.h.b16 %v3388
    %v3473 = vunpack.c.l.b16 %v3389
    %v3474 = vunpack.c.h.b16 %v3389
    %v3475 = vunpack.c.l.b16 %v3390
    %v3476 = vunpack.c.h.b16 %v3390
    %v3477 = vunpack.c.l.b16 %v3391
    %v3478 = vunpack.c.h.b16 %v3391
    %v3479 = vunpack.c.l.b16 %v3392
    %v3480 = vunpack.c.h.b16 %v3392
    %v3481 = vunpack.c.l.b16 %v3393
    %v3482 = vunpack.c.h.b16 %v3393
    %v3483 = vunpack.c.l.b16 %v3394
    %v3484 = vunpack.c.h.b16 %v3394
    %v3485 = vunpack.c.l.b16 %v3395
    %v3486 = vunpack.c.h.b16 %v3395
    %v3487 = vunpack.c.l.b16 %v3396
    %v3488 = vunpack.c.h.b16 %v3396
    %v3489 = vunpack.c.l.b16 %v3397
    %v3490 = vunpack.c.h.b16 %v3397
    %v3491 = vunpack.c.l.b16 %v3398
    %v3492 = vunpack.c.h.b16 %v3398
    %v3493 = vunpack.c.l.b16 %v3399
    %v3494 = vunpack.c.h.b16 %v3399
    %v3495 = vunpack.c.l.b16 %v3400
    %v3496 = vunpack.c.h.b16 %v3400
    %v3497 = vunpack.c.l.b16 %v3401
    %v3498 = vunpack.c.h.b16 %v3401
    %v3499 = vunpack.c.l.b16 %v3402
    %v3500 = vunpack.c.h.b16 %v3402
    %v3501 = vunpack.c.l.b16 %v3403
    %v3502 = vunpack.c.h.b16 %v3403
    %v3503 = vunpack.c.l.b16 %v3404
    %v3504 = vunpack.c.h.b16 %v3404
    %v3505 = vunpack.c.l.b16 %v3405
    %v3506 = vunpack.c.h.b16 %v3405
    %v3507 = vpack.c.b16 %v3447, %v3443
    %v3508 = vpack.c.b16 %v3448, %v3444
    %v3509 = vpack.c.b16 %v3449, %v3445
    %v3510 = vpack.c.b16 %v3450, %v3446
    %v3511 = vpack.c.b16 %v3455, %v3451
    %v3512 = vpack.c.b16 %v3456, %v3452
    %v3513 = vpack.c.b16 %v3457, %v3453
    %v3514 = vpack.c.b16 %v3458, %v3454
    %v3515 = vpack.c.b16 %v3463, %v3459
    %v3516 = vpack.c.b16 %v3464, %v3460
    %v3517 = vpack.c.b16 %v3465, %v3461
    %v3518 = vpack.c.b16 %v3466, %v3462
    %v3519 = vpack.c.b16 %v3471, %v3467
    %v3520 = vpack.c.b16 %v3472, %v3468
    %v3521 = vpack.c.b16 %v3473, %v3469
    %v3522 = vpack.c.b16 %v3474, %v3470
    %v3523 = vpack.c.b16 %v3479, %v3475
    %v3524 = vpack.c.b16 %v3480, %v3476
    %v3525 = vpack.c.b16 %v3481, %v3477
    %v3526 = vpack.c.b16 %v3482, %v3478
    %v3527 = vpack.c.b16 %v3487, %v3483
    %v3528 = vpack.c.b16 %v3488, %v3484
    %v3529 = vpack.c.b16 %v3489, %v3485
    %v3530 = vpack.c.b16 %v3490, %v3486
    %v3531 = vpack.c.b16 %v3495, %v3491
    %v3532 = vpack.c.b16 %v3496, %v3492
    %v3533 = vpack.c.b16 %v3497, %v3493
    %v3534 = vpack.c.b16 %v3498, %v3494
    %v3535 = vpack.c.b16 %v3503, %v3499
    %v3536 = vpack.c.b16 %v3504, %v3500
    %v3537 = vpack.c.b16 %v3505, %v3501
    %v3538 = vpack.c.b16 %v3506, %v3502
    %3571 = vmatprep.subr.bf16.mxu0 %v3508
    %3572 = vmatpush1.bf16.msra.mxu0 %v3507
    %3573 = vmatprep.subr.bf16.mxu0 %v3512
    %3574 = vmatpush1.bf16.msra.mxu0 %v3511
    %3575 = vmatprep.subr.bf16.mxu0 %v3516
    %3576 = vmatpush1.bf16.msra.mxu0 %v3515
    %3577 = vmatprep.subr.bf16.mxu0 %v3520
    %3578 = vmatpush1.bf16.msra.mxu0 %v3519
    %3579 = vmatprep.subr.bf16.mxu0 %v3524
    %3580 = vmatpush1.bf16.msra.mxu0 %v3523
    %3581 = vmatprep.subr.bf16.mxu0 %v3528
    %3582 = vmatpush1.bf16.msra.mxu0 %v3527
    %3583 = vmatprep.subr.bf16.mxu0 %v3532
    %3584 = vmatpush1.bf16.msra.mxu0 %v3531
    %3585 = vmatprep.subr.bf16.mxu0 %v3536
    %3586 = vmatpush1.bf16.msra.mxu0 %v3535
    %3587 = vmatprep.subr.bf16.mxu0 0
    %3588 = vmatpush1.bf16.msra.mxu0 0
    %3589 = vmatprep.subr.bf16.mxu0 0
    %3590 = vmatpush1.bf16.msra.mxu0 0
    %3591 = vmatprep.subr.bf16.mxu0 0
    %3592 = vmatpush1.bf16.msra.mxu0 0
    %3593 = vmatprep.subr.bf16.mxu0 0
    %3594 = vmatpush1.bf16.msra.mxu0 0
    %3595 = vmatprep.subr.bf16.mxu0 0
    %3596 = vmatpush1.bf16.msra.mxu0 0
    %3597 = vmatprep.subr.bf16.mxu0 0
    %3598 = vmatpush1.bf16.msra.mxu0 0
    %3599 = vmatprep.subr.bf16.mxu0 0
    %3600 = vmatpush1.bf16.msra.mxu0 0
    %3601 = vmatprep.subr.bf16.mxu0 0
    %3602 = vmatpush1.bf16.msra.mxu0 0
    %3603 = vmatprep.mubr.bf16.mxu0 0
    %3604 = vmatmul.mubr.bf16.gmra.mrb[0].mxu0 %v3410
    %v3605 = vpop.f32.mrb[0].mxu0
    %v3606 = vadd.f32 0.0, %v3605
    %v3607 = vpop.f32.mrb[0].mxu0
    %v3608 = vadd.f32 0.0, %v3607
    %v3609 = vpop.f32.mrb[0].mxu0
    %v3610 = vpop.f32.mrb[0].mxu0
    %3611 = vdwg.mxu0
    %3612 = vmatprep.subr.bf16.mxu0 %v3510
    %3613 = vmatpush1.bf16.msra.mxu0 %v3509
    %3614 = vmatprep.subr.bf16.mxu0 %v3514
    %3615 = vmatpush1.bf16.msra.mxu0 %v3513
    %3616 = vmatprep.subr.bf16.mxu0 %v3518
    %3617 = vmatpush1.bf16.msra.mxu0 %v3517
    %3618 = vmatprep.subr.bf16.mxu0 %v3522
    %3619 = vmatpush1.bf16.msra.mxu0 %v3521
    %3620 = vmatprep.subr.bf16.mxu0 %v3526
    %3621 = vmatpush1.bf16.msra.mxu0 %v3525
    %3622 = vmatprep.subr.bf16.mxu0 %v3530
    %3623 = vmatpush1.bf16.msra.mxu0 %v3529
    %3624 = vmatprep.subr.bf16.mxu0 %v3534
    %3625 = vmatpush1.bf16.msra.mxu0 %v3533
    %3626 = vmatprep.subr.bf16.mxu0 %v3538
    %3627 = vmatpush1.bf16.msra.mxu0 %v3537
    %3628 = vmatprep.subr.bf16.mxu0 0
    %3629 = vmatpush1.bf16.msra.mxu0 0
    %3630 = vmatprep.subr.bf16.mxu0 0
    %3631 = vmatpush1.bf16.msra.mxu0 0
    %3632 = vmatprep.subr.bf16.mxu0 0
    %3633 = vmatpush1.bf16.msra.mxu0 0
    %3634 = vmatprep.subr.bf16.mxu0 0
    %3635 = vmatpush1.bf16.msra.mxu0 0
    %3636 = vmatprep.subr.bf16.mxu0 0
    %3637 = vmatpush1.bf16.msra.mxu0 0
    %3638 = vmatprep.subr.bf16.mxu0 0
    %3639 = vmatpush1.bf16.msra.mxu0 0
    %3640 = vmatprep.subr.bf16.mxu0 0
    %3641 = vmatpush1.bf16.msra.mxu0 0
    %3642 = vmatprep.subr.bf16.mxu0 0
    %3643 = vmatpush1.bf16.msra.mxu0 0
    %3644 = vmatprep.mubr.bf16.mxu0 0
    %3645 = vmatmul.mubr.bf16.gmra.mrb[0].mxu0 %v3410
    %v3646 = vpop.f32.mrb[0].mxu0
    %v3647 = vadd.f32 0.0, %v3646
    %v3648 = vpop.f32.mrb[0].mxu0
    %v3649 = vadd.f32 0.0, %v3648
    %v3650 = vpop.f32.mrb[0].mxu0
    %v3651 = vpop.f32.mrb[0].mxu0
    %3652 = vdwg.mxu0
    %v3653 = vadd.f32 %v3406, %v3606
    %v3654 = vadd.f32 %v3407, %v3608
    %v3655 = vadd.f32 %v3408, %v3647
    %v3656 = vadd.f32 %v3409, %v3649
    %v3657 = vxor.u32 %v3653, 2147483648
    %v3658 = vmul.f32 %v3657, 1.442695
    %v3659 = vpow.pop %v3658
    %v3660 = vadd.f32 %v3659, 1.0
    %v3661 = vrcp.pop %v3660
    %v3662 = vmul.f32 1.0, %v3661
    %v3663 = vxor.u32 %v3654, 2147483648
    %v3664 = vmul.f32 %v3663, 1.442695
    %v3665 = vpow.pop %v3664
    %v3666 = vadd.f32 %v3665, 1.0
    %v3667 = vrcp.pop %v3666
    %v3668 = vmul.f32 1.0, %v3667
    %v3669 = vtanh.pop %v3655
    %v3670 = vxor.u32 %v3656, 2147483648
    %v3671 = vmul.f32 %v3670, 1.442695
    %v3672 = vpow.pop %v3671
    %v3673 = vadd.f32 %v3672, 1.0
    %v3674 = vrcp.pop %v3673
    %v3675 = vmul.f32 1.0, %v3674
    %v3676 = vmul.f32 %v3668, %v3373
    %v3677 = vmul.f32 %v3662, %v3669
    %v3678 = vadd.f32 %v3676, %v3677
    %v3679 = vtanh.pop %v3678
    %v3680 = vmul.f32 %v3675, %v3679
    %v3681 = vsel %vm3361, %v3680, %v3372
    %3682 = vst [vmem:[#allocation2] sm:$0xff] %v3681
    %v3683 = vld [vmem:[#allocation3] sm:$0xff]
    %v3684 = vsel %vm3361, %v3678, %v3683
    %3685 = vst [vmem:[#allocation3] sm:$0xff] %v3684
    %v3686 = vsel %vm3361, %v3680, 0.0
    %s3687 = scalar_lea.vmem %s4, 40
    %3688 = vst [vmem:[%s3687] sm:$0xff] %v3686
    %s3689 = scalar_lea.vmem %s51, 32
    %v3690 = vld [vmem:[%s3689] sm:$0xff]
    %v3691 = vld [vmem:[%s3689 + $0x8] sm:$0xff]
    %v3692 = vld [vmem:[%s409] sm:$0xff]
    %v3693 = vld [vmem:[%s411] sm:$0xff]
    %v3694 = vld [vmem:[%s413] sm:$0xff]
    %v3695 = vld [vmem:[%s413 + $0x8] sm:$0xff]
    %v3696 = vld [vmem:[%s413 + $0x10] sm:$0xff]
    %v3697 = vld [vmem:[%s413 + $0x18] sm:$0xff]
    %v3698 = vld [vmem:[%s413 + $0x20] sm:$0xff]
    %v3699 = vld [vmem:[%s413 + $0x28] sm:$0xff]
    %v3700 = vld [vmem:[%s413 + $0x30] sm:$0xff]
    %v3701 = vld [vmem:[%s413 + $0x38] sm:$0xff]
    %v3702 = vld [vmem:[%s413 + $0x40] sm:$0xff]
    %v3703 = vld [vmem:[%s413 + $0x48] sm:$0xff]
    %v3704 = vld [vmem:[%s413 + $0x50] sm:$0xff]
    %v3705 = vld [vmem:[%s413 + $0x58] sm:$0xff]
    %v3706 = vld [vmem:[%s413 + $0x60] sm:$0xff]
    %v3707 = vld [vmem:[%s413 + $0x68] sm:$0xff]
    %v3708 = vld [vmem:[%s413 + $0x70] sm:$0xff]
    %v3709 = vld [vmem:[%s413 + $0x78] sm:$0xff]
    %v3710 = vld [vmem:[%s413 + $0x80] sm:$0xff]
    %v3711 = vld [vmem:[%s413 + $0x88] sm:$0xff]
    %v3712 = vld [vmem:[%s413 + $0x90] sm:$0xff]
    %v3713 = vld [vmem:[%s413 + $0x98] sm:$0xff]
    %v3714 = vld [vmem:[%s413 + $0xa0] sm:$0xff]
    %v3715 = vld [vmem:[%s413 + $0xa8] sm:$0xff]
    %v3716 = vld [vmem:[%s413 + $0xb0] sm:$0xff]
    %v3717 = vld [vmem:[%s413 + $0xb8] sm:$0xff]
    %v3718 = vld [vmem:[%s413 + $0xc0] sm:$0xff]
    %v3719 = vld [vmem:[%s413 + $0xc8] sm:$0xff]
    %v3720 = vld [vmem:[%s413 + $0xd0] sm:$0xff]
    %v3721 = vld [vmem:[%s413 + $0xd8] sm:$0xff]
    %v3722 = vld [vmem:[%s413 + $0xe0] sm:$0xff]
    %v3723 = vld [vmem:[%s413 + $0xe8] sm:$0xff]
    %v3724 = vld [vmem:[%s413 + $0xf0] sm:$0xff]
    %v3725 = vld [vmem:[%s413 + $0xf8] sm:$0xff]
    %v3726 = vunpack.c.l.bf16 %v3690
    %v3727 = vunpack.c.h.bf16 %v3690
    %v3728 = vunpack.c.l.bf16 %v3691
    %v3729 = vunpack.c.h.bf16 %v3691
    %v3730 = vpack.c.bf16 %v3692, %v3692
    %v3763 = vunpack.c.l.b16 %v3694
    %v3764 = vunpack.c.h.b16 %v3694
    %v3765 = vunpack.c.l.b16 %v3695
    %v3766 = vunpack.c.h.b16 %v3695
    %v3767 = vunpack.c.l.b16 %v3696
    %v3768 = vunpack.c.h.b16 %v3696
    %v3769 = vunpack.c.l.b16 %v3697
    %v3770 = vunpack.c.h.b16 %v3697
    %v3771 = vunpack.c.l.b16 %v3698
    %v3772 = vunpack.c.h.b16 %v3698
    %v3773 = vunpack.c.l.b16 %v3699
    %v3774 = vunpack.c.h.b16 %v3699
    %v3775 = vunpack.c.l.b16 %v3700
    %v3776 = vunpack.c.h.b16 %v3700
    %v3777 = vunpack.c.l.b16 %v3701
    %v3778 = vunpack.c.h.b16 %v3701
    %v3779 = vunpack.c.l.b16 %v3702
    %v3780 = vunpack.c.h.b16 %v3702
    %v3781 = vunpack.c.l.b16 %v3703
    %v3782 = vunpack.c.h.b16 %v3703
    %v3783 = vunpack.c.l.b16 %v3704
    %v3784 = vunpack.c.h.b16 %v3704
    %v3785 = vunpack.c.l.b16 %v3705
    %v3786 = vunpack.c.h.b16 %v3705
    %v3787 = vunpack.c.l.b16 %v3706
    %v3788 = vunpack.c.h.b16 %v3706
    %v3789 = vunpack.c.l.b16 %v3707
    %v3790 = vunpack.c.h.b16 %v3707
    %v3791 = vunpack.c.l.b16 %v3708
    %v3792 = vunpack.c.h.b16 %v3708
    %v3793 = vunpack.c.l.b16 %v3709
    %v3794 = vunpack.c.h.b16 %v3709
    %v3795 = vunpack.c.l.b16 %v3710
    %v3796 = vunpack.c.h.b16 %v3710
    %v3797 = vunpack.c.l.b16 %v3711
    %v3798 = vunpack.c.h.b16 %v3711
    %v3799 = vunpack.c.l.b16 %v3712
    %v3800 = vunpack.c.h.b16 %v3712
    %v3801 = vunpack.c.l.b16 %v3713
    %v3802 = vunpack.c.h.b16 %v3713
    %v3803 = vunpack.c.l.b16 %v3714
    %v3804 = vunpack.c.h.b16 %v3714
    %v3805 = vunpack.c.l.b16 %v3715
    %v3806 = vunpack.c.h.b16 %v3715
    %v3807 = vunpack.c.l.b16 %v3716
    %v3808 = vunpack.c.h.b16 %v3716
    %v3809 = vunpack.c.l.b16 %v3717
    %v3810 = vunpack.c.h.b16 %v3717
    %v3811 = vunpack.c.l.b16 %v3718
    %v3812 = vunpack.c.h.b16 %v3718
    %v3813 = vunpack.c.l.b16 %v3719
    %v3814 = vunpack.c.h.b16 %v3719
    %v3815 = vunpack.c.l.b16 %v3720
    %v3816 = vunpack.c.h.b16 %v3720
    %v3817 = vunpack.c.l.b16 %v3721
    %v3818 = vunpack.c.h.b16 %v3721
    %v3819 = vunpack.c.l.b16 %v3722
    %v3820 = vunpack.c.h.b16 %v3722
    %v3821 = vunpack.c.l.b16 %v3723
    %v3822 = vunpack.c.h.b16 %v3723
    %v3823 = vunpack.c.l.b16 %v3724
    %v3824 = vunpack.c.h.b16 %v3724
    %v3825 = vunpack.c.l.b16 %v3725
    %v3826 = vunpack.c.h.b16 %v3725
    %v3827 = vpack.c.b16 %v3767, %v3763
    %v3828 = vpack.c.b16 %v3768, %v3764
    %v3829 = vpack.c.b16 %v3769, %v3765
    %v3830 = vpack.c.b16 %v3770, %v3766
    %v3831 = vpack.c.b16 %v3775, %v3771
    %v3832 = vpack.c.b16 %v3776, %v3772
    %v3833 = vpack.c.b16 %v3777, %v3773
    %v3834 = vpack.c.b16 %v3778, %v3774
    %v3835 = vpack.c.b16 %v3783, %v3779
    %v3836 = vpack.c.b16 %v3784, %v3780
    %v3837 = vpack.c.b16 %v3785, %v3781
    %v3838 = vpack.c.b16 %v3786, %v3782
    %v3839 = vpack.c.b16 %v3791, %v3787
    %v3840 = vpack.c.b16 %v3792, %v3788
    %v3841 = vpack.c.b16 %v3793, %v3789
    %v3842 = vpack.c.b16 %v3794, %v3790
    %v3843 = vpack.c.b16 %v3799, %v3795
    %v3844 = vpack.c.b16 %v3800, %v3796
    %v3845 = vpack.c.b16 %v3801, %v3797
    %v3846 = vpack.c.b16 %v3802, %v3798
    %v3847 = vpack.c.b16 %v3807, %v3803
    %v3848 = vpack.c.b16 %v3808, %v3804
    %v3849 = vpack.c.b16 %v3809, %v3805
    %v3850 = vpack.c.b16 %v3810, %v3806
    %v3851 = vpack.c.b16 %v3815, %v3811
    %v3852 = vpack.c.b16 %v3816, %v3812
    %v3853 = vpack.c.b16 %v3817, %v3813
    %v3854 = vpack.c.b16 %v3818, %v3814
    %v3855 = vpack.c.b16 %v3823, %v3819
    %v3856 = vpack.c.b16 %v3824, %v3820
    %v3857 = vpack.c.b16 %v3825, %v3821
    %v3858 = vpack.c.b16 %v3826, %v3822
    %3891 = vmatprep.subr.bf16.mxu0 %v3828
    %3892 = vmatpush1.bf16.msra.mxu0 %v3827
    %3893 = vmatprep.subr.bf16.mxu0 %v3832
    %3894 = vmatpush1.bf16.msra.mxu0 %v3831
    %3895 = vmatprep.subr.bf16.mxu0 %v3836
    %3896 = vmatpush1.bf16.msra.mxu0 %v3835
    %3897 = vmatprep.subr.bf16.mxu0 %v3840
    %3898 = vmatpush1.bf16.msra.mxu0 %v3839
    %3899 = vmatprep.subr.bf16.mxu0 %v3844
    %3900 = vmatpush1.bf16.msra.mxu0 %v3843
    %3901 = vmatprep.subr.bf16.mxu0 %v3848
    %3902 = vmatpush1.bf16.msra.mxu0 %v3847
    %3903 = vmatprep.subr.bf16.mxu0 %v3852
    %3904 = vmatpush1.bf16.msra.mxu0 %v3851
    %3905 = vmatprep.subr.bf16.mxu0 %v3856
    %3906 = vmatpush1.bf16.msra.mxu0 %v3855
    %3907 = vmatprep.subr.bf16.mxu0 0
    %3908 = vmatpush1.bf16.msra.mxu0 0
    %3909 = vmatprep.subr.bf16.mxu0 0
    %3910 = vmatpush1.bf16.msra.mxu0 0
    %3911 = vmatprep.subr.bf16.mxu0 0
    %3912 = vmatpush1.bf16.msra.mxu0 0
    %3913 = vmatprep.subr.bf16.mxu0 0
    %3914 = vmatpush1.bf16.msra.mxu0 0
    %3915 = vmatprep.subr.bf16.mxu0 0
    %3916 = vmatpush1.bf16.msra.mxu0 0
    %3917 = vmatprep.subr.bf16.mxu0 0
    %3918 = vmatpush1.bf16.msra.mxu0 0
    %3919 = vmatprep.subr.bf16.mxu0 0
    %3920 = vmatpush1.bf16.msra.mxu0 0
    %3921 = vmatprep.subr.bf16.mxu0 0
    %3922 = vmatpush1.bf16.msra.mxu0 0
    %3923 = vmatprep.mubr.bf16.mxu0 0
    %3924 = vmatmul.mubr.bf16.gmra.mrb[0].mxu0 %v3730
    %v3925 = vpop.f32.mrb[0].mxu0
    %v3926 = vadd.f32 0.0, %v3925
    %v3927 = vpop.f32.mrb[0].mxu0
    %v3928 = vadd.f32 0.0, %v3927
    %v3929 = vpop.f32.mrb[0].mxu0
    %v3930 = vpop.f32.mrb[0].mxu0
    %3931 = vdwg.mxu0
    %3932 = vmatprep.subr.bf16.mxu0 %v3830
    %3933 = vmatpush1.bf16.msra.mxu0 %v3829
    %3934 = vmatprep.subr.bf16.mxu0 %v3834
    %3935 = vmatpush1.bf16.msra.mxu0 %v3833
    %3936 = vmatprep.subr.bf16.mxu0 %v3838
    %3937 = vmatpush1.bf16.msra.mxu0 %v3837
    %3938 = vmatprep.subr.bf16.mxu0 %v3842
    %3939 = vmatpush1.bf16.msra.mxu0 %v3841
    %3940 = vmatprep.subr.bf16.mxu0 %v3846
    %3941 = vmatpush1.bf16.msra.mxu0 %v3845
    %3942 = vmatprep.subr.bf16.mxu0 %v3850
    %3943 = vmatpush1.bf16.msra.mxu0 %v3849
    %3944 = vmatprep.subr.bf16.mxu0 %v3854
    %3945 = vmatpush1.bf16.msra.mxu0 %v3853
    %3946 = vmatprep.subr.bf16.mxu0 %v3858
    %3947 = vmatpush1.bf16.msra.mxu0 %v3857
    %3948 = vmatprep.subr.bf16.mxu0 0
    %3949 = vmatpush1.bf16.msra.mxu0 0
    %3950 = vmatprep.subr.bf16.mxu0 0
    %3951 = vmatpush1.bf16.msra.mxu0 0
    %3952 = vmatprep.subr.bf16.mxu0 0
    %3953 = vmatpush1.bf16.msra.mxu0 0
    %3954 = vmatprep.subr.bf16.mxu0 0
    %3955 = vmatpush1.bf16.msra.mxu0 0
    %3956 = vmatprep.subr.bf16.mxu0 0
    %3957 = vmatpush1.bf16.msra.mxu0 0
    %3958 = vmatprep.subr.bf16.mxu0 0
    %3959 = vmatpush1.bf16.msra.mxu0 0
    %3960 = vmatprep.subr.bf16.mxu0 0
    %3961 = vmatpush1.bf16.msra.mxu0 0
    %3962 = vmatprep.subr.bf16.mxu0 0
    %3963 = vmatpush1.bf16.msra.mxu0 0
    %3964 = vmatprep.mubr.bf16.mxu0 0
    %3965 = vmatmul.mubr.bf16.gmra.mrb[0].mxu0 %v3730
    %v3966 = vpop.f32.mrb[0].mxu0
    %v3967 = vadd.f32 0.0, %v3966
    %v3968 = vpop.f32.mrb[0].mxu0
    %v3969 = vadd.f32 0.0, %v3968
    %v3970 = vpop.f32.mrb[0].mxu0
    %v3971 = vpop.f32.mrb[0].mxu0
    %3972 = vdwg.mxu0
    %v3973 = vadd.f32 %v3726, %v3926
    %v3974 = vadd.f32 %v3727, %v3928
    %v3975 = vadd.f32 %v3728, %v3967
    %v3976 = vadd.f32 %v3729, %v3969
    %v3977 = vxor.u32 %v3973, 2147483648
    %v3978 = vmul.f32 %v3977, 1.442695
    %v3979 = vpow.pop %v3978
    %v3980 = vadd.f32 %v3979, 1.0
    %v3981 = vrcp.pop %v3980
    %v3982 = vmul.f32 1.0, %v3981
    %v3983 = vxor.u32 %v3974, 2147483648
    %v3984 = vmul.f32 %v3983, 1.442695
    %v3985 = vpow.pop %v3984
    %v3986 = vadd.f32 %v3985, 1.0
    %v3987 = vrcp.pop %v3986
    %v3988 = vmul.f32 1.0, %v3987
    %v3989 = vtanh.pop %v3975
    %v3990 = vxor.u32 %v3976, 2147483648
    %v3991 = vmul.f32 %v3990, 1.442695
    %v3992 = vpow.pop %v3991
    %v3993 = vadd.f32 %v3992, 1.0
    %v3994 = vrcp.pop %v3993
    %v3995 = vmul.f32 1.0, %v3994
    %v3996 = vmul.f32 %v3988, %v3693
    %v3997 = vmul.f32 %v3982, %v3989
    %v3998 = vadd.f32 %v3996, %v3997
    %v3999 = vtanh.pop %v3998
    %v4000 = vmul.f32 %v3995, %v3999
    %v4001 = vsel %vm3368, %v4000, %v3692
    %4002 = vst [vmem:[%s409] sm:$0xff] %v4001
    %v4003 = vld [vmem:[%s411] sm:$0xff]
    %v4004 = vsel %vm3368, %v3998, %v4003
    %4005 = vst [vmem:[%s411] sm:$0xff] %v4004
    %v4006 = vsel %vm3368, %v4000, 0.0
    %s4007 = scalar_lea.vmem %s59, 16
    %4008 = vst [vmem:[%s4007] sm:$0xff] %v4006
    %s4009 = sadd.s32 %s72, 6
    %s4010 = ssub.s32 1, %s72
    %v4011 = vstv %s4009
    %vm4012 = vcmp.lt.s32.totalorder %v4011, %v71
    %v4013 = vsel %vm4012, 1, 0
    %4014 = vset.pattern.permute.xlu0 0
    %4015 = vperm.xlu0 %4014, %v4013
    %v4016 = vpop.permute.xlu0 %4015
    %vm4017 = vcmp.eq.s32.totalorder %v4016, 1
    %v4018 = vstv %s4010
    %vm4019 = vcmp.lt.s32.totalorder %v4018, %v71
    %v4020 = vsel %vm4019, 1, 0
    %4021 = vset.pattern.permute.xlu0 0
    %4022 = vperm.xlu0 %4021, %v4020
    %v4023 = vpop.permute.xlu0 %4022
    %vm4024 = vcmp.eq.s32.totalorder %v4023, 1
    %s4025 = scalar_lea.vmem %s1, 96
    %v4026 = vld [vmem:[%s4025] sm:$0xff]
    %v4027 = vld [vmem:[%s4025 + $0x8] sm:$0xff]
    %v4028 = vld [vmem:[#allocation2] sm:$0xff]
    %v4029 = vld [vmem:[#allocation3] sm:$0xff]
    %v4030 = vld [vmem:[%s3] sm:$0xff]
    %v4031 = vld [vmem:[%s3 + $0x8] sm:$0xff]
    %v4032 = vld [vmem:[%s3 + $0x10] sm:$0xff]
    %v4033 = vld [vmem:[%s3 + $0x18] sm:$0xff]
    %v4034 = vld [vmem:[%s3 + $0x20] sm:$0xff]
    %v4035 = vld [vmem:[%s3 + $0x28] sm:$0xff]
    %v4036 = vld [vmem:[%s3 + $0x30] sm:$0xff]
    %v4037 = vld [vmem:[%s3 + $0x38] sm:$0xff]
    %v4038 = vld [vmem:[%s3 + $0x40] sm:$0xff]
    %v4039 = vld [vmem:[%s3 + $0x48] sm:$0xff]
    %v4040 = vld [vmem:[%s3 + $0x50] sm:$0xff]
    %v4041 = vld [vmem:[%s3 + $0x58] sm:$0xff]
    %v4042 = vld [vmem:[%s3 + $0x60] sm:$0xff]
    %v4043 = vld [vmem:[%s3 + $0x68] sm:$0xff]
    %v4044 = vld [vmem:[%s3 + $0x70] sm:$0xff]
    %v4045 = vld [vmem:[%s3 + $0x78] sm:$0xff]
    %v4046 = vld [vmem:[%s3 + $0x80] sm:$0xff]
    %v4047 = vld [vmem:[%s3 + $0x88] sm:$0xff]
    %v4048 = vld [vmem:[%s3 + $0x90] sm:$0xff]
    %v4049 = vld [vmem:[%s3 + $0x98] sm:$0xff]
    %v4050 = vld [vmem:[%s3 + $0xa0] sm:$0xff]
    %v4051 = vld [vmem:[%s3 + $0xa8] sm:$0xff]
    %v4052 = vld [vmem:[%s3 + $0xb0] sm:$0xff]
    %v4053 = vld [vmem:[%s3 + $0xb8] sm:$0xff]
    %v4054 = vld [vmem:[%s3 + $0xc0] sm:$0xff]
    %v4055 = vld [vmem:[%s3 + $0xc8] sm:$0xff]
    %v4056 = vld [vmem:[%s3 + $0xd0] sm:$0xff]
    %v4057 = vld [vmem:[%s3 + $0xd8] sm:$0xff]
    %v4058 = vld [vmem:[%s3 + $0xe0] sm:$0xff]
    %v4059 = vld [vmem:[%s3 + $0xe8] sm:$0xff]
    %v4060 = vld [vmem:[%s3 + $0xf0] sm:$0xff]
    %v4061 = vld [vmem:[%s3 + $0xf8] sm:$0xff]
    %v4062 = vunpack.c.l.bf16 %v4026
    %v4063 = vunpack.c.h.bf16 %v4026
    %v4064 = vunpack.c.l.bf16 %v4027
    %v4065 = vunpack.c.h.bf16 %v4027
    %v4066 = vpack.c.bf16 %v4028, %v4028
    %v4099 = vunpack.c.l.b16 %v4030
    %v4100 = vunpack.c.h.b16 %v4030
    %v4101 = vunpack.c.l.b16 %v4031
    %v4102 = vunpack.c.h.b16 %v4031
    %v4103 = vunpack.c.l.b16 %v4032
    %v4104 = vunpack.c.h.b16 %v4032
    %v4105 = vunpack.c.l.b16 %v4033
    %v4106 = vunpack.c.h.b16 %v4033
    %v4107 = vunpack.c.l.b16 %v4034
    %v4108 = vunpack.c.h.b16 %v4034
    %v4109 = vunpack.c.l.b16 %v4035
    %v4110 = vunpack.c.h.b16 %v4035
    %v4111 = vunpack.c.l.b16 %v4036
    %v4112 = vunpack.c.h.b16 %v4036
    %v4113 = vunpack.c.l.b16 %v4037
    %v4114 = vunpack.c.h.b16 %v4037
    %v4115 = vunpack.c.l.b16 %v4038
    %v4116 = vunpack.c.h.b16 %v4038
    %v4117 = vunpack.c.l.b16 %v4039
    %v4118 = vunpack.c.h.b16 %v4039
    %v4119 = vunpack.c.l.b16 %v4040
    %v4120 = vunpack.c.h.b16 %v4040
    %v4121 = vunpack.c.l.b16 %v4041
    %v4122 = vunpack.c.h.b16 %v4041
    %v4123 = vunpack.c.l.b16 %v4042
    %v4124 = vunpack.c.h.b16 %v4042
    %v4125 = vunpack.c.l.b16 %v4043
    %v4126 = vunpack.c.h.b16 %v4043
    %v4127 = vunpack.c.l.b16 %v4044
    %v4128 = vunpack.c.h.b16 %v4044
    %v4129 = vunpack.c.l.b16 %v4045
    %v4130 = vunpack.c.h.b16 %v4045
    %v4131 = vunpack.c.l.b16 %v4046
    %v4132 = vunpack.c.h.b16 %v4046
    %v4133 = vunpack.c.l.b16 %v4047
    %v4134 = vunpack.c.h.b16 %v4047
    %v4135 = vunpack.c.l.b16 %v4048
    %v4136 = vunpack.c.h.b16 %v4048
    %v4137 = vunpack.c.l.b16 %v4049
    %v4138 = vunpack.c.h.b16 %v4049
    %v4139 = vunpack.c.l.b16 %v4050
    %v4140 = vunpack.c.h.b16 %v4050
    %v4141 = vunpack.c.l.b16 %v4051
    %v4142 = vunpack.c.h.b16 %v4051
    %v4143 = vunpack.c.l.b16 %v4052
    %v4144 = vunpack.c.h.b16 %v4052
    %v4145 = vunpack.c.l.b16 %v4053
    %v4146 = vunpack.c.h.b16 %v4053
    %v4147 = vunpack.c.l.b16 %v4054
    %v4148 = vunpack.c.h.b16 %v4054
    %v4149 = vunpack.c.l.b16 %v4055
    %v4150 = vunpack.c.h.b16 %v4055
    %v4151 = vunpack.c.l.b16 %v4056
    %v4152 = vunpack.c.h.b16 %v4056
    %v4153 = vunpack.c.l.b16 %v4057
    %v4154 = vunpack.c.h.b16 %v4057
    %v4155 = vunpack.c.l.b16 %v4058
    %v4156 = vunpack.c.h.b16 %v4058
    %v4157 = vunpack.c.l.b16 %v4059
    %v4158 = vunpack.c.h.b16 %v4059
    %v4159 = vunpack.c.l.b16 %v4060
    %v4160 = vunpack.c.h.b16 %v4060
    %v4161 = vunpack.c.l.b16 %v4061
    %v4162 = vunpack.c.h.b16 %v4061
    %v4163 = vpack.c.b16 %v4103, %v4099
    %v4164 = vpack.c.b16 %v4104, %v4100
    %v4165 = vpack.c.b16 %v4105, %v4101
    %v4166 = vpack.c.b16 %v4106, %v4102
    %v4167 = vpack.c.b16 %v4111, %v4107
    %v4168 = vpack.c.b16 %v4112, %v4108
    %v4169 = vpack.c.b16 %v4113, %v4109
    %v4170 = vpack.c.b16 %v4114, %v4110
    %v4171 = vpack.c.b16 %v4119, %v4115
    %v4172 = vpack.c.b16 %v4120, %v4116
    %v4173 = vpack.c.b16 %v4121, %v4117
    %v4174 = vpack.c.b16 %v4122, %v4118
    %v4175 = vpack.c.b16 %v4127, %v4123
    %v4176 = vpack.c.b16 %v4128, %v4124
    %v4177 = vpack.c.b16 %v4129, %v4125
    %v4178 = vpack.c.b16 %v4130, %v4126
    %v4179 = vpack.c.b16 %v4135, %v4131
    %v4180 = vpack.c.b16 %v4136, %v4132
    %v4181 = vpack.c.b16 %v4137, %v4133
    %v4182 = vpack.c.b16 %v4138, %v4134
    %v4183 = vpack.c.b16 %v4143, %v4139
    %v4184 = vpack.c.b16 %v4144, %v4140
    %v4185 = vpack.c.b16 %v4145, %v4141
    %v4186 = vpack.c.b16 %v4146, %v4142
    %v4187 = vpack.c.b16 %v4151, %v4147
    %v4188 = vpack.c.b16 %v4152, %v4148
    %v4189 = vpack.c.b16 %v4153, %v4149
    %v4190 = vpack.c.b16 %v4154, %v4150
    %v4191 = vpack.c.b16 %v4159, %v4155
    %v4192 = vpack.c.b16 %v4160, %v4156
    %v4193 = vpack.c.b16 %v4161, %v4157
    %v4194 = vpack.c.b16 %v4162, %v4158
    %4227 = vmatprep.subr.bf16.mxu0 %v4164
    %4228 = vmatpush1.bf16.msra.mxu0 %v4163
    %4229 = vmatprep.subr.bf16.mxu0 %v4168
    %4230 = vmatpush1.bf16.msra.mxu0 %v4167
    %4231 = vmatprep.subr.bf16.mxu0 %v4172
    %4232 = vmatpush1.bf16.msra.mxu0 %v4171
    %4233 = vmatprep.subr.bf16.mxu0 %v4176
    %4234 = vmatpush1.bf16.msra.mxu0 %v4175
    %4235 = vmatprep.subr.bf16.mxu0 %v4180
    %4236 = vmatpush1.bf16.msra.mxu0 %v4179
    %4237 = vmatprep.subr.bf16.mxu0 %v4184
    %4238 = vmatpush1.bf16.msra.mxu0 %v4183
    %4239 = vmatprep.subr.bf16.mxu0 %v4188
    %4240 = vmatpush1.bf16.msra.mxu0 %v4187
    %4241 = vmatprep.subr.bf16.mxu0 %v4192
    %4242 = vmatpush1.bf16.msra.mxu0 %v4191
    %4243 = vmatprep.subr.bf16.mxu0 0
    %4244 = vmatpush1.bf16.msra.mxu0 0
    %4245 = vmatprep.subr.bf16.mxu0 0
    %4246 = vmatpush1.bf16.msra.mxu0 0
    %4247 = vmatprep.subr.bf16.mxu0 0
    %4248 = vmatpush1.bf16.msra.mxu0 0
    %4249 = vmatprep.subr.bf16.mxu0 0
    %4250 = vmatpush1.bf16.msra.mxu0 0
    %4251 = vmatprep.subr.bf16.mxu0 0
    %4252 = vmatpush1.bf16.msra.mxu0 0
    %4253 = vmatprep.subr.bf16.mxu0 0
    %4254 = vmatpush1.bf16.msra.mxu0 0
    %4255 = vmatprep.subr.bf16.mxu0 0
    %4256 = vmatpush1.bf16.msra.mxu0 0
    %4257 = vmatprep.subr.bf16.mxu0 0
    %4258 = vmatpush1.bf16.msra.mxu0 0
    %4259 = vmatprep.mubr.bf16.mxu0 0
    %4260 = vmatmul.mubr.bf16.gmra.mrb[0].mxu0 %v4066
    %v4261 = vpop.f32.mrb[0].mxu0
    %v4262 = vadd.f32 0.0, %v4261
    %v4263 = vpop.f32.mrb[0].mxu0
    %v4264 = vadd.f32 0.0, %v4263
    %v4265 = vpop.f32.mrb[0].mxu0
    %v4266 = vpop.f32.mrb[0].mxu0
    %4267 = vdwg.mxu0
    %4268 = vmatprep.subr.bf16.mxu0 %v4166
    %4269 = vmatpush1.bf16.msra.mxu0 %v4165
    %4270 = vmatprep.subr.bf16.mxu0 %v4170
    %4271 = vmatpush1.bf16.msra.mxu0 %v4169
    %4272 = vmatprep.subr.bf16.mxu0 %v4174
    %4273 = vmatpush1.bf16.msra.mxu0 %v4173
    %4274 = vmatprep.subr.bf16.mxu0 %v4178
    %4275 = vmatpush1.bf16.msra.mxu0 %v4177
    %4276 = vmatprep.subr.bf16.mxu0 %v4182
    %4277 = vmatpush1.bf16.msra.mxu0 %v4181
    %4278 = vmatprep.subr.bf16.mxu0 %v4186
    %4279 = vmatpush1.bf16.msra.mxu0 %v4185
    %4280 = vmatprep.subr.bf16.mxu0 %v4190
    %4281 = vmatpush1.bf16.msra.mxu0 %v4189
    %4282 = vmatprep.subr.bf16.mxu0 %v4194
    %4283 = vmatpush1.bf16.msra.mxu0 %v4193
    %4284 = vmatprep.subr.bf16.mxu0 0
    %4285 = vmatpush1.bf16.msra.mxu0 0
    %4286 = vmatprep.subr.bf16.mxu0 0
    %4287 = vmatpush1.bf16.msra.mxu0 0
    %4288 = vmatprep.subr.bf16.mxu0 0
    %4289 = vmatpush1.bf16.msra.mxu0 0
    %4290 = vmatprep.subr.bf16.mxu0 0
    %4291 = vmatpush1.bf16.msra.mxu0 0
    %4292 = vmatprep.subr.bf16.mxu0 0
    %4293 = vmatpush1.bf16.msra.mxu0 0
    %4294 = vmatprep.subr.bf16.mxu0 0
    %4295 = vmatpush1.bf16.msra.mxu0 0
    %4296 = vmatprep.subr.bf16.mxu0 0
    %4297 = vmatpush1.bf16.msra.mxu0 0
    %4298 = vmatprep.subr.bf16.mxu0 0
    %4299 = vmatpush1.bf16.msra.mxu0 0
    %4300 = vmatprep.mubr.bf16.mxu0 0
    %4301 = vmatmul.mubr.bf16.gmra.mrb[0].mxu0 %v4066
    %v4302 = vpop.f32.mrb[0].mxu0
    %v4303 = vadd.f32 0.0, %v4302
    %v4304 = vpop.f32.mrb[0].mxu0
    %v4305 = vadd.f32 0.0, %v4304
    %v4306 = vpop.f32.mrb[0].mxu0
    %v4307 = vpop.f32.mrb[0].mxu0
    %4308 = vdwg.mxu0
    %v4309 = vadd.f32 %v4062, %v4262
    %v4310 = vadd.f32 %v4063, %v4264
    %v4311 = vadd.f32 %v4064, %v4303
    %v4312 = vadd.f32 %v4065, %v4305
    %v4313 = vxor.u32 %v4309, 2147483648
    %v4314 = vmul.f32 %v4313, 1.442695
    %v4315 = vpow.pop %v4314
    %v4316 = vadd.f32 %v4315, 1.0
    %v4317 = vrcp.pop %v4316
    %v4318 = vmul.f32 1.0, %v4317
    %v4319 = vxor.u32 %v4310, 2147483648
    %v4320 = vmul.f32 %v4319, 1.442695
    %v4321 = vpow.pop %v4320
    %v4322 = vadd.f32 %v4321, 1.0
    %v4323 = vrcp.pop %v4322
    %v4324 = vmul.f32 1.0, %v4323
    %v4325 = vtanh.pop %v4311
    %v4326 = vxor.u32 %v4312, 2147483648
    %v4327 = vmul.f32 %v4326, 1.442695
    %v4328 = vpow.pop %v4327
    %v4329 = vadd.f32 %v4328, 1.0
    %v4330 = vrcp.pop %v4329
    %v4331 = vmul.f32 1.0, %v4330
    %v4332 = vmul.f32 %v4324, %v4029
    %v4333 = vmul.f32 %v4318, %v4325
    %v4334 = vadd.f32 %v4332, %v4333
    %v4335 = vtanh.pop %v4334
    %v4336 = vmul.f32 %v4331, %v4335
    %v4337 = vsel %vm4017, %v4336, %v4028
    %4338 = vst [vmem:[#allocation2] sm:$0xff] %v4337
    %v4339 = vld [vmem:[#allocation3] sm:$0xff]
    %v4340 = vsel %vm4017, %v4334, %v4339
    %4341 = vst [vmem:[#allocation3] sm:$0xff] %v4340
    %v4342 = vsel %vm4017, %v4336, 0.0
    %s4343 = scalar_lea.vmem %s4, 48
    %4344 = vst [vmem:[%s4343] sm:$0xff] %v4342
    %s4345 = scalar_lea.vmem %s51, 16
    %v4346 = vld [vmem:[%s4345] sm:$0xff]
    %v4347 = vld [vmem:[%s4345 + $0x8] sm:$0xff]
    %v4348 = vld [vmem:[%s409] sm:$0xff]
    %v4349 = vld [vmem:[%s411] sm:$0xff]
    %v4350 = vld [vmem:[%s413] sm:$0xff]
    %v4351 = vld [vmem:[%s413 + $0x8] sm:$0xff]
    %v4352 = vld [vmem:[%s413 + $0x10] sm:$0xff]
    %v4353 = vld [vmem:[%s413 + $0x18] sm:$0xff]
    %v4354 = vld [vmem:[%s413 + $0x20] sm:$0xff]
    %v4355 = vld [vmem:[%s413 + $0x28] sm:$0xff]
    %v4356 = vld [vmem:[%s413 + $0x30] sm:$0xff]
    %v4357 = vld [vmem:[%s413 + $0x38] sm:$0xff]
    %v4358 = vld [vmem:[%s413 + $0x40] sm:$0xff]
    %v4359 = vld [vmem:[%s413 + $0x48] sm:$0xff]
    %v4360 = vld [vmem:[%s413 + $0x50] sm:$0xff]
    %v4361 = vld [vmem:[%s413 + $0x58] sm:$0xff]
    %v4362 = vld [vmem:[%s413 + $0x60] sm:$0xff]
    %v4363 = vld [vmem:[%s413 + $0x68] sm:$0xff]
    %v4364 = vld [vmem:[%s413 + $0x70] sm:$0xff]
    %v4365 = vld [vmem:[%s413 + $0x78] sm:$0xff]
    %v4366 = vld [vmem:[%s413 + $0x80] sm:$0xff]
    %v4367 = vld [vmem:[%s413 + $0x88] sm:$0xff]
    %v4368 = vld [vmem:[%s413 + $0x90] sm:$0xff]
    %v4369 = vld [vmem:[%s413 + $0x98] sm:$0xff]
    %v4370 = vld [vmem:[%s413 + $0xa0] sm:$0xff]
    %v4371 = vld [vmem:[%s413 + $0xa8] sm:$0xff]
    %v4372 = vld [vmem:[%s413 + $0xb0] sm:$0xff]
    %v4373 = vld [vmem:[%s413 + $0xb8] sm:$0xff]
    %v4374 = vld [vmem:[%s413 + $0xc0] sm:$0xff]
    %v4375 = vld [vmem:[%s413 + $0xc8] sm:$0xff]
    %v4376 = vld [vmem:[%s413 + $0xd0] sm:$0xff]
    %v4377 = vld [vmem:[%s413 + $0xd8] sm:$0xff]
    %v4378 = vld [vmem:[%s413 + $0xe0] sm:$0xff]
    %v4379 = vld [vmem:[%s413 + $0xe8] sm:$0xff]
    %v4380 = vld [vmem:[%s413 + $0xf0] sm:$0xff]
    %v4381 = vld [vmem:[%s413 + $0xf8] sm:$0xff]
    %v4382 = vunpack.c.l.bf16 %v4346
    %v4383 = vunpack.c.h.bf16 %v4346
    %v4384 = vunpack.c.l.bf16 %v4347
    %v4385 = vunpack.c.h.bf16 %v4347
    %v4386 = vpack.c.bf16 %v4348, %v4348
    %v4419 = vunpack.c.l.b16 %v4350
    %v4420 = vunpack.c.h.b16 %v4350
    %v4421 = vunpack.c.l.b16 %v4351
    %v4422 = vunpack.c.h.b16 %v4351
    %v4423 = vunpack.c.l.b16 %v4352
    %v4424 = vunpack.c.h.b16 %v4352
    %v4425 = vunpack.c.l.b16 %v4353
    %v4426 = vunpack.c.h.b16 %v4353
    %v4427 = vunpack.c.l.b16 %v4354
    %v4428 = vunpack.c.h.b16 %v4354
    %v4429 = vunpack.c.l.b16 %v4355
    %v4430 = vunpack.c.h.b16 %v4355
    %v4431 = vunpack.c.l.b16 %v4356
    %v4432 = vunpack.c.h.b16 %v4356
    %v4433 = vunpack.c.l.b16 %v4357
    %v4434 = vunpack.c.h.b16 %v4357
    %v4435 = vunpack.c.l.b16 %v4358
    %v4436 = vunpack.c.h.b16 %v4358
    %v4437 = vunpack.c.l.b16 %v4359
    %v4438 = vunpack.c.h.b16 %v4359
    %v4439 = vunpack.c.l.b16 %v4360
    %v4440 = vunpack.c.h.b16 %v4360
    %v4441 = vunpack.c.l.b16 %v4361
    %v4442 = vunpack.c.h.b16 %v4361
    %v4443 = vunpack.c.l.b16 %v4362
    %v4444 = vunpack.c.h.b16 %v4362
    %v4445 = vunpack.c.l.b16 %v4363
    %v4446 = vunpack.c.h.b16 %v4363
    %v4447 = vunpack.c.l.b16 %v4364
    %v4448 = vunpack.c.h.b16 %v4364
    %v4449 = vunpack.c.l.b16 %v4365
    %v4450 = vunpack.c.h.b16 %v4365
    %v4451 = vunpack.c.l.b16 %v4366
    %v4452 = vunpack.c.h.b16 %v4366
    %v4453 = vunpack.c.l.b16 %v4367
    %v4454 = vunpack.c.h.b16 %v4367
    %v4455 = vunpack.c.l.b16 %v4368
    %v4456 = vunpack.c.h.b16 %v4368
    %v4457 = vunpack.c.l.b16 %v4369
    %v4458 = vunpack.c.h.b16 %v4369
    %v4459 = vunpack.c.l.b16 %v4370
    %v4460 = vunpack.c.h.b16 %v4370
    %v4461 = vunpack.c.l.b16 %v4371
    %v4462 = vunpack.c.h.b16 %v4371
    %v4463 = vunpack.c.l.b16 %v4372
    %v4464 = vunpack.c.h.b16 %v4372
    %v4465 = vunpack.c.l.b16 %v4373
    %v4466 = vunpack.c.h.b16 %v4373
    %v4467 = vunpack.c.l.b16 %v4374
    %v4468 = vunpack.c.h.b16 %v4374
    %v4469 = vunpack.c.l.b16 %v4375
    %v4470 = vunpack.c.h.b16 %v4375
    %v4471 = vunpack.c.l.b16 %v4376
    %v4472 = vunpack.c.h.b16 %v4376
    %v4473 = vunpack.c.l.b16 %v4377
    %v4474 = vunpack.c.h.b16 %v4377
    %v4475 = vunpack.c.l.b16 %v4378
    %v4476 = vunpack.c.h.b16 %v4378
    %v4477 = vunpack.c.l.b16 %v4379
    %v4478 = vunpack.c.h.b16 %v4379
    %v4479 = vunpack.c.l.b16 %v4380
    %v4480 = vunpack.c.h.b16 %v4380
    %v4481 = vunpack.c.l.b16 %v4381
    %v4482 = vunpack.c.h.b16 %v4381
    %v4483 = vpack.c.b16 %v4423, %v4419
    %v4484 = vpack.c.b16 %v4424, %v4420
    %v4485 = vpack.c.b16 %v4425, %v4421
    %v4486 = vpack.c.b16 %v4426, %v4422
    %v4487 = vpack.c.b16 %v4431, %v4427
    %v4488 = vpack.c.b16 %v4432, %v4428
    %v4489 = vpack.c.b16 %v4433, %v4429
    %v4490 = vpack.c.b16 %v4434, %v4430
    %v4491 = vpack.c.b16 %v4439, %v4435
    %v4492 = vpack.c.b16 %v4440, %v4436
    %v4493 = vpack.c.b16 %v4441, %v4437
    %v4494 = vpack.c.b16 %v4442, %v4438
    %v4495 = vpack.c.b16 %v4447, %v4443
    %v4496 = vpack.c.b16 %v4448, %v4444
    %v4497 = vpack.c.b16 %v4449, %v4445
    %v4498 = vpack.c.b16 %v4450, %v4446
    %v4499 = vpack.c.b16 %v4455, %v4451
    %v4500 = vpack.c.b16 %v4456, %v4452
    %v4501 = vpack.c.b16 %v4457, %v4453
    %v4502 = vpack.c.b16 %v4458, %v4454
    %v4503 = vpack.c.b16 %v4463, %v4459
    %v4504 = vpack.c.b16 %v4464, %v4460
    %v4505 = vpack.c.b16 %v4465, %v4461
    %v4506 = vpack.c.b16 %v4466, %v4462
    %v4507 = vpack.c.b16 %v4471, %v4467
    %v4508 = vpack.c.b16 %v4472, %v4468
    %v4509 = vpack.c.b16 %v4473, %v4469
    %v4510 = vpack.c.b16 %v4474, %v4470
    %v4511 = vpack.c.b16 %v4479, %v4475
    %v4512 = vpack.c.b16 %v4480, %v4476
    %v4513 = vpack.c.b16 %v4481, %v4477
    %v4514 = vpack.c.b16 %v4482, %v4478
    %4547 = vmatprep.subr.bf16.mxu0 %v4484
    %4548 = vmatpush1.bf16.msra.mxu0 %v4483
    %4549 = vmatprep.subr.bf16.mxu0 %v4488
    %4550 = vmatpush1.bf16.msra.mxu0 %v4487
    %4551 = vmatprep.subr.bf16.mxu0 %v4492
    %4552 = vmatpush1.bf16.msra.mxu0 %v4491
    %4553 = vmatprep.subr.bf16.mxu0 %v4496
    %4554 = vmatpush1.bf16.msra.mxu0 %v4495
    %4555 = vmatprep.subr.bf16.mxu0 %v4500
    %4556 = vmatpush1.bf16.msra.mxu0 %v4499
    %4557 = vmatprep.subr.bf16.mxu0 %v4504
    %4558 = vmatpush1.bf16.msra.mxu0 %v4503
    %4559 = vmatprep.subr.bf16.mxu0 %v4508
    %4560 = vmatpush1.bf16.msra.mxu0 %v4507
    %4561 = vmatprep.subr.bf16.mxu0 %v4512
    %4562 = vmatpush1.bf16.msra.mxu0 %v4511
    %4563 = vmatprep.subr.bf16.mxu0 0
    %4564 = vmatpush1.bf16.msra.mxu0 0
    %4565 = vmatprep.subr.bf16.mxu0 0
    %4566 = vmatpush1.bf16.msra.mxu0 0
    %4567 = vmatprep.subr.bf16.mxu0 0
    %4568 = vmatpush1.bf16.msra.mxu0 0
    %4569 = vmatprep.subr.bf16.mxu0 0
    %4570 = vmatpush1.bf16.msra.mxu0 0
    %4571 = vmatprep.subr.bf16.mxu0 0
    %4572 = vmatpush1.bf16.msra.mxu0 0
    %4573 = vmatprep.subr.bf16.mxu0 0
    %4574 = vmatpush1.bf16.msra.mxu0 0
    %4575 = vmatprep.subr.bf16.mxu0 0
    %4576 = vmatpush1.bf16.msra.mxu0 0
    %4577 = vmatprep.subr.bf16.mxu0 0
    %4578 = vmatpush1.bf16.msra.mxu0 0
    %4579 = vmatprep.mubr.bf16.mxu0 0
    %4580 = vmatmul.mubr.bf16.gmra.mrb[0].mxu0 %v4386
    %v4581 = vpop.f32.mrb[0].mxu0
    %v4582 = vadd.f32 0.0, %v4581
    %v4583 = vpop.f32.mrb[0].mxu0
    %v4584 = vadd.f32 0.0, %v4583
    %v4585 = vpop.f32.mrb[0].mxu0
    %v4586 = vpop.f32.mrb[0].mxu0
    %4587 = vdwg.mxu0
    %4588 = vmatprep.subr.bf16.mxu0 %v4486
    %4589 = vmatpush1.bf16.msra.mxu0 %v4485
    %4590 = vmatprep.subr.bf16.mxu0 %v4490
    %4591 = vmatpush1.bf16.msra.mxu0 %v4489
    %4592 = vmatprep.subr.bf16.mxu0 %v4494
    %4593 = vmatpush1.bf16.msra.mxu0 %v4493
    %4594 = vmatprep.subr.bf16.mxu0 %v4498
    %4595 = vmatpush1.bf16.msra.mxu0 %v4497
    %4596 = vmatprep.subr.bf16.mxu0 %v4502
    %4597 = vmatpush1.bf16.msra.mxu0 %v4501
    %4598 = vmatprep.subr.bf16.mxu0 %v4506
    %4599 = vmatpush1.bf16.msra.mxu0 %v4505
    %4600 = vmatprep.subr.bf16.mxu0 %v4510
    %4601 = vmatpush1.bf16.msra.mxu0 %v4509
    %4602 = vmatprep.subr.bf16.mxu0 %v4514
    %4603 = vmatpush1.bf16.msra.mxu0 %v4513
    %4604 = vmatprep.subr.bf16.mxu0 0
    %4605 = vmatpush1.bf16.msra.mxu0 0
    %4606 = vmatprep.subr.bf16.mxu0 0
    %4607 = vmatpush1.bf16.msra.mxu0 0
    %4608 = vmatprep.subr.bf16.mxu0 0
    %4609 = vmatpush1.bf16.msra.mxu0 0
    %4610 = vmatprep.subr.bf16.mxu0 0
    %4611 = vmatpush1.bf16.msra.mxu0 0
    %4612 = vmatprep.subr.bf16.mxu0 0
    %4613 = vmatpush1.bf16.msra.mxu0 0
    %4614 = vmatprep.subr.bf16.mxu0 0
    %4615 = vmatpush1.bf16.msra.mxu0 0
    %4616 = vmatprep.subr.bf16.mxu0 0
    %4617 = vmatpush1.bf16.msra.mxu0 0
    %4618 = vmatprep.subr.bf16.mxu0 0
    %4619 = vmatpush1.bf16.msra.mxu0 0
    %4620 = vmatprep.mubr.bf16.mxu0 0
    %4621 = vmatmul.mubr.bf16.gmra.mrb[0].mxu0 %v4386
    %v4622 = vpop.f32.mrb[0].mxu0
    %v4623 = vadd.f32 0.0, %v4622
    %v4624 = vpop.f32.mrb[0].mxu0
    %v4625 = vadd.f32 0.0, %v4624
    %v4626 = vpop.f32.mrb[0].mxu0
    %v4627 = vpop.f32.mrb[0].mxu0
    %4628 = vdwg.mxu0
    %v4629 = vadd.f32 %v4382, %v4582
    %v4630 = vadd.f32 %v4383, %v4584
    %v4631 = vadd.f32 %v4384, %v4623
    %v4632 = vadd.f32 %v4385, %v4625
    %v4633 = vxor.u32 %v4629, 2147483648
    %v4634 = vmul.f32 %v4633, 1.442695
    %v4635 = vpow.pop %v4634
    %v4636 = vadd.f32 %v4635, 1.0
    %v4637 = vrcp.pop %v4636
    %v4638 = vmul.f32 1.0, %v4637
    %v4639 = vxor.u32 %v4630, 2147483648
    %v4640 = vmul.f32 %v4639, 1.442695
    %v4641 = vpow.pop %v4640
    %v4642 = vadd.f32 %v4641, 1.0
    %v4643 = vrcp.pop %v4642
    %v4644 = vmul.f32 1.0, %v4643
    %v4645 = vtanh.pop %v4631
    %v4646 = vxor.u32 %v4632, 2147483648
    %v4647 = vmul.f32 %v4646, 1.442695
    %v4648 = vpow.pop %v4647
    %v4649 = vadd.f32 %v4648, 1.0
    %v4650 = vrcp.pop %v4649
    %v4651 = vmul.f32 1.0, %v4650
    %v4652 = vmul.f32 %v4644, %v4349
    %v4653 = vmul.f32 %v4638, %v4645
    %v4654 = vadd.f32 %v4652, %v4653
    %v4655 = vtanh.pop %v4654
    %v4656 = vmul.f32 %v4651, %v4655
    %v4657 = vsel %vm4024, %v4656, %v4348
    %4658 = vst [vmem:[%s409] sm:$0xff] %v4657
    %v4659 = vld [vmem:[%s411] sm:$0xff]
    %v4660 = vsel %vm4024, %v4654, %v4659
    %4661 = vst [vmem:[%s411] sm:$0xff] %v4660
    %v4662 = vsel %vm4024, %v4656, 0.0
    %s4663 = scalar_lea.vmem %s59, 8
    %4664 = vst [vmem:[%s4663] sm:$0xff] %v4662
    %s4665 = sadd.s32 %s72, 7
    %s4666 = ssub.s32 0, %s72
    %v4667 = vstv %s4665
    %vm4668 = vcmp.lt.s32.totalorder %v4667, %v71
    %v4669 = vsel %vm4668, 1, 0
    %4670 = vset.pattern.permute.xlu0 0
    %4671 = vperm.xlu0 %4670, %v4669
    %v4672 = vpop.permute.xlu0 %4671
    %vm4673 = vcmp.eq.s32.totalorder %v4672, 1
    %v4674 = vstv %s4666
    %vm4675 = vcmp.lt.s32.totalorder %v4674, %v71
    %v4676 = vsel %vm4675, 1, 0
    %4677 = vset.pattern.permute.xlu0 0
    %4678 = vperm.xlu0 %4677, %v4676
    %v4679 = vpop.permute.xlu0 %4678
    %vm4680 = vcmp.eq.s32.totalorder %v4679, 1
    %s4681 = scalar_lea.vmem %s1, 112
    %v4682 = vld [vmem:[%s4681] sm:$0xff]
    %v4683 = vld [vmem:[%s4681 + $0x8] sm:$0xff]
    %v4684 = vld [vmem:[#allocation2] sm:$0xff]
    %v4685 = vld [vmem:[#allocation3] sm:$0xff]
    %v4686 = vld [vmem:[%s3] sm:$0xff]
    %v4687 = vld [vmem:[%s3 + $0x8] sm:$0xff]
    %v4688 = vld [vmem:[%s3 + $0x10] sm:$0xff]
    %v4689 = vld [vmem:[%s3 + $0x18] sm:$0xff]
    %v4690 = vld [vmem:[%s3 + $0x20] sm:$0xff]
    %v4691 = vld [vmem:[%s3 + $0x28] sm:$0xff]
    %v4692 = vld [vmem:[%s3 + $0x30] sm:$0xff]
    %v4693 = vld [vmem:[%s3 + $0x38] sm:$0xff]
    %v4694 = vld [vmem:[%s3 + $0x40] sm:$0xff]
    %v4695 = vld [vmem:[%s3 + $0x48] sm:$0xff]
    %v4696 = vld [vmem:[%s3 + $0x50] sm:$0xff]
    %v4697 = vld [vmem:[%s3 + $0x58] sm:$0xff]
    %v4698 = vld [vmem:[%s3 + $0x60] sm:$0xff]
    %v4699 = vld [vmem:[%s3 + $0x68] sm:$0xff]
    %v4700 = vld [vmem:[%s3 + $0x70] sm:$0xff]
    %v4701 = vld [vmem:[%s3 + $0x78] sm:$0xff]
    %v4702 = vld [vmem:[%s3 + $0x80] sm:$0xff]
    %v4703 = vld [vmem:[%s3 + $0x88] sm:$0xff]
    %v4704 = vld [vmem:[%s3 + $0x90] sm:$0xff]
    %v4705 = vld [vmem:[%s3 + $0x98] sm:$0xff]
    %v4706 = vld [vmem:[%s3 + $0xa0] sm:$0xff]
    %v4707 = vld [vmem:[%s3 + $0xa8] sm:$0xff]
    %v4708 = vld [vmem:[%s3 + $0xb0] sm:$0xff]
    %v4709 = vld [vmem:[%s3 + $0xb8] sm:$0xff]
    %v4710 = vld [vmem:[%s3 + $0xc0] sm:$0xff]
    %v4711 = vld [vmem:[%s3 + $0xc8] sm:$0xff]
    %v4712 = vld [vmem:[%s3 + $0xd0] sm:$0xff]
    %v4713 = vld [vmem:[%s3 + $0xd8] sm:$0xff]
    %v4714 = vld [vmem:[%s3 + $0xe0] sm:$0xff]
    %v4715 = vld [vmem:[%s3 + $0xe8] sm:$0xff]
    %v4716 = vld [vmem:[%s3 + $0xf0] sm:$0xff]
    %v4717 = vld [vmem:[%s3 + $0xf8] sm:$0xff]
    %v4718 = vunpack.c.l.bf16 %v4682
    %v4719 = vunpack.c.h.bf16 %v4682
    %v4720 = vunpack.c.l.bf16 %v4683
    %v4721 = vunpack.c.h.bf16 %v4683
    %v4722 = vpack.c.bf16 %v4684, %v4684
    %v4755 = vunpack.c.l.b16 %v4686
    %v4756 = vunpack.c.h.b16 %v4686
    %v4757 = vunpack.c.l.b16 %v4687
    %v4758 = vunpack.c.h.b16 %v4687
    %v4759 = vunpack.c.l.b16 %v4688
    %v4760 = vunpack.c.h.b16 %v4688
    %v4761 = vunpack.c.l.b16 %v4689
    %v4762 = vunpack.c.h.b16 %v4689
    %v4763 = vunpack.c.l.b16 %v4690
    %v4764 = vunpack.c.h.b16 %v4690
    %v4765 = vunpack.c.l.b16 %v4691
    %v4766 = vunpack.c.h.b16 %v4691
    %v4767 = vunpack.c.l.b16 %v4692
    %v4768 = vunpack.c.h.b16 %v4692
    %v4769 = vunpack.c.l.b16 %v4693
    %v4770 = vunpack.c.h.b16 %v4693
    %v4771 = vunpack.c.l.b16 %v4694
    %v4772 = vunpack.c.h.b16 %v4694
    %v4773 = vunpack.c.l.b16 %v4695
    %v4774 = vunpack.c.h.b16 %v4695
    %v4775 = vunpack.c.l.b16 %v4696
    %v4776 = vunpack.c.h.b16 %v4696
    %v4777 = vunpack.c.l.b16 %v4697
    %v4778 = vunpack.c.h.b16 %v4697
    %v4779 = vunpack.c.l.b16 %v4698
    %v4780 = vunpack.c.h.b16 %v4698
    %v4781 = vunpack.c.l.b16 %v4699
    %v4782 = vunpack.c.h.b16 %v4699
    %v4783 = vunpack.c.l.b16 %v4700
    %v4784 = vunpack.c.h.b16 %v4700
    %v4785 = vunpack.c.l.b16 %v4701
    %v4786 = vunpack.c.h.b16 %v4701
    %v4787 = vunpack.c.l.b16 %v4702
    %v4788 = vunpack.c.h.b16 %v4702
    %v4789 = vunpack.c.l.b16 %v4703
    %v4790 = vunpack.c.h.b16 %v4703
    %v4791 = vunpack.c.l.b16 %v4704
    %v4792 = vunpack.c.h.b16 %v4704
    %v4793 = vunpack.c.l.b16 %v4705
    %v4794 = vunpack.c.h.b16 %v4705
    %v4795 = vunpack.c.l.b16 %v4706
    %v4796 = vunpack.c.h.b16 %v4706
    %v4797 = vunpack.c.l.b16 %v4707
    %v4798 = vunpack.c.h.b16 %v4707
    %v4799 = vunpack.c.l.b16 %v4708
    %v4800 = vunpack.c.h.b16 %v4708
    %v4801 = vunpack.c.l.b16 %v4709
    %v4802 = vunpack.c.h.b16 %v4709
    %v4803 = vunpack.c.l.b16 %v4710
    %v4804 = vunpack.c.h.b16 %v4710
    %v4805 = vunpack.c.l.b16 %v4711
    %v4806 = vunpack.c.h.b16 %v4711
    %v4807 = vunpack.c.l.b16 %v4712
    %v4808 = vunpack.c.h.b16 %v4712
    %v4809 = vunpack.c.l.b16 %v4713
    %v4810 = vunpack.c.h.b16 %v4713
    %v4811 = vunpack.c.l.b16 %v4714
    %v4812 = vunpack.c.h.b16 %v4714
    %v4813 = vunpack.c.l.b16 %v4715
    %v4814 = vunpack.c.h.b16 %v4715
    %v4815 = vunpack.c.l.b16 %v4716
    %v4816 = vunpack.c.h.b16 %v4716
    %v4817 = vunpack.c.l.b16 %v4717
    %v4818 = vunpack.c.h.b16 %v4717
    %v4819 = vpack.c.b16 %v4759, %v4755
    %v4820 = vpack.c.b16 %v4760, %v4756
    %v4821 = vpack.c.b16 %v4761, %v4757
    %v4822 = vpack.c.b16 %v4762, %v4758
    %v4823 = vpack.c.b16 %v4767, %v4763
    %v4824 = vpack.c.b16 %v4768, %v4764
    %v4825 = vpack.c.b16 %v4769, %v4765
    %v4826 = vpack.c.b16 %v4770, %v4766
    %v4827 = vpack.c.b16 %v4775, %v4771
    %v4828 = vpack.c.b16 %v4776, %v4772
    %v4829 = vpack.c.b16 %v4777, %v4773
    %v4830 = vpack.c.b16 %v4778, %v4774
    %v4831 = vpack.c.b16 %v4783, %v4779
    %v4832 = vpack.c.b16 %v4784, %v4780
    %v4833 = vpack.c.b16 %v4785, %v4781
    %v4834 = vpack.c.b16 %v4786, %v4782
    %v4835 = vpack.c.b16 %v4791, %v4787
    %v4836 = vpack.c.b16 %v4792, %v4788
    %v4837 = vpack.c.b16 %v4793, %v4789
    %v4838 = vpack.c.b16 %v4794, %v4790
    %v4839 = vpack.c.b16 %v4799, %v4795
    %v4840 = vpack.c.b16 %v4800, %v4796
    %v4841 = vpack.c.b16 %v4801, %v4797
    %v4842 = vpack.c.b16 %v4802, %v4798
    %v4843 = vpack.c.b16 %v4807, %v4803
    %v4844 = vpack.c.b16 %v4808, %v4804
    %v4845 = vpack.c.b16 %v4809, %v4805
    %v4846 = vpack.c.b16 %v4810, %v4806
    %v4847 = vpack.c.b16 %v4815, %v4811
    %v4848 = vpack.c.b16 %v4816, %v4812
    %v4849 = vpack.c.b16 %v4817, %v4813
    %v4850 = vpack.c.b16 %v4818, %v4814
    %4883 = vmatprep.subr.bf16.mxu0 %v4820
    %4884 = vmatpush1.bf16.msra.mxu0 %v4819
    %4885 = vmatprep.subr.bf16.mxu0 %v4824
    %4886 = vmatpush1.bf16.msra.mxu0 %v4823
    %4887 = vmatprep.subr.bf16.mxu0 %v4828
    %4888 = vmatpush1.bf16.msra.mxu0 %v4827
    %4889 = vmatprep.subr.bf16.mxu0 %v4832
    %4890 = vmatpush1.bf16.msra.mxu0 %v4831
    %4891 = vmatprep.subr.bf16.mxu0 %v4836
    %4892 = vmatpush1.bf16.msra.mxu0 %v4835
    %4893 = vmatprep.subr.bf16.mxu0 %v4840
    %4894 = vmatpush1.bf16.msra.mxu0 %v4839
    %4895 = vmatprep.subr.bf16.mxu0 %v4844
    %4896 = vmatpush1.bf16.msra.mxu0 %v4843
    %4897 = vmatprep.subr.bf16.mxu0 %v4848
    %4898 = vmatpush1.bf16.msra.mxu0 %v4847
    %4899 = vmatprep.subr.bf16.mxu0 0
    %4900 = vmatpush1.bf16.msra.mxu0 0
    %4901 = vmatprep.subr.bf16.mxu0 0
    %4902 = vmatpush1.bf16.msra.mxu0 0
    %4903 = vmatprep.subr.bf16.mxu0 0
    %4904 = vmatpush1.bf16.msra.mxu0 0
    %4905 = vmatprep.subr.bf16.mxu0 0
    %4906 = vmatpush1.bf16.msra.mxu0 0
    %4907 = vmatprep.subr.bf16.mxu0 0
    %4908 = vmatpush1.bf16.msra.mxu0 0
    %4909 = vmatprep.subr.bf16.mxu0 0
    %4910 = vmatpush1.bf16.msra.mxu0 0
    %4911 = vmatprep.subr.bf16.mxu0 0
    %4912 = vmatpush1.bf16.msra.mxu0 0
    %4913 = vmatprep.subr.bf16.mxu0 0
    %4914 = vmatpush1.bf16.msra.mxu0 0
    %4915 = vmatprep.mubr.bf16.mxu0 0
    %4916 = vmatmul.mubr.bf16.gmra.mrb[0].mxu0 %v4722
    %v4917 = vpop.f32.mrb[0].mxu0
    %v4918 = vadd.f32 0.0, %v4917
    %v4919 = vpop.f32.mrb[0].mxu0
    %v4920 = vadd.f32 0.0, %v4919
    %v4921 = vpop.f32.mrb[0].mxu0
    %v4922 = vpop.f32.mrb[0].mxu0
    %4923 = vdwg.mxu0
    %4924 = vmatprep.subr.bf16.mxu0 %v4822
    %4925 = vmatpush1.bf16.msra.mxu0 %v4821
    %4926 = vmatprep.subr.bf16.mxu0 %v4826
    %4927 = vmatpush1.bf16.msra.mxu0 %v4825
    %4928 = vmatprep.subr.bf16.mxu0 %v4830
    %4929 = vmatpush1.bf16.msra.mxu0 %v4829
    %4930 = vmatprep.subr.bf16.mxu0 %v4834
    %4931 = vmatpush1.bf16.msra.mxu0 %v4833
    %4932 = vmatprep.subr.bf16.mxu0 %v4838
    %4933 = vmatpush1.bf16.msra.mxu0 %v4837
    %4934 = vmatprep.subr.bf16.mxu0 %v4842
    %4935 = vmatpush1.bf16.msra.mxu0 %v4841
    %4936 = vmatprep.subr.bf16.mxu0 %v4846
    %4937 = vmatpush1.bf16.msra.mxu0 %v4845
    %4938 = vmatprep.subr.bf16.mxu0 %v4850
    %4939 = vmatpush1.bf16.msra.mxu0 %v4849
    %4940 = vmatprep.subr.bf16.mxu0 0
    %4941 = vmatpush1.bf16.msra.mxu0 0
    %4942 = vmatprep.subr.bf16.mxu0 0
    %4943 = vmatpush1.bf16.msra.mxu0 0
    %4944 = vmatprep.subr.bf16.mxu0 0
    %4945 = vmatpush1.bf16.msra.mxu0 0
    %4946 = vmatprep.subr.bf16.mxu0 0
    %4947 = vmatpush1.bf16.msra.mxu0 0
    %4948 = vmatprep.subr.bf16.mxu0 0
    %4949 = vmatpush1.bf16.msra.mxu0 0
    %4950 = vmatprep.subr.bf16.mxu0 0
    %4951 = vmatpush1.bf16.msra.mxu0 0
    %4952 = vmatprep.subr.bf16.mxu0 0
    %4953 = vmatpush1.bf16.msra.mxu0 0
    %4954 = vmatprep.subr.bf16.mxu0 0
    %4955 = vmatpush1.bf16.msra.mxu0 0
    %4956 = vmatprep.mubr.bf16.mxu0 0
    %4957 = vmatmul.mubr.bf16.gmra.mrb[0].mxu0 %v4722
    %v4958 = vpop.f32.mrb[0].mxu0
    %v4959 = vadd.f32 0.0, %v4958
    %v4960 = vpop.f32.mrb[0].mxu0
    %v4961 = vadd.f32 0.0, %v4960
    %v4962 = vpop.f32.mrb[0].mxu0
    %v4963 = vpop.f32.mrb[0].mxu0
    %4964 = vdwg.mxu0
    %v4965 = vadd.f32 %v4718, %v4918
    %v4966 = vadd.f32 %v4719, %v4920
    %v4967 = vadd.f32 %v4720, %v4959
    %v4968 = vadd.f32 %v4721, %v4961
    %v4969 = vxor.u32 %v4965, 2147483648
    %v4970 = vmul.f32 %v4969, 1.442695
    %v4971 = vpow.pop %v4970
    %v4972 = vadd.f32 %v4971, 1.0
    %v4973 = vrcp.pop %v4972
    %v4974 = vmul.f32 1.0, %v4973
    %v4975 = vxor.u32 %v4966, 2147483648
    %v4976 = vmul.f32 %v4975, 1.442695
    %v4977 = vpow.pop %v4976
    %v4978 = vadd.f32 %v4977, 1.0
    %v4979 = vrcp.pop %v4978
    %v4980 = vmul.f32 1.0, %v4979
    %v4981 = vtanh.pop %v4967
    %v4982 = vxor.u32 %v4968, 2147483648
    %v4983 = vmul.f32 %v4982, 1.442695
    %v4984 = vpow.pop %v4983
    %v4985 = vadd.f32 %v4984, 1.0
    %v4986 = vrcp.pop %v4985
    %v4987 = vmul.f32 1.0, %v4986
    %v4988 = vmul.f32 %v4980, %v4685
    %v4989 = vmul.f32 %v4974, %v4981
    %v4990 = vadd.f32 %v4988, %v4989
    %v4991 = vtanh.pop %v4990
    %v4992 = vmul.f32 %v4987, %v4991
    %v4993 = vsel %vm4673, %v4992, %v4684
    %4994 = vst [vmem:[#allocation2] sm:$0xff] %v4993
    %v4995 = vld [vmem:[#allocation3] sm:$0xff]
    %v4996 = vsel %vm4673, %v4990, %v4995
    %4997 = vst [vmem:[#allocation3] sm:$0xff] %v4996
    %v4998 = vsel %vm4673, %v4992, 0.0
    %s4999 = scalar_lea.vmem %s4, 56
    %5000 = vst [vmem:[%s4999] sm:$0xff] %v4998
    %v5001 = vld [vmem:[%s51] sm:$0xff]
    %v5002 = vld [vmem:[%s51 + $0x8] sm:$0xff]
    %v5003 = vld [vmem:[%s409] sm:$0xff]
    %v5004 = vld [vmem:[%s411] sm:$0xff]
    %v5005 = vld [vmem:[%s413] sm:$0xff]
    %v5006 = vld [vmem:[%s413 + $0x8] sm:$0xff]
    %v5007 = vld [vmem:[%s413 + $0x10] sm:$0xff]
    %v5008 = vld [vmem:[%s413 + $0x18] sm:$0xff]
    %v5009 = vld [vmem:[%s413 + $0x20] sm:$0xff]
    %v5010 = vld [vmem:[%s413 + $0x28] sm:$0xff]
    %v5011 = vld [vmem:[%s413 + $0x30] sm:$0xff]
    %v5012 = vld [vmem:[%s413 + $0x38] sm:$0xff]
    %v5013 = vld [vmem:[%s413 + $0x40] sm:$0xff]
    %v5014 = vld [vmem:[%s413 + $0x48] sm:$0xff]
    %v5015 = vld [vmem:[%s413 + $0x50] sm:$0xff]
    %v5016 = vld [vmem:[%s413 + $0x58] sm:$0xff]
    %v5017 = vld [vmem:[%s413 + $0x60] sm:$0xff]
    %v5018 = vld [vmem:[%s413 + $0x68] sm:$0xff]
    %v5019 = vld [vmem:[%s413 + $0x70] sm:$0xff]
    %v5020 = vld [vmem:[%s413 + $0x78] sm:$0xff]
    %v5021 = vld [vmem:[%s413 + $0x80] sm:$0xff]
    %v5022 = vld [vmem:[%s413 + $0x88] sm:$0xff]
    %v5023 = vld [vmem:[%s413 + $0x90] sm:$0xff]
    %v5024 = vld [vmem:[%s413 + $0x98] sm:$0xff]
    %v5025 = vld [vmem:[%s413 + $0xa0] sm:$0xff]
    %v5026 = vld [vmem:[%s413 + $0xa8] sm:$0xff]
    %v5027 = vld [vmem:[%s413 + $0xb0] sm:$0xff]
    %v5028 = vld [vmem:[%s413 + $0xb8] sm:$0xff]
    %v5029 = vld [vmem:[%s413 + $0xc0] sm:$0xff]
    %v5030 = vld [vmem:[%s413 + $0xc8] sm:$0xff]
    %v5031 = vld [vmem:[%s413 + $0xd0] sm:$0xff]
    %v5032 = vld [vmem:[%s413 + $0xd8] sm:$0xff]
    %v5033 = vld [vmem:[%s413 + $0xe0] sm:$0xff]
    %v5034 = vld [vmem:[%s413 + $0xe8] sm:$0xff]
    %v5035 = vld [vmem:[%s413 + $0xf0] sm:$0xff]
    %v5036 = vld [vmem:[%s413 + $0xf8] sm:$0xff]
    %v5037 = vunpack.c.l.bf16 %v5001
    %v5038 = vunpack.c.h.bf16 %v5001
    %v5039 = vunpack.c.l.bf16 %v5002
    %v5040 = vunpack.c.h.bf16 %v5002
    %v5041 = vpack.c.bf16 %v5003, %v5003
    %v5074 = vunpack.c.l.b16 %v5005
    %v5075 = vunpack.c.h.b16 %v5005
    %v5076 = vunpack.c.l.b16 %v5006
    %v5077 = vunpack.c.h.b16 %v5006
    %v5078 = vunpack.c.l.b16 %v5007
    %v5079 = vunpack.c.h.b16 %v5007
    %v5080 = vunpack.c.l.b16 %v5008
    %v5081 = vunpack.c.h.b16 %v5008
    %v5082 = vunpack.c.l.b16 %v5009
    %v5083 = vunpack.c.h.b16 %v5009
    %v5084 = vunpack.c.l.b16 %v5010
    %v5085 = vunpack.c.h.b16 %v5010
    %v5086 = vunpack.c.l.b16 %v5011
    %v5087 = vunpack.c.h.b16 %v5011
    %v5088 = vunpack.c.l.b16 %v5012
    %v5089 = vunpack.c.h.b16 %v5012
    %v5090 = vunpack.c.l.b16 %v5013
    %v5091 = vunpack.c.h.b16 %v5013
    %v5092 = vunpack.c.l.b16 %v5014
    %v5093 = vunpack.c.h.b16 %v5014
    %v5094 = vunpack.c.l.b16 %v5015
    %v5095 = vunpack.c.h.b16 %v5015
    %v5096 = vunpack.c.l.b16 %v5016
    %v5097 = vunpack.c.h.b16 %v5016
    %v5098 = vunpack.c.l.b16 %v5017
    %v5099 = vunpack.c.h.b16 %v5017
    %v5100 = vunpack.c.l.b16 %v5018
    %v5101 = vunpack.c.h.b16 %v5018
    %v5102 = vunpack.c.l.b16 %v5019
    %v5103 = vunpack.c.h.b16 %v5019
    %v5104 = vunpack.c.l.b16 %v5020
    %v5105 = vunpack.c.h.b16 %v5020
    %v5106 = vunpack.c.l.b16 %v5021
    %v5107 = vunpack.c.h.b16 %v5021
    %v5108 = vunpack.c.l.b16 %v5022
    %v5109 = vunpack.c.h.b16 %v5022
    %v5110 = vunpack.c.l.b16 %v5023
    %v5111 = vunpack.c.h.b16 %v5023
    %v5112 = vunpack.c.l.b16 %v5024
    %v5113 = vunpack.c.h.b16 %v5024
    %v5114 = vunpack.c.l.b16 %v5025
    %v5115 = vunpack.c.h.b16 %v5025
    %v5116 = vunpack.c.l.b16 %v5026
    %v5117 = vunpack.c.h.b16 %v5026
    %v5118 = vunpack.c.l.b16 %v5027
    %v5119 = vunpack.c.h.b16 %v5027
    %v5120 = vunpack.c.l.b16 %v5028
    %v5121 = vunpack.c.h.b16 %v5028
    %v5122 = vunpack.c.l.b16 %v5029
    %v5123 = vunpack.c.h.b16 %v5029
    %v5124 = vunpack.c.l.b16 %v5030
    %v5125 = vunpack.c.h.b16 %v5030
    %v5126 = vunpack.c.l.b16 %v5031
    %v5127 = vunpack.c.h.b16 %v5031
    %v5128 = vunpack.c.l.b16 %v5032
    %v5129 = vunpack.c.h.b16 %v5032
    %v5130 = vunpack.c.l.b16 %v5033
    %v5131 = vunpack.c.h.b16 %v5033
    %v5132 = vunpack.c.l.b16 %v5034
    %v5133 = vunpack.c.h.b16 %v5034
    %v5134 = vunpack.c.l.b16 %v5035
    %v5135 = vunpack.c.h.b16 %v5035
    %v5136 = vunpack.c.l.b16 %v5036
    %v5137 = vunpack.c.h.b16 %v5036
    %v5138 = vpack.c.b16 %v5078, %v5074
    %v5139 = vpack.c.b16 %v5079, %v5075
    %v5140 = vpack.c.b16 %v5080, %v5076
    %v5141 = vpack.c.b16 %v5081, %v5077
    %v5142 = vpack.c.b16 %v5086, %v5082
    %v5143 = vpack.c.b16 %v5087, %v5083
    %v5144 = vpack.c.b16 %v5088, %v5084
    %v5145 = vpack.c.b16 %v5089, %v5085
    %v5146 = vpack.c.b16 %v5094, %v5090
    %v5147 = vpack.c.b16 %v5095, %v5091
    %v5148 = vpack.c.b16 %v5096, %v5092
    %v5149 = vpack.c.b16 %v5097, %v5093
    %v5150 = vpack.c.b16 %v5102, %v5098
    %v5151 = vpack.c.b16 %v5103, %v5099
    %v5152 = vpack.c.b16 %v5104, %v5100
    %v5153 = vpack.c.b16 %v5105, %v5101
    %v5154 = vpack.c.b16 %v5110, %v5106
    %v5155 = vpack.c.b16 %v5111, %v5107
    %v5156 = vpack.c.b16 %v5112, %v5108
    %v5157 = vpack.c.b16 %v5113, %v5109
    %v5158 = vpack.c.b16 %v5118, %v5114
    %v5159 = vpack.c.b16 %v5119, %v5115
    %v5160 = vpack.c.b16 %v5120, %v5116
    %v5161 = vpack.c.b16 %v5121, %v5117
    %v5162 = vpack.c.b16 %v5126, %v5122
    %v5163 = vpack.c.b16 %v5127, %v5123
    %v5164 = vpack.c.b16 %v5128, %v5124
    %v5165 = vpack.c.b16 %v5129, %v5125
    %v5166 = vpack.c.b16 %v5134, %v5130
    %v5167 = vpack.c.b16 %v5135, %v5131
    %v5168 = vpack.c.b16 %v5136, %v5132
    %v5169 = vpack.c.b16 %v5137, %v5133
    %5202 = vmatprep.subr.bf16.mxu0 %v5139
    %5203 = vmatpush1.bf16.msra.mxu0 %v5138
    %5204 = vmatprep.subr.bf16.mxu0 %v5143
    %5205 = vmatpush1.bf16.msra.mxu0 %v5142
    %5206 = vmatprep.subr.bf16.mxu0 %v5147
    %5207 = vmatpush1.bf16.msra.mxu0 %v5146
    %5208 = vmatprep.subr.bf16.mxu0 %v5151
    %5209 = vmatpush1.bf16.msra.mxu0 %v5150
    %5210 = vmatprep.subr.bf16.mxu0 %v5155
    %5211 = vmatpush1.bf16.msra.mxu0 %v5154
    %5212 = vmatprep.subr.bf16.mxu0 %v5159
    %5213 = vmatpush1.bf16.msra.mxu0 %v5158
    %5214 = vmatprep.subr.bf16.mxu0 %v5163
    %5215 = vmatpush1.bf16.msra.mxu0 %v5162
    %5216 = vmatprep.subr.bf16.mxu0 %v5167
    %5217 = vmatpush1.bf16.msra.mxu0 %v5166
    %5218 = vmatprep.subr.bf16.mxu0 0
    %5219 = vmatpush1.bf16.msra.mxu0 0
    %5220 = vmatprep.subr.bf16.mxu0 0
    %5221 = vmatpush1.bf16.msra.mxu0 0
    %5222 = vmatprep.subr.bf16.mxu0 0
    %5223 = vmatpush1.bf16.msra.mxu0 0
    %5224 = vmatprep.subr.bf16.mxu0 0
    %5225 = vmatpush1.bf16.msra.mxu0 0
    %5226 = vmatprep.subr.bf16.mxu0 0
    %5227 = vmatpush1.bf16.msra.mxu0 0
    %5228 = vmatprep.subr.bf16.mxu0 0
    %5229 = vmatpush1.bf16.msra.mxu0 0
    %5230 = vmatprep.subr.bf16.mxu0 0
    %5231 = vmatpush1.bf16.msra.mxu0 0
    %5232 = vmatprep.subr.bf16.mxu0 0
    %5233 = vmatpush1.bf16.msra.mxu0 0
    %5234 = vmatprep.mubr.bf16.mxu0 0
    %5235 = vmatmul.mubr.bf16.gmra.mrb[0].mxu0 %v5041
    %v5236 = vpop.f32.mrb[0].mxu0
    %v5237 = vadd.f32 0.0, %v5236
    %v5238 = vpop.f32.mrb[0].mxu0
    %v5239 = vadd.f32 0.0, %v5238
    %v5240 = vpop.f32.mrb[0].mxu0
    %v5241 = vpop.f32.mrb[0].mxu0
    %5242 = vdwg.mxu0
    %5243 = vmatprep.subr.bf16.mxu0 %v5141
    %5244 = vmatpush1.bf16.msra.mxu0 %v5140
    %5245 = vmatprep.subr.bf16.mxu0 %v5145
    %5246 = vmatpush1.bf16.msra.mxu0 %v5144
    %5247 = vmatprep.subr.bf16.mxu0 %v5149
    %5248 = vmatpush1.bf16.msra.mxu0 %v5148
    %5249 = vmatprep.subr.bf16.mxu0 %v5153
    %5250 = vmatpush1.bf16.msra.mxu0 %v5152
    %5251 = vmatprep.subr.bf16.mxu0 %v5157
    %5252 = vmatpush1.bf16.msra.mxu0 %v5156
    %5253 = vmatprep.subr.bf16.mxu0 %v5161
    %5254 = vmatpush1.bf16.msra.mxu0 %v5160
    %5255 = vmatprep.subr.bf16.mxu0 %v5165
    %5256 = vmatpush1.bf16.msra.mxu0 %v5164
    %5257 = vmatprep.subr.bf16.mxu0 %v5169
    %5258 = vmatpush1.bf16.msra.mxu0 %v5168
    %5259 = vmatprep.subr.bf16.mxu0 0
    %5260 = vmatpush1.bf16.msra.mxu0 0
    %5261 = vmatprep.subr.bf16.mxu0 0
    %5262 = vmatpush1.bf16.msra.mxu0 0
    %5263 = vmatprep.subr.bf16.mxu0 0
    %5264 = vmatpush1.bf16.msra.mxu0 0
    %5265 = vmatprep.subr.bf16.mxu0 0
    %5266 = vmatpush1.bf16.msra.mxu0 0
    %5267 = vmatprep.subr.bf16.mxu0 0
    %5268 = vmatpush1.bf16.msra.mxu0 0
    %5269 = vmatprep.subr.bf16.mxu0 0
    %5270 = vmatpush1.bf16.msra.mxu0 0
    %5271 = vmatprep.subr.bf16.mxu0 0
    %5272 = vmatpush1.bf16.msra.mxu0 0
    %5273 = vmatprep.subr.bf16.mxu0 0
    %5274 = vmatpush1.bf16.msra.mxu0 0
    %5275 = vmatprep.mubr.bf16.mxu0 0
    %5276 = vmatmul.mubr.bf16.gmra.mrb[0].mxu0 %v5041
    %v5277 = vpop.f32.mrb[0].mxu0
    %v5278 = vadd.f32 0.0, %v5277
    %v5279 = vpop.f32.mrb[0].mxu0
    %v5280 = vadd.f32 0.0, %v5279
    %v5281 = vpop.f32.mrb[0].mxu0
    %v5282 = vpop.f32.mrb[0].mxu0
    %5283 = vdwg.mxu0
    %v5284 = vadd.f32 %v5037, %v5237
    %v5285 = vadd.f32 %v5038, %v5239
    %v5286 = vadd.f32 %v5039, %v5278
    %v5287 = vadd.f32 %v5040, %v5280
    %v5288 = vxor.u32 %v5284, 2147483648
    %v5289 = vmul.f32 %v5288, 1.442695
    %v5290 = vpow.pop %v5289
    %v5291 = vadd.f32 %v5290, 1.0
    %v5292 = vrcp.pop %v5291
    %v5293 = vmul.f32 1.0, %v5292
    %v5294 = vxor.u32 %v5285, 2147483648
    %v5295 = vmul.f32 %v5294, 1.442695
    %v5296 = vpow.pop %v5295
    %v5297 = vadd.f32 %v5296, 1.0
    %v5298 = vrcp.pop %v5297
    %v5299 = vmul.f32 1.0, %v5298
    %v5300 = vtanh.pop %v5286
    %v5301 = vxor.u32 %v5287, 2147483648
    %v5302 = vmul.f32 %v5301, 1.442695
    %v5303 = vpow.pop %v5302
    %v5304 = vadd.f32 %v5303, 1.0
    %v5305 = vrcp.pop %v5304
    %v5306 = vmul.f32 1.0, %v5305
    %v5307 = vmul.f32 %v5299, %v5004
    %v5308 = vmul.f32 %v5293, %v5300
    %v5309 = vadd.f32 %v5307, %v5308
    %v5310 = vtanh.pop %v5309
    %v5311 = vmul.f32 %v5306, %v5310
    %v5312 = vsel %vm4680, %v5311, %v5003
    %5313 = vst [vmem:[%s409] sm:$0xff] %v5312
    %v5314 = vld [vmem:[%s411] sm:$0xff]
    %v5315 = vsel %vm4680, %v5309, %v5314
    %5316 = vst [vmem:[%s411] sm:$0xff] %v5315
    %v5317 = vsel %vm4680, %v5311, 0.0
    %5318 = vst [vmem:[%s59] sm:$0xff] %v5317
    // Predicated region
    $region22: #{encoder_rnn_forward.3} parent=1 // pred_check
      %p5319 = pneg %p63
    $region23: #{encoder_rnn_forward.3} parent=1 // pred_check_branch
      %5321 = sbr.rel (%p5319) target = $region25
    $region24: #{encoder_rnn_forward.3} parent=1 // pred_region
      %v5322 = vld [vmem:[#allocation2] sm:$0xff]
      %v5323 = vld [vmem:[#allocation2 + $0x8] sm:$0xff]
      %5324 = vst [vmem:[#allocation4] sm:$0xff] %v5322
      %5325 = vst [vmem:[#allocation4 + $0x8] sm:$0xff] %v5323
      %v5326 = vld [vmem:[#allocation3] sm:$0xff]
      %v5327 = vld [vmem:[#allocation3 + $0x8] sm:$0xff]
      %5328 = vst [vmem:[#allocation6] sm:$0xff] %v5326
      %5329 = vst [vmem:[#allocation6 + $0x8] sm:$0xff] %v5327
    $region25: #{encoder_rnn_forward.3} parent=1 // pred_fallthru
      _
    %s5330 = ssub.s32 0, 0
    %s5331 = smul.u32 8, %s5330
    %p5332 = scmp.lt.s32.totalorder %s5331, 7
    %s5333 = scalar_select %p5332, %s5331, 7
    %s5334 = smul.addr %s5333, 8
    %s5335 = scalar_lea.vmem %s5, %s5334
    // Predicated region
    $region26: #{encoder_rnn_forward.3} parent=1 // pred_check
      _
    $region27: #{encoder_rnn_forward.3} parent=1 // pred_check_branch
      %5337 = sbr.rel (0) target = $region29
    $region28: #{encoder_rnn_forward.3} parent=1 // pred_region
      _
    $region29: #{encoder_rnn_forward.3} parent=1 // pred_fallthru
      _
    // Predicated region
    $region30: #{encoder_rnn_forward.3} parent=1 // pred_check
      _
    $region31: #{encoder_rnn_forward.3} parent=1 // pred_check_branch
      %5339 = sbr.rel (0) target = $region33
    $region32: #{encoder_rnn_forward.3} parent=1 // pred_region
      %s5340 = ssub.s32 0, 0
      %s5341 = smul.u32 8, %s5340
    $region33: #{encoder_rnn_forward.3} parent=1 // pred_fallthru
      _
    // Predicated region
    $region34: #{encoder_rnn_forward.3} parent=1 // pred_check
      _
    $region35: #{encoder_rnn_forward.3} parent=1 // pred_check_branch
      %5343 = sbr.rel (0) target = $region37
    $region36: #{encoder_rnn_forward.3} parent=1 // pred_region
      %s5345 = ssub.s32 256, 256
      %5346 = vsyncadd [#allocation5], %s5345
      %s5347 = sshll.u32 [#allocation4], 4
      %s5348 = int_to_ptr.vmem [resolvable:$true] %s5347
      %5353 = dma.vmem_to_hbm [thread:$0]  %s5348, 256, %s6, [#allocation5], 128, 128, 8
    $region37: #{encoder_rnn_forward.3} parent=1 // pred_fallthru
      _
    // Predicated region
    $region38: #{encoder_rnn_forward.3} parent=1 // pred_check
      _
    $region39: #{encoder_rnn_forward.3} parent=1 // pred_check_branch
      %5355 = sbr.rel (0) target = $region41
    $region40: #{encoder_rnn_forward.3} parent=1 // pred_region
      %s5357 = ssub.s32 256, 256
      %5358 = vsyncadd [#allocation7], %s5357
      %s5359 = sshll.u32 [#allocation6], 4
      %s5360 = int_to_ptr.vmem [resolvable:$true] %s5359
      %5365 = dma.vmem_to_hbm [thread:$0]  %s5360, 256, %s7, [#allocation7], 128, 128, 8
    $region41: #{encoder_rnn_forward.3} parent=1 // pred_fallthru
      _
    // Predicated region
    $region42: #{encoder_rnn_forward.3} parent=1 // pred_check
      _
    $region43: #{encoder_rnn_forward.3} parent=1 // pred_check_branch
      %5367 = sbr.rel (0) target = $region45
    $region44: #{encoder_rnn_forward.3} parent=1 // pred_region
      _
    $region45: #{encoder_rnn_forward.3} parent=1 // pred_fallthru
      _
    // Predicated region
    $region46: #{encoder_rnn_forward.3} parent=1 // pred_check
      _
    $region47: #{encoder_rnn_forward.3} parent=1 // pred_check_branch
      %5369 = sbr.rel (0) target = $region49
    $region48: #{encoder_rnn_forward.3} parent=1 // pred_region
      %s5370 = ssub.s32 0, 0
      %s5371 = smul.u32 8, %s5370
      %p5372 = scmp.lt.s32.totalorder %s5371, 7
      %s5373 = scalar_select %p5372, %s5371, 7
      %s5374 = smul.addr %s5373, 8
      %s5375 = scalar_lea.vmem %s5, %s5374
    $region49: #{encoder_rnn_forward.3} parent=1 // pred_fallthru
      _
    // Predicated region
    $region50: #{encoder_rnn_forward.3} parent=1 // pred_check
      _
    $region51: #{encoder_rnn_forward.3} parent=1 // pred_check_branch
      %5377 = sbr.rel (0) target = $region53
    $region52: #{encoder_rnn_forward.3} parent=1 // pred_region
      %5378 = dma.done [#allocation5], 256
    $region53: #{encoder_rnn_forward.3} parent=1 // pred_fallthru
      _
    // Predicated region
    $region54: #{encoder_rnn_forward.3} parent=1 // pred_check
      _
    $region55: #{encoder_rnn_forward.3} parent=1 // pred_check_branch
      %5380 = sbr.rel (0) target = $region57
    $region56: #{encoder_rnn_forward.3} parent=1 // pred_region
      %5381 = dma.done [#allocation7], 256
    $region57: #{encoder_rnn_forward.3} parent=1 // pred_fallthru
      _
    %5382 = vsyncpa [#allocation5], 1
    %5383 = vsyncpa [#allocation7], 1

</llo_original>
